<compile_context>
chip_gen: v5e
topology: v5e:2x2
jax: 0.10.0
libtpu: 0.0.40
codegen_flags: <defaults>
</compile_context>

<pallas_src>
import functools

import jax
import jax.numpy as jnp
from jax import lax
from jax.experimental import pallas as pl
from jax.experimental.pallas import tpu as pltpu


def _silu(x):
    return x * jax.nn.sigmoid(x)


def _round_up(x, m):
    return ((x + m - 1) // m) * m


# -----------------------------------------------------------------------------
# Fused ASFF kernel: one batch image per grid step.
# -----------------------------------------------------------------------------
def _asff_kernel(x0_ref, x1_ref, w0_ref, b0_ref, w1_ref, b1_ref,
                 wl0_ref, wl1_ref, bl_ref, wexp_ref, bexp_ref,
                 o_ref, xpad_ref, *, H, W, WP, C):
    # ---- stage 1: level weights + weighted fusion -----------------------------
    x0 = x0_ref[0].reshape(H * W, C).astype(jnp.float32)       # (H*W, C)
    x1 = x1_ref[0].reshape(H * W, C).astype(jnp.float32)

    a0 = _silu(jnp.dot(x0, w0_ref[...], preferred_element_type=jnp.float32)
               + b0_ref[...])                                   # (H*W, cc)
    a1 = _silu(jnp.dot(x1, w1_ref[...], preferred_element_type=jnp.float32)
               + b1_ref[...])

    # weight_levels(concat(a0, a1)) == a0 @ wl[:cc] + a1 @ wl[cc:]  (no concat)
    z = _silu(jnp.dot(a0, wl0_ref[...], preferred_element_type=jnp.float32)
              + jnp.dot(a1, wl1_ref[...], preferred_element_type=jnp.float32)
              + bl_ref[...])                                    # (H*W, 2)

    # 2-class softmax == sigmoid of the logit difference
    s0 = jax.nn.sigmoid(z[:, 0:1] - z[:, 1:2])
    fused = x0 * s0 + x1 * (1.0 - s0)                           # (H*W, C)

    # ---- stage 2: 3x3 "expand" conv + BN + SiLU, all in VMEM ------------------
    # Zero-padded image lives only in a bf16 VMEM scratch (never in HBM).
    # Layout: rows [1, H+1) and cols [1, W+1) hold data; everything else is 0
    # (cols >= W+2 are alignment junk, also zero).
    xpad_ref[...] = jnp.zeros_like(xpad_ref)
    xpad_ref[pl.ds(1, H), pl.ds(1, W), :] = (
        fused.reshape(H, W, C).astype(xpad_ref.dtype))

    out_acc = None
    for kx in range(3):
        acc = None
        for ky in range(3):
            # Full-width row slab: leading-dim slice + reshape (view when WP%8==0).
            slab = xpad_ref[pl.ds(ky, H), :, :].reshape(H * WP, C)   # bf16
            y = jnp.dot(slab, wexp_ref[ky, kx],
                        preferred_element_type=jnp.float32)          # (H*WP, C)
            acc = y if acc is None else acc + y
        # Resolve the kx shift with one output-sized slice per kx.
        part = acc.reshape(H, WP, C)[:, kx:kx + W, :]                 # (H, W, C)
        out_acc = part if out_acc is None else out_acc + part

    o_ref[0] = _silu(out_acc + bexp_ref[...]).astype(o_ref.dtype)


def asff_fused(x0_nhwc, x1_nhwc, params, *,
               vmem_limit_bytes=32 * 1024 * 1024):
    """Runs the full ASFF forward on NHWC inputs via one fused Pallas kernel."""
    B, H, W, C = x0_nhwc.shape
    cc = params["w0"].shape[1]
    WP = _round_up(W + 2, 8)                 # padded width, sublane aligned

    wl0 = params["wl"][:cc]                  # split weight_levels -> no concat
    wl1 = params["wl"][cc:]
    w_exp = params["w_exp"].astype(jnp.bfloat16)   # bf16 MXU operands

    kernel = functools.partial(_asff_kernel, H=H, W=W, WP=WP, C=C)

    img_spec = pl.BlockSpec((1, H, W, C), lambda b: (b, 0, 0, 0))

    def full(shape):
        return pl.BlockSpec(shape, lambda b, _s=shape: (0,) * len(_s))

    # TODO(synk): for production shapes (C=512, H=W>=64) add an H-row-tiled grid
    # with a 1-row halo so per-step VMEM stays within v7x's 64 MiB and the
    # pipeline has depth; at the small demo shapes one image per step suffices.
    return pl.pallas_call(
        kernel,
        out_shape=jax.ShapeDtypeStruct((B, H, W, C), jnp.float32),
        grid_spec=pltpu.PrefetchScalarGridSpec(
            num_scalar_prefetch=0,
            grid=(B,),
            in_specs=[
                img_spec,                       # x0
                img_spec,                       # x1
                full((C, cc)),                  # w0
                full((1, cc)),                  # b0
                full((C, cc)),                  # w1
                full((1, cc)),                  # b1
                full((cc, 2)),                  # wl0
                full((cc, 2)),                  # wl1
                full((1, 2)),                   # bl
                full((3, 3, C, C)),             # w_exp (bf16)
                full((1, C)),                   # b_exp
            ],
            out_specs=pl.BlockSpec((1, H, W, C), lambda b: (b, 0, 0, 0)),
            scratch_shapes=[pltpu.VMEM((H + 2, WP, C), jnp.bfloat16)],
        ),
        compiler_params=pltpu.CompilerParams(
            dimension_semantics=("parallel",),
            vmem_limit_bytes=vmem_limit_bytes),
    )(x0_nhwc, x1_nhwc, params["w0"], params["b0"], params["w1"], params["b1"],
      wl0, wl1, params["bl"], w_exp, params["b_exp"])


# -----------------------------------------------------------------------------
# Parameters (deterministic; BN folded in eval mode with default init).
# -----------------------------------------------------------------------------
def make_params(key, in_dim, compress_c=16, bn_eps=1e-5):
    k0, k1, k2, k3 = jax.random.split(key, 4)
    bn_scale = 1.0 / jnp.sqrt(1.0 + bn_eps)   # gamma / sqrt(var + eps)
    bn_bias = 0.0                             # beta - mean * scale

    # 1x1 convs stored as [Cin, Cout]  (PyTorch weight is [Cout, Cin, 1, 1]).
    w0 = jax.random.normal(k0, (in_dim, compress_c), jnp.float32) * 0.1 * bn_scale
    w1 = jax.random.normal(k1, (in_dim, compress_c), jnp.float32) * 0.1 * bn_scale
    wl = jax.random.normal(k2, (2 * compress_c, 2), jnp.float32) * 0.1 * bn_scale
    b0 = jnp.full((1, compress_c), bn_bias, jnp.float32)
    b1 = jnp.full((1, compress_c), bn_bias, jnp.float32)
    bl = jnp.full((1, 2), bn_bias, jnp.float32)

    # 3x3 expand conv stored as [kh, kw, Cin, Cout].
    w_exp = jax.random.normal(k3, (3, 3, in_dim, in_dim), jnp.float32) * 0.05 * bn_scale
    b_exp = jnp.full((1, in_dim), bn_bias, jnp.float32)
    return dict(w0=w0, b0=b0, w1=w1, b1=b1, wl=wl, bl=bl,
                w_exp=w_exp, b_exp=b_exp)


# -----------------------------------------------------------------------------
# Full forward (NCHW interface like the PyTorch module).
# -----------------------------------------------------------------------------
@jax.jit
def asff_forward(x0_nchw, x1_nchw, params):
    # TODO(synk): if the surrounding model supplies/consumes NHWC, drop these
    # transposes (each is a full HBM round trip outside the kernel).
    x0 = jnp.transpose(x0_nchw, (0, 2, 3, 1))
    x1 = jnp.transpose(x1_nchw, (0, 2, 3, 1))
    out = asff_fused(x0, x1, params)
    return jnp.transpose(out, (0, 3, 1, 2))


# -----------------------------------------------------------------------------
# Pure-JAX reference (full f32) for the correctness check.
# -----------------------------------------------------------------------------
def asff_reference(x0_nchw, x1_nchw, p):
    x0 = jnp.transpose(x0_nchw, (0, 2, 3, 1))
    x1 = jnp.transpose(x1_nchw, (0, 2, 3, 1))
    a0 = _silu(jnp.einsum("bhwc,cd->bhwd", x0, p["w0"]) + p["b0"][0])
    a1 = _silu(jnp.einsum("bhwc,cd->bhwd", x1, p["w1"]) + p["b1"][0])
    cat = jnp.concatenate([a0, a1], axis=-1)
    z = _silu(jnp.einsum("bhwc,cd->bhwd", cat, p["wl"]) + p["bl"][0])
    s = jax.nn.softmax(z, axis=-1)
    fused = x0 * s[..., 0:1] + x1 * s[..., 1:2]
    out = lax.conv_general_dilated(
        fused, p["w_exp"], window_strides=(1, 1), padding="SAME",
        dimension_numbers=("NHWC", "HWIO", "NHWC"))
    out = _silu(out + p["b_exp"][0])
    return jnp.transpose(out, (0, 3, 1, 2))


if __name__ == "__main__":
    B, C, H, W = 2, 32, 16, 16   # small stand-in for in_dim=512
    key = jax.random.PRNGKey(0)
    kx0, kx1, kp = jax.random.split(key, 3)
    x0 = jax.random.normal(kx0, (B, C, H, W), jnp.float32)
    x1 = jax.random.normal(kx1, (B, C, H, W), jnp.float32)
    params = make_params(kp, C)

    out = asff_forward(x0, x1, params)
    jax.block_until_ready(out)

    ref = asff_reference(x0, x1, params)
    assert out.shape == (B, C, H, W)
    # Expand conv runs with bf16 operands (f32 accumulation), so the tolerance
    # vs. the full-f32 reference is loosened accordingly.
    assert jnp.allclose(out, ref, atol=2e-2, rtol=2e-2), "mismatch vs reference"

    print("KERNEL_OK")
</pallas_src>

<mosaic_0001>
module attributes {stable_mosaic.version = 11 : i64} {
  func.func @_asff_kernel(%arg0: i32, %arg1: memref<1x16x16x32xf32, #tpu.memory_space<vmem>>, %arg2: memref<1x16x16x32xf32, #tpu.memory_space<vmem>>, %arg3: memref<32x16xf32, #tpu.memory_space<vmem>>, %arg4: memref<1x16xf32, #tpu.memory_space<vmem>>, %arg5: memref<32x16xf32, #tpu.memory_space<vmem>>, %arg6: memref<1x16xf32, #tpu.memory_space<vmem>>, %arg7: memref<16x2xf32, #tpu.memory_space<vmem>>, %arg8: memref<16x2xf32, #tpu.memory_space<vmem>>, %arg9: memref<1x2xf32, #tpu.memory_space<vmem>>, %arg10: memref<3x3x32x32xbf16, #tpu.memory_space<vmem>>, %arg11: memref<1x32xf32, #tpu.memory_space<vmem>>, %arg12: memref<1x16x16x32xf32, #tpu.memory_space<vmem>>, %arg13: memref<18x24x32xbf16, #tpu.memory_space<vmem>>) attributes {dimension_semantics = [#tpu.dimension_semantics<parallel>], iteration_bounds = array<i64: 2>, scalar_prefetch = 0 : i64, scratch_operands = 1 : i64, tpu.core_type = #tpu.core_type<tc>, window_params = [{transform_indices = @transform_0, window_bounds = array<i64: 1, 16, 16, 32>}, {transform_indices = @transform_1, window_bounds = array<i64: 1, 16, 16, 32>}, {pipeline_mode = #tpu.pipeline_mode<synchronous>, transform_indices = @transform_2, window_bounds = array<i64: 32, 16>}, {pipeline_mode = #tpu.pipeline_mode<synchronous>, transform_indices = @transform_3, window_bounds = array<i64: 1, 16>}, {pipeline_mode = #tpu.pipeline_mode<synchronous>, transform_indices = @transform_4, window_bounds = array<i64: 32, 16>}, {pipeline_mode = #tpu.pipeline_mode<synchronous>, transform_indices = @transform_5, window_bounds = array<i64: 1, 16>}, {pipeline_mode = #tpu.pipeline_mode<synchronous>, transform_indices = @transform_6, window_bounds = array<i64: 16, 2>}, {pipeline_mode = #tpu.pipeline_mode<synchronous>, transform_indices = @transform_7, window_bounds = array<i64: 16, 2>}, {pipeline_mode = #tpu.pipeline_mode<synchronous>, transform_indices = @transform_8, window_bounds = array<i64: 1, 2>}, {pipeline_mode = #tpu.pipeline_mode<synchronous>, transform_indices = @transform_9, window_bounds = array<i64: 3, 3, 32, 32>}, {pipeline_mode = #tpu.pipeline_mode<synchronous>, transform_indices = @transform_10, window_bounds = array<i64: 1, 32>}, {transform_indices = @transform_11, window_bounds = array<i64: 1, 16, 16, 32>}]} {
    %c0 = arith.constant 0 : index
    %c0_0 = arith.constant 0 : index
    %c0_1 = arith.constant 0 : index
    %c0_2 = arith.constant 0 : index
    %0 = vector.load %arg1[%c0, %c0_0, %c0_1, %c0_2] : memref<1x16x16x32xf32, #tpu.memory_space<vmem>>, vector<1x16x16x32xf32>
    %1 = vector.shape_cast %0 : vector<1x16x16x32xf32> to vector<16x16x32xf32>
    %2 = vector.shape_cast %1 : vector<16x16x32xf32> to vector<256x32xf32>
    %c0_3 = arith.constant 0 : index
    %c0_4 = arith.constant 0 : index
    %c0_5 = arith.constant 0 : index
    %c0_6 = arith.constant 0 : index
    %3 = vector.load %arg2[%c0_3, %c0_4, %c0_5, %c0_6] : memref<1x16x16x32xf32, #tpu.memory_space<vmem>>, vector<1x16x16x32xf32>
    %4 = vector.shape_cast %3 : vector<1x16x16x32xf32> to vector<16x16x32xf32>
    %5 = vector.shape_cast %4 : vector<16x16x32xf32> to vector<256x32xf32>
    %c0_7 = arith.constant 0 : index
    %c0_8 = arith.constant 0 : index
    %6 = vector.load %arg3[%c0_7, %c0_8] : memref<32x16xf32, #tpu.memory_space<vmem>>, vector<32x16xf32>
    %cst = arith.constant dense<0.000000e+00> : vector<256x16xf32>
    %7 = tpu.matmul %2, %6, %cst {dimension_numbers = #tpu.dot_dimension_numbers<[1], [0], [0], [1], [0, 0, 1, 1], [], []>} : vector<256x32xf32>, vector<32x16xf32>, vector<256x16xf32> -> vector<256x16xf32>
    %c0_9 = arith.constant 0 : index
    %c0_10 = arith.constant 0 : index
    %8 = vector.load %arg4[%c0_9, %c0_10] : memref<1x16xf32, #tpu.memory_space<vmem>>, vector<1x16xf32>
    %9 = vector.broadcast %8 : vector<1x16xf32> to vector<256x16xf32>
    %10 = arith.addf %7, %9 : vector<256x16xf32>
    %11 = arith.negf %10 : vector<256x16xf32>
    %12 = math.exp %11 : vector<256x16xf32>
    %cst_11 = arith.constant 1.000000e+00 : f32
    %13 = vector.broadcast %cst_11 : f32 to vector<256x16xf32>
    %14 = arith.addf %13, %12 : vector<256x16xf32>
    %15 = arith.divf %13, %14 : vector<256x16xf32>
    %16 = arith.mulf %10, %15 : vector<256x16xf32>
    %c0_12 = arith.constant 0 : index
    %c0_13 = arith.constant 0 : index
    %17 = vector.load %arg5[%c0_12, %c0_13] : memref<32x16xf32, #tpu.memory_space<vmem>>, vector<32x16xf32>
    %cst_14 = arith.constant dense<0.000000e+00> : vector<256x16xf32>
    %18 = tpu.matmul %5, %17, %cst_14 {dimension_numbers = #tpu.dot_dimension_numbers<[1], [0], [0], [1], [0, 0, 1, 1], [], []>} : vector<256x32xf32>, vector<32x16xf32>, vector<256x16xf32> -> vector<256x16xf32>
    %c0_15 = arith.constant 0 : index
    %c0_16 = arith.constant 0 : index
    %19 = vector.load %arg6[%c0_15, %c0_16] : memref<1x16xf32, #tpu.memory_space<vmem>>, vector<1x16xf32>
    %20 = vector.broadcast %19 : vector<1x16xf32> to vector<256x16xf32>
    %21 = arith.addf %18, %20 : vector<256x16xf32>
    %22 = arith.negf %21 : vector<256x16xf32>
    %23 = math.exp %22 : vector<256x16xf32>
    %cst_17 = arith.constant 1.000000e+00 : f32
    %24 = vector.broadcast %cst_17 : f32 to vector<256x16xf32>
    %25 = arith.addf %24, %23 : vector<256x16xf32>
    %26 = arith.divf %24, %25 : vector<256x16xf32>
    %27 = arith.mulf %21, %26 : vector<256x16xf32>
    %c0_18 = arith.constant 0 : index
    %c0_19 = arith.constant 0 : index
    %28 = vector.load %arg7[%c0_18, %c0_19] : memref<16x2xf32, #tpu.memory_space<vmem>>, vector<16x2xf32>
    %cst_20 = arith.constant dense<0.000000e+00> : vector<256x2xf32>
    %29 = tpu.matmul %16, %28, %cst_20 {dimension_numbers = #tpu.dot_dimension_numbers<[1], [0], [0], [1], [0, 0, 1, 1], [], []>} : vector<256x16xf32>, vector<16x2xf32>, vector<256x2xf32> -> vector<256x2xf32>
    %c0_21 = arith.constant 0 : index
    %c0_22 = arith.constant 0 : index
    %30 = vector.load %arg8[%c0_21, %c0_22] : memref<16x2xf32, #tpu.memory_space<vmem>>, vector<16x2xf32>
    %cst_23 = arith.constant dense<0.000000e+00> : vector<256x2xf32>
    %31 = tpu.matmul %27, %30, %cst_23 {dimension_numbers = #tpu.dot_dimension_numbers<[1], [0], [0], [1], [0, 0, 1, 1], [], []>} : vector<256x16xf32>, vector<16x2xf32>, vector<256x2xf32> -> vector<256x2xf32>
    %32 = arith.addf %29, %31 : vector<256x2xf32>
    %c0_24 = arith.constant 0 : index
    %c0_25 = arith.constant 0 : index
    %33 = vector.load %arg9[%c0_24, %c0_25] : memref<1x2xf32, #tpu.memory_space<vmem>>, vector<1x2xf32>
    %34 = vector.broadcast %33 : vector<1x2xf32> to vector<256x2xf32>
    %35 = arith.addf %32, %34 : vector<256x2xf32>
    %36 = arith.negf %35 : vector<256x2xf32>
    %37 = math.exp %36 : vector<256x2xf32>
    %cst_26 = arith.constant 1.000000e+00 : f32
    %38 = vector.broadcast %cst_26 : f32 to vector<256x2xf32>
    %39 = arith.addf %38, %37 : vector<256x2xf32>
    %40 = arith.divf %38, %39 : vector<256x2xf32>
    %41 = arith.mulf %35, %40 : vector<256x2xf32>
    %42 = vector.extract_strided_slice %41 {offsets = [0, 0], sizes = [256, 1], strides = [1, 1]} : vector<256x2xf32> to vector<256x1xf32>
    %43 = vector.extract_strided_slice %41 {offsets = [0, 1], sizes = [256, 1], strides = [1, 1]} : vector<256x2xf32> to vector<256x1xf32>
    %44 = arith.subf %42, %43 : vector<256x1xf32>
    %45 = arith.negf %44 : vector<256x1xf32>
    %46 = math.exp %45 : vector<256x1xf32>
    %cst_27 = arith.constant 1.000000e+00 : f32
    %47 = vector.broadcast %cst_27 : f32 to vector<256x1xf32>
    %48 = arith.addf %47, %46 : vector<256x1xf32>
    %49 = arith.divf %47, %48 : vector<256x1xf32>
    %50 = vector.broadcast %49 : vector<256x1xf32> to vector<256x32xf32>
    %51 = arith.mulf %2, %50 : vector<256x32xf32>
    %cst_28 = arith.constant 1.000000e+00 : f32
    %52 = vector.broadcast %cst_28 : f32 to vector<256x1xf32>
    %53 = arith.subf %52, %49 : vector<256x1xf32>
    %54 = vector.broadcast %53 : vector<256x1xf32> to vector<256x32xf32>
    %55 = arith.mulf %5, %54 : vector<256x32xf32>
    %56 = arith.addf %51, %55 : vector<256x32xf32>
    %cst_29 = arith.constant 0.000000e+00 : bf16
    %57 = vector.broadcast %cst_29 : bf16 to vector<18x24x32xbf16>
    %c0_30 = arith.constant 0 : index
    %c0_31 = arith.constant 0 : index
    %c0_32 = arith.constant 0 : index
    %58 = vector.load %arg13[%c0_30, %c0_31, %c0_32] : memref<18x24x32xbf16, #tpu.memory_space<vmem>>, vector<18x24x32xbf16>
    tpu.vector_store %arg13[%c0_30, %c0_31, %c0_32], %57 {strides = array<i32>} : memref<18x24x32xbf16, #tpu.memory_space<vmem>>, vector<18x24x32xbf16>,
    %59 = vector.shape_cast %56 : vector<256x32xf32> to vector<16x16x32xf32>
    %60 = arith.truncf %59 : vector<16x16x32xf32> to vector<16x16x32xbf16>
    %c1 = arith.constant 1 : index
    %c1_33 = arith.constant 1 : index
    %c0_34 = arith.constant 0 : index
    %61 = vector.load %arg13[%c1, %c1_33, %c0_34] : memref<18x24x32xbf16, #tpu.memory_space<vmem>>, vector<16x16x32xbf16>
    tpu.vector_store %arg13[%c1, %c1_33, %c0_34], %60 {strides = array<i32>} : memref<18x24x32xbf16, #tpu.memory_space<vmem>>, vector<16x16x32xbf16>,
    %c0_35 = arith.constant 0 : index
    %c0_36 = arith.constant 0 : index
    %c0_37 = arith.constant 0 : index
    %62 = vector.load %arg13[%c0_35, %c0_36, %c0_37] : memref<18x24x32xbf16, #tpu.memory_space<vmem>>, vector<16x24x32xbf16>
    %63 = vector.shape_cast %62 : vector<16x24x32xbf16> to vector<384x32xbf16>
    %c0_38 = arith.constant 0 : index
    %c0_39 = arith.constant 0 : index
    %c0_40 = arith.constant 0 : index
    %c0_41 = arith.constant 0 : index
    %64 = vector.load %arg10[%c0_38, %c0_39, %c0_40, %c0_41] : memref<3x3x32x32xbf16, #tpu.memory_space<vmem>>, vector<1x1x32x32xbf16>
    %65 = vector.shape_cast %64 : vector<1x1x32x32xbf16> to vector<32x32xbf16>
    %cst_42 = arith.constant dense<0.000000e+00> : vector<384x32xf32>
    %66 = tpu.matmul %63, %65, %cst_42 {dimension_numbers = #tpu.dot_dimension_numbers<[1], [0], [0], [1], [0, 0, 1, 1], [], []>} : vector<384x32xbf16>, vector<32x32xbf16>, vector<384x32xf32> -> vector<384x32xf32>
    %c1_43 = arith.constant 1 : index
    %c0_44 = arith.constant 0 : index
    %c0_45 = arith.constant 0 : index
    %67 = vector.load %arg13[%c1_43, %c0_44, %c0_45] : memref<18x24x32xbf16, #tpu.memory_space<vmem>>, vector<16x24x32xbf16>
    %68 = vector.shape_cast %67 : vector<16x24x32xbf16> to vector<384x32xbf16>
    %c1_46 = arith.constant 1 : index
    %c0_47 = arith.constant 0 : index
    %c0_48 = arith.constant 0 : index
    %c0_49 = arith.constant 0 : index
    %69 = vector.load %arg10[%c1_46, %c0_47, %c0_48, %c0_49] : memref<3x3x32x32xbf16, #tpu.memory_space<vmem>>, vector<1x1x32x32xbf16>
    %70 = vector.shape_cast %69 : vector<1x1x32x32xbf16> to vector<32x32xbf16>
    %cst_50 = arith.constant dense<0.000000e+00> : vector<384x32xf32>
    %71 = tpu.matmul %68, %70, %cst_50 {dimension_numbers = #tpu.dot_dimension_numbers<[1], [0], [0], [1], [0, 0, 1, 1], [], []>} : vector<384x32xbf16>, vector<32x32xbf16>, vector<384x32xf32> -> vector<384x32xf32>
    %72 = arith.addf %66, %71 : vector<384x32xf32>
    %c2 = arith.constant 2 : index
    %c0_51 = arith.constant 0 : index
    %c0_52 = arith.constant 0 : index
    %73 = vector.load %arg13[%c2, %c0_51, %c0_52] : memref<18x24x32xbf16, #tpu.memory_space<vmem>>, vector<16x24x32xbf16>
    %74 = vector.shape_cast %73 : vector<16x24x32xbf16> to vector<384x32xbf16>
    %c2_53 = arith.constant 2 : index
    %c0_54 = arith.constant 0 : index
    %c0_55 = arith.constant 0 : index
    %c0_56 = arith.constant 0 : index
    %75 = vector.load %arg10[%c2_53, %c0_54, %c0_55, %c0_56] : memref<3x3x32x32xbf16, #tpu.memory_space<vmem>>, vector<1x1x32x32xbf16>
    %76 = vector.shape_cast %75 : vector<1x1x32x32xbf16> to vector<32x32xbf16>
    %cst_57 = arith.constant dense<0.000000e+00> : vector<384x32xf32>
    %77 = tpu.matmul %74, %76, %cst_57 {dimension_numbers = #tpu.dot_dimension_numbers<[1], [0], [0], [1], [0, 0, 1, 1], [], []>} : vector<384x32xbf16>, vector<32x32xbf16>, vector<384x32xf32> -> vector<384x32xf32>
    %78 = arith.addf %72, %77 : vector<384x32xf32>
    %79 = vector.shape_cast %78 : vector<384x32xf32> to vector<16x24x32xf32>
    %80 = vector.extract_strided_slice %79 {offsets = [0, 0, 0], sizes = [16, 16, 32], strides = [1, 1, 1]} : vector<16x24x32xf32> to vector<16x16x32xf32>
    %c0_58 = arith.constant 0 : index
    %c0_59 = arith.constant 0 : index
    %c0_60 = arith.constant 0 : index
    %81 = vector.load %arg13[%c0_58, %c0_59, %c0_60] : memref<18x24x32xbf16, #tpu.memory_space<vmem>>, vector<16x24x32xbf16>
    %82 = vector.shape_cast %81 : vector<16x24x32xbf16> to vector<384x32xbf16>
    %c0_61 = arith.constant 0 : index
    %c1_62 = arith.constant 1 : index
    %c0_63 = arith.constant 0 : index
    %c0_64 = arith.constant 0 : index
    %83 = vector.load %arg10[%c0_61, %c1_62, %c0_63, %c0_64] : memref<3x3x32x32xbf16, #tpu.memory_space<vmem>>, vector<1x1x32x32xbf16>
    %84 = vector.shape_cast %83 : vector<1x1x32x32xbf16> to vector<32x32xbf16>
    %cst_65 = arith.constant dense<0.000000e+00> : vector<384x32xf32>
    %85 = tpu.matmul %82, %84, %cst_65 {dimension_numbers = #tpu.dot_dimension_numbers<[1], [0], [0], [1], [0, 0, 1, 1], [], []>} : vector<384x32xbf16>, vector<32x32xbf16>, vector<384x32xf32> -> vector<384x32xf32>
    %c1_66 = arith.constant 1 : index
    %c0_67 = arith.constant 0 : index
    %c0_68 = arith.constant 0 : index
    %86 = vector.load %arg13[%c1_66, %c0_67, %c0_68] : memref<18x24x32xbf16, #tpu.memory_space<vmem>>, vector<16x24x32xbf16>
    %87 = vector.shape_cast %86 : vector<16x24x32xbf16> to vector<384x32xbf16>
    %c1_69 = arith.constant 1 : index
    %c1_70 = arith.constant 1 : index
    %c0_71 = arith.constant 0 : index
    %c0_72 = arith.constant 0 : index
    %88 = vector.load %arg10[%c1_69, %c1_70, %c0_71, %c0_72] : memref<3x3x32x32xbf16, #tpu.memory_space<vmem>>, vector<1x1x32x32xbf16>
    %89 = vector.shape_cast %88 : vector<1x1x32x32xbf16> to vector<32x32xbf16>
    %cst_73 = arith.constant dense<0.000000e+00> : vector<384x32xf32>
    %90 = tpu.matmul %87, %89, %cst_73 {dimension_numbers = #tpu.dot_dimension_numbers<[1], [0], [0], [1], [0, 0, 1, 1], [], []>} : vector<384x32xbf16>, vector<32x32xbf16>, vector<384x32xf32> -> vector<384x32xf32>
    %91 = arith.addf %85, %90 : vector<384x32xf32>
    %c2_74 = arith.constant 2 : index
    %c0_75 = arith.constant 0 : index
    %c0_76 = arith.constant 0 : index
    %92 = vector.load %arg13[%c2_74, %c0_75, %c0_76] : memref<18x24x32xbf16, #tpu.memory_space<vmem>>, vector<16x24x32xbf16>
    %93 = vector.shape_cast %92 : vector<16x24x32xbf16> to vector<384x32xbf16>
    %c2_77 = arith.constant 2 : index
    %c1_78 = arith.constant 1 : index
    %c0_79 = arith.constant 0 : index
    %c0_80 = arith.constant 0 : index
    %94 = vector.load %arg10[%c2_77, %c1_78, %c0_79, %c0_80] : memref<3x3x32x32xbf16, #tpu.memory_space<vmem>>, vector<1x1x32x32xbf16>
    %95 = vector.shape_cast %94 : vector<1x1x32x32xbf16> to vector<32x32xbf16>
    %cst_81 = arith.constant dense<0.000000e+00> : vector<384x32xf32>
    %96 = tpu.matmul %93, %95, %cst_81 {dimension_numbers = #tpu.dot_dimension_numbers<[1], [0], [0], [1], [0, 0, 1, 1], [], []>} : vector<384x32xbf16>, vector<32x32xbf16>, vector<384x32xf32> -> vector<384x32xf32>
    %97 = arith.addf %91, %96 : vector<384x32xf32>
    %98 = vector.shape_cast %97 : vector<384x32xf32> to vector<16x24x32xf32>
    %99 = vector.extract_strided_slice %98 {offsets = [0, 1, 0], sizes = [16, 16, 32], strides = [1, 1, 1]} : vector<16x24x32xf32> to vector<16x16x32xf32>
    %100 = arith.addf %80, %99 : vector<16x16x32xf32>
    %c0_82 = arith.constant 0 : index
    %c0_83 = arith.constant 0 : index
    %c0_84 = arith.constant 0 : index
    %101 = vector.load %arg13[%c0_82, %c0_83, %c0_84] : memref<18x24x32xbf16, #tpu.memory_space<vmem>>, vector<16x24x32xbf16>
    %102 = vector.shape_cast %101 : vector<16x24x32xbf16> to vector<384x32xbf16>
    %c0_85 = arith.constant 0 : index
    %c2_86 = arith.constant 2 : index
    %c0_87 = arith.constant 0 : index
    %c0_88 = arith.constant 0 : index
    %103 = vector.load %arg10[%c0_85, %c2_86, %c0_87, %c0_88] : memref<3x3x32x32xbf16, #tpu.memory_space<vmem>>, vector<1x1x32x32xbf16>
    %104 = vector.shape_cast %103 : vector<1x1x32x32xbf16> to vector<32x32xbf16>
    %cst_89 = arith.constant dense<0.000000e+00> : vector<384x32xf32>
    %105 = tpu.matmul %102, %104, %cst_89 {dimension_numbers = #tpu.dot_dimension_numbers<[1], [0], [0], [1], [0, 0, 1, 1], [], []>} : vector<384x32xbf16>, vector<32x32xbf16>, vector<384x32xf32> -> vector<384x32xf32>
    %c1_90 = arith.constant 1 : index
    %c0_91 = arith.constant 0 : index
    %c0_92 = arith.constant 0 : index
    %106 = vector.load %arg13[%c1_90, %c0_91, %c0_92] : memref<18x24x32xbf16, #tpu.memory_space<vmem>>, vector<16x24x32xbf16>
    %107 = vector.shape_cast %106 : vector<16x24x32xbf16> to vector<384x32xbf16>
    %c1_93 = arith.constant 1 : index
    %c2_94 = arith.constant 2 : index
    %c0_95 = arith.constant 0 : index
    %c0_96 = arith.constant 0 : index
    %108 = vector.load %arg10[%c1_93, %c2_94, %c0_95, %c0_96] : memref<3x3x32x32xbf16, #tpu.memory_space<vmem>>, vector<1x1x32x32xbf16>
    %109 = vector.shape_cast %108 : vector<1x1x32x32xbf16> to vector<32x32xbf16>
    %cst_97 = arith.constant dense<0.000000e+00> : vector<384x32xf32>
    %110 = tpu.matmul %107, %109, %cst_97 {dimension_numbers = #tpu.dot_dimension_numbers<[1], [0], [0], [1], [0, 0, 1, 1], [], []>} : vector<384x32xbf16>, vector<32x32xbf16>, vector<384x32xf32> -> vector<384x32xf32>
    %111 = arith.addf %105, %110 : vector<384x32xf32>
    %c2_98 = arith.constant 2 : index
    %c0_99 = arith.constant 0 : index
    %c0_100 = arith.constant 0 : index
    %112 = vector.load %arg13[%c2_98, %c0_99, %c0_100] : memref<18x24x32xbf16, #tpu.memory_space<vmem>>, vector<16x24x32xbf16>
    %113 = vector.shape_cast %112 : vector<16x24x32xbf16> to vector<384x32xbf16>
    %c2_101 = arith.constant 2 : index
    %c2_102 = arith.constant 2 : index
    %c0_103 = arith.constant 0 : index
    %c0_104 = arith.constant 0 : index
    %114 = vector.load %arg10[%c2_101, %c2_102, %c0_103, %c0_104] : memref<3x3x32x32xbf16, #tpu.memory_space<vmem>>, vector<1x1x32x32xbf16>
    %115 = vector.shape_cast %114 : vector<1x1x32x32xbf16> to vector<32x32xbf16>
    %cst_105 = arith.constant dense<0.000000e+00> : vector<384x32xf32>
    %116 = tpu.matmul %113, %115, %cst_105 {dimension_numbers = #tpu.dot_dimension_numbers<[1], [0], [0], [1], [0, 0, 1, 1], [], []>} : vector<384x32xbf16>, vector<32x32xbf16>, vector<384x32xf32> -> vector<384x32xf32>
    %117 = arith.addf %111, %116 : vector<384x32xf32>
    %118 = vector.shape_cast %117 : vector<384x32xf32> to vector<16x24x32xf32>
    %119 = vector.extract_strided_slice %118 {offsets = [0, 2, 0], sizes = [16, 16, 32], strides = [1, 1, 1]} : vector<16x24x32xf32> to vector<16x16x32xf32>
    %120 = arith.addf %100, %119 : vector<16x16x32xf32>
    %c0_106 = arith.constant 0 : index
    %c0_107 = arith.constant 0 : index
    %121 = vector.load %arg11[%c0_106, %c0_107] : memref<1x32xf32, #tpu.memory_space<vmem>>, vector<1x32xf32>
    %122 = vector.shape_cast %121 : vector<1x32xf32> to vector<1x1x32xf32>
    %123 = vector.broadcast %122 : vector<1x1x32xf32> to vector<16x16x32xf32>
    %124 = arith.addf %120, %123 : vector<16x16x32xf32>
    %125 = arith.negf %124 : vector<16x16x32xf32>
    %126 = math.exp %125 : vector<16x16x32xf32>
    %cst_108 = arith.constant 1.000000e+00 : f32
    %127 = vector.broadcast %cst_108 : f32 to vector<16x16x32xf32>
    %128 = arith.addf %127, %126 : vector<16x16x32xf32>
    %129 = arith.divf %127, %128 : vector<16x16x32xf32>
    %130 = arith.mulf %124, %129 : vector<16x16x32xf32>
    %c0_109 = arith.constant 0 : index
    %c0_110 = arith.constant 0 : index
    %c0_111 = arith.constant 0 : index
    %c0_112 = arith.constant 0 : index
    %131 = vector.load %arg12[%c0_109, %c0_110, %c0_111, %c0_112] : memref<1x16x16x32xf32, #tpu.memory_space<vmem>>, vector<1x16x16x32xf32>
    %132 = vector.shape_cast %131 : vector<1x16x16x32xf32> to vector<16x16x32xf32>
    %133 = vector.shape_cast %130 : vector<16x16x32xf32> to vector<1x16x16x32xf32>
    tpu.vector_store %arg12[%c0_109, %c0_110, %c0_111, %c0_112], %133 {strides = array<i32>} : memref<1x16x16x32xf32, #tpu.memory_space<vmem>>, vector<1x16x16x32xf32>,
    return
  }
  func.func @transform_0(%arg0: i32) -> (i32, i32, i32, i32) {
    %c0_i32 = arith.constant 0 : i32
    %c0_i32_0 = arith.constant 0 : i32
    %c0_i32_1 = arith.constant 0 : i32
    %c0_i32_2 = arith.constant 0 : i32
    return %arg0, %c0_i32, %c0_i32_0, %c0_i32_1 : i32, i32, i32, i32
  }
  func.func @transform_1(%arg0: i32) -> (i32, i32, i32, i32) {
    %c0_i32 = arith.constant 0 : i32
    %c0_i32_0 = arith.constant 0 : i32
    %c0_i32_1 = arith.constant 0 : i32
    %c0_i32_2 = arith.constant 0 : i32
    return %arg0, %c0_i32, %c0_i32_0, %c0_i32_1 : i32, i32, i32, i32
  }
  func.func @transform_2(%arg0: i32) -> (i32, i32) {
    %c0_i32 = arith.constant 0 : i32
    %c0_i32_0 = arith.constant 0 : i32
    %c0_i32_1 = arith.constant 0 : i32
    return %c0_i32, %c0_i32_0 : i32, i32
  }
  func.func @transform_3(%arg0: i32) -> (i32, i32) {
    %c0_i32 = arith.constant 0 : i32
    %c0_i32_0 = arith.constant 0 : i32
    %c0_i32_1 = arith.constant 0 : i32
    return %c0_i32, %c0_i32_0 : i32, i32
  }
  func.func @transform_4(%arg0: i32) -> (i32, i32) {
    %c0_i32 = arith.constant 0 : i32
    %c0_i32_0 = arith.constant 0 : i32
    %c0_i32_1 = arith.constant 0 : i32
    return %c0_i32, %c0_i32_0 : i32, i32
  }
  func.func @transform_5(%arg0: i32) -> (i32, i32) {
    %c0_i32 = arith.constant 0 : i32
    %c0_i32_0 = arith.constant 0 : i32
    %c0_i32_1 = arith.constant 0 : i32
    return %c0_i32, %c0_i32_0 : i32, i32
  }
  func.func @transform_6(%arg0: i32) -> (i32, i32) {
    %c0_i32 = arith.constant 0 : i32
    %c0_i32_0 = arith.constant 0 : i32
    %c0_i32_1 = arith.constant 0 : i32
    return %c0_i32, %c0_i32_0 : i32, i32
  }
  func.func @transform_7(%arg0: i32) -> (i32, i32) {
    %c0_i32 = arith.constant 0 : i32
    %c0_i32_0 = arith.constant 0 : i32
    %c0_i32_1 = arith.constant 0 : i32
    return %c0_i32, %c0_i32_0 : i32, i32
  }
  func.func @transform_8(%arg0: i32) -> (i32, i32) {
    %c0_i32 = arith.constant 0 : i32
    %c0_i32_0 = arith.constant 0 : i32
    %c0_i32_1 = arith.constant 0 : i32
    return %c0_i32, %c0_i32_0 : i32, i32
  }
  func.func @transform_9(%arg0: i32) -> (i32, i32, i32, i32) {
    %c0_i32 = arith.constant 0 : i32
    %c0_i32_0 = arith.constant 0 : i32
    %c0_i32_1 = arith.constant 0 : i32
    %c0_i32_2 = arith.constant 0 : i32
    %c0_i32_3 = arith.constant 0 : i32
    return %c0_i32, %c0_i32_0, %c0_i32_1, %c0_i32_2 : i32, i32, i32, i32
  }
  func.func @transform_10(%arg0: i32) -> (i32, i32) {
    %c0_i32 = arith.constant 0 : i32
    %c0_i32_0 = arith.constant 0 : i32
    %c0_i32_1 = arith.constant 0 : i32
    return %c0_i32, %c0_i32_0 : i32, i32
  }
  func.func @transform_11(%arg0: i32) -> (i32, i32, i32, i32) {
    %c0_i32 = arith.constant 0 : i32
    %c0_i32_0 = arith.constant 0 : i32
    %c0_i32_1 = arith.constant 0 : i32
    %c0_i32_2 = arith.constant 0 : i32
    return %arg0, %c0_i32, %c0_i32_0, %c0_i32_1 : i32, i32, i32, i32
  }
}

</mosaic_0001>

<llo_original>
// kernel: asff_forward.1
$region0: #{asff_forward.1}
  #allocation0 [shape = 'u32[]', space=smem, size = 0x4, offset = 0x4, fixed_abs, tag = 'smem constant byte address 0x4 - core index']
  #allocation1 [shape = 'u32[72,128]{1,0:T(1,128)}', space=vmem, size = 0x9000, scoped, tag = 'internal scratch']
  #allocation2 [shape = 'bf16[18,24,32]{2,1,0:T(8,128)(2,1)}', space=vmem, size = 0x1b000, scoped, tag = 'scratch operand']
  %s0 = inlined_call_operand.vmem [shape: f32[2,16,16,32], index: 0, kind: input, shape index: {}]
  %s1 = inlined_call_operand.hbm [shape: f32[2,16,16,32], index: 1, kind: input, shape index: {}]
  %s2 = inlined_call_operand.vmem [shape: f32[32,16], index: 2, kind: input, shape index: {}]
  %s3 = inlined_call_operand.vmem [shape: f32[1,16], index: 3, kind: input, shape index: {}]
  %s4 = inlined_call_operand.vmem [shape: f32[32,16], index: 4, kind: input, shape index: {}]
  %s5 = inlined_call_operand.vmem [shape: f32[1,16], index: 5, kind: input, shape index: {}]
  %s6 = inlined_call_operand.vmem [shape: f32[16,2], index: 6, kind: input, shape index: {}]
  %s7 = inlined_call_operand.vmem [shape: f32[16,2], index: 7, kind: input, shape index: {}]
  %s8 = inlined_call_operand.vmem [shape: f32[1,2], index: 8, kind: input, shape index: {}]
  %s9 = inlined_call_operand.vmem [shape: bf16[3,3,32,32], index: 9, kind: input, shape index: {}]
  %s10 = inlined_call_operand.vmem [shape: f32[1,32], index: 10, kind: input, shape index: {}]
  %s11 = inlined_call_operand.hbm [shape: f32[2,16,16,32], index: 11, kind: output, shape index: {}]
  %s12 = sld [smem:[#allocation0]]
  $region81: #{asff_forward.1} parent=0
    _
  %s14 = ssub.s32 1, %s12
  %s15 = scalar_select 0, %s14, %s12
  $region1: #{asff_forward.1} parent=0
    #allocation3 [shape = 'u8[262144]{0}', space=vmem, size = 0x40000, scoped, tag = 'input window, operand 1']
    #allocation4 [shape = 's32[2]{0}', space=sflag, size = 0x8, scoped, tag = 'scoped memory for asff_forward.1']
    #allocation5 [shape = 's32[2]{0}', space=sflag, size = 0x8, scoped, tag = 'scoped memory for asff_forward.1']
    #allocation6 [shape = 'u8[262144]{0}', space=vmem, size = 0x40000, scoped, tag = 'output window, operand 0']
    %16 = vsyncpa [#allocation4], 0
    %s17 = scalar_lea.sflag [#allocation4], 1
    %18 = vsyncpa %s17, 0
    %19 = vsyncpa [#allocation5], 0
    %s20 = scalar_lea.sflag [#allocation5], 1
    %21 = vsyncpa %s20, 0
    loop: start=0, step=1, limit=4
    $region2: #{asff_forward.1} parent=1 // loop_pre_header
      _
    $region3: #{asff_forward.1} parent=1 // loop_header
      %s23 = sphi 0, %s27
      %p24 = scmp.ge.s32.totalorder %s23, 4
      %s33 = sphi 0, %s35
      %s36 = sphi 0, %s33
      %s37 = sphi 0, %s36
      %s53 = sphi 0, %s37
      %s59 = sphi 0, %s61
      %s62 = sphi 0, %s59
      %s63 = sphi 0, %s62
      %s79 = sphi 0, %s63
      %s83 = sphi 0, %s83
      %s85 = sphi 0, %s83
      %s86 = sphi 0, %s85
      %s100 = sphi 0, %s86
      %s104 = sphi 0, %s104
      %s106 = sphi 0, %s104
      %s107 = sphi 0, %s106
      %s121 = sphi 0, %s107
      %s125 = sphi 0, %s125
      %s127 = sphi 0, %s125
      %s128 = sphi 0, %s127
      %s142 = sphi 0, %s128
      %s146 = sphi 0, %s146
      %s148 = sphi 0, %s146
      %s149 = sphi 0, %s148
      %s163 = sphi 0, %s149
      %s167 = sphi 0, %s167
      %s169 = sphi 0, %s167
      %s170 = sphi 0, %s169
      %s184 = sphi 0, %s170
      %s188 = sphi 0, %s188
      %s190 = sphi 0, %s188
      %s191 = sphi 0, %s190
      %s205 = sphi 0, %s191
      %s209 = sphi 0, %s209
      %s211 = sphi 0, %s209
      %s212 = sphi 0, %s211
      %s226 = sphi 0, %s212
      %s230 = sphi 0, %s230
      %s232 = sphi 0, %s230
      %s233 = sphi 0, %s232
      %s247 = sphi 0, %s233
      %s251 = sphi 0, %s251
      %s253 = sphi 0, %s251
      %s254 = sphi 0, %s253
      %s268 = sphi 0, %s254
      %s274 = sphi 0, %s276
      %s277 = sphi 0, %s274
      %s278 = sphi 0, %s277
      %s294 = sphi 0, %s278
    $region4: #{asff_forward.1} parent=1 // loop_header_branch
      %26 = sbr.rel (%p24) target = $region8
    $region5: #{asff_forward.1} parent=1 // loop_body
      %s28 = ssub.s32 %s23, 1
      %s29 = ssub.s32 %s23, 2
      %s30 = sadd.s32 %s23, 1
      %s31 = ssub.s32 %s23, %s30
      %p32 = scmp.eq.s32.totalorder %s31, 0
      %s34 = sadd.s32 %s33, 1
      %s35 = scalar_select %p32, %s33, %s34
      %p38 = pneg %p32
      %p39 = scmp.eq.s32.totalorder %s23, 1
      %p40 = por %p38, %p39
      %p41 = scmp.ne.s32.totalorder %s33, %s36
      %p42 = scmp.eq.s32.totalorder %s23, 0
      %p43 = por %p41, %p42
      %p44 = scmp.ne.s32.totalorder %s33, %s36
      %p45 = scmp.eq.s32.totalorder %s28, 1
      %p46 = por %p44, %p45
      %p47 = scmp.ne.s32.totalorder %s36, %s37
      %p48 = scmp.eq.s32.totalorder %s28, 0
      %p49 = por %p47, %p48
      %p50 = scmp.ne.s32.totalorder %s36, %s37
      %p51 = scmp.eq.s32.totalorder %s29, 1
      %p52 = por %p50, %p51
      %p54 = scmp.ne.s32.totalorder %s37, %s53
      %p55 = scmp.eq.s32.totalorder %s29, 0
      %p56 = por %p54, %p55
      %s57 = ssub.s32 %s23, %s30
      %p58 = scmp.eq.s32.totalorder %s57, 0
      %s60 = sadd.s32 %s59, 1
      %s61 = scalar_select %p58, %s59, %s60
      %p64 = pneg %p58
      %p65 = scmp.eq.s32.totalorder %s23, 1
      %p66 = por %p64, %p65
      %p67 = scmp.ne.s32.totalorder %s59, %s62
      %p68 = scmp.eq.s32.totalorder %s23, 0
      %p69 = por %p67, %p68
      %p70 = scmp.ne.s32.totalorder %s59, %s62
      %p71 = scmp.eq.s32.totalorder %s28, 1
      %p72 = por %p70, %p71
      %p73 = scmp.ne.s32.totalorder %s62, %s63
      %p74 = scmp.eq.s32.totalorder %s28, 0
      %p75 = por %p73, %p74
      %p76 = scmp.ne.s32.totalorder %s62, %s63
      %p77 = scmp.eq.s32.totalorder %s29, 1
      %p78 = por %p76, %p77
      %p80 = scmp.ne.s32.totalorder %s63, %s79
      %p81 = scmp.eq.s32.totalorder %s29, 0
      %p82 = por %p80, %p81
      %s84 = sadd.s32 %s83, 1
      %p87 = scmp.eq.s32.totalorder %s23, 1
      %p88 = scmp.ne.s32.totalorder %s83, %s85
      %p89 = scmp.eq.s32.totalorder %s23, 0
      %p90 = por %p88, %p89
      %p91 = scmp.ne.s32.totalorder %s83, %s85
      %p92 = scmp.eq.s32.totalorder %s28, 1
      %p93 = por %p91, %p92
      %p94 = scmp.ne.s32.totalorder %s85, %s86
      %p95 = scmp.eq.s32.totalorder %s28, 0
      %p96 = por %p94, %p95
      %p97 = scmp.ne.s32.totalorder %s85, %s86
      %p98 = scmp.eq.s32.totalorder %s29, 1
      %p99 = por %p97, %p98
      %p101 = scmp.ne.s32.totalorder %s86, %s100
      %p102 = scmp.eq.s32.totalorder %s29, 0
      %p103 = por %p101, %p102
      %s105 = sadd.s32 %s104, 1
      %p108 = scmp.eq.s32.totalorder %s23, 1
      %p109 = scmp.ne.s32.totalorder %s104, %s106
      %p110 = scmp.eq.s32.totalorder %s23, 0
      %p111 = por %p109, %p110
      %p112 = scmp.ne.s32.totalorder %s104, %s106
      %p113 = scmp.eq.s32.totalorder %s28, 1
      %p114 = por %p112, %p113
      %p115 = scmp.ne.s32.totalorder %s106, %s107
      %p116 = scmp.eq.s32.totalorder %s28, 0
      %p117 = por %p115, %p116
      %p118 = scmp.ne.s32.totalorder %s106, %s107
      %p119 = scmp.eq.s32.totalorder %s29, 1
      %p120 = por %p118, %p119
      %p122 = scmp.ne.s32.totalorder %s107, %s121
      %p123 = scmp.eq.s32.totalorder %s29, 0
      %p124 = por %p122, %p123
      %s126 = sadd.s32 %s125, 1
      %p129 = scmp.eq.s32.totalorder %s23, 1
      %p130 = scmp.ne.s32.totalorder %s125, %s127
      %p131 = scmp.eq.s32.totalorder %s23, 0
      %p132 = por %p130, %p131
      %p133 = scmp.ne.s32.totalorder %s125, %s127
      %p134 = scmp.eq.s32.totalorder %s28, 1
      %p135 = por %p133, %p134
      %p136 = scmp.ne.s32.totalorder %s127, %s128
      %p137 = scmp.eq.s32.totalorder %s28, 0
      %p138 = por %p136, %p137
      %p139 = scmp.ne.s32.totalorder %s127, %s128
      %p140 = scmp.eq.s32.totalorder %s29, 1
      %p141 = por %p139, %p140
      %p143 = scmp.ne.s32.totalorder %s128, %s142
      %p144 = scmp.eq.s32.totalorder %s29, 0
      %p145 = por %p143, %p144
      %s147 = sadd.s32 %s146, 1
      %p150 = scmp.eq.s32.totalorder %s23, 1
      %p151 = scmp.ne.s32.totalorder %s146, %s148
      %p152 = scmp.eq.s32.totalorder %s23, 0
      %p153 = por %p151, %p152
      %p154 = scmp.ne.s32.totalorder %s146, %s148
      %p155 = scmp.eq.s32.totalorder %s28, 1
      %p156 = por %p154, %p155
      %p157 = scmp.ne.s32.totalorder %s148, %s149
      %p158 = scmp.eq.s32.totalorder %s28, 0
      %p159 = por %p157, %p158
      %p160 = scmp.ne.s32.totalorder %s148, %s149
      %p161 = scmp.eq.s32.totalorder %s29, 1
      %p162 = por %p160, %p161
      %p164 = scmp.ne.s32.totalorder %s149, %s163
      %p165 = scmp.eq.s32.totalorder %s29, 0
      %p166 = por %p164, %p165
      %s168 = sadd.s32 %s167, 1
      %p171 = scmp.eq.s32.totalorder %s23, 1
      %p172 = scmp.ne.s32.totalorder %s167, %s169
      %p173 = scmp.eq.s32.totalorder %s23, 0
      %p174 = por %p172, %p173
      %p175 = scmp.ne.s32.totalorder %s167, %s169
      %p176 = scmp.eq.s32.totalorder %s28, 1
      %p177 = por %p175, %p176
      %p178 = scmp.ne.s32.totalorder %s169, %s170
      %p179 = scmp.eq.s32.totalorder %s28, 0
      %p180 = por %p178, %p179
      %p181 = scmp.ne.s32.totalorder %s169, %s170
      %p182 = scmp.eq.s32.totalorder %s29, 1
      %p183 = por %p181, %p182
      %p185 = scmp.ne.s32.totalorder %s170, %s184
      %p186 = scmp.eq.s32.totalorder %s29, 0
      %p187 = por %p185, %p186
      %s189 = sadd.s32 %s188, 1
      %p192 = scmp.eq.s32.totalorder %s23, 1
      %p193 = scmp.ne.s32.totalorder %s188, %s190
      %p194 = scmp.eq.s32.totalorder %s23, 0
      %p195 = por %p193, %p194
      %p196 = scmp.ne.s32.totalorder %s188, %s190
      %p197 = scmp.eq.s32.totalorder %s28, 1
      %p198 = por %p196, %p197
      %p199 = scmp.ne.s32.totalorder %s190, %s191
      %p200 = scmp.eq.s32.totalorder %s28, 0
      %p201 = por %p199, %p200
      %p202 = scmp.ne.s32.totalorder %s190, %s191
      %p203 = scmp.eq.s32.totalorder %s29, 1
      %p204 = por %p202, %p203
      %p206 = scmp.ne.s32.totalorder %s191, %s205
      %p207 = scmp.eq.s32.totalorder %s29, 0
      %p208 = por %p206, %p207
      %s210 = sadd.s32 %s209, 1
      %p213 = scmp.eq.s32.totalorder %s23, 1
      %p214 = scmp.ne.s32.totalorder %s209, %s211
      %p215 = scmp.eq.s32.totalorder %s23, 0
      %p216 = por %p214, %p215
      %p217 = scmp.ne.s32.totalorder %s209, %s211
      %p218 = scmp.eq.s32.totalorder %s28, 1
      %p219 = por %p217, %p218
      %p220 = scmp.ne.s32.totalorder %s211, %s212
      %p221 = scmp.eq.s32.totalorder %s28, 0
      %p222 = por %p220, %p221
      %p223 = scmp.ne.s32.totalorder %s211, %s212
      %p224 = scmp.eq.s32.totalorder %s29, 1
      %p225 = por %p223, %p224
      %p227 = scmp.ne.s32.totalorder %s212, %s226
      %p228 = scmp.eq.s32.totalorder %s29, 0
      %p229 = por %p227, %p228
      %s231 = sadd.s32 %s230, 1
      %p234 = scmp.eq.s32.totalorder %s23, 1
      %p235 = scmp.ne.s32.totalorder %s230, %s232
      %p236 = scmp.eq.s32.totalorder %s23, 0
      %p237 = por %p235, %p236
      %p238 = scmp.ne.s32.totalorder %s230, %s232
      %p239 = scmp.eq.s32.totalorder %s28, 1
      %p240 = por %p238, %p239
      %p241 = scmp.ne.s32.totalorder %s232, %s233
      %p242 = scmp.eq.s32.totalorder %s28, 0
      %p243 = por %p241, %p242
      %p244 = scmp.ne.s32.totalorder %s232, %s233
      %p245 = scmp.eq.s32.totalorder %s29, 1
      %p246 = por %p244, %p245
      %p248 = scmp.ne.s32.totalorder %s233, %s247
      %p249 = scmp.eq.s32.totalorder %s29, 0
      %p250 = por %p248, %p249
      %s252 = sadd.s32 %s251, 1
      %p255 = scmp.eq.s32.totalorder %s23, 1
      %p256 = scmp.ne.s32.totalorder %s251, %s253
      %p257 = scmp.eq.s32.totalorder %s23, 0
      %p258 = por %p256, %p257
      %p259 = scmp.ne.s32.totalorder %s251, %s253
      %p260 = scmp.eq.s32.totalorder %s28, 1
      %p261 = por %p259, %p260
      %p262 = scmp.ne.s32.totalorder %s253, %s254
      %p263 = scmp.eq.s32.totalorder %s28, 0
      %p264 = por %p262, %p263
      %p265 = scmp.ne.s32.totalorder %s253, %s254
      %p266 = scmp.eq.s32.totalorder %s29, 1
      %p267 = por %p265, %p266
      %p269 = scmp.ne.s32.totalorder %s254, %s268
      %p270 = scmp.eq.s32.totalorder %s29, 0
      %p271 = por %p269, %p270
      %s272 = ssub.s32 %s23, %s30
      %p273 = scmp.eq.s32.totalorder %s272, 0
      %s275 = sadd.s32 %s274, 1
      %s276 = scalar_select %p273, %s274, %s275
      %p279 = pneg %p273
      %p280 = scmp.eq.s32.totalorder %s23, 1
      %p281 = por %p279, %p280
      %p282 = scmp.ne.s32.totalorder %s274, %s277
      %p283 = scmp.eq.s32.totalorder %s23, 0
      %p284 = por %p282, %p283
      %p285 = scmp.ne.s32.totalorder %s274, %s277
      %p286 = scmp.eq.s32.totalorder %s28, 1
      %p287 = por %p285, %p286
      %p288 = scmp.ne.s32.totalorder %s277, %s278
      %p289 = scmp.eq.s32.totalorder %s28, 0
      %p290 = por %p288, %p289
      %p291 = scmp.ne.s32.totalorder %s277, %s278
      %p292 = scmp.eq.s32.totalorder %s29, 1
      %p293 = por %p291, %p292
      %p295 = scmp.ne.s32.totalorder %s278, %s294
      %p296 = scmp.eq.s32.totalorder %s29, 0
      %p297 = por %p295, %p296
      %p298 = scmp.le.s32.totalorder 1, %s23
      %p299 = scmp.lt.s32.totalorder %s23, 3
      %p300 = pnand %p298, %p299
      %p301 = pneg %p300
      // Predicated region
      $region9: #{asff_forward.1} parent=5 // pred_check
        _
      $region10: #{asff_forward.1} parent=5 // pred_check_branch
        %303 = sbr.rel (%p300) target = $region12
      $region11: #{asff_forward.1} parent=5 // pred_region
        %s304 = ssub.s32 %s23, 1
        // Predicated region
        $region13: #{asff_forward.1} parent=11 // pred_check
          %p305 = pneg %p96
        $region14: #{asff_forward.1} parent=11 // pred_check_branch
          %307 = sbr.rel (%p305) target = $region16
        $region15: #{asff_forward.1} parent=11 // pred_region
          _
        $region16: #{asff_forward.1} parent=11 // pred_fallthru
          _
        // Predicated region
        $region17: #{asff_forward.1} parent=11 // pred_check
          %p308 = pneg %p117
        $region18: #{asff_forward.1} parent=11 // pred_check_branch
          %310 = sbr.rel (%p308) target = $region20
        $region19: #{asff_forward.1} parent=11 // pred_region
          _
        $region20: #{asff_forward.1} parent=11 // pred_fallthru
          _
        // Predicated region
        $region21: #{asff_forward.1} parent=11 // pred_check
          %p311 = pneg %p138
        $region22: #{asff_forward.1} parent=11 // pred_check_branch
          %313 = sbr.rel (%p311) target = $region24
        $region23: #{asff_forward.1} parent=11 // pred_region
          _
        $region24: #{asff_forward.1} parent=11 // pred_fallthru
          _
        // Predicated region
        $region25: #{asff_forward.1} parent=11 // pred_check
          %p314 = pneg %p159
        $region26: #{asff_forward.1} parent=11 // pred_check_branch
          %316 = sbr.rel (%p314) target = $region28
        $region27: #{asff_forward.1} parent=11 // pred_region
          _
        $region28: #{asff_forward.1} parent=11 // pred_fallthru
          _
        // Predicated region
        $region29: #{asff_forward.1} parent=11 // pred_check
          %p317 = pneg %p180
        $region30: #{asff_forward.1} parent=11 // pred_check_branch
          %319 = sbr.rel (%p317) target = $region32
        $region31: #{asff_forward.1} parent=11 // pred_region
          _
        $region32: #{asff_forward.1} parent=11 // pred_fallthru
          _
        // Predicated region
        $region33: #{asff_forward.1} parent=11 // pred_check
          %p320 = pneg %p201
        $region34: #{asff_forward.1} parent=11 // pred_check_branch
          %322 = sbr.rel (%p320) target = $region36
        $region35: #{asff_forward.1} parent=11 // pred_region
          _
        $region36: #{asff_forward.1} parent=11 // pred_fallthru
          _
        // Predicated region
        $region37: #{asff_forward.1} parent=11 // pred_check
          %p323 = pneg %p222
        $region38: #{asff_forward.1} parent=11 // pred_check_branch
          %325 = sbr.rel (%p323) target = $region40
        $region39: #{asff_forward.1} parent=11 // pred_region
          _
        $region40: #{asff_forward.1} parent=11 // pred_fallthru
          _
        // Predicated region
        $region41: #{asff_forward.1} parent=11 // pred_check
          %p326 = pneg %p243
        $region42: #{asff_forward.1} parent=11 // pred_check_branch
          %328 = sbr.rel (%p326) target = $region44
        $region43: #{asff_forward.1} parent=11 // pred_region
          _
        $region44: #{asff_forward.1} parent=11 // pred_fallthru
          _
        // Predicated region
        $region45: #{asff_forward.1} parent=11 // pred_check
          %p329 = pneg %p264
        $region46: #{asff_forward.1} parent=11 // pred_check_branch
          %331 = sbr.rel (%p329) target = $region48
        $region47: #{asff_forward.1} parent=11 // pred_region
          _
        $region48: #{asff_forward.1} parent=11 // pred_fallthru
          _
      $region12: #{asff_forward.1} parent=5 // pred_fallthru
        _
      %p332 = scmp.lt.s32.totalorder %s23, 2
      // Predicated region
      $region49: #{asff_forward.1} parent=5 // pred_check
        %p333 = pneg %p332
      $region50: #{asff_forward.1} parent=5 // pred_check_branch
        %335 = sbr.rel (%p333) target = $region52
      $region51: #{asff_forward.1} parent=5 // pred_region
        // Predicated region
        $region53: #{asff_forward.1} parent=51 // pred_check
          %p336 = pneg %p43
        $region54: #{asff_forward.1} parent=51 // pred_check_branch
          %338 = sbr.rel (%p336) target = $region56
        $region55: #{asff_forward.1} parent=51 // pred_region
          %p339 = scmp.lt.s32.totalorder %s23, 1
          %s340 = scalar_select %p339, %s23, 1
          %s341 = smul.addr %s340, 32
          %s342 = smul.addr %s341, 8
          %s343 = scalar_lea.vmem %s0, %s342
        $region56: #{asff_forward.1} parent=51 // pred_fallthru
          _
        // Predicated region
        $region57: #{asff_forward.1} parent=51 // pred_check
          %p344 = pneg %p69
        $region58: #{asff_forward.1} parent=51 // pred_check_branch
          %346 = sbr.rel (%p344) target = $region60
        $region59: #{asff_forward.1} parent=51 // pred_region
          %s347 = sand.u32 %s59, 1
          %s348 = scalar_lea.sflag [#allocation4], %s347
          %s349 = sand.u32 %s59, 1
          %s350 = smul.addr %s349, 256
          %s351 = scalar_lea.vmem [#allocation3], %s350
          %353 = vsyncadd %s348, 0
          %s354 = smul.addr %s23, 32
          %s355 = smul.addr %s354, 8
          %s356 = scalar_lea.hbm %s1, %s355
          %s357 = sshll.u32 %s356, 4
          %s358 = int_to_ptr.hbm [resolvable:$true] %s357
          %s359 = sshll.u32 %s351, 4
          %s360 = int_to_ptr.vmem [resolvable:$true] %s359
          %365 = dma.hbm_to_vmem [thread:$0]  %s358, 4096, %s360, %s348, 128, 128, 8
        $region60: #{asff_forward.1} parent=51 // pred_fallthru
          _
      $region52: #{asff_forward.1} parent=5 // pred_fallthru
        _
      %p366 = scmp.le.s32.totalorder 1, %s23
      %p367 = scmp.lt.s32.totalorder %s23, 3
      %p368 = pnand %p366, %p367
      %p369 = pneg %p368
      // Predicated region
      $region61: #{asff_forward.1} parent=5 // pred_check
        _
      $region62: #{asff_forward.1} parent=5 // pred_check_branch
        %371 = sbr.rel (%p368) target = $region64
      $region63: #{asff_forward.1} parent=5 // pred_region
        %s372 = ssub.s32 %s23, 1
        %s373 = sand.u32 %s62, 1
        %s374 = scalar_lea.sflag [#allocation4], %s373
        %s375 = sand.u32 %s62, 1
        %s376 = smul.addr %s375, 256
        %s377 = scalar_lea.vmem [#allocation3], %s376
        // Predicated region
        $region65: #{asff_forward.1} parent=63 // pred_check
          %p378 = pneg %p75
        $region66: #{asff_forward.1} parent=63 // pred_check_branch
          %380 = sbr.rel (%p378) target = $region68
        $region67: #{asff_forward.1} parent=63 // pred_region
          %382 = dma.done %s374, 4096
        $region68: #{asff_forward.1} parent=63 // pred_fallthru
          _
        %p383 = scmp.lt.s32.totalorder %s28, 1
        %s384 = scalar_select %p383, %s28, 1
        %s385 = smul.addr %s384, 32
        %s386 = smul.addr %s385, 8
        %s387 = scalar_lea.vmem %s0, %s386
        %p388 = pneg %p49
        %p389 = pneg %p46
        %s390 = sand.u32 %s62, 1
        %s391 = scalar_lea.sflag [#allocation4], %s390
        %s392 = sand.u32 %s62, 1
        %s393 = smul.addr %s392, 256
        %s394 = scalar_lea.vmem [#allocation3], %s393
        %p395 = pneg %p75
        %p396 = pneg %p72
        %p397 = pneg %p96
        %p398 = pneg %p93
        %p399 = pneg %p117
        %p400 = pneg %p114
        %p401 = pneg %p138
        %p402 = pneg %p135
        %p403 = pneg %p159
        %p404 = pneg %p156
        %p405 = pneg %p180
        %p406 = pneg %p177
        %p407 = pneg %p201
        %p408 = pneg %p198
        %p409 = pneg %p222
        %p410 = pneg %p219
        %p411 = pneg %p243
        %p412 = pneg %p240
        %p413 = pneg %p264
        %p414 = pneg %p261
        %p415 = pneg %p290
        %p416 = pneg %p287
        %s417 = sand.u32 %s277, 1
        %s418 = scalar_lea.sflag [#allocation5], %s417
        %s419 = sand.u32 %s277, 1
        %s420 = smul.addr %s419, 256
        %s421 = scalar_lea.vmem [#allocation6], %s420
        %p422 = scmp.lt.s32.totalorder %s28, 1
        %s423 = scalar_select %p422, %s28, 1
        %s424 = smul.addr %s423, 32
        %s425 = smul.addr %s424, 8
        %s426 = scalar_lea.vmem %s0, %s425
        %v428 = vld [vmem:[%s426] sm:$0xff]
        %v429 = vld [vmem:[%s426 + $0x8] sm:$0xff]
        %v430 = vld [vmem:[%s426 + $0x10] sm:$0xff]
        %v431 = vld [vmem:[%s426 + $0x18] sm:$0xff]
        %v432 = vld [vmem:[%s426 + $0x20] sm:$0xff]
        %v433 = vld [vmem:[%s426 + $0x28] sm:$0xff]
        %v434 = vld [vmem:[%s426 + $0x30] sm:$0xff]
        %v435 = vld [vmem:[%s426 + $0x38] sm:$0xff]
        %v436 = vld [vmem:[%s426 + $0x40] sm:$0xff]
        %v437 = vld [vmem:[%s426 + $0x48] sm:$0xff]
        %v438 = vld [vmem:[%s426 + $0x50] sm:$0xff]
        %v439 = vld [vmem:[%s426 + $0x58] sm:$0xff]
        %v440 = vld [vmem:[%s426 + $0x60] sm:$0xff]
        %v441 = vld [vmem:[%s426 + $0x68] sm:$0xff]
        %v442 = vld [vmem:[%s426 + $0x70] sm:$0xff]
        %v443 = vld [vmem:[%s426 + $0x78] sm:$0xff]
        %v444 = vld [vmem:[%s426 + $0x80] sm:$0xff]
        %v445 = vld [vmem:[%s426 + $0x88] sm:$0xff]
        %v446 = vld [vmem:[%s426 + $0x90] sm:$0xff]
        %v447 = vld [vmem:[%s426 + $0x98] sm:$0xff]
        %v448 = vld [vmem:[%s426 + $0xa0] sm:$0xff]
        %v449 = vld [vmem:[%s426 + $0xa8] sm:$0xff]
        %v450 = vld [vmem:[%s426 + $0xb0] sm:$0xff]
        %v451 = vld [vmem:[%s426 + $0xb8] sm:$0xff]
        %v452 = vld [vmem:[%s426 + $0xc0] sm:$0xff]
        %v453 = vld [vmem:[%s426 + $0xc8] sm:$0xff]
        %v454 = vld [vmem:[%s426 + $0xd0] sm:$0xff]
        %v455 = vld [vmem:[%s426 + $0xd8] sm:$0xff]
        %v456 = vld [vmem:[%s426 + $0xe0] sm:$0xff]
        %v457 = vld [vmem:[%s426 + $0xe8] sm:$0xff]
        %v458 = vld [vmem:[%s426 + $0xf0] sm:$0xff]
        %v459 = vld [vmem:[%s426 + $0xf8] sm:$0xff]
        %v460 = vld [vmem:[%s377] sm:$0xff]
        %v461 = vld [vmem:[%s377 + $0x8] sm:$0xff]
        %v462 = vld [vmem:[%s377 + $0x10] sm:$0xff]
        %v463 = vld [vmem:[%s377 + $0x18] sm:$0xff]
        %v464 = vld [vmem:[%s377 + $0x20] sm:$0xff]
        %v465 = vld [vmem:[%s377 + $0x28] sm:$0xff]
        %v466 = vld [vmem:[%s377 + $0x30] sm:$0xff]
        %v467 = vld [vmem:[%s377 + $0x38] sm:$0xff]
        %v468 = vld [vmem:[%s377 + $0x40] sm:$0xff]
        %v469 = vld [vmem:[%s377 + $0x48] sm:$0xff]
        %v470 = vld [vmem:[%s377 + $0x50] sm:$0xff]
        %v471 = vld [vmem:[%s377 + $0x58] sm:$0xff]
        %v472 = vld [vmem:[%s377 + $0x60] sm:$0xff]
        %v473 = vld [vmem:[%s377 + $0x68] sm:$0xff]
        %v474 = vld [vmem:[%s377 + $0x70] sm:$0xff]
        %v475 = vld [vmem:[%s377 + $0x78] sm:$0xff]
        %v476 = vld [vmem:[%s377 + $0x80] sm:$0xff]
        %v477 = vld [vmem:[%s377 + $0x88] sm:$0xff]
        %v478 = vld [vmem:[%s377 + $0x90] sm:$0xff]
        %v479 = vld [vmem:[%s377 + $0x98] sm:$0xff]
        %v480 = vld [vmem:[%s377 + $0xa0] sm:$0xff]
        %v481 = vld [vmem:[%s377 + $0xa8] sm:$0xff]
        %v482 = vld [vmem:[%s377 + $0xb0] sm:$0xff]
        %v483 = vld [vmem:[%s377 + $0xb8] sm:$0xff]
        %v484 = vld [vmem:[%s377 + $0xc0] sm:$0xff]
        %v485 = vld [vmem:[%s377 + $0xc8] sm:$0xff]
        %v486 = vld [vmem:[%s377 + $0xd0] sm:$0xff]
        %v487 = vld [vmem:[%s377 + $0xd8] sm:$0xff]
        %v488 = vld [vmem:[%s377 + $0xe0] sm:$0xff]
        %v489 = vld [vmem:[%s377 + $0xe8] sm:$0xff]
        %v490 = vld [vmem:[%s377 + $0xf0] sm:$0xff]
        %v491 = vld [vmem:[%s377 + $0xf8] sm:$0xff]
        %v492 = vld [vmem:[%s2] sm:$0xff]
        %v493 = vld [vmem:[%s2 + $0x8] sm:$0xff]
        %v494 = vld [vmem:[%s2 + $0x10] sm:$0xff]
        %v495 = vld [vmem:[%s2 + $0x18] sm:$0xff]
        %v496 = vld [vmem:[%s3] sm:$0x1]
        %v498 = vperm.slane %v496, 0
        %vm500 = vcmask 261120
        %v502 = vsel %vm500, %v428, 0
        %v505 = vsel %vm500, %v429, 0
        %v508 = vsel %vm500, %v430, 0
        %v511 = vsel %vm500, %v431, 0
        %v514 = vsel %vm500, %v432, 0
        %v517 = vsel %vm500, %v433, 0
        %v520 = vsel %vm500, %v434, 0
        %v523 = vsel %vm500, %v435, 0
        %v526 = vsel %vm500, %v436, 0
        %v529 = vsel %vm500, %v437, 0
        %v532 = vsel %vm500, %v438, 0
        %v535 = vsel %vm500, %v439, 0
        %v538 = vsel %vm500, %v440, 0
        %v541 = vsel %vm500, %v441, 0
        %v544 = vsel %vm500, %v442, 0
        %v547 = vsel %vm500, %v443, 0
        %v550 = vsel %vm500, %v444, 0
        %v553 = vsel %vm500, %v445, 0
        %v556 = vsel %vm500, %v446, 0
        %v559 = vsel %vm500, %v447, 0
        %v562 = vsel %vm500, %v448, 0
        %v565 = vsel %vm500, %v449, 0
        %v568 = vsel %vm500, %v450, 0
        %v571 = vsel %vm500, %v451, 0
        %v574 = vsel %vm500, %v452, 0
        %v577 = vsel %vm500, %v453, 0
        %v580 = vsel %vm500, %v454, 0
        %v583 = vsel %vm500, %v455, 0
        %v586 = vsel %vm500, %v456, 0
        %v589 = vsel %vm500, %v457, 0
        %v592 = vsel %vm500, %v458, 0
        %v595 = vsel %vm500, %v459, 0
        %597 = vmatpush.msra.mxu0 0.0
        %598 = vmatpush.msra.mxu0 0.0
        %599 = vmatpush.msra.mxu0 0.0
        %600 = vmatpush.msra.mxu0 0.0
        %601 = vmatpush.msra.mxu0 0.0
        %602 = vmatpush.msra.mxu0 0.0
        %603 = vmatpush.msra.mxu0 0.0
        %604 = vmatpush.msra.mxu0 0.0
        %605 = vmatpush.msra.mxu0 0.0
        %606 = vmatpush.msra.mxu0 0.0
        %607 = vmatpush.msra.mxu0 0.0
        %608 = vmatpush.msra.mxu0 0.0
        %609 = vmatpush.msra.mxu0 %v495
        %610 = vmatpush.msra.mxu0 %v494
        %611 = vmatpush.msra.mxu0 %v493
        %612 = vmatpush.msra.mxu0 %v492
        %613 = vmatmul.f32.gmra.mxu0 %v502
        %v614 = vpop.f32.mrf.mxu0
        %v615 = vadd.f32 %v498, %v614
        %616 = vmatmul.f32.gmra.mxu0 %v505
        %v617 = vpop.f32.mrf.mxu0
        %v618 = vadd.f32 %v498, %v617
        %619 = vmatmul.f32.gmra.mxu0 %v508
        %v620 = vpop.f32.mrf.mxu0
        %v621 = vadd.f32 %v498, %v620
        %622 = vmatmul.f32.gmra.mxu0 %v511
        %v623 = vpop.f32.mrf.mxu0
        %v624 = vadd.f32 %v498, %v623
        %625 = vmatmul.f32.gmra.mxu0 %v514
        %v626 = vpop.f32.mrf.mxu0
        %v627 = vadd.f32 %v498, %v626
        %628 = vmatmul.f32.gmra.mxu0 %v517
        %v629 = vpop.f32.mrf.mxu0
        %v630 = vadd.f32 %v498, %v629
        %631 = vmatmul.f32.gmra.mxu0 %v520
        %v632 = vpop.f32.mrf.mxu0
        %v633 = vadd.f32 %v498, %v632
        %634 = vmatmul.f32.gmra.mxu0 %v523
        %v635 = vpop.f32.mrf.mxu0
        %v636 = vadd.f32 %v498, %v635
        %637 = vmatmul.f32.gmra.mxu0 %v526
        %v638 = vpop.f32.mrf.mxu0
        %v639 = vadd.f32 %v498, %v638
        %640 = vmatmul.f32.gmra.mxu0 %v529
        %v641 = vpop.f32.mrf.mxu0
        %v642 = vadd.f32 %v498, %v641
        %643 = vmatmul.f32.gmra.mxu0 %v532
        %v644 = vpop.f32.mrf.mxu0
        %v645 = vadd.f32 %v498, %v644
        %646 = vmatmul.f32.gmra.mxu0 %v535
        %v647 = vpop.f32.mrf.mxu0
        %v648 = vadd.f32 %v498, %v647
        %649 = vmatmul.f32.gmra.mxu0 %v538
        %v650 = vpop.f32.mrf.mxu0
        %v651 = vadd.f32 %v498, %v650
        %652 = vmatmul.f32.gmra.mxu0 %v541
        %v653 = vpop.f32.mrf.mxu0
        %v654 = vadd.f32 %v498, %v653
        %655 = vmatmul.f32.gmra.mxu0 %v544
        %v656 = vpop.f32.mrf.mxu0
        %v657 = vadd.f32 %v498, %v656
        %658 = vmatmul.f32.gmra.mxu0 %v547
        %v659 = vpop.f32.mrf.mxu0
        %v660 = vadd.f32 %v498, %v659
        %661 = vmatmul.f32.gmra.mxu0 %v550
        %v662 = vpop.f32.mrf.mxu0
        %v663 = vadd.f32 %v498, %v662
        %664 = vmatmul.f32.gmra.mxu0 %v553
        %v665 = vpop.f32.mrf.mxu0
        %v666 = vadd.f32 %v498, %v665
        %667 = vmatmul.f32.gmra.mxu0 %v556
        %v668 = vpop.f32.mrf.mxu0
        %v669 = vadd.f32 %v498, %v668
        %670 = vmatmul.f32.gmra.mxu0 %v559
        %v671 = vpop.f32.mrf.mxu0
        %v672 = vadd.f32 %v498, %v671
        %673 = vmatmul.f32.gmra.mxu0 %v562
        %v674 = vpop.f32.mrf.mxu0
        %v675 = vadd.f32 %v498, %v674
        %676 = vmatmul.f32.gmra.mxu0 %v565
        %v677 = vpop.f32.mrf.mxu0
        %v678 = vadd.f32 %v498, %v677
        %679 = vmatmul.f32.gmra.mxu0 %v568
        %v680 = vpop.f32.mrf.mxu0
        %v681 = vadd.f32 %v498, %v680
        %682 = vmatmul.f32.gmra.mxu0 %v571
        %v683 = vpop.f32.mrf.mxu0
        %v684 = vadd.f32 %v498, %v683
        %685 = vmatmul.f32.gmra.mxu0 %v574
        %v686 = vpop.f32.mrf.mxu0
        %v687 = vadd.f32 %v498, %v686
        %688 = vmatmul.f32.gmra.mxu0 %v577
        %v689 = vpop.f32.mrf.mxu0
        %v690 = vadd.f32 %v498, %v689
        %691 = vmatmul.f32.gmra.mxu0 %v580
        %v692 = vpop.f32.mrf.mxu0
        %v693 = vadd.f32 %v498, %v692
        %694 = vmatmul.f32.gmra.mxu0 %v583
        %v695 = vpop.f32.mrf.mxu0
        %v696 = vadd.f32 %v498, %v695
        %697 = vmatmul.f32.gmra.mxu0 %v586
        %v698 = vpop.f32.mrf.mxu0
        %v699 = vadd.f32 %v498, %v698
        %700 = vmatmul.f32.gmra.mxu0 %v589
        %v701 = vpop.f32.mrf.mxu0
        %v702 = vadd.f32 %v498, %v701
        %703 = vmatmul.f32.gmra.mxu0 %v592
        %v704 = vpop.f32.mrf.mxu0
        %v705 = vadd.f32 %v498, %v704
        %706 = vmatmul.f32.gmra.mxu0 %v595
        %v707 = vpop.f32.mrf.mxu0
        %v708 = vadd.f32 %v498, %v707
        %709 = vdwg.mxu0
        %v710 = vxor.u32 %v615, 2147483648
        %v711 = vxor.u32 %v618, 2147483648
        %v712 = vxor.u32 %v621, 2147483648
        %v713 = vxor.u32 %v624, 2147483648
        %v714 = vxor.u32 %v627, 2147483648
        %v715 = vxor.u32 %v630, 2147483648
        %v716 = vxor.u32 %v633, 2147483648
        %v717 = vxor.u32 %v636, 2147483648
        %v718 = vxor.u32 %v639, 2147483648
        %v719 = vxor.u32 %v642, 2147483648
        %v720 = vxor.u32 %v645, 2147483648
        %v721 = vxor.u32 %v648, 2147483648
        %v722 = vxor.u32 %v651, 2147483648
        %v723 = vxor.u32 %v654, 2147483648
        %v724 = vxor.u32 %v657, 2147483648
        %v725 = vxor.u32 %v660, 2147483648
        %v726 = vxor.u32 %v663, 2147483648
        %v727 = vxor.u32 %v666, 2147483648
        %v728 = vxor.u32 %v669, 2147483648
        %v729 = vxor.u32 %v672, 2147483648
        %v730 = vxor.u32 %v675, 2147483648
        %v731 = vxor.u32 %v678, 2147483648
        %v732 = vxor.u32 %v681, 2147483648
        %v733 = vxor.u32 %v684, 2147483648
        %v734 = vxor.u32 %v687, 2147483648
        %v735 = vxor.u32 %v690, 2147483648
        %v736 = vxor.u32 %v693, 2147483648
        %v737 = vxor.u32 %v696, 2147483648
        %v738 = vxor.u32 %v699, 2147483648
        %v739 = vxor.u32 %v702, 2147483648
        %v740 = vxor.u32 %v705, 2147483648
        %v741 = vxor.u32 %v708, 2147483648
        %v742 = vmul.f32 %v710, 1.442695
        %v743 = vpow.pop %v742
        %v744 = vmul.f32 %v711, 1.442695
        %v745 = vpow.pop %v744
        %v746 = vmul.f32 %v712, 1.442695
        %v747 = vpow.pop %v746
        %v748 = vmul.f32 %v713, 1.442695
        %v749 = vpow.pop %v748
        %v750 = vmul.f32 %v714, 1.442695
        %v751 = vpow.pop %v750
        %v752 = vmul.f32 %v715, 1.442695
        %v753 = vpow.pop %v752
        %v754 = vmul.f32 %v716, 1.442695
        %v755 = vpow.pop %v754
        %v756 = vmul.f32 %v717, 1.442695
        %v757 = vpow.pop %v756
        %v758 = vmul.f32 %v718, 1.442695
        %v759 = vpow.pop %v758
        %v760 = vmul.f32 %v719, 1.442695
        %v761 = vpow.pop %v760
        %v762 = vmul.f32 %v720, 1.442695
        %v763 = vpow.pop %v762
        %v764 = vmul.f32 %v721, 1.442695
        %v765 = vpow.pop %v764
        %v766 = vmul.f32 %v722, 1.442695
        %v767 = vpow.pop %v766
        %v768 = vmul.f32 %v723, 1.442695
        %v769 = vpow.pop %v768
        %v770 = vmul.f32 %v724, 1.442695
        %v771 = vpow.pop %v770
        %v772 = vmul.f32 %v725, 1.442695
        %v773 = vpow.pop %v772
        %v774 = vmul.f32 %v726, 1.442695
        %v775 = vpow.pop %v774
        %v776 = vmul.f32 %v727, 1.442695
        %v777 = vpow.pop %v776
        %v778 = vmul.f32 %v728, 1.442695
        %v779 = vpow.pop %v778
        %v780 = vmul.f32 %v729, 1.442695
        %v781 = vpow.pop %v780
        %v782 = vmul.f32 %v730, 1.442695
        %v783 = vpow.pop %v782
        %v784 = vmul.f32 %v731, 1.442695
        %v785 = vpow.pop %v784
        %v786 = vmul.f32 %v732, 1.442695
        %v787 = vpow.pop %v786
        %v788 = vmul.f32 %v733, 1.442695
        %v789 = vpow.pop %v788
        %v790 = vmul.f32 %v734, 1.442695
        %v791 = vpow.pop %v790
        %v792 = vmul.f32 %v735, 1.442695
        %v793 = vpow.pop %v792
        %v794 = vmul.f32 %v736, 1.442695
        %v795 = vpow.pop %v794
        %v796 = vmul.f32 %v737, 1.442695
        %v797 = vpow.pop %v796
        %v798 = vmul.f32 %v738, 1.442695
        %v799 = vpow.pop %v798
        %v800 = vmul.f32 %v739, 1.442695
        %v801 = vpow.pop %v800
        %v802 = vmul.f32 %v740, 1.442695
        %v803 = vpow.pop %v802
        %v804 = vmul.f32 %v741, 1.442695
        %v805 = vpow.pop %v804
        %v806 = vadd.f32 %v743, 1.0
        %v807 = vadd.f32 %v745, 1.0
        %v808 = vadd.f32 %v747, 1.0
        %v809 = vadd.f32 %v749, 1.0
        %v810 = vadd.f32 %v751, 1.0
        %v811 = vadd.f32 %v753, 1.0
        %v812 = vadd.f32 %v755, 1.0
        %v813 = vadd.f32 %v757, 1.0
        %v814 = vadd.f32 %v759, 1.0
        %v815 = vadd.f32 %v761, 1.0
        %v816 = vadd.f32 %v763, 1.0
        %v817 = vadd.f32 %v765, 1.0
        %v818 = vadd.f32 %v767, 1.0
        %v819 = vadd.f32 %v769, 1.0
        %v820 = vadd.f32 %v771, 1.0
        %v821 = vadd.f32 %v773, 1.0
        %v822 = vadd.f32 %v775, 1.0
        %v823 = vadd.f32 %v777, 1.0
        %v824 = vadd.f32 %v779, 1.0
        %v825 = vadd.f32 %v781, 1.0
        %v826 = vadd.f32 %v783, 1.0
        %v827 = vadd.f32 %v785, 1.0
        %v828 = vadd.f32 %v787, 1.0
        %v829 = vadd.f32 %v789, 1.0
        %v830 = vadd.f32 %v791, 1.0
        %v831 = vadd.f32 %v793, 1.0
        %v832 = vadd.f32 %v795, 1.0
        %v833 = vadd.f32 %v797, 1.0
        %v834 = vadd.f32 %v799, 1.0
        %v835 = vadd.f32 %v801, 1.0
        %v836 = vadd.f32 %v803, 1.0
        %v837 = vadd.f32 %v805, 1.0
        %v838 = vrcp.pop %v806
        %v839 = vmul.f32 %v806, %v838
        %v840 = vsub.f32 1.0, %v839
        %v841 = vmul.f32 %v838, %v840
        %v842 = vadd.f32 %v838, %v841
        %vm843 = vweird.f32 %v806
        %vm844 = vweird.f32 %v838
        %vm845 = vmor %vm843, %vm844
        %v846 = vsel %vm845, %v838, %v842
        %v847 = vand.u32 2147483647, %v806
        %vm848 = vcmp.eq.f32.partialorder %v847, 8.507059e+37
        %v849 = vand.u32 %v806, 2147483648
        %v850 = vor.u32 1.1754944e-38, %v849
        %v851 = vsel %vm848, %v850, %v846
        %v852 = vmul.f32 1.0, %v851
        %v853 = vrcp.pop %v807
        %v854 = vmul.f32 %v807, %v853
        %v855 = vsub.f32 1.0, %v854
        %v856 = vmul.f32 %v853, %v855
        %v857 = vadd.f32 %v853, %v856
        %vm858 = vweird.f32 %v807
        %vm859 = vweird.f32 %v853
        %vm860 = vmor %vm858, %vm859
        %v861 = vsel %vm860, %v853, %v857
        %v862 = vand.u32 2147483647, %v807
        %vm863 = vcmp.eq.f32.partialorder %v862, 8.507059e+37
        %v864 = vand.u32 %v807, 2147483648
        %v865 = vor.u32 1.1754944e-38, %v864
        %v866 = vsel %vm863, %v865, %v861
        %v867 = vmul.f32 1.0, %v866
        %v868 = vrcp.pop %v808
        %v869 = vmul.f32 %v808, %v868
        %v870 = vsub.f32 1.0, %v869
        %v871 = vmul.f32 %v868, %v870
        %v872 = vadd.f32 %v868, %v871
        %vm873 = vweird.f32 %v808
        %vm874 = vweird.f32 %v868
        %vm875 = vmor %vm873, %vm874
        %v876 = vsel %vm875, %v868, %v872
        %v877 = vand.u32 2147483647, %v808
        %vm878 = vcmp.eq.f32.partialorder %v877, 8.507059e+37
        %v879 = vand.u32 %v808, 2147483648
        %v880 = vor.u32 1.1754944e-38, %v879
        %v881 = vsel %vm878, %v880, %v876
        %v882 = vmul.f32 1.0, %v881
        %v883 = vrcp.pop %v809
        %v884 = vmul.f32 %v809, %v883
        %v885 = vsub.f32 1.0, %v884
        %v886 = vmul.f32 %v883, %v885
        %v887 = vadd.f32 %v883, %v886
        %vm888 = vweird.f32 %v809
        %vm889 = vweird.f32 %v883
        %vm890 = vmor %vm888, %vm889
        %v891 = vsel %vm890, %v883, %v887
        %v892 = vand.u32 2147483647, %v809
        %vm893 = vcmp.eq.f32.partialorder %v892, 8.507059e+37
        %v894 = vand.u32 %v809, 2147483648
        %v895 = vor.u32 1.1754944e-38, %v894
        %v896 = vsel %vm893, %v895, %v891
        %v897 = vmul.f32 1.0, %v896
        %v898 = vrcp.pop %v810
        %v899 = vmul.f32 %v810, %v898
        %v900 = vsub.f32 1.0, %v899
        %v901 = vmul.f32 %v898, %v900
        %v902 = vadd.f32 %v898, %v901
        %vm903 = vweird.f32 %v810
        %vm904 = vweird.f32 %v898
        %vm905 = vmor %vm903, %vm904
        %v906 = vsel %vm905, %v898, %v902
        %v907 = vand.u32 2147483647, %v810
        %vm908 = vcmp.eq.f32.partialorder %v907, 8.507059e+37
        %v909 = vand.u32 %v810, 2147483648
        %v910 = vor.u32 1.1754944e-38, %v909
        %v911 = vsel %vm908, %v910, %v906
        %v912 = vmul.f32 1.0, %v911
        %v913 = vrcp.pop %v811
        %v914 = vmul.f32 %v811, %v913
        %v915 = vsub.f32 1.0, %v914
        %v916 = vmul.f32 %v913, %v915
        %v917 = vadd.f32 %v913, %v916
        %vm918 = vweird.f32 %v811
        %vm919 = vweird.f32 %v913
        %vm920 = vmor %vm918, %vm919
        %v921 = vsel %vm920, %v913, %v917
        %v922 = vand.u32 2147483647, %v811
        %vm923 = vcmp.eq.f32.partialorder %v922, 8.507059e+37
        %v924 = vand.u32 %v811, 2147483648
        %v925 = vor.u32 1.1754944e-38, %v924
        %v926 = vsel %vm923, %v925, %v921
        %v927 = vmul.f32 1.0, %v926
        %v928 = vrcp.pop %v812
        %v929 = vmul.f32 %v812, %v928
        %v930 = vsub.f32 1.0, %v929
        %v931 = vmul.f32 %v928, %v930
        %v932 = vadd.f32 %v928, %v931
        %vm933 = vweird.f32 %v812
        %vm934 = vweird.f32 %v928
        %vm935 = vmor %vm933, %vm934
        %v936 = vsel %vm935, %v928, %v932
        %v937 = vand.u32 2147483647, %v812
        %vm938 = vcmp.eq.f32.partialorder %v937, 8.507059e+37
        %v939 = vand.u32 %v812, 2147483648
        %v940 = vor.u32 1.1754944e-38, %v939
        %v941 = vsel %vm938, %v940, %v936
        %v942 = vmul.f32 1.0, %v941
        %v943 = vrcp.pop %v813
        %v944 = vmul.f32 %v813, %v943
        %v945 = vsub.f32 1.0, %v944
        %v946 = vmul.f32 %v943, %v945
        %v947 = vadd.f32 %v943, %v946
        %vm948 = vweird.f32 %v813
        %vm949 = vweird.f32 %v943
        %vm950 = vmor %vm948, %vm949
        %v951 = vsel %vm950, %v943, %v947
        %v952 = vand.u32 2147483647, %v813
        %vm953 = vcmp.eq.f32.partialorder %v952, 8.507059e+37
        %v954 = vand.u32 %v813, 2147483648
        %v955 = vor.u32 1.1754944e-38, %v954
        %v956 = vsel %vm953, %v955, %v951
        %v957 = vmul.f32 1.0, %v956
        %v958 = vrcp.pop %v814
        %v959 = vmul.f32 %v814, %v958
        %v960 = vsub.f32 1.0, %v959
        %v961 = vmul.f32 %v958, %v960
        %v962 = vadd.f32 %v958, %v961
        %vm963 = vweird.f32 %v814
        %vm964 = vweird.f32 %v958
        %vm965 = vmor %vm963, %vm964
        %v966 = vsel %vm965, %v958, %v962
        %v967 = vand.u32 2147483647, %v814
        %vm968 = vcmp.eq.f32.partialorder %v967, 8.507059e+37
        %v969 = vand.u32 %v814, 2147483648
        %v970 = vor.u32 1.1754944e-38, %v969
        %v971 = vsel %vm968, %v970, %v966
        %v972 = vmul.f32 1.0, %v971
        %v973 = vrcp.pop %v815
        %v974 = vmul.f32 %v815, %v973
        %v975 = vsub.f32 1.0, %v974
        %v976 = vmul.f32 %v973, %v975
        %v977 = vadd.f32 %v973, %v976
        %vm978 = vweird.f32 %v815
        %vm979 = vweird.f32 %v973
        %vm980 = vmor %vm978, %vm979
        %v981 = vsel %vm980, %v973, %v977
        %v982 = vand.u32 2147483647, %v815
        %vm983 = vcmp.eq.f32.partialorder %v982, 8.507059e+37
        %v984 = vand.u32 %v815, 2147483648
        %v985 = vor.u32 1.1754944e-38, %v984
        %v986 = vsel %vm983, %v985, %v981
        %v987 = vmul.f32 1.0, %v986
        %v988 = vrcp.pop %v816
        %v989 = vmul.f32 %v816, %v988
        %v990 = vsub.f32 1.0, %v989
        %v991 = vmul.f32 %v988, %v990
        %v992 = vadd.f32 %v988, %v991
        %vm993 = vweird.f32 %v816
        %vm994 = vweird.f32 %v988
        %vm995 = vmor %vm993, %vm994
        %v996 = vsel %vm995, %v988, %v992
        %v997 = vand.u32 2147483647, %v816
        %vm998 = vcmp.eq.f32.partialorder %v997, 8.507059e+37
        %v999 = vand.u32 %v816, 2147483648
        %v1000 = vor.u32 1.1754944e-38, %v999
        %v1001 = vsel %vm998, %v1000, %v996
        %v1002 = vmul.f32 1.0, %v1001
        %v1003 = vrcp.pop %v817
        %v1004 = vmul.f32 %v817, %v1003
        %v1005 = vsub.f32 1.0, %v1004
        %v1006 = vmul.f32 %v1003, %v1005
        %v1007 = vadd.f32 %v1003, %v1006
        %vm1008 = vweird.f32 %v817
        %vm1009 = vweird.f32 %v1003
        %vm1010 = vmor %vm1008, %vm1009
        %v1011 = vsel %vm1010, %v1003, %v1007
        %v1012 = vand.u32 2147483647, %v817
        %vm1013 = vcmp.eq.f32.partialorder %v1012, 8.507059e+37
        %v1014 = vand.u32 %v817, 2147483648
        %v1015 = vor.u32 1.1754944e-38, %v1014
        %v1016 = vsel %vm1013, %v1015, %v1011
        %v1017 = vmul.f32 1.0, %v1016
        %v1018 = vrcp.pop %v818
        %v1019 = vmul.f32 %v818, %v1018
        %v1020 = vsub.f32 1.0, %v1019
        %v1021 = vmul.f32 %v1018, %v1020
        %v1022 = vadd.f32 %v1018, %v1021
        %vm1023 = vweird.f32 %v818
        %vm1024 = vweird.f32 %v1018
        %vm1025 = vmor %vm1023, %vm1024
        %v1026 = vsel %vm1025, %v1018, %v1022
        %v1027 = vand.u32 2147483647, %v818
        %vm1028 = vcmp.eq.f32.partialorder %v1027, 8.507059e+37
        %v1029 = vand.u32 %v818, 2147483648
        %v1030 = vor.u32 1.1754944e-38, %v1029
        %v1031 = vsel %vm1028, %v1030, %v1026
        %v1032 = vmul.f32 1.0, %v1031
        %v1033 = vrcp.pop %v819
        %v1034 = vmul.f32 %v819, %v1033
        %v1035 = vsub.f32 1.0, %v1034
        %v1036 = vmul.f32 %v1033, %v1035
        %v1037 = vadd.f32 %v1033, %v1036
        %vm1038 = vweird.f32 %v819
        %vm1039 = vweird.f32 %v1033
        %vm1040 = vmor %vm1038, %vm1039
        %v1041 = vsel %vm1040, %v1033, %v1037
        %v1042 = vand.u32 2147483647, %v819
        %vm1043 = vcmp.eq.f32.partialorder %v1042, 8.507059e+37
        %v1044 = vand.u32 %v819, 2147483648
        %v1045 = vor.u32 1.1754944e-38, %v1044
        %v1046 = vsel %vm1043, %v1045, %v1041
        %v1047 = vmul.f32 1.0, %v1046
        %v1048 = vrcp.pop %v820
        %v1049 = vmul.f32 %v820, %v1048
        %v1050 = vsub.f32 1.0, %v1049
        %v1051 = vmul.f32 %v1048, %v1050
        %v1052 = vadd.f32 %v1048, %v1051
        %vm1053 = vweird.f32 %v820
        %vm1054 = vweird.f32 %v1048
        %vm1055 = vmor %vm1053, %vm1054
        %v1056 = vsel %vm1055, %v1048, %v1052
        %v1057 = vand.u32 2147483647, %v820
        %vm1058 = vcmp.eq.f32.partialorder %v1057, 8.507059e+37
        %v1059 = vand.u32 %v820, 2147483648
        %v1060 = vor.u32 1.1754944e-38, %v1059
        %v1061 = vsel %vm1058, %v1060, %v1056
        %v1062 = vmul.f32 1.0, %v1061
        %v1063 = vrcp.pop %v821
        %v1064 = vmul.f32 %v821, %v1063
        %v1065 = vsub.f32 1.0, %v1064
        %v1066 = vmul.f32 %v1063, %v1065
        %v1067 = vadd.f32 %v1063, %v1066
        %vm1068 = vweird.f32 %v821
        %vm1069 = vweird.f32 %v1063
        %vm1070 = vmor %vm1068, %vm1069
        %v1071 = vsel %vm1070, %v1063, %v1067
        %v1072 = vand.u32 2147483647, %v821
        %vm1073 = vcmp.eq.f32.partialorder %v1072, 8.507059e+37
        %v1074 = vand.u32 %v821, 2147483648
        %v1075 = vor.u32 1.1754944e-38, %v1074
        %v1076 = vsel %vm1073, %v1075, %v1071
        %v1077 = vmul.f32 1.0, %v1076
        %v1078 = vrcp.pop %v822
        %v1079 = vmul.f32 %v822, %v1078
        %v1080 = vsub.f32 1.0, %v1079
        %v1081 = vmul.f32 %v1078, %v1080
        %v1082 = vadd.f32 %v1078, %v1081
        %vm1083 = vweird.f32 %v822
        %vm1084 = vweird.f32 %v1078
        %vm1085 = vmor %vm1083, %vm1084
        %v1086 = vsel %vm1085, %v1078, %v1082
        %v1087 = vand.u32 2147483647, %v822
        %vm1088 = vcmp.eq.f32.partialorder %v1087, 8.507059e+37
        %v1089 = vand.u32 %v822, 2147483648
        %v1090 = vor.u32 1.1754944e-38, %v1089
        %v1091 = vsel %vm1088, %v1090, %v1086
        %v1092 = vmul.f32 1.0, %v1091
        %v1093 = vrcp.pop %v823
        %v1094 = vmul.f32 %v823, %v1093
        %v1095 = vsub.f32 1.0, %v1094
        %v1096 = vmul.f32 %v1093, %v1095
        %v1097 = vadd.f32 %v1093, %v1096
        %vm1098 = vweird.f32 %v823
        %vm1099 = vweird.f32 %v1093
        %vm1100 = vmor %vm1098, %vm1099
        %v1101 = vsel %vm1100, %v1093, %v1097
        %v1102 = vand.u32 2147483647, %v823
        %vm1103 = vcmp.eq.f32.partialorder %v1102, 8.507059e+37
        %v1104 = vand.u32 %v823, 2147483648
        %v1105 = vor.u32 1.1754944e-38, %v1104
        %v1106 = vsel %vm1103, %v1105, %v1101
        %v1107 = vmul.f32 1.0, %v1106
        %v1108 = vrcp.pop %v824
        %v1109 = vmul.f32 %v824, %v1108
        %v1110 = vsub.f32 1.0, %v1109
        %v1111 = vmul.f32 %v1108, %v1110
        %v1112 = vadd.f32 %v1108, %v1111
        %vm1113 = vweird.f32 %v824
        %vm1114 = vweird.f32 %v1108
        %vm1115 = vmor %vm1113, %vm1114
        %v1116 = vsel %vm1115, %v1108, %v1112
        %v1117 = vand.u32 2147483647, %v824
        %vm1118 = vcmp.eq.f32.partialorder %v1117, 8.507059e+37
        %v1119 = vand.u32 %v824, 2147483648
        %v1120 = vor.u32 1.1754944e-38, %v1119
        %v1121 = vsel %vm1118, %v1120, %v1116
        %v1122 = vmul.f32 1.0, %v1121
        %v1123 = vrcp.pop %v825
        %v1124 = vmul.f32 %v825, %v1123
        %v1125 = vsub.f32 1.0, %v1124
        %v1126 = vmul.f32 %v1123, %v1125
        %v1127 = vadd.f32 %v1123, %v1126
        %vm1128 = vweird.f32 %v825
        %vm1129 = vweird.f32 %v1123
        %vm1130 = vmor %vm1128, %vm1129
        %v1131 = vsel %vm1130, %v1123, %v1127
        %v1132 = vand.u32 2147483647, %v825
        %vm1133 = vcmp.eq.f32.partialorder %v1132, 8.507059e+37
        %v1134 = vand.u32 %v825, 2147483648
        %v1135 = vor.u32 1.1754944e-38, %v1134
        %v1136 = vsel %vm1133, %v1135, %v1131
        %v1137 = vmul.f32 1.0, %v1136
        %v1138 = vrcp.pop %v826
        %v1139 = vmul.f32 %v826, %v1138
        %v1140 = vsub.f32 1.0, %v1139
        %v1141 = vmul.f32 %v1138, %v1140
        %v1142 = vadd.f32 %v1138, %v1141
        %vm1143 = vweird.f32 %v826
        %vm1144 = vweird.f32 %v1138
        %vm1145 = vmor %vm1143, %vm1144
        %v1146 = vsel %vm1145, %v1138, %v1142
        %v1147 = vand.u32 2147483647, %v826
        %vm1148 = vcmp.eq.f32.partialorder %v1147, 8.507059e+37
        %v1149 = vand.u32 %v826, 2147483648
        %v1150 = vor.u32 1.1754944e-38, %v1149
        %v1151 = vsel %vm1148, %v1150, %v1146
        %v1152 = vmul.f32 1.0, %v1151
        %v1153 = vrcp.pop %v827
        %v1154 = vmul.f32 %v827, %v1153
        %v1155 = vsub.f32 1.0, %v1154
        %v1156 = vmul.f32 %v1153, %v1155
        %v1157 = vadd.f32 %v1153, %v1156
        %vm1158 = vweird.f32 %v827
        %vm1159 = vweird.f32 %v1153
        %vm1160 = vmor %vm1158, %vm1159
        %v1161 = vsel %vm1160, %v1153, %v1157
        %v1162 = vand.u32 2147483647, %v827
        %vm1163 = vcmp.eq.f32.partialorder %v1162, 8.507059e+37
        %v1164 = vand.u32 %v827, 2147483648
        %v1165 = vor.u32 1.1754944e-38, %v1164
        %v1166 = vsel %vm1163, %v1165, %v1161
        %v1167 = vmul.f32 1.0, %v1166
        %v1168 = vrcp.pop %v828
        %v1169 = vmul.f32 %v828, %v1168
        %v1170 = vsub.f32 1.0, %v1169
        %v1171 = vmul.f32 %v1168, %v1170
        %v1172 = vadd.f32 %v1168, %v1171
        %vm1173 = vweird.f32 %v828
        %vm1174 = vweird.f32 %v1168
        %vm1175 = vmor %vm1173, %vm1174
        %v1176 = vsel %vm1175, %v1168, %v1172
        %v1177 = vand.u32 2147483647, %v828
        %vm1178 = vcmp.eq.f32.partialorder %v1177, 8.507059e+37
        %v1179 = vand.u32 %v828, 2147483648
        %v1180 = vor.u32 1.1754944e-38, %v1179
        %v1181 = vsel %vm1178, %v1180, %v1176
        %v1182 = vmul.f32 1.0, %v1181
        %v1183 = vrcp.pop %v829
        %v1184 = vmul.f32 %v829, %v1183
        %v1185 = vsub.f32 1.0, %v1184
        %v1186 = vmul.f32 %v1183, %v1185
        %v1187 = vadd.f32 %v1183, %v1186
        %vm1188 = vweird.f32 %v829
        %vm1189 = vweird.f32 %v1183
        %vm1190 = vmor %vm1188, %vm1189
        %v1191 = vsel %vm1190, %v1183, %v1187
        %v1192 = vand.u32 2147483647, %v829
        %vm1193 = vcmp.eq.f32.partialorder %v1192, 8.507059e+37
        %v1194 = vand.u32 %v829, 2147483648
        %v1195 = vor.u32 1.1754944e-38, %v1194
        %v1196 = vsel %vm1193, %v1195, %v1191
        %v1197 = vmul.f32 1.0, %v1196
        %v1198 = vrcp.pop %v830
        %v1199 = vmul.f32 %v830, %v1198
        %v1200 = vsub.f32 1.0, %v1199
        %v1201 = vmul.f32 %v1198, %v1200
        %v1202 = vadd.f32 %v1198, %v1201
        %vm1203 = vweird.f32 %v830
        %vm1204 = vweird.f32 %v1198
        %vm1205 = vmor %vm1203, %vm1204
        %v1206 = vsel %vm1205, %v1198, %v1202
        %v1207 = vand.u32 2147483647, %v830
        %vm1208 = vcmp.eq.f32.partialorder %v1207, 8.507059e+37
        %v1209 = vand.u32 %v830, 2147483648
        %v1210 = vor.u32 1.1754944e-38, %v1209
        %v1211 = vsel %vm1208, %v1210, %v1206
        %v1212 = vmul.f32 1.0, %v1211
        %v1213 = vrcp.pop %v831
        %v1214 = vmul.f32 %v831, %v1213
        %v1215 = vsub.f32 1.0, %v1214
        %v1216 = vmul.f32 %v1213, %v1215
        %v1217 = vadd.f32 %v1213, %v1216
        %vm1218 = vweird.f32 %v831
        %vm1219 = vweird.f32 %v1213
        %vm1220 = vmor %vm1218, %vm1219
        %v1221 = vsel %vm1220, %v1213, %v1217
        %v1222 = vand.u32 2147483647, %v831
        %vm1223 = vcmp.eq.f32.partialorder %v1222, 8.507059e+37
        %v1224 = vand.u32 %v831, 2147483648
        %v1225 = vor.u32 1.1754944e-38, %v1224
        %v1226 = vsel %vm1223, %v1225, %v1221
        %v1227 = vmul.f32 1.0, %v1226
        %v1228 = vrcp.pop %v832
        %v1229 = vmul.f32 %v832, %v1228
        %v1230 = vsub.f32 1.0, %v1229
        %v1231 = vmul.f32 %v1228, %v1230
        %v1232 = vadd.f32 %v1228, %v1231
        %vm1233 = vweird.f32 %v832
        %vm1234 = vweird.f32 %v1228
        %vm1235 = vmor %vm1233, %vm1234
        %v1236 = vsel %vm1235, %v1228, %v1232
        %v1237 = vand.u32 2147483647, %v832
        %vm1238 = vcmp.eq.f32.partialorder %v1237, 8.507059e+37
        %v1239 = vand.u32 %v832, 2147483648
        %v1240 = vor.u32 1.1754944e-38, %v1239
        %v1241 = vsel %vm1238, %v1240, %v1236
        %v1242 = vmul.f32 1.0, %v1241
        %v1243 = vrcp.pop %v833
        %v1244 = vmul.f32 %v833, %v1243
        %v1245 = vsub.f32 1.0, %v1244
        %v1246 = vmul.f32 %v1243, %v1245
        %v1247 = vadd.f32 %v1243, %v1246
        %vm1248 = vweird.f32 %v833
        %vm1249 = vweird.f32 %v1243
        %vm1250 = vmor %vm1248, %vm1249
        %v1251 = vsel %vm1250, %v1243, %v1247
        %v1252 = vand.u32 2147483647, %v833
        %vm1253 = vcmp.eq.f32.partialorder %v1252, 8.507059e+37
        %v1254 = vand.u32 %v833, 2147483648
        %v1255 = vor.u32 1.1754944e-38, %v1254
        %v1256 = vsel %vm1253, %v1255, %v1251
        %v1257 = vmul.f32 1.0, %v1256
        %v1258 = vrcp.pop %v834
        %v1259 = vmul.f32 %v834, %v1258
        %v1260 = vsub.f32 1.0, %v1259
        %v1261 = vmul.f32 %v1258, %v1260
        %v1262 = vadd.f32 %v1258, %v1261
        %vm1263 = vweird.f32 %v834
        %vm1264 = vweird.f32 %v1258
        %vm1265 = vmor %vm1263, %vm1264
        %v1266 = vsel %vm1265, %v1258, %v1262
        %v1267 = vand.u32 2147483647, %v834
        %vm1268 = vcmp.eq.f32.partialorder %v1267, 8.507059e+37
        %v1269 = vand.u32 %v834, 2147483648
        %v1270 = vor.u32 1.1754944e-38, %v1269
        %v1271 = vsel %vm1268, %v1270, %v1266
        %v1272 = vmul.f32 1.0, %v1271
        %v1273 = vrcp.pop %v835
        %v1274 = vmul.f32 %v835, %v1273
        %v1275 = vsub.f32 1.0, %v1274
        %v1276 = vmul.f32 %v1273, %v1275
        %v1277 = vadd.f32 %v1273, %v1276
        %vm1278 = vweird.f32 %v835
        %vm1279 = vweird.f32 %v1273
        %vm1280 = vmor %vm1278, %vm1279
        %v1281 = vsel %vm1280, %v1273, %v1277
        %v1282 = vand.u32 2147483647, %v835
        %vm1283 = vcmp.eq.f32.partialorder %v1282, 8.507059e+37
        %v1284 = vand.u32 %v835, 2147483648
        %v1285 = vor.u32 1.1754944e-38, %v1284
        %v1286 = vsel %vm1283, %v1285, %v1281
        %v1287 = vmul.f32 1.0, %v1286
        %v1288 = vrcp.pop %v836
        %v1289 = vmul.f32 %v836, %v1288
        %v1290 = vsub.f32 1.0, %v1289
        %v1291 = vmul.f32 %v1288, %v1290
        %v1292 = vadd.f32 %v1288, %v1291
        %vm1293 = vweird.f32 %v836
        %vm1294 = vweird.f32 %v1288
        %vm1295 = vmor %vm1293, %vm1294
        %v1296 = vsel %vm1295, %v1288, %v1292
        %v1297 = vand.u32 2147483647, %v836
        %vm1298 = vcmp.eq.f32.partialorder %v1297, 8.507059e+37
        %v1299 = vand.u32 %v836, 2147483648
        %v1300 = vor.u32 1.1754944e-38, %v1299
        %v1301 = vsel %vm1298, %v1300, %v1296
        %v1302 = vmul.f32 1.0, %v1301
        %v1303 = vrcp.pop %v837
        %v1304 = vmul.f32 %v837, %v1303
        %v1305 = vsub.f32 1.0, %v1304
        %v1306 = vmul.f32 %v1303, %v1305
        %v1307 = vadd.f32 %v1303, %v1306
        %vm1308 = vweird.f32 %v837
        %vm1309 = vweird.f32 %v1303
        %vm1310 = vmor %vm1308, %vm1309
        %v1311 = vsel %vm1310, %v1303, %v1307
        %v1312 = vand.u32 2147483647, %v837
        %vm1313 = vcmp.eq.f32.partialorder %v1312, 8.507059e+37
        %v1314 = vand.u32 %v837, 2147483648
        %v1315 = vor.u32 1.1754944e-38, %v1314
        %v1316 = vsel %vm1313, %v1315, %v1311
        %v1317 = vmul.f32 1.0, %v1316
        %v1318 = vmul.f32 %v615, %v852
        %v1319 = vmul.f32 %v618, %v867
        %v1320 = vmul.f32 %v621, %v882
        %v1321 = vmul.f32 %v624, %v897
        %v1322 = vmul.f32 %v627, %v912
        %v1323 = vmul.f32 %v630, %v927
        %v1324 = vmul.f32 %v633, %v942
        %v1325 = vmul.f32 %v636, %v957
        %v1326 = vmul.f32 %v639, %v972
        %v1327 = vmul.f32 %v642, %v987
        %v1328 = vmul.f32 %v645, %v1002
        %v1329 = vmul.f32 %v648, %v1017
        %v1330 = vmul.f32 %v651, %v1032
        %v1331 = vmul.f32 %v654, %v1047
        %v1332 = vmul.f32 %v657, %v1062
        %v1333 = vmul.f32 %v660, %v1077
        %v1334 = vmul.f32 %v663, %v1092
        %v1335 = vmul.f32 %v666, %v1107
        %v1336 = vmul.f32 %v669, %v1122
        %v1337 = vmul.f32 %v672, %v1137
        %v1338 = vmul.f32 %v675, %v1152
        %v1339 = vmul.f32 %v678, %v1167
        %v1340 = vmul.f32 %v681, %v1182
        %v1341 = vmul.f32 %v684, %v1197
        %v1342 = vmul.f32 %v687, %v1212
        %v1343 = vmul.f32 %v690, %v1227
        %v1344 = vmul.f32 %v693, %v1242
        %v1345 = vmul.f32 %v696, %v1257
        %v1346 = vmul.f32 %v699, %v1272
        %v1347 = vmul.f32 %v702, %v1287
        %v1348 = vmul.f32 %v705, %v1302
        %v1349 = vmul.f32 %v708, %v1317
        %v1350 = vld [vmem:[%s4] sm:$0xff]
        %v1351 = vld [vmem:[%s4 + $0x8] sm:$0xff]
        %v1352 = vld [vmem:[%s4 + $0x10] sm:$0xff]
        %v1353 = vld [vmem:[%s4 + $0x18] sm:$0xff]
        %v1354 = vld [vmem:[%s5] sm:$0x1]
        %v1356 = vperm.slane %v1354, 0
        %v1359 = vsel %vm500, %v460, 0
        %v1362 = vsel %vm500, %v461, 0
        %v1365 = vsel %vm500, %v462, 0
        %v1368 = vsel %vm500, %v463, 0
        %v1371 = vsel %vm500, %v464, 0
        %v1374 = vsel %vm500, %v465, 0
        %v1377 = vsel %vm500, %v466, 0
        %v1380 = vsel %vm500, %v467, 0
        %v1383 = vsel %vm500, %v468, 0
        %v1386 = vsel %vm500, %v469, 0
        %v1389 = vsel %vm500, %v470, 0
        %v1392 = vsel %vm500, %v471, 0
        %v1395 = vsel %vm500, %v472, 0
        %v1398 = vsel %vm500, %v473, 0
        %v1401 = vsel %vm500, %v474, 0
        %v1404 = vsel %vm500, %v475, 0
        %v1407 = vsel %vm500, %v476, 0
        %v1410 = vsel %vm500, %v477, 0
        %v1413 = vsel %vm500, %v478, 0
        %v1416 = vsel %vm500, %v479, 0
        %v1419 = vsel %vm500, %v480, 0
        %v1422 = vsel %vm500, %v481, 0
        %v1425 = vsel %vm500, %v482, 0
        %v1428 = vsel %vm500, %v483, 0
        %v1431 = vsel %vm500, %v484, 0
        %v1434 = vsel %vm500, %v485, 0
        %v1437 = vsel %vm500, %v486, 0
        %v1440 = vsel %vm500, %v487, 0
        %v1443 = vsel %vm500, %v488, 0
        %v1446 = vsel %vm500, %v489, 0
        %v1449 = vsel %vm500, %v490, 0
        %v1452 = vsel %vm500, %v491, 0
        %1454 = vmatpush.msra.mxu0 0.0
        %1455 = vmatpush.msra.mxu0 0.0
        %1456 = vmatpush.msra.mxu0 0.0
        %1457 = vmatpush.msra.mxu0 0.0
        %1458 = vmatpush.msra.mxu0 0.0
        %1459 = vmatpush.msra.mxu0 0.0
        %1460 = vmatpush.msra.mxu0 0.0
        %1461 = vmatpush.msra.mxu0 0.0
        %1462 = vmatpush.msra.mxu0 0.0
        %1463 = vmatpush.msra.mxu0 0.0
        %1464 = vmatpush.msra.mxu0 0.0
        %1465 = vmatpush.msra.mxu0 0.0
        %1466 = vmatpush.msra.mxu0 %v1353
        %1467 = vmatpush.msra.mxu0 %v1352
        %1468 = vmatpush.msra.mxu0 %v1351
        %1469 = vmatpush.msra.mxu0 %v1350
        %1470 = vmatmul.f32.gmra.mxu0 %v1359
        %v1471 = vpop.f32.mrf.mxu0
        %v1472 = vadd.f32 %v1356, %v1471
        %1473 = vmatmul.f32.gmra.mxu0 %v1362
        %v1474 = vpop.f32.mrf.mxu0
        %v1475 = vadd.f32 %v1356, %v1474
        %1476 = vmatmul.f32.gmra.mxu0 %v1365
        %v1477 = vpop.f32.mrf.mxu0
        %v1478 = vadd.f32 %v1356, %v1477
        %1479 = vmatmul.f32.gmra.mxu0 %v1368
        %v1480 = vpop.f32.mrf.mxu0
        %v1481 = vadd.f32 %v1356, %v1480
        %1482 = vmatmul.f32.gmra.mxu0 %v1371
        %v1483 = vpop.f32.mrf.mxu0
        %v1484 = vadd.f32 %v1356, %v1483
        %1485 = vmatmul.f32.gmra.mxu0 %v1374
        %v1486 = vpop.f32.mrf.mxu0
        %v1487 = vadd.f32 %v1356, %v1486
        %1488 = vmatmul.f32.gmra.mxu0 %v1377
        %v1489 = vpop.f32.mrf.mxu0
        %v1490 = vadd.f32 %v1356, %v1489
        %1491 = vmatmul.f32.gmra.mxu0 %v1380
        %v1492 = vpop.f32.mrf.mxu0
        %v1493 = vadd.f32 %v1356, %v1492
        %1494 = vmatmul.f32.gmra.mxu0 %v1383
        %v1495 = vpop.f32.mrf.mxu0
        %v1496 = vadd.f32 %v1356, %v1495
        %1497 = vmatmul.f32.gmra.mxu0 %v1386
        %v1498 = vpop.f32.mrf.mxu0
        %v1499 = vadd.f32 %v1356, %v1498
        %1500 = vmatmul.f32.gmra.mxu0 %v1389
        %v1501 = vpop.f32.mrf.mxu0
        %v1502 = vadd.f32 %v1356, %v1501
        %1503 = vmatmul.f32.gmra.mxu0 %v1392
        %v1504 = vpop.f32.mrf.mxu0
        %v1505 = vadd.f32 %v1356, %v1504
        %1506 = vmatmul.f32.gmra.mxu0 %v1395
        %v1507 = vpop.f32.mrf.mxu0
        %v1508 = vadd.f32 %v1356, %v1507
        %1509 = vmatmul.f32.gmra.mxu0 %v1398
        %v1510 = vpop.f32.mrf.mxu0
        %v1511 = vadd.f32 %v1356, %v1510
        %1512 = vmatmul.f32.gmra.mxu0 %v1401
        %v1513 = vpop.f32.mrf.mxu0
        %v1514 = vadd.f32 %v1356, %v1513
        %1515 = vmatmul.f32.gmra.mxu0 %v1404
        %v1516 = vpop.f32.mrf.mxu0
        %v1517 = vadd.f32 %v1356, %v1516
        %1518 = vmatmul.f32.gmra.mxu0 %v1407
        %v1519 = vpop.f32.mrf.mxu0
        %v1520 = vadd.f32 %v1356, %v1519
        %1521 = vmatmul.f32.gmra.mxu0 %v1410
        %v1522 = vpop.f32.mrf.mxu0
        %v1523 = vadd.f32 %v1356, %v1522
        %1524 = vmatmul.f32.gmra.mxu0 %v1413
        %v1525 = vpop.f32.mrf.mxu0
        %v1526 = vadd.f32 %v1356, %v1525
        %1527 = vmatmul.f32.gmra.mxu0 %v1416
        %v1528 = vpop.f32.mrf.mxu0
        %v1529 = vadd.f32 %v1356, %v1528
        %1530 = vmatmul.f32.gmra.mxu0 %v1419
        %v1531 = vpop.f32.mrf.mxu0
        %v1532 = vadd.f32 %v1356, %v1531
        %1533 = vmatmul.f32.gmra.mxu0 %v1422
        %v1534 = vpop.f32.mrf.mxu0
        %v1535 = vadd.f32 %v1356, %v1534
        %1536 = vmatmul.f32.gmra.mxu0 %v1425
        %v1537 = vpop.f32.mrf.mxu0
        %v1538 = vadd.f32 %v1356, %v1537
        %1539 = vmatmul.f32.gmra.mxu0 %v1428
        %v1540 = vpop.f32.mrf.mxu0
        %v1541 = vadd.f32 %v1356, %v1540
        %1542 = vmatmul.f32.gmra.mxu0 %v1431
        %v1543 = vpop.f32.mrf.mxu0
        %v1544 = vadd.f32 %v1356, %v1543
        %1545 = vmatmul.f32.gmra.mxu0 %v1434
        %v1546 = vpop.f32.mrf.mxu0
        %v1547 = vadd.f32 %v1356, %v1546
        %1548 = vmatmul.f32.gmra.mxu0 %v1437
        %v1549 = vpop.f32.mrf.mxu0
        %v1550 = vadd.f32 %v1356, %v1549
        %1551 = vmatmul.f32.gmra.mxu0 %v1440
        %v1552 = vpop.f32.mrf.mxu0
        %v1553 = vadd.f32 %v1356, %v1552
        %1554 = vmatmul.f32.gmra.mxu0 %v1443
        %v1555 = vpop.f32.mrf.mxu0
        %v1556 = vadd.f32 %v1356, %v1555
        %1557 = vmatmul.f32.gmra.mxu0 %v1446
        %v1558 = vpop.f32.mrf.mxu0
        %v1559 = vadd.f32 %v1356, %v1558
        %1560 = vmatmul.f32.gmra.mxu0 %v1449
        %v1561 = vpop.f32.mrf.mxu0
        %v1562 = vadd.f32 %v1356, %v1561
        %1563 = vmatmul.f32.gmra.mxu0 %v1452
        %v1564 = vpop.f32.mrf.mxu0
        %v1565 = vadd.f32 %v1356, %v1564
        %1566 = vdwg.mxu0
        %v1567 = vxor.u32 %v1472, 2147483648
        %v1568 = vxor.u32 %v1475, 2147483648
        %v1569 = vxor.u32 %v1478, 2147483648
        %v1570 = vxor.u32 %v1481, 2147483648
        %v1571 = vxor.u32 %v1484, 2147483648
        %v1572 = vxor.u32 %v1487, 2147483648
        %v1573 = vxor.u32 %v1490, 2147483648
        %v1574 = vxor.u32 %v1493, 2147483648
        %v1575 = vxor.u32 %v1496, 2147483648
        %v1576 = vxor.u32 %v1499, 2147483648
        %v1577 = vxor.u32 %v1502, 2147483648
        %v1578 = vxor.u32 %v1505, 2147483648
        %v1579 = vxor.u32 %v1508, 2147483648
        %v1580 = vxor.u32 %v1511, 2147483648
        %v1581 = vxor.u32 %v1514, 2147483648
        %v1582 = vxor.u32 %v1517, 2147483648
        %v1583 = vxor.u32 %v1520, 2147483648
        %v1584 = vxor.u32 %v1523, 2147483648
        %v1585 = vxor.u32 %v1526, 2147483648
        %v1586 = vxor.u32 %v1529, 2147483648
        %v1587 = vxor.u32 %v1532, 2147483648
        %v1588 = vxor.u32 %v1535, 2147483648
        %v1589 = vxor.u32 %v1538, 2147483648
        %v1590 = vxor.u32 %v1541, 2147483648
        %v1591 = vxor.u32 %v1544, 2147483648
        %v1592 = vxor.u32 %v1547, 2147483648
        %v1593 = vxor.u32 %v1550, 2147483648
        %v1594 = vxor.u32 %v1553, 2147483648
        %v1595 = vxor.u32 %v1556, 2147483648
        %v1596 = vxor.u32 %v1559, 2147483648
        %v1597 = vxor.u32 %v1562, 2147483648
        %v1598 = vxor.u32 %v1565, 2147483648
        %v1599 = vmul.f32 %v1567, 1.442695
        %v1600 = vpow.pop %v1599
        %v1601 = vmul.f32 %v1568, 1.442695
        %v1602 = vpow.pop %v1601
        %v1603 = vmul.f32 %v1569, 1.442695
        %v1604 = vpow.pop %v1603
        %v1605 = vmul.f32 %v1570, 1.442695
        %v1606 = vpow.pop %v1605
        %v1607 = vmul.f32 %v1571, 1.442695
        %v1608 = vpow.pop %v1607
        %v1609 = vmul.f32 %v1572, 1.442695
        %v1610 = vpow.pop %v1609
        %v1611 = vmul.f32 %v1573, 1.442695
        %v1612 = vpow.pop %v1611
        %v1613 = vmul.f32 %v1574, 1.442695
        %v1614 = vpow.pop %v1613
        %v1615 = vmul.f32 %v1575, 1.442695
        %v1616 = vpow.pop %v1615
        %v1617 = vmul.f32 %v1576, 1.442695
        %v1618 = vpow.pop %v1617
        %v1619 = vmul.f32 %v1577, 1.442695
        %v1620 = vpow.pop %v1619
        %v1621 = vmul.f32 %v1578, 1.442695
        %v1622 = vpow.pop %v1621
        %v1623 = vmul.f32 %v1579, 1.442695
        %v1624 = vpow.pop %v1623
        %v1625 = vmul.f32 %v1580, 1.442695
        %v1626 = vpow.pop %v1625
        %v1627 = vmul.f32 %v1581, 1.442695
        %v1628 = vpow.pop %v1627
        %v1629 = vmul.f32 %v1582, 1.442695
        %v1630 = vpow.pop %v1629
        %v1631 = vmul.f32 %v1583, 1.442695
        %v1632 = vpow.pop %v1631
        %v1633 = vmul.f32 %v1584, 1.442695
        %v1634 = vpow.pop %v1633
        %v1635 = vmul.f32 %v1585, 1.442695
        %v1636 = vpow.pop %v1635
        %v1637 = vmul.f32 %v1586, 1.442695
        %v1638 = vpow.pop %v1637
        %v1639 = vmul.f32 %v1587, 1.442695
        %v1640 = vpow.pop %v1639
        %v1641 = vmul.f32 %v1588, 1.442695
        %v1642 = vpow.pop %v1641
        %v1643 = vmul.f32 %v1589, 1.442695
        %v1644 = vpow.pop %v1643
        %v1645 = vmul.f32 %v1590, 1.442695
        %v1646 = vpow.pop %v1645
        %v1647 = vmul.f32 %v1591, 1.442695
        %v1648 = vpow.pop %v1647
        %v1649 = vmul.f32 %v1592, 1.442695
        %v1650 = vpow.pop %v1649
        %v1651 = vmul.f32 %v1593, 1.442695
        %v1652 = vpow.pop %v1651
        %v1653 = vmul.f32 %v1594, 1.442695
        %v1654 = vpow.pop %v1653
        %v1655 = vmul.f32 %v1595, 1.442695
        %v1656 = vpow.pop %v1655
        %v1657 = vmul.f32 %v1596, 1.442695
        %v1658 = vpow.pop %v1657
        %v1659 = vmul.f32 %v1597, 1.442695
        %v1660 = vpow.pop %v1659
        %v1661 = vmul.f32 %v1598, 1.442695
        %v1662 = vpow.pop %v1661
        %v1663 = vadd.f32 %v1600, 1.0
        %v1664 = vadd.f32 %v1602, 1.0
        %v1665 = vadd.f32 %v1604, 1.0
        %v1666 = vadd.f32 %v1606, 1.0
        %v1667 = vadd.f32 %v1608, 1.0
        %v1668 = vadd.f32 %v1610, 1.0
        %v1669 = vadd.f32 %v1612, 1.0
        %v1670 = vadd.f32 %v1614, 1.0
        %v1671 = vadd.f32 %v1616, 1.0
        %v1672 = vadd.f32 %v1618, 1.0
        %v1673 = vadd.f32 %v1620, 1.0
        %v1674 = vadd.f32 %v1622, 1.0
        %v1675 = vadd.f32 %v1624, 1.0
        %v1676 = vadd.f32 %v1626, 1.0
        %v1677 = vadd.f32 %v1628, 1.0
        %v1678 = vadd.f32 %v1630, 1.0
        %v1679 = vadd.f32 %v1632, 1.0
        %v1680 = vadd.f32 %v1634, 1.0
        %v1681 = vadd.f32 %v1636, 1.0
        %v1682 = vadd.f32 %v1638, 1.0
        %v1683 = vadd.f32 %v1640, 1.0
        %v1684 = vadd.f32 %v1642, 1.0
        %v1685 = vadd.f32 %v1644, 1.0
        %v1686 = vadd.f32 %v1646, 1.0
        %v1687 = vadd.f32 %v1648, 1.0
        %v1688 = vadd.f32 %v1650, 1.0
        %v1689 = vadd.f32 %v1652, 1.0
        %v1690 = vadd.f32 %v1654, 1.0
        %v1691 = vadd.f32 %v1656, 1.0
        %v1692 = vadd.f32 %v1658, 1.0
        %v1693 = vadd.f32 %v1660, 1.0
        %v1694 = vadd.f32 %v1662, 1.0
        %v1695 = vrcp.pop %v1663
        %v1696 = vmul.f32 %v1663, %v1695
        %v1697 = vsub.f32 1.0, %v1696
        %v1698 = vmul.f32 %v1695, %v1697
        %v1699 = vadd.f32 %v1695, %v1698
        %vm1700 = vweird.f32 %v1663
        %vm1701 = vweird.f32 %v1695
        %vm1702 = vmor %vm1700, %vm1701
        %v1703 = vsel %vm1702, %v1695, %v1699
        %v1704 = vand.u32 2147483647, %v1663
        %vm1705 = vcmp.eq.f32.partialorder %v1704, 8.507059e+37
        %v1706 = vand.u32 %v1663, 2147483648
        %v1707 = vor.u32 1.1754944e-38, %v1706
        %v1708 = vsel %vm1705, %v1707, %v1703
        %v1709 = vmul.f32 1.0, %v1708
        %v1710 = vrcp.pop %v1664
        %v1711 = vmul.f32 %v1664, %v1710
        %v1712 = vsub.f32 1.0, %v1711
        %v1713 = vmul.f32 %v1710, %v1712
        %v1714 = vadd.f32 %v1710, %v1713
        %vm1715 = vweird.f32 %v1664
        %vm1716 = vweird.f32 %v1710
        %vm1717 = vmor %vm1715, %vm1716
        %v1718 = vsel %vm1717, %v1710, %v1714
        %v1719 = vand.u32 2147483647, %v1664
        %vm1720 = vcmp.eq.f32.partialorder %v1719, 8.507059e+37
        %v1721 = vand.u32 %v1664, 2147483648
        %v1722 = vor.u32 1.1754944e-38, %v1721
        %v1723 = vsel %vm1720, %v1722, %v1718
        %v1724 = vmul.f32 1.0, %v1723
        %v1725 = vrcp.pop %v1665
        %v1726 = vmul.f32 %v1665, %v1725
        %v1727 = vsub.f32 1.0, %v1726
        %v1728 = vmul.f32 %v1725, %v1727
        %v1729 = vadd.f32 %v1725, %v1728
        %vm1730 = vweird.f32 %v1665
        %vm1731 = vweird.f32 %v1725
        %vm1732 = vmor %vm1730, %vm1731
        %v1733 = vsel %vm1732, %v1725, %v1729
        %v1734 = vand.u32 2147483647, %v1665
        %vm1735 = vcmp.eq.f32.partialorder %v1734, 8.507059e+37
        %v1736 = vand.u32 %v1665, 2147483648
        %v1737 = vor.u32 1.1754944e-38, %v1736
        %v1738 = vsel %vm1735, %v1737, %v1733
        %v1739 = vmul.f32 1.0, %v1738
        %v1740 = vrcp.pop %v1666
        %v1741 = vmul.f32 %v1666, %v1740
        %v1742 = vsub.f32 1.0, %v1741
        %v1743 = vmul.f32 %v1740, %v1742
        %v1744 = vadd.f32 %v1740, %v1743
        %vm1745 = vweird.f32 %v1666
        %vm1746 = vweird.f32 %v1740
        %vm1747 = vmor %vm1745, %vm1746
        %v1748 = vsel %vm1747, %v1740, %v1744
        %v1749 = vand.u32 2147483647, %v1666
        %vm1750 = vcmp.eq.f32.partialorder %v1749, 8.507059e+37
        %v1751 = vand.u32 %v1666, 2147483648
        %v1752 = vor.u32 1.1754944e-38, %v1751
        %v1753 = vsel %vm1750, %v1752, %v1748
        %v1754 = vmul.f32 1.0, %v1753
        %v1755 = vrcp.pop %v1667
        %v1756 = vmul.f32 %v1667, %v1755
        %v1757 = vsub.f32 1.0, %v1756
        %v1758 = vmul.f32 %v1755, %v1757
        %v1759 = vadd.f32 %v1755, %v1758
        %vm1760 = vweird.f32 %v1667
        %vm1761 = vweird.f32 %v1755
        %vm1762 = vmor %vm1760, %vm1761
        %v1763 = vsel %vm1762, %v1755, %v1759
        %v1764 = vand.u32 2147483647, %v1667
        %vm1765 = vcmp.eq.f32.partialorder %v1764, 8.507059e+37
        %v1766 = vand.u32 %v1667, 2147483648
        %v1767 = vor.u32 1.1754944e-38, %v1766
        %v1768 = vsel %vm1765, %v1767, %v1763
        %v1769 = vmul.f32 1.0, %v1768
        %v1770 = vrcp.pop %v1668
        %v1771 = vmul.f32 %v1668, %v1770
        %v1772 = vsub.f32 1.0, %v1771
        %v1773 = vmul.f32 %v1770, %v1772
        %v1774 = vadd.f32 %v1770, %v1773
        %vm1775 = vweird.f32 %v1668
        %vm1776 = vweird.f32 %v1770
        %vm1777 = vmor %vm1775, %vm1776
        %v1778 = vsel %vm1777, %v1770, %v1774
        %v1779 = vand.u32 2147483647, %v1668
        %vm1780 = vcmp.eq.f32.partialorder %v1779, 8.507059e+37
        %v1781 = vand.u32 %v1668, 2147483648
        %v1782 = vor.u32 1.1754944e-38, %v1781
        %v1783 = vsel %vm1780, %v1782, %v1778
        %v1784 = vmul.f32 1.0, %v1783
        %v1785 = vrcp.pop %v1669
        %v1786 = vmul.f32 %v1669, %v1785
        %v1787 = vsub.f32 1.0, %v1786
        %v1788 = vmul.f32 %v1785, %v1787
        %v1789 = vadd.f32 %v1785, %v1788
        %vm1790 = vweird.f32 %v1669
        %vm1791 = vweird.f32 %v1785
        %vm1792 = vmor %vm1790, %vm1791
        %v1793 = vsel %vm1792, %v1785, %v1789
        %v1794 = vand.u32 2147483647, %v1669
        %vm1795 = vcmp.eq.f32.partialorder %v1794, 8.507059e+37
        %v1796 = vand.u32 %v1669, 2147483648
        %v1797 = vor.u32 1.1754944e-38, %v1796
        %v1798 = vsel %vm1795, %v1797, %v1793
        %v1799 = vmul.f32 1.0, %v1798
        %v1800 = vrcp.pop %v1670
        %v1801 = vmul.f32 %v1670, %v1800
        %v1802 = vsub.f32 1.0, %v1801
        %v1803 = vmul.f32 %v1800, %v1802
        %v1804 = vadd.f32 %v1800, %v1803
        %vm1805 = vweird.f32 %v1670
        %vm1806 = vweird.f32 %v1800
        %vm1807 = vmor %vm1805, %vm1806
        %v1808 = vsel %vm1807, %v1800, %v1804
        %v1809 = vand.u32 2147483647, %v1670
        %vm1810 = vcmp.eq.f32.partialorder %v1809, 8.507059e+37
        %v1811 = vand.u32 %v1670, 2147483648
        %v1812 = vor.u32 1.1754944e-38, %v1811
        %v1813 = vsel %vm1810, %v1812, %v1808
        %v1814 = vmul.f32 1.0, %v1813
        %v1815 = vrcp.pop %v1671
        %v1816 = vmul.f32 %v1671, %v1815
        %v1817 = vsub.f32 1.0, %v1816
        %v1818 = vmul.f32 %v1815, %v1817
        %v1819 = vadd.f32 %v1815, %v1818
        %vm1820 = vweird.f32 %v1671
        %vm1821 = vweird.f32 %v1815
        %vm1822 = vmor %vm1820, %vm1821
        %v1823 = vsel %vm1822, %v1815, %v1819
        %v1824 = vand.u32 2147483647, %v1671
        %vm1825 = vcmp.eq.f32.partialorder %v1824, 8.507059e+37
        %v1826 = vand.u32 %v1671, 2147483648
        %v1827 = vor.u32 1.1754944e-38, %v1826
        %v1828 = vsel %vm1825, %v1827, %v1823
        %v1829 = vmul.f32 1.0, %v1828
        %v1830 = vrcp.pop %v1672
        %v1831 = vmul.f32 %v1672, %v1830
        %v1832 = vsub.f32 1.0, %v1831
        %v1833 = vmul.f32 %v1830, %v1832
        %v1834 = vadd.f32 %v1830, %v1833
        %vm1835 = vweird.f32 %v1672
        %vm1836 = vweird.f32 %v1830
        %vm1837 = vmor %vm1835, %vm1836
        %v1838 = vsel %vm1837, %v1830, %v1834
        %v1839 = vand.u32 2147483647, %v1672
        %vm1840 = vcmp.eq.f32.partialorder %v1839, 8.507059e+37
        %v1841 = vand.u32 %v1672, 2147483648
        %v1842 = vor.u32 1.1754944e-38, %v1841
        %v1843 = vsel %vm1840, %v1842, %v1838
        %v1844 = vmul.f32 1.0, %v1843
        %v1845 = vrcp.pop %v1673
        %v1846 = vmul.f32 %v1673, %v1845
        %v1847 = vsub.f32 1.0, %v1846
        %v1848 = vmul.f32 %v1845, %v1847
        %v1849 = vadd.f32 %v1845, %v1848
        %vm1850 = vweird.f32 %v1673
        %vm1851 = vweird.f32 %v1845
        %vm1852 = vmor %vm1850, %vm1851
        %v1853 = vsel %vm1852, %v1845, %v1849
        %v1854 = vand.u32 2147483647, %v1673
        %vm1855 = vcmp.eq.f32.partialorder %v1854, 8.507059e+37
        %v1856 = vand.u32 %v1673, 2147483648
        %v1857 = vor.u32 1.1754944e-38, %v1856
        %v1858 = vsel %vm1855, %v1857, %v1853
        %v1859 = vmul.f32 1.0, %v1858
        %v1860 = vrcp.pop %v1674
        %v1861 = vmul.f32 %v1674, %v1860
        %v1862 = vsub.f32 1.0, %v1861
        %v1863 = vmul.f32 %v1860, %v1862
        %v1864 = vadd.f32 %v1860, %v1863
        %vm1865 = vweird.f32 %v1674
        %vm1866 = vweird.f32 %v1860
        %vm1867 = vmor %vm1865, %vm1866
        %v1868 = vsel %vm1867, %v1860, %v1864
        %v1869 = vand.u32 2147483647, %v1674
        %vm1870 = vcmp.eq.f32.partialorder %v1869, 8.507059e+37
        %v1871 = vand.u32 %v1674, 2147483648
        %v1872 = vor.u32 1.1754944e-38, %v1871
        %v1873 = vsel %vm1870, %v1872, %v1868
        %v1874 = vmul.f32 1.0, %v1873
        %v1875 = vrcp.pop %v1675
        %v1876 = vmul.f32 %v1675, %v1875
        %v1877 = vsub.f32 1.0, %v1876
        %v1878 = vmul.f32 %v1875, %v1877
        %v1879 = vadd.f32 %v1875, %v1878
        %vm1880 = vweird.f32 %v1675
        %vm1881 = vweird.f32 %v1875
        %vm1882 = vmor %vm1880, %vm1881
        %v1883 = vsel %vm1882, %v1875, %v1879
        %v1884 = vand.u32 2147483647, %v1675
        %vm1885 = vcmp.eq.f32.partialorder %v1884, 8.507059e+37
        %v1886 = vand.u32 %v1675, 2147483648
        %v1887 = vor.u32 1.1754944e-38, %v1886
        %v1888 = vsel %vm1885, %v1887, %v1883
        %v1889 = vmul.f32 1.0, %v1888
        %v1890 = vrcp.pop %v1676
        %v1891 = vmul.f32 %v1676, %v1890
        %v1892 = vsub.f32 1.0, %v1891
        %v1893 = vmul.f32 %v1890, %v1892
        %v1894 = vadd.f32 %v1890, %v1893
        %vm1895 = vweird.f32 %v1676
        %vm1896 = vweird.f32 %v1890
        %vm1897 = vmor %vm1895, %vm1896
        %v1898 = vsel %vm1897, %v1890, %v1894
        %v1899 = vand.u32 2147483647, %v1676
        %vm1900 = vcmp.eq.f32.partialorder %v1899, 8.507059e+37
        %v1901 = vand.u32 %v1676, 2147483648
        %v1902 = vor.u32 1.1754944e-38, %v1901
        %v1903 = vsel %vm1900, %v1902, %v1898
        %v1904 = vmul.f32 1.0, %v1903
        %v1905 = vrcp.pop %v1677
        %v1906 = vmul.f32 %v1677, %v1905
        %v1907 = vsub.f32 1.0, %v1906
        %v1908 = vmul.f32 %v1905, %v1907
        %v1909 = vadd.f32 %v1905, %v1908
        %vm1910 = vweird.f32 %v1677
        %vm1911 = vweird.f32 %v1905
        %vm1912 = vmor %vm1910, %vm1911
        %v1913 = vsel %vm1912, %v1905, %v1909
        %v1914 = vand.u32 2147483647, %v1677
        %vm1915 = vcmp.eq.f32.partialorder %v1914, 8.507059e+37
        %v1916 = vand.u32 %v1677, 2147483648
        %v1917 = vor.u32 1.1754944e-38, %v1916
        %v1918 = vsel %vm1915, %v1917, %v1913
        %v1919 = vmul.f32 1.0, %v1918
        %v1920 = vrcp.pop %v1678
        %v1921 = vmul.f32 %v1678, %v1920
        %v1922 = vsub.f32 1.0, %v1921
        %v1923 = vmul.f32 %v1920, %v1922
        %v1924 = vadd.f32 %v1920, %v1923
        %vm1925 = vweird.f32 %v1678
        %vm1926 = vweird.f32 %v1920
        %vm1927 = vmor %vm1925, %vm1926
        %v1928 = vsel %vm1927, %v1920, %v1924
        %v1929 = vand.u32 2147483647, %v1678
        %vm1930 = vcmp.eq.f32.partialorder %v1929, 8.507059e+37
        %v1931 = vand.u32 %v1678, 2147483648
        %v1932 = vor.u32 1.1754944e-38, %v1931
        %v1933 = vsel %vm1930, %v1932, %v1928
        %v1934 = vmul.f32 1.0, %v1933
        %v1935 = vrcp.pop %v1679
        %v1936 = vmul.f32 %v1679, %v1935
        %v1937 = vsub.f32 1.0, %v1936
        %v1938 = vmul.f32 %v1935, %v1937
        %v1939 = vadd.f32 %v1935, %v1938
        %vm1940 = vweird.f32 %v1679
        %vm1941 = vweird.f32 %v1935
        %vm1942 = vmor %vm1940, %vm1941
        %v1943 = vsel %vm1942, %v1935, %v1939
        %v1944 = vand.u32 2147483647, %v1679
        %vm1945 = vcmp.eq.f32.partialorder %v1944, 8.507059e+37
        %v1946 = vand.u32 %v1679, 2147483648
        %v1947 = vor.u32 1.1754944e-38, %v1946
        %v1948 = vsel %vm1945, %v1947, %v1943
        %v1949 = vmul.f32 1.0, %v1948
        %v1950 = vrcp.pop %v1680
        %v1951 = vmul.f32 %v1680, %v1950
        %v1952 = vsub.f32 1.0, %v1951
        %v1953 = vmul.f32 %v1950, %v1952
        %v1954 = vadd.f32 %v1950, %v1953
        %vm1955 = vweird.f32 %v1680
        %vm1956 = vweird.f32 %v1950
        %vm1957 = vmor %vm1955, %vm1956
        %v1958 = vsel %vm1957, %v1950, %v1954
        %v1959 = vand.u32 2147483647, %v1680
        %vm1960 = vcmp.eq.f32.partialorder %v1959, 8.507059e+37
        %v1961 = vand.u32 %v1680, 2147483648
        %v1962 = vor.u32 1.1754944e-38, %v1961
        %v1963 = vsel %vm1960, %v1962, %v1958
        %v1964 = vmul.f32 1.0, %v1963
        %v1965 = vrcp.pop %v1681
        %v1966 = vmul.f32 %v1681, %v1965
        %v1967 = vsub.f32 1.0, %v1966
        %v1968 = vmul.f32 %v1965, %v1967
        %v1969 = vadd.f32 %v1965, %v1968
        %vm1970 = vweird.f32 %v1681
        %vm1971 = vweird.f32 %v1965
        %vm1972 = vmor %vm1970, %vm1971
        %v1973 = vsel %vm1972, %v1965, %v1969
        %v1974 = vand.u32 2147483647, %v1681
        %vm1975 = vcmp.eq.f32.partialorder %v1974, 8.507059e+37
        %v1976 = vand.u32 %v1681, 2147483648
        %v1977 = vor.u32 1.1754944e-38, %v1976
        %v1978 = vsel %vm1975, %v1977, %v1973
        %v1979 = vmul.f32 1.0, %v1978
        %v1980 = vrcp.pop %v1682
        %v1981 = vmul.f32 %v1682, %v1980
        %v1982 = vsub.f32 1.0, %v1981
        %v1983 = vmul.f32 %v1980, %v1982
        %v1984 = vadd.f32 %v1980, %v1983
        %vm1985 = vweird.f32 %v1682
        %vm1986 = vweird.f32 %v1980
        %vm1987 = vmor %vm1985, %vm1986
        %v1988 = vsel %vm1987, %v1980, %v1984
        %v1989 = vand.u32 2147483647, %v1682
        %vm1990 = vcmp.eq.f32.partialorder %v1989, 8.507059e+37
        %v1991 = vand.u32 %v1682, 2147483648
        %v1992 = vor.u32 1.1754944e-38, %v1991
        %v1993 = vsel %vm1990, %v1992, %v1988
        %v1994 = vmul.f32 1.0, %v1993
        %v1995 = vrcp.pop %v1683
        %v1996 = vmul.f32 %v1683, %v1995
        %v1997 = vsub.f32 1.0, %v1996
        %v1998 = vmul.f32 %v1995, %v1997
        %v1999 = vadd.f32 %v1995, %v1998
        %vm2000 = vweird.f32 %v1683
        %vm2001 = vweird.f32 %v1995
        %vm2002 = vmor %vm2000, %vm2001
        %v2003 = vsel %vm2002, %v1995, %v1999
        %v2004 = vand.u32 2147483647, %v1683
        %vm2005 = vcmp.eq.f32.partialorder %v2004, 8.507059e+37
        %v2006 = vand.u32 %v1683, 2147483648
        %v2007 = vor.u32 1.1754944e-38, %v2006
        %v2008 = vsel %vm2005, %v2007, %v2003
        %v2009 = vmul.f32 1.0, %v2008
        %v2010 = vrcp.pop %v1684
        %v2011 = vmul.f32 %v1684, %v2010
        %v2012 = vsub.f32 1.0, %v2011
        %v2013 = vmul.f32 %v2010, %v2012
        %v2014 = vadd.f32 %v2010, %v2013
        %vm2015 = vweird.f32 %v1684
        %vm2016 = vweird.f32 %v2010
        %vm2017 = vmor %vm2015, %vm2016
        %v2018 = vsel %vm2017, %v2010, %v2014
        %v2019 = vand.u32 2147483647, %v1684
        %vm2020 = vcmp.eq.f32.partialorder %v2019, 8.507059e+37
        %v2021 = vand.u32 %v1684, 2147483648
        %v2022 = vor.u32 1.1754944e-38, %v2021
        %v2023 = vsel %vm2020, %v2022, %v2018
        %v2024 = vmul.f32 1.0, %v2023
        %v2025 = vrcp.pop %v1685
        %v2026 = vmul.f32 %v1685, %v2025
        %v2027 = vsub.f32 1.0, %v2026
        %v2028 = vmul.f32 %v2025, %v2027
        %v2029 = vadd.f32 %v2025, %v2028
        %vm2030 = vweird.f32 %v1685
        %vm2031 = vweird.f32 %v2025
        %vm2032 = vmor %vm2030, %vm2031
        %v2033 = vsel %vm2032, %v2025, %v2029
        %v2034 = vand.u32 2147483647, %v1685
        %vm2035 = vcmp.eq.f32.partialorder %v2034, 8.507059e+37
        %v2036 = vand.u32 %v1685, 2147483648
        %v2037 = vor.u32 1.1754944e-38, %v2036
        %v2038 = vsel %vm2035, %v2037, %v2033
        %v2039 = vmul.f32 1.0, %v2038
        %v2040 = vrcp.pop %v1686
        %v2041 = vmul.f32 %v1686, %v2040
        %v2042 = vsub.f32 1.0, %v2041
        %v2043 = vmul.f32 %v2040, %v2042
        %v2044 = vadd.f32 %v2040, %v2043
        %vm2045 = vweird.f32 %v1686
        %vm2046 = vweird.f32 %v2040
        %vm2047 = vmor %vm2045, %vm2046
        %v2048 = vsel %vm2047, %v2040, %v2044
        %v2049 = vand.u32 2147483647, %v1686
        %vm2050 = vcmp.eq.f32.partialorder %v2049, 8.507059e+37
        %v2051 = vand.u32 %v1686, 2147483648
        %v2052 = vor.u32 1.1754944e-38, %v2051
        %v2053 = vsel %vm2050, %v2052, %v2048
        %v2054 = vmul.f32 1.0, %v2053
        %v2055 = vrcp.pop %v1687
        %v2056 = vmul.f32 %v1687, %v2055
        %v2057 = vsub.f32 1.0, %v2056
        %v2058 = vmul.f32 %v2055, %v2057
        %v2059 = vadd.f32 %v2055, %v2058
        %vm2060 = vweird.f32 %v1687
        %vm2061 = vweird.f32 %v2055
        %vm2062 = vmor %vm2060, %vm2061
        %v2063 = vsel %vm2062, %v2055, %v2059
        %v2064 = vand.u32 2147483647, %v1687
        %vm2065 = vcmp.eq.f32.partialorder %v2064, 8.507059e+37
        %v2066 = vand.u32 %v1687, 2147483648
        %v2067 = vor.u32 1.1754944e-38, %v2066
        %v2068 = vsel %vm2065, %v2067, %v2063
        %v2069 = vmul.f32 1.0, %v2068
        %v2070 = vrcp.pop %v1688
        %v2071 = vmul.f32 %v1688, %v2070
        %v2072 = vsub.f32 1.0, %v2071
        %v2073 = vmul.f32 %v2070, %v2072
        %v2074 = vadd.f32 %v2070, %v2073
        %vm2075 = vweird.f32 %v1688
        %vm2076 = vweird.f32 %v2070
        %vm2077 = vmor %vm2075, %vm2076
        %v2078 = vsel %vm2077, %v2070, %v2074
        %v2079 = vand.u32 2147483647, %v1688
        %vm2080 = vcmp.eq.f32.partialorder %v2079, 8.507059e+37
        %v2081 = vand.u32 %v1688, 2147483648
        %v2082 = vor.u32 1.1754944e-38, %v2081
        %v2083 = vsel %vm2080, %v2082, %v2078
        %v2084 = vmul.f32 1.0, %v2083
        %v2085 = vrcp.pop %v1689
        %v2086 = vmul.f32 %v1689, %v2085
        %v2087 = vsub.f32 1.0, %v2086
        %v2088 = vmul.f32 %v2085, %v2087
        %v2089 = vadd.f32 %v2085, %v2088
        %vm2090 = vweird.f32 %v1689
        %vm2091 = vweird.f32 %v2085
        %vm2092 = vmor %vm2090, %vm2091
        %v2093 = vsel %vm2092, %v2085, %v2089
        %v2094 = vand.u32 2147483647, %v1689
        %vm2095 = vcmp.eq.f32.partialorder %v2094, 8.507059e+37
        %v2096 = vand.u32 %v1689, 2147483648
        %v2097 = vor.u32 1.1754944e-38, %v2096
        %v2098 = vsel %vm2095, %v2097, %v2093
        %v2099 = vmul.f32 1.0, %v2098
        %v2100 = vrcp.pop %v1690
        %v2101 = vmul.f32 %v1690, %v2100
        %v2102 = vsub.f32 1.0, %v2101
        %v2103 = vmul.f32 %v2100, %v2102
        %v2104 = vadd.f32 %v2100, %v2103
        %vm2105 = vweird.f32 %v1690
        %vm2106 = vweird.f32 %v2100
        %vm2107 = vmor %vm2105, %vm2106
        %v2108 = vsel %vm2107, %v2100, %v2104
        %v2109 = vand.u32 2147483647, %v1690
        %vm2110 = vcmp.eq.f32.partialorder %v2109, 8.507059e+37
        %v2111 = vand.u32 %v1690, 2147483648
        %v2112 = vor.u32 1.1754944e-38, %v2111
        %v2113 = vsel %vm2110, %v2112, %v2108
        %v2114 = vmul.f32 1.0, %v2113
        %v2115 = vrcp.pop %v1691
        %v2116 = vmul.f32 %v1691, %v2115
        %v2117 = vsub.f32 1.0, %v2116
        %v2118 = vmul.f32 %v2115, %v2117
        %v2119 = vadd.f32 %v2115, %v2118
        %vm2120 = vweird.f32 %v1691
        %vm2121 = vweird.f32 %v2115
        %vm2122 = vmor %vm2120, %vm2121
        %v2123 = vsel %vm2122, %v2115, %v2119
        %v2124 = vand.u32 2147483647, %v1691
        %vm2125 = vcmp.eq.f32.partialorder %v2124, 8.507059e+37
        %v2126 = vand.u32 %v1691, 2147483648
        %v2127 = vor.u32 1.1754944e-38, %v2126
        %v2128 = vsel %vm2125, %v2127, %v2123
        %v2129 = vmul.f32 1.0, %v2128
        %v2130 = vrcp.pop %v1692
        %v2131 = vmul.f32 %v1692, %v2130
        %v2132 = vsub.f32 1.0, %v2131
        %v2133 = vmul.f32 %v2130, %v2132
        %v2134 = vadd.f32 %v2130, %v2133
        %vm2135 = vweird.f32 %v1692
        %vm2136 = vweird.f32 %v2130
        %vm2137 = vmor %vm2135, %vm2136
        %v2138 = vsel %vm2137, %v2130, %v2134
        %v2139 = vand.u32 2147483647, %v1692
        %vm2140 = vcmp.eq.f32.partialorder %v2139, 8.507059e+37
        %v2141 = vand.u32 %v1692, 2147483648
        %v2142 = vor.u32 1.1754944e-38, %v2141
        %v2143 = vsel %vm2140, %v2142, %v2138
        %v2144 = vmul.f32 1.0, %v2143
        %v2145 = vrcp.pop %v1693
        %v2146 = vmul.f32 %v1693, %v2145
        %v2147 = vsub.f32 1.0, %v2146
        %v2148 = vmul.f32 %v2145, %v2147
        %v2149 = vadd.f32 %v2145, %v2148
        %vm2150 = vweird.f32 %v1693
        %vm2151 = vweird.f32 %v2145
        %vm2152 = vmor %vm2150, %vm2151
        %v2153 = vsel %vm2152, %v2145, %v2149
        %v2154 = vand.u32 2147483647, %v1693
        %vm2155 = vcmp.eq.f32.partialorder %v2154, 8.507059e+37
        %v2156 = vand.u32 %v1693, 2147483648
        %v2157 = vor.u32 1.1754944e-38, %v2156
        %v2158 = vsel %vm2155, %v2157, %v2153
        %v2159 = vmul.f32 1.0, %v2158
        %v2160 = vrcp.pop %v1694
        %v2161 = vmul.f32 %v1694, %v2160
        %v2162 = vsub.f32 1.0, %v2161
        %v2163 = vmul.f32 %v2160, %v2162
        %v2164 = vadd.f32 %v2160, %v2163
        %vm2165 = vweird.f32 %v1694
        %vm2166 = vweird.f32 %v2160
        %vm2167 = vmor %vm2165, %vm2166
        %v2168 = vsel %vm2167, %v2160, %v2164
        %v2169 = vand.u32 2147483647, %v1694
        %vm2170 = vcmp.eq.f32.partialorder %v2169, 8.507059e+37
        %v2171 = vand.u32 %v1694, 2147483648
        %v2172 = vor.u32 1.1754944e-38, %v2171
        %v2173 = vsel %vm2170, %v2172, %v2168
        %v2174 = vmul.f32 1.0, %v2173
        %v2175 = vmul.f32 %v1472, %v1709
        %v2176 = vmul.f32 %v1475, %v1724
        %v2177 = vmul.f32 %v1478, %v1739
        %v2178 = vmul.f32 %v1481, %v1754
        %v2179 = vmul.f32 %v1484, %v1769
        %v2180 = vmul.f32 %v1487, %v1784
        %v2181 = vmul.f32 %v1490, %v1799
        %v2182 = vmul.f32 %v1493, %v1814
        %v2183 = vmul.f32 %v1496, %v1829
        %v2184 = vmul.f32 %v1499, %v1844
        %v2185 = vmul.f32 %v1502, %v1859
        %v2186 = vmul.f32 %v1505, %v1874
        %v2187 = vmul.f32 %v1508, %v1889
        %v2188 = vmul.f32 %v1511, %v1904
        %v2189 = vmul.f32 %v1514, %v1919
        %v2190 = vmul.f32 %v1517, %v1934
        %v2191 = vmul.f32 %v1520, %v1949
        %v2192 = vmul.f32 %v1523, %v1964
        %v2193 = vmul.f32 %v1526, %v1979
        %v2194 = vmul.f32 %v1529, %v1994
        %v2195 = vmul.f32 %v1532, %v2009
        %v2196 = vmul.f32 %v1535, %v2024
        %v2197 = vmul.f32 %v1538, %v2039
        %v2198 = vmul.f32 %v1541, %v2054
        %v2199 = vmul.f32 %v1544, %v2069
        %v2200 = vmul.f32 %v1547, %v2084
        %v2201 = vmul.f32 %v1550, %v2099
        %v2202 = vmul.f32 %v1553, %v2114
        %v2203 = vmul.f32 %v1556, %v2129
        %v2204 = vmul.f32 %v1559, %v2144
        %v2205 = vmul.f32 %v1562, %v2159
        %v2206 = vmul.f32 %v1565, %v2174
        %v2207 = vld [vmem:[%s6] sm:$0xff]
        %v2208 = vld [vmem:[%s6 + $0x8] sm:$0xff]
        %v2209 = vld [vmem:[%s7] sm:$0xff]
        %v2210 = vld [vmem:[%s7 + $0x8] sm:$0xff]
        %vm2211 = vcmask 130048
        %v2213 = vsel %vm2211, %v2175, 0
        %v2216 = vsel %vm2211, %v2176, 0
        %v2219 = vsel %vm2211, %v2177, 0
        %v2222 = vsel %vm2211, %v2178, 0
        %v2225 = vsel %vm2211, %v2179, 0
        %v2228 = vsel %vm2211, %v2180, 0
        %v2231 = vsel %vm2211, %v2181, 0
        %v2234 = vsel %vm2211, %v2182, 0
        %v2237 = vsel %vm2211, %v2183, 0
        %v2240 = vsel %vm2211, %v2184, 0
        %v2243 = vsel %vm2211, %v2185, 0
        %v2246 = vsel %vm2211, %v2186, 0
        %v2249 = vsel %vm2211, %v2187, 0
        %v2252 = vsel %vm2211, %v2188, 0
        %v2255 = vsel %vm2211, %v2189, 0
        %v2258 = vsel %vm2211, %v2190, 0
        %v2261 = vsel %vm2211, %v2191, 0
        %v2264 = vsel %vm2211, %v2192, 0
        %v2267 = vsel %vm2211, %v2193, 0
        %v2270 = vsel %vm2211, %v2194, 0
        %v2273 = vsel %vm2211, %v2195, 0
        %v2276 = vsel %vm2211, %v2196, 0
        %v2279 = vsel %vm2211, %v2197, 0
        %v2282 = vsel %vm2211, %v2198, 0
        %v2285 = vsel %vm2211, %v2199, 0
        %v2288 = vsel %vm2211, %v2200, 0
        %v2291 = vsel %vm2211, %v2201, 0
        %v2294 = vsel %vm2211, %v2202, 0
        %v2297 = vsel %vm2211, %v2203, 0
        %v2300 = vsel %vm2211, %v2204, 0
        %v2303 = vsel %vm2211, %v2205, 0
        %v2306 = vsel %vm2211, %v2206, 0
        %2308 = vmatpush.msra.mxu0 0.0
        %2309 = vmatpush.msra.mxu0 0.0
        %2310 = vmatpush.msra.mxu0 0.0
        %2311 = vmatpush.msra.mxu0 0.0
        %2312 = vmatpush.msra.mxu0 0.0
        %2313 = vmatpush.msra.mxu0 0.0
        %2314 = vmatpush.msra.mxu0 0.0
        %2315 = vmatpush.msra.mxu0 0.0
        %2316 = vmatpush.msra.mxu0 0.0
        %2317 = vmatpush.msra.mxu0 0.0
        %2318 = vmatpush.msra.mxu0 0.0
        %2319 = vmatpush.msra.mxu0 0.0
        %2320 = vmatpush.msra.mxu0 0.0
        %2321 = vmatpush.msra.mxu0 0.0
        %2322 = vmatpush.msra.mxu0 %v2210
        %2323 = vmatpush.msra.mxu0 %v2209
        %2324 = vmatmul.f32.gmra.mxu0 %v2213
        %v2325 = vpop.f32.mrf.mxu0
        %v2326 = vadd.f32 0.0, %v2325
        %2327 = vmatmul.f32.gmra.mxu0 %v2216
        %v2328 = vpop.f32.mrf.mxu0
        %v2329 = vadd.f32 0.0, %v2328
        %2330 = vmatmul.f32.gmra.mxu0 %v2219
        %v2331 = vpop.f32.mrf.mxu0
        %v2332 = vadd.f32 0.0, %v2331
        %2333 = vmatmul.f32.gmra.mxu0 %v2222
        %v2334 = vpop.f32.mrf.mxu0
        %v2335 = vadd.f32 0.0, %v2334
        %2336 = vmatmul.f32.gmra.mxu0 %v2225
        %v2337 = vpop.f32.mrf.mxu0
        %v2338 = vadd.f32 0.0, %v2337
        %2339 = vmatmul.f32.gmra.mxu0 %v2228
        %v2340 = vpop.f32.mrf.mxu0
        %v2341 = vadd.f32 0.0, %v2340
        %2342 = vmatmul.f32.gmra.mxu0 %v2231
        %v2343 = vpop.f32.mrf.mxu0
        %v2344 = vadd.f32 0.0, %v2343
        %2345 = vmatmul.f32.gmra.mxu0 %v2234
        %v2346 = vpop.f32.mrf.mxu0
        %v2347 = vadd.f32 0.0, %v2346
        %2348 = vmatmul.f32.gmra.mxu0 %v2237
        %v2349 = vpop.f32.mrf.mxu0
        %v2350 = vadd.f32 0.0, %v2349
        %2351 = vmatmul.f32.gmra.mxu0 %v2240
        %v2352 = vpop.f32.mrf.mxu0
        %v2353 = vadd.f32 0.0, %v2352
        %2354 = vmatmul.f32.gmra.mxu0 %v2243
        %v2355 = vpop.f32.mrf.mxu0
        %v2356 = vadd.f32 0.0, %v2355
        %2357 = vmatmul.f32.gmra.mxu0 %v2246
        %v2358 = vpop.f32.mrf.mxu0
        %v2359 = vadd.f32 0.0, %v2358
        %2360 = vmatmul.f32.gmra.mxu0 %v2249
        %v2361 = vpop.f32.mrf.mxu0
        %v2362 = vadd.f32 0.0, %v2361
        %2363 = vmatmul.f32.gmra.mxu0 %v2252
        %v2364 = vpop.f32.mrf.mxu0
        %v2365 = vadd.f32 0.0, %v2364
        %2366 = vmatmul.f32.gmra.mxu0 %v2255
        %v2367 = vpop.f32.mrf.mxu0
        %v2368 = vadd.f32 0.0, %v2367
        %2369 = vmatmul.f32.gmra.mxu0 %v2258
        %v2370 = vpop.f32.mrf.mxu0
        %v2371 = vadd.f32 0.0, %v2370
        %2372 = vmatmul.f32.gmra.mxu0 %v2261
        %v2373 = vpop.f32.mrf.mxu0
        %v2374 = vadd.f32 0.0, %v2373
        %2375 = vmatmul.f32.gmra.mxu0 %v2264
        %v2376 = vpop.f32.mrf.mxu0
        %v2377 = vadd.f32 0.0, %v2376
        %2378 = vmatmul.f32.gmra.mxu0 %v2267
        %v2379 = vpop.f32.mrf.mxu0
        %v2380 = vadd.f32 0.0, %v2379
        %2381 = vmatmul.f32.gmra.mxu0 %v2270
        %v2382 = vpop.f32.mrf.mxu0
        %v2383 = vadd.f32 0.0, %v2382
        %2384 = vmatmul.f32.gmra.mxu0 %v2273
        %v2385 = vpop.f32.mrf.mxu0
        %v2386 = vadd.f32 0.0, %v2385
        %2387 = vmatmul.f32.gmra.mxu0 %v2276
        %v2388 = vpop.f32.mrf.mxu0
        %v2389 = vadd.f32 0.0, %v2388
        %2390 = vmatmul.f32.gmra.mxu0 %v2279
        %v2391 = vpop.f32.mrf.mxu0
        %v2392 = vadd.f32 0.0, %v2391
        %2393 = vmatmul.f32.gmra.mxu0 %v2282
        %v2394 = vpop.f32.mrf.mxu0
        %v2395 = vadd.f32 0.0, %v2394
        %2396 = vmatmul.f32.gmra.mxu0 %v2285
        %v2397 = vpop.f32.mrf.mxu0
        %v2398 = vadd.f32 0.0, %v2397
        %2399 = vmatmul.f32.gmra.mxu0 %v2288
        %v2400 = vpop.f32.mrf.mxu0
        %v2401 = vadd.f32 0.0, %v2400
        %2402 = vmatmul.f32.gmra.mxu0 %v2291
        %v2403 = vpop.f32.mrf.mxu0
        %v2404 = vadd.f32 0.0, %v2403
        %2405 = vmatmul.f32.gmra.mxu0 %v2294
        %v2406 = vpop.f32.mrf.mxu0
        %v2407 = vadd.f32 0.0, %v2406
        %2408 = vmatmul.f32.gmra.mxu0 %v2297
        %v2409 = vpop.f32.mrf.mxu0
        %v2410 = vadd.f32 0.0, %v2409
        %2411 = vmatmul.f32.gmra.mxu0 %v2300
        %v2412 = vpop.f32.mrf.mxu0
        %v2413 = vadd.f32 0.0, %v2412
        %2414 = vmatmul.f32.gmra.mxu0 %v2303
        %v2415 = vpop.f32.mrf.mxu0
        %v2416 = vadd.f32 0.0, %v2415
        %2417 = vmatmul.f32.gmra.mxu0 %v2306
        %v2418 = vpop.f32.mrf.mxu0
        %v2419 = vadd.f32 0.0, %v2418
        %2420 = vdwg.mxu0
        %v2422 = vsel %vm2211, %v1318, 0
        %v2425 = vsel %vm2211, %v1319, 0
        %v2428 = vsel %vm2211, %v1320, 0
        %v2431 = vsel %vm2211, %v1321, 0
        %v2434 = vsel %vm2211, %v1322, 0
        %v2437 = vsel %vm2211, %v1323, 0
        %v2440 = vsel %vm2211, %v1324, 0
        %v2443 = vsel %vm2211, %v1325, 0
        %v2446 = vsel %vm2211, %v1326, 0
        %v2449 = vsel %vm2211, %v1327, 0
        %v2452 = vsel %vm2211, %v1328, 0
        %v2455 = vsel %vm2211, %v1329, 0
        %v2458 = vsel %vm2211, %v1330, 0
        %v2461 = vsel %vm2211, %v1331, 0
        %v2464 = vsel %vm2211, %v1332, 0
        %v2467 = vsel %vm2211, %v1333, 0
        %v2470 = vsel %vm2211, %v1334, 0
        %v2473 = vsel %vm2211, %v1335, 0
        %v2476 = vsel %vm2211, %v1336, 0
        %v2479 = vsel %vm2211, %v1337, 0
        %v2482 = vsel %vm2211, %v1338, 0
        %v2485 = vsel %vm2211, %v1339, 0
        %v2488 = vsel %vm2211, %v1340, 0
        %v2491 = vsel %vm2211, %v1341, 0
        %v2494 = vsel %vm2211, %v1342, 0
        %v2497 = vsel %vm2211, %v1343, 0
        %v2500 = vsel %vm2211, %v1344, 0
        %v2503 = vsel %vm2211, %v1345, 0
        %v2506 = vsel %vm2211, %v1346, 0
        %v2509 = vsel %vm2211, %v1347, 0
        %v2512 = vsel %vm2211, %v1348, 0
        %v2515 = vsel %vm2211, %v1349, 0
        %2517 = vmatpush.msra.mxu0 0.0
        %2518 = vmatpush.msra.mxu0 0.0
        %2519 = vmatpush.msra.mxu0 0.0
        %2520 = vmatpush.msra.mxu0 0.0
        %2521 = vmatpush.msra.mxu0 0.0
        %2522 = vmatpush.msra.mxu0 0.0
        %2523 = vmatpush.msra.mxu0 0.0
        %2524 = vmatpush.msra.mxu0 0.0
        %2525 = vmatpush.msra.mxu0 0.0
        %2526 = vmatpush.msra.mxu0 0.0
        %2527 = vmatpush.msra.mxu0 0.0
        %2528 = vmatpush.msra.mxu0 0.0
        %2529 = vmatpush.msra.mxu0 0.0
        %2530 = vmatpush.msra.mxu0 0.0
        %2531 = vmatpush.msra.mxu0 %v2208
        %2532 = vmatpush.msra.mxu0 %v2207
        %2533 = vmatmul.f32.gmra.mxu0 %v2422
        %v2534 = vpop.f32.mrf.mxu0
        %v2535 = vadd.f32 %v2326, %v2534
        %2536 = vmatmul.f32.gmra.mxu0 %v2425
        %v2537 = vpop.f32.mrf.mxu0
        %v2538 = vadd.f32 %v2329, %v2537
        %2539 = vmatmul.f32.gmra.mxu0 %v2428
        %v2540 = vpop.f32.mrf.mxu0
        %v2541 = vadd.f32 %v2332, %v2540
        %2542 = vmatmul.f32.gmra.mxu0 %v2431
        %v2543 = vpop.f32.mrf.mxu0
        %v2544 = vadd.f32 %v2335, %v2543
        %2545 = vmatmul.f32.gmra.mxu0 %v2434
        %v2546 = vpop.f32.mrf.mxu0
        %v2547 = vadd.f32 %v2338, %v2546
        %2548 = vmatmul.f32.gmra.mxu0 %v2437
        %v2549 = vpop.f32.mrf.mxu0
        %v2550 = vadd.f32 %v2341, %v2549
        %2551 = vmatmul.f32.gmra.mxu0 %v2440
        %v2552 = vpop.f32.mrf.mxu0
        %v2553 = vadd.f32 %v2344, %v2552
        %2554 = vmatmul.f32.gmra.mxu0 %v2443
        %v2555 = vpop.f32.mrf.mxu0
        %v2556 = vadd.f32 %v2347, %v2555
        %2557 = vmatmul.f32.gmra.mxu0 %v2446
        %v2558 = vpop.f32.mrf.mxu0
        %v2559 = vadd.f32 %v2350, %v2558
        %2560 = vmatmul.f32.gmra.mxu0 %v2449
        %v2561 = vpop.f32.mrf.mxu0
        %v2562 = vadd.f32 %v2353, %v2561
        %2563 = vmatmul.f32.gmra.mxu0 %v2452
        %v2564 = vpop.f32.mrf.mxu0
        %v2565 = vadd.f32 %v2356, %v2564
        %2566 = vmatmul.f32.gmra.mxu0 %v2455
        %v2567 = vpop.f32.mrf.mxu0
        %v2568 = vadd.f32 %v2359, %v2567
        %2569 = vmatmul.f32.gmra.mxu0 %v2458
        %v2570 = vpop.f32.mrf.mxu0
        %v2571 = vadd.f32 %v2362, %v2570
        %2572 = vmatmul.f32.gmra.mxu0 %v2461
        %v2573 = vpop.f32.mrf.mxu0
        %v2574 = vadd.f32 %v2365, %v2573
        %2575 = vmatmul.f32.gmra.mxu0 %v2464
        %v2576 = vpop.f32.mrf.mxu0
        %v2577 = vadd.f32 %v2368, %v2576
        %2578 = vmatmul.f32.gmra.mxu0 %v2467
        %v2579 = vpop.f32.mrf.mxu0
        %v2580 = vadd.f32 %v2371, %v2579
        %2581 = vmatmul.f32.gmra.mxu0 %v2470
        %v2582 = vpop.f32.mrf.mxu0
        %v2583 = vadd.f32 %v2374, %v2582
        %2584 = vmatmul.f32.gmra.mxu0 %v2473
        %v2585 = vpop.f32.mrf.mxu0
        %v2586 = vadd.f32 %v2377, %v2585
        %2587 = vmatmul.f32.gmra.mxu0 %v2476
        %v2588 = vpop.f32.mrf.mxu0
        %v2589 = vadd.f32 %v2380, %v2588
        %2590 = vmatmul.f32.gmra.mxu0 %v2479
        %v2591 = vpop.f32.mrf.mxu0
        %v2592 = vadd.f32 %v2383, %v2591
        %2593 = vmatmul.f32.gmra.mxu0 %v2482
        %v2594 = vpop.f32.mrf.mxu0
        %v2595 = vadd.f32 %v2386, %v2594
        %2596 = vmatmul.f32.gmra.mxu0 %v2485
        %v2597 = vpop.f32.mrf.mxu0
        %v2598 = vadd.f32 %v2389, %v2597
        %2599 = vmatmul.f32.gmra.mxu0 %v2488
        %v2600 = vpop.f32.mrf.mxu0
        %v2601 = vadd.f32 %v2392, %v2600
        %2602 = vmatmul.f32.gmra.mxu0 %v2491
        %v2603 = vpop.f32.mrf.mxu0
        %v2604 = vadd.f32 %v2395, %v2603
        %2605 = vmatmul.f32.gmra.mxu0 %v2494
        %v2606 = vpop.f32.mrf.mxu0
        %v2607 = vadd.f32 %v2398, %v2606
        %2608 = vmatmul.f32.gmra.mxu0 %v2497
        %v2609 = vpop.f32.mrf.mxu0
        %v2610 = vadd.f32 %v2401, %v2609
        %2611 = vmatmul.f32.gmra.mxu0 %v2500
        %v2612 = vpop.f32.mrf.mxu0
        %v2613 = vadd.f32 %v2404, %v2612
        %2614 = vmatmul.f32.gmra.mxu0 %v2503
        %v2615 = vpop.f32.mrf.mxu0
        %v2616 = vadd.f32 %v2407, %v2615
        %2617 = vmatmul.f32.gmra.mxu0 %v2506
        %v2618 = vpop.f32.mrf.mxu0
        %v2619 = vadd.f32 %v2410, %v2618
        %2620 = vmatmul.f32.gmra.mxu0 %v2509
        %v2621 = vpop.f32.mrf.mxu0
        %v2622 = vadd.f32 %v2413, %v2621
        %2623 = vmatmul.f32.gmra.mxu0 %v2512
        %v2624 = vpop.f32.mrf.mxu0
        %v2625 = vadd.f32 %v2416, %v2624
        %2626 = vmatmul.f32.gmra.mxu0 %v2515
        %v2627 = vpop.f32.mrf.mxu0
        %v2628 = vadd.f32 %v2419, %v2627
        %2629 = vdwg.mxu0
        %v2630 = vld [vmem:[%s8] sm:$0x1]
        %v2632 = vperm.slane %v2630, 0
        %v2634 = vadd.f32 %v2535, %v2632
        %v2635 = vadd.f32 %v2538, %v2632
        %v2636 = vadd.f32 %v2541, %v2632
        %v2637 = vadd.f32 %v2544, %v2632
        %v2638 = vadd.f32 %v2547, %v2632
        %v2639 = vadd.f32 %v2550, %v2632
        %v2640 = vadd.f32 %v2553, %v2632
        %v2641 = vadd.f32 %v2556, %v2632
        %v2642 = vadd.f32 %v2559, %v2632
        %v2643 = vadd.f32 %v2562, %v2632
        %v2644 = vadd.f32 %v2565, %v2632
        %v2645 = vadd.f32 %v2568, %v2632
        %v2646 = vadd.f32 %v2571, %v2632
        %v2647 = vadd.f32 %v2574, %v2632
        %v2648 = vadd.f32 %v2577, %v2632
        %v2649 = vadd.f32 %v2580, %v2632
        %v2650 = vadd.f32 %v2583, %v2632
        %v2651 = vadd.f32 %v2586, %v2632
        %v2652 = vadd.f32 %v2589, %v2632
        %v2653 = vadd.f32 %v2592, %v2632
        %v2654 = vadd.f32 %v2595, %v2632
        %v2655 = vadd.f32 %v2598, %v2632
        %v2656 = vadd.f32 %v2601, %v2632
        %v2657 = vadd.f32 %v2604, %v2632
        %v2658 = vadd.f32 %v2607, %v2632
        %v2659 = vadd.f32 %v2610, %v2632
        %v2660 = vadd.f32 %v2613, %v2632
        %v2661 = vadd.f32 %v2616, %v2632
        %v2662 = vadd.f32 %v2619, %v2632
        %v2663 = vadd.f32 %v2622, %v2632
        %v2664 = vadd.f32 %v2625, %v2632
        %v2665 = vadd.f32 %v2628, %v2632
        %v2666 = vxor.u32 %v2634, 2147483648
        %v2667 = vxor.u32 %v2635, 2147483648
        %v2668 = vxor.u32 %v2636, 2147483648
        %v2669 = vxor.u32 %v2637, 2147483648
        %v2670 = vxor.u32 %v2638, 2147483648
        %v2671 = vxor.u32 %v2639, 2147483648
        %v2672 = vxor.u32 %v2640, 2147483648
        %v2673 = vxor.u32 %v2641, 2147483648
        %v2674 = vxor.u32 %v2642, 2147483648
        %v2675 = vxor.u32 %v2643, 2147483648
        %v2676 = vxor.u32 %v2644, 2147483648
        %v2677 = vxor.u32 %v2645, 2147483648
        %v2678 = vxor.u32 %v2646, 2147483648
        %v2679 = vxor.u32 %v2647, 2147483648
        %v2680 = vxor.u32 %v2648, 2147483648
        %v2681 = vxor.u32 %v2649, 2147483648
        %v2682 = vxor.u32 %v2650, 2147483648
        %v2683 = vxor.u32 %v2651, 2147483648
        %v2684 = vxor.u32 %v2652, 2147483648
        %v2685 = vxor.u32 %v2653, 2147483648
        %v2686 = vxor.u32 %v2654, 2147483648
        %v2687 = vxor.u32 %v2655, 2147483648
        %v2688 = vxor.u32 %v2656, 2147483648
        %v2689 = vxor.u32 %v2657, 2147483648
        %v2690 = vxor.u32 %v2658, 2147483648
        %v2691 = vxor.u32 %v2659, 2147483648
        %v2692 = vxor.u32 %v2660, 2147483648
        %v2693 = vxor.u32 %v2661, 2147483648
        %v2694 = vxor.u32 %v2662, 2147483648
        %v2695 = vxor.u32 %v2663, 2147483648
        %v2696 = vxor.u32 %v2664, 2147483648
        %v2697 = vxor.u32 %v2665, 2147483648
        %v2698 = vmul.f32 %v2666, 1.442695
        %v2699 = vpow.pop %v2698
        %v2700 = vmul.f32 %v2667, 1.442695
        %v2701 = vpow.pop %v2700
        %v2702 = vmul.f32 %v2668, 1.442695
        %v2703 = vpow.pop %v2702
        %v2704 = vmul.f32 %v2669, 1.442695
        %v2705 = vpow.pop %v2704
        %v2706 = vmul.f32 %v2670, 1.442695
        %v2707 = vpow.pop %v2706
        %v2708 = vmul.f32 %v2671, 1.442695
        %v2709 = vpow.pop %v2708
        %v2710 = vmul.f32 %v2672, 1.442695
        %v2711 = vpow.pop %v2710
        %v2712 = vmul.f32 %v2673, 1.442695
        %v2713 = vpow.pop %v2712
        %v2714 = vmul.f32 %v2674, 1.442695
        %v2715 = vpow.pop %v2714
        %v2716 = vmul.f32 %v2675, 1.442695
        %v2717 = vpow.pop %v2716
        %v2718 = vmul.f32 %v2676, 1.442695
        %v2719 = vpow.pop %v2718
        %v2720 = vmul.f32 %v2677, 1.442695
        %v2721 = vpow.pop %v2720
        %v2722 = vmul.f32 %v2678, 1.442695
        %v2723 = vpow.pop %v2722
        %v2724 = vmul.f32 %v2679, 1.442695
        %v2725 = vpow.pop %v2724
        %v2726 = vmul.f32 %v2680, 1.442695
        %v2727 = vpow.pop %v2726
        %v2728 = vmul.f32 %v2681, 1.442695
        %v2729 = vpow.pop %v2728
        %v2730 = vmul.f32 %v2682, 1.442695
        %v2731 = vpow.pop %v2730
        %v2732 = vmul.f32 %v2683, 1.442695
        %v2733 = vpow.pop %v2732
        %v2734 = vmul.f32 %v2684, 1.442695
        %v2735 = vpow.pop %v2734
        %v2736 = vmul.f32 %v2685, 1.442695
        %v2737 = vpow.pop %v2736
        %v2738 = vmul.f32 %v2686, 1.442695
        %v2739 = vpow.pop %v2738
        %v2740 = vmul.f32 %v2687, 1.442695
        %v2741 = vpow.pop %v2740
        %v2742 = vmul.f32 %v2688, 1.442695
        %v2743 = vpow.pop %v2742
        %v2744 = vmul.f32 %v2689, 1.442695
        %v2745 = vpow.pop %v2744
        %v2746 = vmul.f32 %v2690, 1.442695
        %v2747 = vpow.pop %v2746
        %v2748 = vmul.f32 %v2691, 1.442695
        %v2749 = vpow.pop %v2748
        %v2750 = vmul.f32 %v2692, 1.442695
        %v2751 = vpow.pop %v2750
        %v2752 = vmul.f32 %v2693, 1.442695
        %v2753 = vpow.pop %v2752
        %v2754 = vmul.f32 %v2694, 1.442695
        %v2755 = vpow.pop %v2754
        %v2756 = vmul.f32 %v2695, 1.442695
        %v2757 = vpow.pop %v2756
        %v2758 = vmul.f32 %v2696, 1.442695
        %v2759 = vpow.pop %v2758
        %v2760 = vmul.f32 %v2697, 1.442695
        %v2761 = vpow.pop %v2760
        %v2762 = vadd.f32 %v2699, 1.0
        %v2763 = vadd.f32 %v2701, 1.0
        %v2764 = vadd.f32 %v2703, 1.0
        %v2765 = vadd.f32 %v2705, 1.0
        %v2766 = vadd.f32 %v2707, 1.0
        %v2767 = vadd.f32 %v2709, 1.0
        %v2768 = vadd.f32 %v2711, 1.0
        %v2769 = vadd.f32 %v2713, 1.0
        %v2770 = vadd.f32 %v2715, 1.0
        %v2771 = vadd.f32 %v2717, 1.0
        %v2772 = vadd.f32 %v2719, 1.0
        %v2773 = vadd.f32 %v2721, 1.0
        %v2774 = vadd.f32 %v2723, 1.0
        %v2775 = vadd.f32 %v2725, 1.0
        %v2776 = vadd.f32 %v2727, 1.0
        %v2777 = vadd.f32 %v2729, 1.0
        %v2778 = vadd.f32 %v2731, 1.0
        %v2779 = vadd.f32 %v2733, 1.0
        %v2780 = vadd.f32 %v2735, 1.0
        %v2781 = vadd.f32 %v2737, 1.0
        %v2782 = vadd.f32 %v2739, 1.0
        %v2783 = vadd.f32 %v2741, 1.0
        %v2784 = vadd.f32 %v2743, 1.0
        %v2785 = vadd.f32 %v2745, 1.0
        %v2786 = vadd.f32 %v2747, 1.0
        %v2787 = vadd.f32 %v2749, 1.0
        %v2788 = vadd.f32 %v2751, 1.0
        %v2789 = vadd.f32 %v2753, 1.0
        %v2790 = vadd.f32 %v2755, 1.0
        %v2791 = vadd.f32 %v2757, 1.0
        %v2792 = vadd.f32 %v2759, 1.0
        %v2793 = vadd.f32 %v2761, 1.0
        %v2794 = vrcp.pop %v2762
        %v2795 = vmul.f32 %v2762, %v2794
        %v2796 = vsub.f32 1.0, %v2795
        %v2797 = vmul.f32 %v2794, %v2796
        %v2798 = vadd.f32 %v2794, %v2797
        %vm2799 = vweird.f32 %v2762
        %vm2800 = vweird.f32 %v2794
        %vm2801 = vmor %vm2799, %vm2800
        %v2802 = vsel %vm2801, %v2794, %v2798
        %v2803 = vand.u32 2147483647, %v2762
        %vm2804 = vcmp.eq.f32.partialorder %v2803, 8.507059e+37
        %v2805 = vand.u32 %v2762, 2147483648
        %v2806 = vor.u32 1.1754944e-38, %v2805
        %v2807 = vsel %vm2804, %v2806, %v2802
        %v2808 = vmul.f32 1.0, %v2807
        %v2809 = vrcp.pop %v2763
        %v2810 = vmul.f32 %v2763, %v2809
        %v2811 = vsub.f32 1.0, %v2810
        %v2812 = vmul.f32 %v2809, %v2811
        %v2813 = vadd.f32 %v2809, %v2812
        %vm2814 = vweird.f32 %v2763
        %vm2815 = vweird.f32 %v2809
        %vm2816 = vmor %vm2814, %vm2815
        %v2817 = vsel %vm2816, %v2809, %v2813
        %v2818 = vand.u32 2147483647, %v2763
        %vm2819 = vcmp.eq.f32.partialorder %v2818, 8.507059e+37
        %v2820 = vand.u32 %v2763, 2147483648
        %v2821 = vor.u32 1.1754944e-38, %v2820
        %v2822 = vsel %vm2819, %v2821, %v2817
        %v2823 = vmul.f32 1.0, %v2822
        %v2824 = vrcp.pop %v2764
        %v2825 = vmul.f32 %v2764, %v2824
        %v2826 = vsub.f32 1.0, %v2825
        %v2827 = vmul.f32 %v2824, %v2826
        %v2828 = vadd.f32 %v2824, %v2827
        %vm2829 = vweird.f32 %v2764
        %vm2830 = vweird.f32 %v2824
        %vm2831 = vmor %vm2829, %vm2830
        %v2832 = vsel %vm2831, %v2824, %v2828
        %v2833 = vand.u32 2147483647, %v2764
        %vm2834 = vcmp.eq.f32.partialorder %v2833, 8.507059e+37
        %v2835 = vand.u32 %v2764, 2147483648
        %v2836 = vor.u32 1.1754944e-38, %v2835
        %v2837 = vsel %vm2834, %v2836, %v2832
        %v2838 = vmul.f32 1.0, %v2837
        %v2839 = vrcp.pop %v2765
        %v2840 = vmul.f32 %v2765, %v2839
        %v2841 = vsub.f32 1.0, %v2840
        %v2842 = vmul.f32 %v2839, %v2841
        %v2843 = vadd.f32 %v2839, %v2842
        %vm2844 = vweird.f32 %v2765
        %vm2845 = vweird.f32 %v2839
        %vm2846 = vmor %vm2844, %vm2845
        %v2847 = vsel %vm2846, %v2839, %v2843
        %v2848 = vand.u32 2147483647, %v2765
        %vm2849 = vcmp.eq.f32.partialorder %v2848, 8.507059e+37
        %v2850 = vand.u32 %v2765, 2147483648
        %v2851 = vor.u32 1.1754944e-38, %v2850
        %v2852 = vsel %vm2849, %v2851, %v2847
        %v2853 = vmul.f32 1.0, %v2852
        %v2854 = vrcp.pop %v2766
        %v2855 = vmul.f32 %v2766, %v2854
        %v2856 = vsub.f32 1.0, %v2855
        %v2857 = vmul.f32 %v2854, %v2856
        %v2858 = vadd.f32 %v2854, %v2857
        %vm2859 = vweird.f32 %v2766
        %vm2860 = vweird.f32 %v2854
        %vm2861 = vmor %vm2859, %vm2860
        %v2862 = vsel %vm2861, %v2854, %v2858
        %v2863 = vand.u32 2147483647, %v2766
        %vm2864 = vcmp.eq.f32.partialorder %v2863, 8.507059e+37
        %v2865 = vand.u32 %v2766, 2147483648
        %v2866 = vor.u32 1.1754944e-38, %v2865
        %v2867 = vsel %vm2864, %v2866, %v2862
        %v2868 = vmul.f32 1.0, %v2867
        %v2869 = vrcp.pop %v2767
        %v2870 = vmul.f32 %v2767, %v2869
        %v2871 = vsub.f32 1.0, %v2870
        %v2872 = vmul.f32 %v2869, %v2871
        %v2873 = vadd.f32 %v2869, %v2872
        %vm2874 = vweird.f32 %v2767
        %vm2875 = vweird.f32 %v2869
        %vm2876 = vmor %vm2874, %vm2875
        %v2877 = vsel %vm2876, %v2869, %v2873
        %v2878 = vand.u32 2147483647, %v2767
        %vm2879 = vcmp.eq.f32.partialorder %v2878, 8.507059e+37
        %v2880 = vand.u32 %v2767, 2147483648
        %v2881 = vor.u32 1.1754944e-38, %v2880
        %v2882 = vsel %vm2879, %v2881, %v2877
        %v2883 = vmul.f32 1.0, %v2882
        %v2884 = vrcp.pop %v2768
        %v2885 = vmul.f32 %v2768, %v2884
        %v2886 = vsub.f32 1.0, %v2885
        %v2887 = vmul.f32 %v2884, %v2886
        %v2888 = vadd.f32 %v2884, %v2887
        %vm2889 = vweird.f32 %v2768
        %vm2890 = vweird.f32 %v2884
        %vm2891 = vmor %vm2889, %vm2890
        %v2892 = vsel %vm2891, %v2884, %v2888
        %v2893 = vand.u32 2147483647, %v2768
        %vm2894 = vcmp.eq.f32.partialorder %v2893, 8.507059e+37
        %v2895 = vand.u32 %v2768, 2147483648
        %v2896 = vor.u32 1.1754944e-38, %v2895
        %v2897 = vsel %vm2894, %v2896, %v2892
        %v2898 = vmul.f32 1.0, %v2897
        %v2899 = vrcp.pop %v2769
        %v2900 = vmul.f32 %v2769, %v2899
        %v2901 = vsub.f32 1.0, %v2900
        %v2902 = vmul.f32 %v2899, %v2901
        %v2903 = vadd.f32 %v2899, %v2902
        %vm2904 = vweird.f32 %v2769
        %vm2905 = vweird.f32 %v2899
        %vm2906 = vmor %vm2904, %vm2905
        %v2907 = vsel %vm2906, %v2899, %v2903
        %v2908 = vand.u32 2147483647, %v2769
        %vm2909 = vcmp.eq.f32.partialorder %v2908, 8.507059e+37
        %v2910 = vand.u32 %v2769, 2147483648
        %v2911 = vor.u32 1.1754944e-38, %v2910
        %v2912 = vsel %vm2909, %v2911, %v2907
        %v2913 = vmul.f32 1.0, %v2912
        %v2914 = vrcp.pop %v2770
        %v2915 = vmul.f32 %v2770, %v2914
        %v2916 = vsub.f32 1.0, %v2915
        %v2917 = vmul.f32 %v2914, %v2916
        %v2918 = vadd.f32 %v2914, %v2917
        %vm2919 = vweird.f32 %v2770
        %vm2920 = vweird.f32 %v2914
        %vm2921 = vmor %vm2919, %vm2920
        %v2922 = vsel %vm2921, %v2914, %v2918
        %v2923 = vand.u32 2147483647, %v2770
        %vm2924 = vcmp.eq.f32.partialorder %v2923, 8.507059e+37
        %v2925 = vand.u32 %v2770, 2147483648
        %v2926 = vor.u32 1.1754944e-38, %v2925
        %v2927 = vsel %vm2924, %v2926, %v2922
        %v2928 = vmul.f32 1.0, %v2927
        %v2929 = vrcp.pop %v2771
        %v2930 = vmul.f32 %v2771, %v2929
        %v2931 = vsub.f32 1.0, %v2930
        %v2932 = vmul.f32 %v2929, %v2931
        %v2933 = vadd.f32 %v2929, %v2932
        %vm2934 = vweird.f32 %v2771
        %vm2935 = vweird.f32 %v2929
        %vm2936 = vmor %vm2934, %vm2935
        %v2937 = vsel %vm2936, %v2929, %v2933
        %v2938 = vand.u32 2147483647, %v2771
        %vm2939 = vcmp.eq.f32.partialorder %v2938, 8.507059e+37
        %v2940 = vand.u32 %v2771, 2147483648
        %v2941 = vor.u32 1.1754944e-38, %v2940
        %v2942 = vsel %vm2939, %v2941, %v2937
        %v2943 = vmul.f32 1.0, %v2942
        %v2944 = vrcp.pop %v2772
        %v2945 = vmul.f32 %v2772, %v2944
        %v2946 = vsub.f32 1.0, %v2945
        %v2947 = vmul.f32 %v2944, %v2946
        %v2948 = vadd.f32 %v2944, %v2947
        %vm2949 = vweird.f32 %v2772
        %vm2950 = vweird.f32 %v2944
        %vm2951 = vmor %vm2949, %vm2950
        %v2952 = vsel %vm2951, %v2944, %v2948
        %v2953 = vand.u32 2147483647, %v2772
        %vm2954 = vcmp.eq.f32.partialorder %v2953, 8.507059e+37
        %v2955 = vand.u32 %v2772, 2147483648
        %v2956 = vor.u32 1.1754944e-38, %v2955
        %v2957 = vsel %vm2954, %v2956, %v2952
        %v2958 = vmul.f32 1.0, %v2957
        %v2959 = vrcp.pop %v2773
        %v2960 = vmul.f32 %v2773, %v2959
        %v2961 = vsub.f32 1.0, %v2960
        %v2962 = vmul.f32 %v2959, %v2961
        %v2963 = vadd.f32 %v2959, %v2962
        %vm2964 = vweird.f32 %v2773
        %vm2965 = vweird.f32 %v2959
        %vm2966 = vmor %vm2964, %vm2965
        %v2967 = vsel %vm2966, %v2959, %v2963
        %v2968 = vand.u32 2147483647, %v2773
        %vm2969 = vcmp.eq.f32.partialorder %v2968, 8.507059e+37
        %v2970 = vand.u32 %v2773, 2147483648
        %v2971 = vor.u32 1.1754944e-38, %v2970
        %v2972 = vsel %vm2969, %v2971, %v2967
        %v2973 = vmul.f32 1.0, %v2972
        %v2974 = vrcp.pop %v2774
        %v2975 = vmul.f32 %v2774, %v2974
        %v2976 = vsub.f32 1.0, %v2975
        %v2977 = vmul.f32 %v2974, %v2976
        %v2978 = vadd.f32 %v2974, %v2977
        %vm2979 = vweird.f32 %v2774
        %vm2980 = vweird.f32 %v2974
        %vm2981 = vmor %vm2979, %vm2980
        %v2982 = vsel %vm2981, %v2974, %v2978
        %v2983 = vand.u32 2147483647, %v2774
        %vm2984 = vcmp.eq.f32.partialorder %v2983, 8.507059e+37
        %v2985 = vand.u32 %v2774, 2147483648
        %v2986 = vor.u32 1.1754944e-38, %v2985
        %v2987 = vsel %vm2984, %v2986, %v2982
        %v2988 = vmul.f32 1.0, %v2987
        %v2989 = vrcp.pop %v2775
        %v2990 = vmul.f32 %v2775, %v2989
        %v2991 = vsub.f32 1.0, %v2990
        %v2992 = vmul.f32 %v2989, %v2991
        %v2993 = vadd.f32 %v2989, %v2992
        %vm2994 = vweird.f32 %v2775
        %vm2995 = vweird.f32 %v2989
        %vm2996 = vmor %vm2994, %vm2995
        %v2997 = vsel %vm2996, %v2989, %v2993
        %v2998 = vand.u32 2147483647, %v2775
        %vm2999 = vcmp.eq.f32.partialorder %v2998, 8.507059e+37
        %v3000 = vand.u32 %v2775, 2147483648
        %v3001 = vor.u32 1.1754944e-38, %v3000
        %v3002 = vsel %vm2999, %v3001, %v2997
        %v3003 = vmul.f32 1.0, %v3002
        %v3004 = vrcp.pop %v2776
        %v3005 = vmul.f32 %v2776, %v3004
        %v3006 = vsub.f32 1.0, %v3005
        %v3007 = vmul.f32 %v3004, %v3006
        %v3008 = vadd.f32 %v3004, %v3007
        %vm3009 = vweird.f32 %v2776
        %vm3010 = vweird.f32 %v3004
        %vm3011 = vmor %vm3009, %vm3010
        %v3012 = vsel %vm3011, %v3004, %v3008
        %v3013 = vand.u32 2147483647, %v2776
        %vm3014 = vcmp.eq.f32.partialorder %v3013, 8.507059e+37
        %v3015 = vand.u32 %v2776, 2147483648
        %v3016 = vor.u32 1.1754944e-38, %v3015
        %v3017 = vsel %vm3014, %v3016, %v3012
        %v3018 = vmul.f32 1.0, %v3017
        %v3019 = vrcp.pop %v2777
        %v3020 = vmul.f32 %v2777, %v3019
        %v3021 = vsub.f32 1.0, %v3020
        %v3022 = vmul.f32 %v3019, %v3021
        %v3023 = vadd.f32 %v3019, %v3022
        %vm3024 = vweird.f32 %v2777
        %vm3025 = vweird.f32 %v3019
        %vm3026 = vmor %vm3024, %vm3025
        %v3027 = vsel %vm3026, %v3019, %v3023
        %v3028 = vand.u32 2147483647, %v2777
        %vm3029 = vcmp.eq.f32.partialorder %v3028, 8.507059e+37
        %v3030 = vand.u32 %v2777, 2147483648
        %v3031 = vor.u32 1.1754944e-38, %v3030
        %v3032 = vsel %vm3029, %v3031, %v3027
        %v3033 = vmul.f32 1.0, %v3032
        %v3034 = vrcp.pop %v2778
        %v3035 = vmul.f32 %v2778, %v3034
        %v3036 = vsub.f32 1.0, %v3035
        %v3037 = vmul.f32 %v3034, %v3036
        %v3038 = vadd.f32 %v3034, %v3037
        %vm3039 = vweird.f32 %v2778
        %vm3040 = vweird.f32 %v3034
        %vm3041 = vmor %vm3039, %vm3040
        %v3042 = vsel %vm3041, %v3034, %v3038
        %v3043 = vand.u32 2147483647, %v2778
        %vm3044 = vcmp.eq.f32.partialorder %v3043, 8.507059e+37
        %v3045 = vand.u32 %v2778, 2147483648
        %v3046 = vor.u32 1.1754944e-38, %v3045
        %v3047 = vsel %vm3044, %v3046, %v3042
        %v3048 = vmul.f32 1.0, %v3047
        %v3049 = vrcp.pop %v2779
        %v3050 = vmul.f32 %v2779, %v3049
        %v3051 = vsub.f32 1.0, %v3050
        %v3052 = vmul.f32 %v3049, %v3051
        %v3053 = vadd.f32 %v3049, %v3052
        %vm3054 = vweird.f32 %v2779
        %vm3055 = vweird.f32 %v3049
        %vm3056 = vmor %vm3054, %vm3055
        %v3057 = vsel %vm3056, %v3049, %v3053
        %v3058 = vand.u32 2147483647, %v2779
        %vm3059 = vcmp.eq.f32.partialorder %v3058, 8.507059e+37
        %v3060 = vand.u32 %v2779, 2147483648
        %v3061 = vor.u32 1.1754944e-38, %v3060
        %v3062 = vsel %vm3059, %v3061, %v3057
        %v3063 = vmul.f32 1.0, %v3062
        %v3064 = vrcp.pop %v2780
        %v3065 = vmul.f32 %v2780, %v3064
        %v3066 = vsub.f32 1.0, %v3065
        %v3067 = vmul.f32 %v3064, %v3066
        %v3068 = vadd.f32 %v3064, %v3067
        %vm3069 = vweird.f32 %v2780
        %vm3070 = vweird.f32 %v3064
        %vm3071 = vmor %vm3069, %vm3070
        %v3072 = vsel %vm3071, %v3064, %v3068
        %v3073 = vand.u32 2147483647, %v2780
        %vm3074 = vcmp.eq.f32.partialorder %v3073, 8.507059e+37
        %v3075 = vand.u32 %v2780, 2147483648
        %v3076 = vor.u32 1.1754944e-38, %v3075
        %v3077 = vsel %vm3074, %v3076, %v3072
        %v3078 = vmul.f32 1.0, %v3077
        %v3079 = vrcp.pop %v2781
        %v3080 = vmul.f32 %v2781, %v3079
        %v3081 = vsub.f32 1.0, %v3080
        %v3082 = vmul.f32 %v3079, %v3081
        %v3083 = vadd.f32 %v3079, %v3082
        %vm3084 = vweird.f32 %v2781
        %vm3085 = vweird.f32 %v3079
        %vm3086 = vmor %vm3084, %vm3085
        %v3087 = vsel %vm3086, %v3079, %v3083
        %v3088 = vand.u32 2147483647, %v2781
        %vm3089 = vcmp.eq.f32.partialorder %v3088, 8.507059e+37
        %v3090 = vand.u32 %v2781, 2147483648
        %v3091 = vor.u32 1.1754944e-38, %v3090
        %v3092 = vsel %vm3089, %v3091, %v3087
        %v3093 = vmul.f32 1.0, %v3092
        %v3094 = vrcp.pop %v2782
        %v3095 = vmul.f32 %v2782, %v3094
        %v3096 = vsub.f32 1.0, %v3095
        %v3097 = vmul.f32 %v3094, %v3096
        %v3098 = vadd.f32 %v3094, %v3097
        %vm3099 = vweird.f32 %v2782
        %vm3100 = vweird.f32 %v3094
        %vm3101 = vmor %vm3099, %vm3100
        %v3102 = vsel %vm3101, %v3094, %v3098
        %v3103 = vand.u32 2147483647, %v2782
        %vm3104 = vcmp.eq.f32.partialorder %v3103, 8.507059e+37
        %v3105 = vand.u32 %v2782, 2147483648
        %v3106 = vor.u32 1.1754944e-38, %v3105
        %v3107 = vsel %vm3104, %v3106, %v3102
        %v3108 = vmul.f32 1.0, %v3107
        %v3109 = vrcp.pop %v2783
        %v3110 = vmul.f32 %v2783, %v3109
        %v3111 = vsub.f32 1.0, %v3110
        %v3112 = vmul.f32 %v3109, %v3111
        %v3113 = vadd.f32 %v3109, %v3112
        %vm3114 = vweird.f32 %v2783
        %vm3115 = vweird.f32 %v3109
        %vm3116 = vmor %vm3114, %vm3115
        %v3117 = vsel %vm3116, %v3109, %v3113
        %v3118 = vand.u32 2147483647, %v2783
        %vm3119 = vcmp.eq.f32.partialorder %v3118, 8.507059e+37
        %v3120 = vand.u32 %v2783, 2147483648
        %v3121 = vor.u32 1.1754944e-38, %v3120
        %v3122 = vsel %vm3119, %v3121, %v3117
        %v3123 = vmul.f32 1.0, %v3122
        %v3124 = vrcp.pop %v2784
        %v3125 = vmul.f32 %v2784, %v3124
        %v3126 = vsub.f32 1.0, %v3125
        %v3127 = vmul.f32 %v3124, %v3126
        %v3128 = vadd.f32 %v3124, %v3127
        %vm3129 = vweird.f32 %v2784
        %vm3130 = vweird.f32 %v3124
        %vm3131 = vmor %vm3129, %vm3130
        %v3132 = vsel %vm3131, %v3124, %v3128
        %v3133 = vand.u32 2147483647, %v2784
        %vm3134 = vcmp.eq.f32.partialorder %v3133, 8.507059e+37
        %v3135 = vand.u32 %v2784, 2147483648
        %v3136 = vor.u32 1.1754944e-38, %v3135
        %v3137 = vsel %vm3134, %v3136, %v3132
        %v3138 = vmul.f32 1.0, %v3137
        %v3139 = vrcp.pop %v2785
        %v3140 = vmul.f32 %v2785, %v3139
        %v3141 = vsub.f32 1.0, %v3140
        %v3142 = vmul.f32 %v3139, %v3141
        %v3143 = vadd.f32 %v3139, %v3142
        %vm3144 = vweird.f32 %v2785
        %vm3145 = vweird.f32 %v3139
        %vm3146 = vmor %vm3144, %vm3145
        %v3147 = vsel %vm3146, %v3139, %v3143
        %v3148 = vand.u32 2147483647, %v2785
        %vm3149 = vcmp.eq.f32.partialorder %v3148, 8.507059e+37
        %v3150 = vand.u32 %v2785, 2147483648
        %v3151 = vor.u32 1.1754944e-38, %v3150
        %v3152 = vsel %vm3149, %v3151, %v3147
        %v3153 = vmul.f32 1.0, %v3152
        %v3154 = vrcp.pop %v2786
        %v3155 = vmul.f32 %v2786, %v3154
        %v3156 = vsub.f32 1.0, %v3155
        %v3157 = vmul.f32 %v3154, %v3156
        %v3158 = vadd.f32 %v3154, %v3157
        %vm3159 = vweird.f32 %v2786
        %vm3160 = vweird.f32 %v3154
        %vm3161 = vmor %vm3159, %vm3160
        %v3162 = vsel %vm3161, %v3154, %v3158
        %v3163 = vand.u32 2147483647, %v2786
        %vm3164 = vcmp.eq.f32.partialorder %v3163, 8.507059e+37
        %v3165 = vand.u32 %v2786, 2147483648
        %v3166 = vor.u32 1.1754944e-38, %v3165
        %v3167 = vsel %vm3164, %v3166, %v3162
        %v3168 = vmul.f32 1.0, %v3167
        %v3169 = vrcp.pop %v2787
        %v3170 = vmul.f32 %v2787, %v3169
        %v3171 = vsub.f32 1.0, %v3170
        %v3172 = vmul.f32 %v3169, %v3171
        %v3173 = vadd.f32 %v3169, %v3172
        %vm3174 = vweird.f32 %v2787
        %vm3175 = vweird.f32 %v3169
        %vm3176 = vmor %vm3174, %vm3175
        %v3177 = vsel %vm3176, %v3169, %v3173
        %v3178 = vand.u32 2147483647, %v2787
        %vm3179 = vcmp.eq.f32.partialorder %v3178, 8.507059e+37
        %v3180 = vand.u32 %v2787, 2147483648
        %v3181 = vor.u32 1.1754944e-38, %v3180
        %v3182 = vsel %vm3179, %v3181, %v3177
        %v3183 = vmul.f32 1.0, %v3182
        %v3184 = vrcp.pop %v2788
        %v3185 = vmul.f32 %v2788, %v3184
        %v3186 = vsub.f32 1.0, %v3185
        %v3187 = vmul.f32 %v3184, %v3186
        %v3188 = vadd.f32 %v3184, %v3187
        %vm3189 = vweird.f32 %v2788
        %vm3190 = vweird.f32 %v3184
        %vm3191 = vmor %vm3189, %vm3190
        %v3192 = vsel %vm3191, %v3184, %v3188
        %v3193 = vand.u32 2147483647, %v2788
        %vm3194 = vcmp.eq.f32.partialorder %v3193, 8.507059e+37
        %v3195 = vand.u32 %v2788, 2147483648
        %v3196 = vor.u32 1.1754944e-38, %v3195
        %v3197 = vsel %vm3194, %v3196, %v3192
        %v3198 = vmul.f32 1.0, %v3197
        %v3199 = vrcp.pop %v2789
        %v3200 = vmul.f32 %v2789, %v3199
        %v3201 = vsub.f32 1.0, %v3200
        %v3202 = vmul.f32 %v3199, %v3201
        %v3203 = vadd.f32 %v3199, %v3202
        %vm3204 = vweird.f32 %v2789
        %vm3205 = vweird.f32 %v3199
        %vm3206 = vmor %vm3204, %vm3205
        %v3207 = vsel %vm3206, %v3199, %v3203
        %v3208 = vand.u32 2147483647, %v2789
        %vm3209 = vcmp.eq.f32.partialorder %v3208, 8.507059e+37
        %v3210 = vand.u32 %v2789, 2147483648
        %v3211 = vor.u32 1.1754944e-38, %v3210
        %v3212 = vsel %vm3209, %v3211, %v3207
        %v3213 = vmul.f32 1.0, %v3212
        %v3214 = vrcp.pop %v2790
        %v3215 = vmul.f32 %v2790, %v3214
        %v3216 = vsub.f32 1.0, %v3215
        %v3217 = vmul.f32 %v3214, %v3216
        %v3218 = vadd.f32 %v3214, %v3217
        %vm3219 = vweird.f32 %v2790
        %vm3220 = vweird.f32 %v3214
        %vm3221 = vmor %vm3219, %vm3220
        %v3222 = vsel %vm3221, %v3214, %v3218
        %v3223 = vand.u32 2147483647, %v2790
        %vm3224 = vcmp.eq.f32.partialorder %v3223, 8.507059e+37
        %v3225 = vand.u32 %v2790, 2147483648
        %v3226 = vor.u32 1.1754944e-38, %v3225
        %v3227 = vsel %vm3224, %v3226, %v3222
        %v3228 = vmul.f32 1.0, %v3227
        %v3229 = vrcp.pop %v2791
        %v3230 = vmul.f32 %v2791, %v3229
        %v3231 = vsub.f32 1.0, %v3230
        %v3232 = vmul.f32 %v3229, %v3231
        %v3233 = vadd.f32 %v3229, %v3232
        %vm3234 = vweird.f32 %v2791
        %vm3235 = vweird.f32 %v3229
        %vm3236 = vmor %vm3234, %vm3235
        %v3237 = vsel %vm3236, %v3229, %v3233
        %v3238 = vand.u32 2147483647, %v2791
        %vm3239 = vcmp.eq.f32.partialorder %v3238, 8.507059e+37
        %v3240 = vand.u32 %v2791, 2147483648
        %v3241 = vor.u32 1.1754944e-38, %v3240
        %v3242 = vsel %vm3239, %v3241, %v3237
        %v3243 = vmul.f32 1.0, %v3242
        %v3244 = vrcp.pop %v2792
        %v3245 = vmul.f32 %v2792, %v3244
        %v3246 = vsub.f32 1.0, %v3245
        %v3247 = vmul.f32 %v3244, %v3246
        %v3248 = vadd.f32 %v3244, %v3247
        %vm3249 = vweird.f32 %v2792
        %vm3250 = vweird.f32 %v3244
        %vm3251 = vmor %vm3249, %vm3250
        %v3252 = vsel %vm3251, %v3244, %v3248
        %v3253 = vand.u32 2147483647, %v2792
        %vm3254 = vcmp.eq.f32.partialorder %v3253, 8.507059e+37
        %v3255 = vand.u32 %v2792, 2147483648
        %v3256 = vor.u32 1.1754944e-38, %v3255
        %v3257 = vsel %vm3254, %v3256, %v3252
        %v3258 = vmul.f32 1.0, %v3257
        %v3259 = vrcp.pop %v2793
        %v3260 = vmul.f32 %v2793, %v3259
        %v3261 = vsub.f32 1.0, %v3260
        %v3262 = vmul.f32 %v3259, %v3261
        %v3263 = vadd.f32 %v3259, %v3262
        %vm3264 = vweird.f32 %v2793
        %vm3265 = vweird.f32 %v3259
        %vm3266 = vmor %vm3264, %vm3265
        %v3267 = vsel %vm3266, %v3259, %v3263
        %v3268 = vand.u32 2147483647, %v2793
        %vm3269 = vcmp.eq.f32.partialorder %v3268, 8.507059e+37
        %v3270 = vand.u32 %v2793, 2147483648
        %v3271 = vor.u32 1.1754944e-38, %v3270
        %v3272 = vsel %vm3269, %v3271, %v3267
        %v3273 = vmul.f32 1.0, %v3272
        %v3274 = vmul.f32 %v2634, %v2808
        %v3275 = vmul.f32 %v2635, %v2823
        %v3276 = vmul.f32 %v2636, %v2838
        %v3277 = vmul.f32 %v2637, %v2853
        %v3278 = vmul.f32 %v2638, %v2868
        %v3279 = vmul.f32 %v2639, %v2883
        %v3280 = vmul.f32 %v2640, %v2898
        %v3281 = vmul.f32 %v2641, %v2913
        %v3282 = vmul.f32 %v2642, %v2928
        %v3283 = vmul.f32 %v2643, %v2943
        %v3284 = vmul.f32 %v2644, %v2958
        %v3285 = vmul.f32 %v2645, %v2973
        %v3286 = vmul.f32 %v2646, %v2988
        %v3287 = vmul.f32 %v2647, %v3003
        %v3288 = vmul.f32 %v2648, %v3018
        %v3289 = vmul.f32 %v2649, %v3033
        %v3290 = vmul.f32 %v2650, %v3048
        %v3291 = vmul.f32 %v2651, %v3063
        %v3292 = vmul.f32 %v2652, %v3078
        %v3293 = vmul.f32 %v2653, %v3093
        %v3294 = vmul.f32 %v2654, %v3108
        %v3295 = vmul.f32 %v2655, %v3123
        %v3296 = vmul.f32 %v2656, %v3138
        %v3297 = vmul.f32 %v2657, %v3153
        %v3298 = vmul.f32 %v2658, %v3168
        %v3299 = vmul.f32 %v2659, %v3183
        %v3300 = vmul.f32 %v2660, %v3198
        %v3301 = vmul.f32 %v2661, %v3213
        %v3302 = vmul.f32 %v2662, %v3228
        %v3303 = vmul.f32 %v2663, %v3243
        %v3304 = vmul.f32 %v2664, %v3258
        %v3305 = vmul.f32 %v2665, %v3273
        %3338 = vrot.lane.b32.xlu0 %v3274, 127
        %v3339 = vpop.permute.xlu0 %3338
        %3340 = vrot.lane.b32.xlu0 %v3275, 127
        %v3341 = vpop.permute.xlu0 %3340
        %3342 = vrot.lane.b32.xlu0 %v3276, 127
        %v3343 = vpop.permute.xlu0 %3342
        %3344 = vrot.lane.b32.xlu0 %v3277, 127
        %v3345 = vpop.permute.xlu0 %3344
        %3346 = vrot.lane.b32.xlu0 %v3278, 127
        %v3347 = vpop.permute.xlu0 %3346
        %3348 = vrot.lane.b32.xlu0 %v3279, 127
        %v3349 = vpop.permute.xlu0 %3348
        %3350 = vrot.lane.b32.xlu0 %v3280, 127
        %v3351 = vpop.permute.xlu0 %3350
        %3352 = vrot.lane.b32.xlu0 %v3281, 127
        %v3353 = vpop.permute.xlu0 %3352
        %3354 = vrot.lane.b32.xlu0 %v3282, 127
        %v3355 = vpop.permute.xlu0 %3354
        %3356 = vrot.lane.b32.xlu0 %v3283, 127
        %v3357 = vpop.permute.xlu0 %3356
        %3358 = vrot.lane.b32.xlu0 %v3284, 127
        %v3359 = vpop.permute.xlu0 %3358
        %3360 = vrot.lane.b32.xlu0 %v3285, 127
        %v3361 = vpop.permute.xlu0 %3360
        %3362 = vrot.lane.b32.xlu0 %v3286, 127
        %v3363 = vpop.permute.xlu0 %3362
        %3364 = vrot.lane.b32.xlu0 %v3287, 127
        %v3365 = vpop.permute.xlu0 %3364
        %3366 = vrot.lane.b32.xlu0 %v3288, 127
        %v3367 = vpop.permute.xlu0 %3366
        %3368 = vrot.lane.b32.xlu0 %v3289, 127
        %v3369 = vpop.permute.xlu0 %3368
        %3370 = vrot.lane.b32.xlu0 %v3290, 127
        %v3371 = vpop.permute.xlu0 %3370
        %3372 = vrot.lane.b32.xlu0 %v3291, 127
        %v3373 = vpop.permute.xlu0 %3372
        %3374 = vrot.lane.b32.xlu0 %v3292, 127
        %v3375 = vpop.permute.xlu0 %3374
        %3376 = vrot.lane.b32.xlu0 %v3293, 127
        %v3377 = vpop.permute.xlu0 %3376
        %3378 = vrot.lane.b32.xlu0 %v3294, 127
        %v3379 = vpop.permute.xlu0 %3378
        %3380 = vrot.lane.b32.xlu0 %v3295, 127
        %v3381 = vpop.permute.xlu0 %3380
        %3382 = vrot.lane.b32.xlu0 %v3296, 127
        %v3383 = vpop.permute.xlu0 %3382
        %3384 = vrot.lane.b32.xlu0 %v3297, 127
        %v3385 = vpop.permute.xlu0 %3384
        %3386 = vrot.lane.b32.xlu0 %v3298, 127
        %v3387 = vpop.permute.xlu0 %3386
        %3388 = vrot.lane.b32.xlu0 %v3299, 127
        %v3389 = vpop.permute.xlu0 %3388
        %3390 = vrot.lane.b32.xlu0 %v3300, 127
        %v3391 = vpop.permute.xlu0 %3390
        %3392 = vrot.lane.b32.xlu0 %v3301, 127
        %v3393 = vpop.permute.xlu0 %3392
        %3394 = vrot.lane.b32.xlu0 %v3302, 127
        %v3395 = vpop.permute.xlu0 %3394
        %3396 = vrot.lane.b32.xlu0 %v3303, 127
        %v3397 = vpop.permute.xlu0 %3396
        %3398 = vrot.lane.b32.xlu0 %v3304, 127
        %v3399 = vpop.permute.xlu0 %3398
        %3400 = vrot.lane.b32.xlu0 %v3305, 127
        %v3401 = vpop.permute.xlu0 %3400
        %v3434 = vsub.f32 %v3274, %v3339
        %v3435 = vsub.f32 %v3275, %v3341
        %v3436 = vsub.f32 %v3276, %v3343
        %v3437 = vsub.f32 %v3277, %v3345
        %v3438 = vsub.f32 %v3278, %v3347
        %v3439 = vsub.f32 %v3279, %v3349
        %v3440 = vsub.f32 %v3280, %v3351
        %v3441 = vsub.f32 %v3281, %v3353
        %v3442 = vsub.f32 %v3282, %v3355
        %v3443 = vsub.f32 %v3283, %v3357
        %v3444 = vsub.f32 %v3284, %v3359
        %v3445 = vsub.f32 %v3285, %v3361
        %v3446 = vsub.f32 %v3286, %v3363
        %v3447 = vsub.f32 %v3287, %v3365
        %v3448 = vsub.f32 %v3288, %v3367
        %v3449 = vsub.f32 %v3289, %v3369
        %v3450 = vsub.f32 %v3290, %v3371
        %v3451 = vsub.f32 %v3291, %v3373
        %v3452 = vsub.f32 %v3292, %v3375
        %v3453 = vsub.f32 %v3293, %v3377
        %v3454 = vsub.f32 %v3294, %v3379
        %v3455 = vsub.f32 %v3295, %v3381
        %v3456 = vsub.f32 %v3296, %v3383
        %v3457 = vsub.f32 %v3297, %v3385
        %v3458 = vsub.f32 %v3298, %v3387
        %v3459 = vsub.f32 %v3299, %v3389
        %v3460 = vsub.f32 %v3300, %v3391
        %v3461 = vsub.f32 %v3301, %v3393
        %v3462 = vsub.f32 %v3302, %v3395
        %v3463 = vsub.f32 %v3303, %v3397
        %v3464 = vsub.f32 %v3304, %v3399
        %v3465 = vsub.f32 %v3305, %v3401
        %v3466 = vxor.u32 %v3434, 2147483648
        %v3467 = vxor.u32 %v3435, 2147483648
        %v3468 = vxor.u32 %v3436, 2147483648
        %v3469 = vxor.u32 %v3437, 2147483648
        %v3470 = vxor.u32 %v3438, 2147483648
        %v3471 = vxor.u32 %v3439, 2147483648
        %v3472 = vxor.u32 %v3440, 2147483648
        %v3473 = vxor.u32 %v3441, 2147483648
        %v3474 = vxor.u32 %v3442, 2147483648
        %v3475 = vxor.u32 %v3443, 2147483648
        %v3476 = vxor.u32 %v3444, 2147483648
        %v3477 = vxor.u32 %v3445, 2147483648
        %v3478 = vxor.u32 %v3446, 2147483648
        %v3479 = vxor.u32 %v3447, 2147483648
        %v3480 = vxor.u32 %v3448, 2147483648
        %v3481 = vxor.u32 %v3449, 2147483648
        %v3482 = vxor.u32 %v3450, 2147483648
        %v3483 = vxor.u32 %v3451, 2147483648
        %v3484 = vxor.u32 %v3452, 2147483648
        %v3485 = vxor.u32 %v3453, 2147483648
        %v3486 = vxor.u32 %v3454, 2147483648
        %v3487 = vxor.u32 %v3455, 2147483648
        %v3488 = vxor.u32 %v3456, 2147483648
        %v3489 = vxor.u32 %v3457, 2147483648
        %v3490 = vxor.u32 %v3458, 2147483648
        %v3491 = vxor.u32 %v3459, 2147483648
        %v3492 = vxor.u32 %v3460, 2147483648
        %v3493 = vxor.u32 %v3461, 2147483648
        %v3494 = vxor.u32 %v3462, 2147483648
        %v3495 = vxor.u32 %v3463, 2147483648
        %v3496 = vxor.u32 %v3464, 2147483648
        %v3497 = vxor.u32 %v3465, 2147483648
        %v3498 = vmul.f32 %v3466, 1.442695
        %v3499 = vpow.pop %v3498
        %v3500 = vmul.f32 %v3467, 1.442695
        %v3501 = vpow.pop %v3500
        %v3502 = vmul.f32 %v3468, 1.442695
        %v3503 = vpow.pop %v3502
        %v3504 = vmul.f32 %v3469, 1.442695
        %v3505 = vpow.pop %v3504
        %v3506 = vmul.f32 %v3470, 1.442695
        %v3507 = vpow.pop %v3506
        %v3508 = vmul.f32 %v3471, 1.442695
        %v3509 = vpow.pop %v3508
        %v3510 = vmul.f32 %v3472, 1.442695
        %v3511 = vpow.pop %v3510
        %v3512 = vmul.f32 %v3473, 1.442695
        %v3513 = vpow.pop %v3512
        %v3514 = vmul.f32 %v3474, 1.442695
        %v3515 = vpow.pop %v3514
        %v3516 = vmul.f32 %v3475, 1.442695
        %v3517 = vpow.pop %v3516
        %v3518 = vmul.f32 %v3476, 1.442695
        %v3519 = vpow.pop %v3518
        %v3520 = vmul.f32 %v3477, 1.442695
        %v3521 = vpow.pop %v3520
        %v3522 = vmul.f32 %v3478, 1.442695
        %v3523 = vpow.pop %v3522
        %v3524 = vmul.f32 %v3479, 1.442695
        %v3525 = vpow.pop %v3524
        %v3526 = vmul.f32 %v3480, 1.442695
        %v3527 = vpow.pop %v3526
        %v3528 = vmul.f32 %v3481, 1.442695
        %v3529 = vpow.pop %v3528
        %v3530 = vmul.f32 %v3482, 1.442695
        %v3531 = vpow.pop %v3530
        %v3532 = vmul.f32 %v3483, 1.442695
        %v3533 = vpow.pop %v3532
        %v3534 = vmul.f32 %v3484, 1.442695
        %v3535 = vpow.pop %v3534
        %v3536 = vmul.f32 %v3485, 1.442695
        %v3537 = vpow.pop %v3536
        %v3538 = vmul.f32 %v3486, 1.442695
        %v3539 = vpow.pop %v3538
        %v3540 = vmul.f32 %v3487, 1.442695
        %v3541 = vpow.pop %v3540
        %v3542 = vmul.f32 %v3488, 1.442695
        %v3543 = vpow.pop %v3542
        %v3544 = vmul.f32 %v3489, 1.442695
        %v3545 = vpow.pop %v3544
        %v3546 = vmul.f32 %v3490, 1.442695
        %v3547 = vpow.pop %v3546
        %v3548 = vmul.f32 %v3491, 1.442695
        %v3549 = vpow.pop %v3548
        %v3550 = vmul.f32 %v3492, 1.442695
        %v3551 = vpow.pop %v3550
        %v3552 = vmul.f32 %v3493, 1.442695
        %v3553 = vpow.pop %v3552
        %v3554 = vmul.f32 %v3494, 1.442695
        %v3555 = vpow.pop %v3554
        %v3556 = vmul.f32 %v3495, 1.442695
        %v3557 = vpow.pop %v3556
        %v3558 = vmul.f32 %v3496, 1.442695
        %v3559 = vpow.pop %v3558
        %v3560 = vmul.f32 %v3497, 1.442695
        %v3561 = vpow.pop %v3560
        %v3562 = vadd.f32 %v3499, 1.0
        %v3563 = vadd.f32 %v3501, 1.0
        %v3564 = vadd.f32 %v3503, 1.0
        %v3565 = vadd.f32 %v3505, 1.0
        %v3566 = vadd.f32 %v3507, 1.0
        %v3567 = vadd.f32 %v3509, 1.0
        %v3568 = vadd.f32 %v3511, 1.0
        %v3569 = vadd.f32 %v3513, 1.0
        %v3570 = vadd.f32 %v3515, 1.0
        %v3571 = vadd.f32 %v3517, 1.0
        %v3572 = vadd.f32 %v3519, 1.0
        %v3573 = vadd.f32 %v3521, 1.0
        %v3574 = vadd.f32 %v3523, 1.0
        %v3575 = vadd.f32 %v3525, 1.0
        %v3576 = vadd.f32 %v3527, 1.0
        %v3577 = vadd.f32 %v3529, 1.0
        %v3578 = vadd.f32 %v3531, 1.0
        %v3579 = vadd.f32 %v3533, 1.0
        %v3580 = vadd.f32 %v3535, 1.0
        %v3581 = vadd.f32 %v3537, 1.0
        %v3582 = vadd.f32 %v3539, 1.0
        %v3583 = vadd.f32 %v3541, 1.0
        %v3584 = vadd.f32 %v3543, 1.0
        %v3585 = vadd.f32 %v3545, 1.0
        %v3586 = vadd.f32 %v3547, 1.0
        %v3587 = vadd.f32 %v3549, 1.0
        %v3588 = vadd.f32 %v3551, 1.0
        %v3589 = vadd.f32 %v3553, 1.0
        %v3590 = vadd.f32 %v3555, 1.0
        %v3591 = vadd.f32 %v3557, 1.0
        %v3592 = vadd.f32 %v3559, 1.0
        %v3593 = vadd.f32 %v3561, 1.0
        %v3594 = vrcp.pop %v3562
        %v3595 = vmul.f32 %v3562, %v3594
        %v3596 = vsub.f32 1.0, %v3595
        %v3597 = vmul.f32 %v3594, %v3596
        %v3598 = vadd.f32 %v3594, %v3597
        %vm3599 = vweird.f32 %v3562
        %vm3600 = vweird.f32 %v3594
        %vm3601 = vmor %vm3599, %vm3600
        %v3602 = vsel %vm3601, %v3594, %v3598
        %v3603 = vand.u32 2147483647, %v3562
        %vm3604 = vcmp.eq.f32.partialorder %v3603, 8.507059e+37
        %v3605 = vand.u32 %v3562, 2147483648
        %v3606 = vor.u32 1.1754944e-38, %v3605
        %v3607 = vsel %vm3604, %v3606, %v3602
        %v3608 = vmul.f32 1.0, %v3607
        %v3609 = vrcp.pop %v3563
        %v3610 = vmul.f32 %v3563, %v3609
        %v3611 = vsub.f32 1.0, %v3610
        %v3612 = vmul.f32 %v3609, %v3611
        %v3613 = vadd.f32 %v3609, %v3612
        %vm3614 = vweird.f32 %v3563
        %vm3615 = vweird.f32 %v3609
        %vm3616 = vmor %vm3614, %vm3615
        %v3617 = vsel %vm3616, %v3609, %v3613
        %v3618 = vand.u32 2147483647, %v3563
        %vm3619 = vcmp.eq.f32.partialorder %v3618, 8.507059e+37
        %v3620 = vand.u32 %v3563, 2147483648
        %v3621 = vor.u32 1.1754944e-38, %v3620
        %v3622 = vsel %vm3619, %v3621, %v3617
        %v3623 = vmul.f32 1.0, %v3622
        %v3624 = vrcp.pop %v3564
        %v3625 = vmul.f32 %v3564, %v3624
        %v3626 = vsub.f32 1.0, %v3625
        %v3627 = vmul.f32 %v3624, %v3626
        %v3628 = vadd.f32 %v3624, %v3627
        %vm3629 = vweird.f32 %v3564
        %vm3630 = vweird.f32 %v3624
        %vm3631 = vmor %vm3629, %vm3630
        %v3632 = vsel %vm3631, %v3624, %v3628
        %v3633 = vand.u32 2147483647, %v3564
        %vm3634 = vcmp.eq.f32.partialorder %v3633, 8.507059e+37
        %v3635 = vand.u32 %v3564, 2147483648
        %v3636 = vor.u32 1.1754944e-38, %v3635
        %v3637 = vsel %vm3634, %v3636, %v3632
        %v3638 = vmul.f32 1.0, %v3637
        %v3639 = vrcp.pop %v3565
        %v3640 = vmul.f32 %v3565, %v3639
        %v3641 = vsub.f32 1.0, %v3640
        %v3642 = vmul.f32 %v3639, %v3641
        %v3643 = vadd.f32 %v3639, %v3642
        %vm3644 = vweird.f32 %v3565
        %vm3645 = vweird.f32 %v3639
        %vm3646 = vmor %vm3644, %vm3645
        %v3647 = vsel %vm3646, %v3639, %v3643
        %v3648 = vand.u32 2147483647, %v3565
        %vm3649 = vcmp.eq.f32.partialorder %v3648, 8.507059e+37
        %v3650 = vand.u32 %v3565, 2147483648
        %v3651 = vor.u32 1.1754944e-38, %v3650
        %v3652 = vsel %vm3649, %v3651, %v3647
        %v3653 = vmul.f32 1.0, %v3652
        %v3654 = vrcp.pop %v3566
        %v3655 = vmul.f32 %v3566, %v3654
        %v3656 = vsub.f32 1.0, %v3655
        %v3657 = vmul.f32 %v3654, %v3656
        %v3658 = vadd.f32 %v3654, %v3657
        %vm3659 = vweird.f32 %v3566
        %vm3660 = vweird.f32 %v3654
        %vm3661 = vmor %vm3659, %vm3660
        %v3662 = vsel %vm3661, %v3654, %v3658
        %v3663 = vand.u32 2147483647, %v3566
        %vm3664 = vcmp.eq.f32.partialorder %v3663, 8.507059e+37
        %v3665 = vand.u32 %v3566, 2147483648
        %v3666 = vor.u32 1.1754944e-38, %v3665
        %v3667 = vsel %vm3664, %v3666, %v3662
        %v3668 = vmul.f32 1.0, %v3667
        %v3669 = vrcp.pop %v3567
        %v3670 = vmul.f32 %v3567, %v3669
        %v3671 = vsub.f32 1.0, %v3670
        %v3672 = vmul.f32 %v3669, %v3671
        %v3673 = vadd.f32 %v3669, %v3672
        %vm3674 = vweird.f32 %v3567
        %vm3675 = vweird.f32 %v3669
        %vm3676 = vmor %vm3674, %vm3675
        %v3677 = vsel %vm3676, %v3669, %v3673
        %v3678 = vand.u32 2147483647, %v3567
        %vm3679 = vcmp.eq.f32.partialorder %v3678, 8.507059e+37
        %v3680 = vand.u32 %v3567, 2147483648
        %v3681 = vor.u32 1.1754944e-38, %v3680
        %v3682 = vsel %vm3679, %v3681, %v3677
        %v3683 = vmul.f32 1.0, %v3682
        %v3684 = vrcp.pop %v3568
        %v3685 = vmul.f32 %v3568, %v3684
        %v3686 = vsub.f32 1.0, %v3685
        %v3687 = vmul.f32 %v3684, %v3686
        %v3688 = vadd.f32 %v3684, %v3687
        %vm3689 = vweird.f32 %v3568
        %vm3690 = vweird.f32 %v3684
        %vm3691 = vmor %vm3689, %vm3690
        %v3692 = vsel %vm3691, %v3684, %v3688
        %v3693 = vand.u32 2147483647, %v3568
        %vm3694 = vcmp.eq.f32.partialorder %v3693, 8.507059e+37
        %v3695 = vand.u32 %v3568, 2147483648
        %v3696 = vor.u32 1.1754944e-38, %v3695
        %v3697 = vsel %vm3694, %v3696, %v3692
        %v3698 = vmul.f32 1.0, %v3697
        %v3699 = vrcp.pop %v3569
        %v3700 = vmul.f32 %v3569, %v3699
        %v3701 = vsub.f32 1.0, %v3700
        %v3702 = vmul.f32 %v3699, %v3701
        %v3703 = vadd.f32 %v3699, %v3702
        %vm3704 = vweird.f32 %v3569
        %vm3705 = vweird.f32 %v3699
        %vm3706 = vmor %vm3704, %vm3705
        %v3707 = vsel %vm3706, %v3699, %v3703
        %v3708 = vand.u32 2147483647, %v3569
        %vm3709 = vcmp.eq.f32.partialorder %v3708, 8.507059e+37
        %v3710 = vand.u32 %v3569, 2147483648
        %v3711 = vor.u32 1.1754944e-38, %v3710
        %v3712 = vsel %vm3709, %v3711, %v3707
        %v3713 = vmul.f32 1.0, %v3712
        %v3714 = vrcp.pop %v3570
        %v3715 = vmul.f32 %v3570, %v3714
        %v3716 = vsub.f32 1.0, %v3715
        %v3717 = vmul.f32 %v3714, %v3716
        %v3718 = vadd.f32 %v3714, %v3717
        %vm3719 = vweird.f32 %v3570
        %vm3720 = vweird.f32 %v3714
        %vm3721 = vmor %vm3719, %vm3720
        %v3722 = vsel %vm3721, %v3714, %v3718
        %v3723 = vand.u32 2147483647, %v3570
        %vm3724 = vcmp.eq.f32.partialorder %v3723, 8.507059e+37
        %v3725 = vand.u32 %v3570, 2147483648
        %v3726 = vor.u32 1.1754944e-38, %v3725
        %v3727 = vsel %vm3724, %v3726, %v3722
        %v3728 = vmul.f32 1.0, %v3727
        %v3729 = vrcp.pop %v3571
        %v3730 = vmul.f32 %v3571, %v3729
        %v3731 = vsub.f32 1.0, %v3730
        %v3732 = vmul.f32 %v3729, %v3731
        %v3733 = vadd.f32 %v3729, %v3732
        %vm3734 = vweird.f32 %v3571
        %vm3735 = vweird.f32 %v3729
        %vm3736 = vmor %vm3734, %vm3735
        %v3737 = vsel %vm3736, %v3729, %v3733
        %v3738 = vand.u32 2147483647, %v3571
        %vm3739 = vcmp.eq.f32.partialorder %v3738, 8.507059e+37
        %v3740 = vand.u32 %v3571, 2147483648
        %v3741 = vor.u32 1.1754944e-38, %v3740
        %v3742 = vsel %vm3739, %v3741, %v3737
        %v3743 = vmul.f32 1.0, %v3742
        %v3744 = vrcp.pop %v3572
        %v3745 = vmul.f32 %v3572, %v3744
        %v3746 = vsub.f32 1.0, %v3745
        %v3747 = vmul.f32 %v3744, %v3746
        %v3748 = vadd.f32 %v3744, %v3747
        %vm3749 = vweird.f32 %v3572
        %vm3750 = vweird.f32 %v3744
        %vm3751 = vmor %vm3749, %vm3750
        %v3752 = vsel %vm3751, %v3744, %v3748
        %v3753 = vand.u32 2147483647, %v3572
        %vm3754 = vcmp.eq.f32.partialorder %v3753, 8.507059e+37
        %v3755 = vand.u32 %v3572, 2147483648
        %v3756 = vor.u32 1.1754944e-38, %v3755
        %v3757 = vsel %vm3754, %v3756, %v3752
        %v3758 = vmul.f32 1.0, %v3757
        %v3759 = vrcp.pop %v3573
        %v3760 = vmul.f32 %v3573, %v3759
        %v3761 = vsub.f32 1.0, %v3760
        %v3762 = vmul.f32 %v3759, %v3761
        %v3763 = vadd.f32 %v3759, %v3762
        %vm3764 = vweird.f32 %v3573
        %vm3765 = vweird.f32 %v3759
        %vm3766 = vmor %vm3764, %vm3765
        %v3767 = vsel %vm3766, %v3759, %v3763
        %v3768 = vand.u32 2147483647, %v3573
        %vm3769 = vcmp.eq.f32.partialorder %v3768, 8.507059e+37
        %v3770 = vand.u32 %v3573, 2147483648
        %v3771 = vor.u32 1.1754944e-38, %v3770
        %v3772 = vsel %vm3769, %v3771, %v3767
        %v3773 = vmul.f32 1.0, %v3772
        %v3774 = vrcp.pop %v3574
        %v3775 = vmul.f32 %v3574, %v3774
        %v3776 = vsub.f32 1.0, %v3775
        %v3777 = vmul.f32 %v3774, %v3776
        %v3778 = vadd.f32 %v3774, %v3777
        %vm3779 = vweird.f32 %v3574
        %vm3780 = vweird.f32 %v3774
        %vm3781 = vmor %vm3779, %vm3780
        %v3782 = vsel %vm3781, %v3774, %v3778
        %v3783 = vand.u32 2147483647, %v3574
        %vm3784 = vcmp.eq.f32.partialorder %v3783, 8.507059e+37
        %v3785 = vand.u32 %v3574, 2147483648
        %v3786 = vor.u32 1.1754944e-38, %v3785
        %v3787 = vsel %vm3784, %v3786, %v3782
        %v3788 = vmul.f32 1.0, %v3787
        %v3789 = vrcp.pop %v3575
        %v3790 = vmul.f32 %v3575, %v3789
        %v3791 = vsub.f32 1.0, %v3790
        %v3792 = vmul.f32 %v3789, %v3791
        %v3793 = vadd.f32 %v3789, %v3792
        %vm3794 = vweird.f32 %v3575
        %vm3795 = vweird.f32 %v3789
        %vm3796 = vmor %vm3794, %vm3795
        %v3797 = vsel %vm3796, %v3789, %v3793
        %v3798 = vand.u32 2147483647, %v3575
        %vm3799 = vcmp.eq.f32.partialorder %v3798, 8.507059e+37
        %v3800 = vand.u32 %v3575, 2147483648
        %v3801 = vor.u32 1.1754944e-38, %v3800
        %v3802 = vsel %vm3799, %v3801, %v3797
        %v3803 = vmul.f32 1.0, %v3802
        %v3804 = vrcp.pop %v3576
        %v3805 = vmul.f32 %v3576, %v3804
        %v3806 = vsub.f32 1.0, %v3805
        %v3807 = vmul.f32 %v3804, %v3806
        %v3808 = vadd.f32 %v3804, %v3807
        %vm3809 = vweird.f32 %v3576
        %vm3810 = vweird.f32 %v3804
        %vm3811 = vmor %vm3809, %vm3810
        %v3812 = vsel %vm3811, %v3804, %v3808
        %v3813 = vand.u32 2147483647, %v3576
        %vm3814 = vcmp.eq.f32.partialorder %v3813, 8.507059e+37
        %v3815 = vand.u32 %v3576, 2147483648
        %v3816 = vor.u32 1.1754944e-38, %v3815
        %v3817 = vsel %vm3814, %v3816, %v3812
        %v3818 = vmul.f32 1.0, %v3817
        %v3819 = vrcp.pop %v3577
        %v3820 = vmul.f32 %v3577, %v3819
        %v3821 = vsub.f32 1.0, %v3820
        %v3822 = vmul.f32 %v3819, %v3821
        %v3823 = vadd.f32 %v3819, %v3822
        %vm3824 = vweird.f32 %v3577
        %vm3825 = vweird.f32 %v3819
        %vm3826 = vmor %vm3824, %vm3825
        %v3827 = vsel %vm3826, %v3819, %v3823
        %v3828 = vand.u32 2147483647, %v3577
        %vm3829 = vcmp.eq.f32.partialorder %v3828, 8.507059e+37
        %v3830 = vand.u32 %v3577, 2147483648
        %v3831 = vor.u32 1.1754944e-38, %v3830
        %v3832 = vsel %vm3829, %v3831, %v3827
        %v3833 = vmul.f32 1.0, %v3832
        %v3834 = vrcp.pop %v3578
        %v3835 = vmul.f32 %v3578, %v3834
        %v3836 = vsub.f32 1.0, %v3835
        %v3837 = vmul.f32 %v3834, %v3836
        %v3838 = vadd.f32 %v3834, %v3837
        %vm3839 = vweird.f32 %v3578
        %vm3840 = vweird.f32 %v3834
        %vm3841 = vmor %vm3839, %vm3840
        %v3842 = vsel %vm3841, %v3834, %v3838
        %v3843 = vand.u32 2147483647, %v3578
        %vm3844 = vcmp.eq.f32.partialorder %v3843, 8.507059e+37
        %v3845 = vand.u32 %v3578, 2147483648
        %v3846 = vor.u32 1.1754944e-38, %v3845
        %v3847 = vsel %vm3844, %v3846, %v3842
        %v3848 = vmul.f32 1.0, %v3847
        %v3849 = vrcp.pop %v3579
        %v3850 = vmul.f32 %v3579, %v3849
        %v3851 = vsub.f32 1.0, %v3850
        %v3852 = vmul.f32 %v3849, %v3851
        %v3853 = vadd.f32 %v3849, %v3852
        %vm3854 = vweird.f32 %v3579
        %vm3855 = vweird.f32 %v3849
        %vm3856 = vmor %vm3854, %vm3855
        %v3857 = vsel %vm3856, %v3849, %v3853
        %v3858 = vand.u32 2147483647, %v3579
        %vm3859 = vcmp.eq.f32.partialorder %v3858, 8.507059e+37
        %v3860 = vand.u32 %v3579, 2147483648
        %v3861 = vor.u32 1.1754944e-38, %v3860
        %v3862 = vsel %vm3859, %v3861, %v3857
        %v3863 = vmul.f32 1.0, %v3862
        %v3864 = vrcp.pop %v3580
        %v3865 = vmul.f32 %v3580, %v3864
        %v3866 = vsub.f32 1.0, %v3865
        %v3867 = vmul.f32 %v3864, %v3866
        %v3868 = vadd.f32 %v3864, %v3867
        %vm3869 = vweird.f32 %v3580
        %vm3870 = vweird.f32 %v3864
        %vm3871 = vmor %vm3869, %vm3870
        %v3872 = vsel %vm3871, %v3864, %v3868
        %v3873 = vand.u32 2147483647, %v3580
        %vm3874 = vcmp.eq.f32.partialorder %v3873, 8.507059e+37
        %v3875 = vand.u32 %v3580, 2147483648
        %v3876 = vor.u32 1.1754944e-38, %v3875
        %v3877 = vsel %vm3874, %v3876, %v3872
        %v3878 = vmul.f32 1.0, %v3877
        %v3879 = vrcp.pop %v3581
        %v3880 = vmul.f32 %v3581, %v3879
        %v3881 = vsub.f32 1.0, %v3880
        %v3882 = vmul.f32 %v3879, %v3881
        %v3883 = vadd.f32 %v3879, %v3882
        %vm3884 = vweird.f32 %v3581
        %vm3885 = vweird.f32 %v3879
        %vm3886 = vmor %vm3884, %vm3885
        %v3887 = vsel %vm3886, %v3879, %v3883
        %v3888 = vand.u32 2147483647, %v3581
        %vm3889 = vcmp.eq.f32.partialorder %v3888, 8.507059e+37
        %v3890 = vand.u32 %v3581, 2147483648
        %v3891 = vor.u32 1.1754944e-38, %v3890
        %v3892 = vsel %vm3889, %v3891, %v3887
        %v3893 = vmul.f32 1.0, %v3892
        %v3894 = vrcp.pop %v3582
        %v3895 = vmul.f32 %v3582, %v3894
        %v3896 = vsub.f32 1.0, %v3895
        %v3897 = vmul.f32 %v3894, %v3896
        %v3898 = vadd.f32 %v3894, %v3897
        %vm3899 = vweird.f32 %v3582
        %vm3900 = vweird.f32 %v3894
        %vm3901 = vmor %vm3899, %vm3900
        %v3902 = vsel %vm3901, %v3894, %v3898
        %v3903 = vand.u32 2147483647, %v3582
        %vm3904 = vcmp.eq.f32.partialorder %v3903, 8.507059e+37
        %v3905 = vand.u32 %v3582, 2147483648
        %v3906 = vor.u32 1.1754944e-38, %v3905
        %v3907 = vsel %vm3904, %v3906, %v3902
        %v3908 = vmul.f32 1.0, %v3907
        %v3909 = vrcp.pop %v3583
        %v3910 = vmul.f32 %v3583, %v3909
        %v3911 = vsub.f32 1.0, %v3910
        %v3912 = vmul.f32 %v3909, %v3911
        %v3913 = vadd.f32 %v3909, %v3912
        %vm3914 = vweird.f32 %v3583
        %vm3915 = vweird.f32 %v3909
        %vm3916 = vmor %vm3914, %vm3915
        %v3917 = vsel %vm3916, %v3909, %v3913
        %v3918 = vand.u32 2147483647, %v3583
        %vm3919 = vcmp.eq.f32.partialorder %v3918, 8.507059e+37
        %v3920 = vand.u32 %v3583, 2147483648
        %v3921 = vor.u32 1.1754944e-38, %v3920
        %v3922 = vsel %vm3919, %v3921, %v3917
        %v3923 = vmul.f32 1.0, %v3922
        %v3924 = vrcp.pop %v3584
        %v3925 = vmul.f32 %v3584, %v3924
        %v3926 = vsub.f32 1.0, %v3925
        %v3927 = vmul.f32 %v3924, %v3926
        %v3928 = vadd.f32 %v3924, %v3927
        %vm3929 = vweird.f32 %v3584
        %vm3930 = vweird.f32 %v3924
        %vm3931 = vmor %vm3929, %vm3930
        %v3932 = vsel %vm3931, %v3924, %v3928
        %v3933 = vand.u32 2147483647, %v3584
        %vm3934 = vcmp.eq.f32.partialorder %v3933, 8.507059e+37
        %v3935 = vand.u32 %v3584, 2147483648
        %v3936 = vor.u32 1.1754944e-38, %v3935
        %v3937 = vsel %vm3934, %v3936, %v3932
        %v3938 = vmul.f32 1.0, %v3937
        %v3939 = vrcp.pop %v3585
        %v3940 = vmul.f32 %v3585, %v3939
        %v3941 = vsub.f32 1.0, %v3940
        %v3942 = vmul.f32 %v3939, %v3941
        %v3943 = vadd.f32 %v3939, %v3942
        %vm3944 = vweird.f32 %v3585
        %vm3945 = vweird.f32 %v3939
        %vm3946 = vmor %vm3944, %vm3945
        %v3947 = vsel %vm3946, %v3939, %v3943
        %v3948 = vand.u32 2147483647, %v3585
        %vm3949 = vcmp.eq.f32.partialorder %v3948, 8.507059e+37
        %v3950 = vand.u32 %v3585, 2147483648
        %v3951 = vor.u32 1.1754944e-38, %v3950
        %v3952 = vsel %vm3949, %v3951, %v3947
        %v3953 = vmul.f32 1.0, %v3952
        %v3954 = vrcp.pop %v3586
        %v3955 = vmul.f32 %v3586, %v3954
        %v3956 = vsub.f32 1.0, %v3955
        %v3957 = vmul.f32 %v3954, %v3956
        %v3958 = vadd.f32 %v3954, %v3957
        %vm3959 = vweird.f32 %v3586
        %vm3960 = vweird.f32 %v3954
        %vm3961 = vmor %vm3959, %vm3960
        %v3962 = vsel %vm3961, %v3954, %v3958
        %v3963 = vand.u32 2147483647, %v3586
        %vm3964 = vcmp.eq.f32.partialorder %v3963, 8.507059e+37
        %v3965 = vand.u32 %v3586, 2147483648
        %v3966 = vor.u32 1.1754944e-38, %v3965
        %v3967 = vsel %vm3964, %v3966, %v3962
        %v3968 = vmul.f32 1.0, %v3967
        %v3969 = vrcp.pop %v3587
        %v3970 = vmul.f32 %v3587, %v3969
        %v3971 = vsub.f32 1.0, %v3970
        %v3972 = vmul.f32 %v3969, %v3971
        %v3973 = vadd.f32 %v3969, %v3972
        %vm3974 = vweird.f32 %v3587
        %vm3975 = vweird.f32 %v3969
        %vm3976 = vmor %vm3974, %vm3975
        %v3977 = vsel %vm3976, %v3969, %v3973
        %v3978 = vand.u32 2147483647, %v3587
        %vm3979 = vcmp.eq.f32.partialorder %v3978, 8.507059e+37
        %v3980 = vand.u32 %v3587, 2147483648
        %v3981 = vor.u32 1.1754944e-38, %v3980
        %v3982 = vsel %vm3979, %v3981, %v3977
        %v3983 = vmul.f32 1.0, %v3982
        %v3984 = vrcp.pop %v3588
        %v3985 = vmul.f32 %v3588, %v3984
        %v3986 = vsub.f32 1.0, %v3985
        %v3987 = vmul.f32 %v3984, %v3986
        %v3988 = vadd.f32 %v3984, %v3987
        %vm3989 = vweird.f32 %v3588
        %vm3990 = vweird.f32 %v3984
        %vm3991 = vmor %vm3989, %vm3990
        %v3992 = vsel %vm3991, %v3984, %v3988
        %v3993 = vand.u32 2147483647, %v3588
        %vm3994 = vcmp.eq.f32.partialorder %v3993, 8.507059e+37
        %v3995 = vand.u32 %v3588, 2147483648
        %v3996 = vor.u32 1.1754944e-38, %v3995
        %v3997 = vsel %vm3994, %v3996, %v3992
        %v3998 = vmul.f32 1.0, %v3997
        %v3999 = vrcp.pop %v3589
        %v4000 = vmul.f32 %v3589, %v3999
        %v4001 = vsub.f32 1.0, %v4000
        %v4002 = vmul.f32 %v3999, %v4001
        %v4003 = vadd.f32 %v3999, %v4002
        %vm4004 = vweird.f32 %v3589
        %vm4005 = vweird.f32 %v3999
        %vm4006 = vmor %vm4004, %vm4005
        %v4007 = vsel %vm4006, %v3999, %v4003
        %v4008 = vand.u32 2147483647, %v3589
        %vm4009 = vcmp.eq.f32.partialorder %v4008, 8.507059e+37
        %v4010 = vand.u32 %v3589, 2147483648
        %v4011 = vor.u32 1.1754944e-38, %v4010
        %v4012 = vsel %vm4009, %v4011, %v4007
        %v4013 = vmul.f32 1.0, %v4012
        %v4014 = vrcp.pop %v3590
        %v4015 = vmul.f32 %v3590, %v4014
        %v4016 = vsub.f32 1.0, %v4015
        %v4017 = vmul.f32 %v4014, %v4016
        %v4018 = vadd.f32 %v4014, %v4017
        %vm4019 = vweird.f32 %v3590
        %vm4020 = vweird.f32 %v4014
        %vm4021 = vmor %vm4019, %vm4020
        %v4022 = vsel %vm4021, %v4014, %v4018
        %v4023 = vand.u32 2147483647, %v3590
        %vm4024 = vcmp.eq.f32.partialorder %v4023, 8.507059e+37
        %v4025 = vand.u32 %v3590, 2147483648
        %v4026 = vor.u32 1.1754944e-38, %v4025
        %v4027 = vsel %vm4024, %v4026, %v4022
        %v4028 = vmul.f32 1.0, %v4027
        %v4029 = vrcp.pop %v3591
        %v4030 = vmul.f32 %v3591, %v4029
        %v4031 = vsub.f32 1.0, %v4030
        %v4032 = vmul.f32 %v4029, %v4031
        %v4033 = vadd.f32 %v4029, %v4032
        %vm4034 = vweird.f32 %v3591
        %vm4035 = vweird.f32 %v4029
        %vm4036 = vmor %vm4034, %vm4035
        %v4037 = vsel %vm4036, %v4029, %v4033
        %v4038 = vand.u32 2147483647, %v3591
        %vm4039 = vcmp.eq.f32.partialorder %v4038, 8.507059e+37
        %v4040 = vand.u32 %v3591, 2147483648
        %v4041 = vor.u32 1.1754944e-38, %v4040
        %v4042 = vsel %vm4039, %v4041, %v4037
        %v4043 = vmul.f32 1.0, %v4042
        %v4044 = vrcp.pop %v3592
        %v4045 = vmul.f32 %v3592, %v4044
        %v4046 = vsub.f32 1.0, %v4045
        %v4047 = vmul.f32 %v4044, %v4046
        %v4048 = vadd.f32 %v4044, %v4047
        %vm4049 = vweird.f32 %v3592
        %vm4050 = vweird.f32 %v4044
        %vm4051 = vmor %vm4049, %vm4050
        %v4052 = vsel %vm4051, %v4044, %v4048
        %v4053 = vand.u32 2147483647, %v3592
        %vm4054 = vcmp.eq.f32.partialorder %v4053, 8.507059e+37
        %v4055 = vand.u32 %v3592, 2147483648
        %v4056 = vor.u32 1.1754944e-38, %v4055
        %v4057 = vsel %vm4054, %v4056, %v4052
        %v4058 = vmul.f32 1.0, %v4057
        %v4059 = vrcp.pop %v3593
        %v4060 = vmul.f32 %v3593, %v4059
        %v4061 = vsub.f32 1.0, %v4060
        %v4062 = vmul.f32 %v4059, %v4061
        %v4063 = vadd.f32 %v4059, %v4062
        %vm4064 = vweird.f32 %v3593
        %vm4065 = vweird.f32 %v4059
        %vm4066 = vmor %vm4064, %vm4065
        %v4067 = vsel %vm4066, %v4059, %v4063
        %v4068 = vand.u32 2147483647, %v3593
        %vm4069 = vcmp.eq.f32.partialorder %v4068, 8.507059e+37
        %v4070 = vand.u32 %v3593, 2147483648
        %v4071 = vor.u32 1.1754944e-38, %v4070
        %v4072 = vsel %vm4069, %v4071, %v4067
        %v4073 = vmul.f32 1.0, %v4072
        %4075 = vset.pattern.permute.xlu0 0
        %4076 = vperm.xlu0 %4075, %v3608
        %v4077 = vpop.permute.xlu0 %4076
        %4080 = vset.pattern.permute.xlu0 0
        %4081 = vperm.xlu0 %4080, %v3623
        %v4082 = vpop.permute.xlu0 %4081
        %4085 = vset.pattern.permute.xlu0 0
        %4086 = vperm.xlu0 %4085, %v3638
        %v4087 = vpop.permute.xlu0 %4086
        %4090 = vset.pattern.permute.xlu0 0
        %4091 = vperm.xlu0 %4090, %v3653
        %v4092 = vpop.permute.xlu0 %4091
        %4095 = vset.pattern.permute.xlu0 0
        %4096 = vperm.xlu0 %4095, %v3668
        %v4097 = vpop.permute.xlu0 %4096
        %4100 = vset.pattern.permute.xlu0 0
        %4101 = vperm.xlu0 %4100, %v3683
        %v4102 = vpop.permute.xlu0 %4101
        %4105 = vset.pattern.permute.xlu0 0
        %4106 = vperm.xlu0 %4105, %v3698
        %v4107 = vpop.permute.xlu0 %4106
        %4110 = vset.pattern.permute.xlu0 0
        %4111 = vperm.xlu0 %4110, %v3713
        %v4112 = vpop.permute.xlu0 %4111
        %4115 = vset.pattern.permute.xlu0 0
        %4116 = vperm.xlu0 %4115, %v3728
        %v4117 = vpop.permute.xlu0 %4116
        %4120 = vset.pattern.permute.xlu0 0
        %4121 = vperm.xlu0 %4120, %v3743
        %v4122 = vpop.permute.xlu0 %4121
        %4125 = vset.pattern.permute.xlu0 0
        %4126 = vperm.xlu0 %4125, %v3758
        %v4127 = vpop.permute.xlu0 %4126
        %4130 = vset.pattern.permute.xlu0 0
        %4131 = vperm.xlu0 %4130, %v3773
        %v4132 = vpop.permute.xlu0 %4131
        %4135 = vset.pattern.permute.xlu0 0
        %4136 = vperm.xlu0 %4135, %v3788
        %v4137 = vpop.permute.xlu0 %4136
        %4140 = vset.pattern.permute.xlu0 0
        %4141 = vperm.xlu0 %4140, %v3803
        %v4142 = vpop.permute.xlu0 %4141
        %4145 = vset.pattern.permute.xlu0 0
        %4146 = vperm.xlu0 %4145, %v3818
        %v4147 = vpop.permute.xlu0 %4146
        %4150 = vset.pattern.permute.xlu0 0
        %4151 = vperm.xlu0 %4150, %v3833
        %v4152 = vpop.permute.xlu0 %4151
        %4155 = vset.pattern.permute.xlu0 0
        %4156 = vperm.xlu0 %4155, %v3848
        %v4157 = vpop.permute.xlu0 %4156
        %4160 = vset.pattern.permute.xlu0 0
        %4161 = vperm.xlu0 %4160, %v3863
        %v4162 = vpop.permute.xlu0 %4161
        %4165 = vset.pattern.permute.xlu0 0
        %4166 = vperm.xlu0 %4165, %v3878
        %v4167 = vpop.permute.xlu0 %4166
        %4170 = vset.pattern.permute.xlu0 0
        %4171 = vperm.xlu0 %4170, %v3893
        %v4172 = vpop.permute.xlu0 %4171
        %4175 = vset.pattern.permute.xlu0 0
        %4176 = vperm.xlu0 %4175, %v3908
        %v4177 = vpop.permute.xlu0 %4176
        %4180 = vset.pattern.permute.xlu0 0
        %4181 = vperm.xlu0 %4180, %v3923
        %v4182 = vpop.permute.xlu0 %4181
        %4185 = vset.pattern.permute.xlu0 0
        %4186 = vperm.xlu0 %4185, %v3938
        %v4187 = vpop.permute.xlu0 %4186
        %4190 = vset.pattern.permute.xlu0 0
        %4191 = vperm.xlu0 %4190, %v3953
        %v4192 = vpop.permute.xlu0 %4191
        %4195 = vset.pattern.permute.xlu0 0
        %4196 = vperm.xlu0 %4195, %v3968
        %v4197 = vpop.permute.xlu0 %4196
        %4200 = vset.pattern.permute.xlu0 0
        %4201 = vperm.xlu0 %4200, %v3983
        %v4202 = vpop.permute.xlu0 %4201
        %4205 = vset.pattern.permute.xlu0 0
        %4206 = vperm.xlu0 %4205, %v3998
        %v4207 = vpop.permute.xlu0 %4206
        %4210 = vset.pattern.permute.xlu0 0
        %4211 = vperm.xlu0 %4210, %v4013
        %v4212 = vpop.permute.xlu0 %4211
        %4215 = vset.pattern.permute.xlu0 0
        %4216 = vperm.xlu0 %4215, %v4028
        %v4217 = vpop.permute.xlu0 %4216
        %4220 = vset.pattern.permute.xlu0 0
        %4221 = vperm.xlu0 %4220, %v4043
        %v4222 = vpop.permute.xlu0 %4221
        %4225 = vset.pattern.permute.xlu0 0
        %4226 = vperm.xlu0 %4225, %v4058
        %v4227 = vpop.permute.xlu0 %4226
        %4230 = vset.pattern.permute.xlu0 0
        %4231 = vperm.xlu0 %4230, %v4073
        %v4232 = vpop.permute.xlu0 %4231
        %v4234 = vmul.f32 %v428, %v4077
        %v4235 = vmul.f32 %v429, %v4082
        %v4236 = vmul.f32 %v430, %v4087
        %v4237 = vmul.f32 %v431, %v4092
        %v4238 = vmul.f32 %v432, %v4097
        %v4239 = vmul.f32 %v433, %v4102
        %v4240 = vmul.f32 %v434, %v4107
        %v4241 = vmul.f32 %v435, %v4112
        %v4242 = vmul.f32 %v436, %v4117
        %v4243 = vmul.f32 %v437, %v4122
        %v4244 = vmul.f32 %v438, %v4127
        %v4245 = vmul.f32 %v439, %v4132
        %v4246 = vmul.f32 %v440, %v4137
        %v4247 = vmul.f32 %v441, %v4142
        %v4248 = vmul.f32 %v442, %v4147
        %v4249 = vmul.f32 %v443, %v4152
        %v4250 = vmul.f32 %v444, %v4157
        %v4251 = vmul.f32 %v445, %v4162
        %v4252 = vmul.f32 %v446, %v4167
        %v4253 = vmul.f32 %v447, %v4172
        %v4254 = vmul.f32 %v448, %v4177
        %v4255 = vmul.f32 %v449, %v4182
        %v4256 = vmul.f32 %v450, %v4187
        %v4257 = vmul.f32 %v451, %v4192
        %v4258 = vmul.f32 %v452, %v4197
        %v4259 = vmul.f32 %v453, %v4202
        %v4260 = vmul.f32 %v454, %v4207
        %v4261 = vmul.f32 %v455, %v4212
        %v4262 = vmul.f32 %v456, %v4217
        %v4263 = vmul.f32 %v457, %v4222
        %v4264 = vmul.f32 %v458, %v4227
        %v4265 = vmul.f32 %v459, %v4232
        %v4266 = vsub.f32 1.0, %v3608
        %v4267 = vsub.f32 1.0, %v3623
        %v4268 = vsub.f32 1.0, %v3638
        %v4269 = vsub.f32 1.0, %v3653
        %v4270 = vsub.f32 1.0, %v3668
        %v4271 = vsub.f32 1.0, %v3683
        %v4272 = vsub.f32 1.0, %v3698
        %v4273 = vsub.f32 1.0, %v3713
        %v4274 = vsub.f32 1.0, %v3728
        %v4275 = vsub.f32 1.0, %v3743
        %v4276 = vsub.f32 1.0, %v3758
        %v4277 = vsub.f32 1.0, %v3773
        %v4278 = vsub.f32 1.0, %v3788
        %v4279 = vsub.f32 1.0, %v3803
        %v4280 = vsub.f32 1.0, %v3818
        %v4281 = vsub.f32 1.0, %v3833
        %v4282 = vsub.f32 1.0, %v3848
        %v4283 = vsub.f32 1.0, %v3863
        %v4284 = vsub.f32 1.0, %v3878
        %v4285 = vsub.f32 1.0, %v3893
        %v4286 = vsub.f32 1.0, %v3908
        %v4287 = vsub.f32 1.0, %v3923
        %v4288 = vsub.f32 1.0, %v3938
        %v4289 = vsub.f32 1.0, %v3953
        %v4290 = vsub.f32 1.0, %v3968
        %v4291 = vsub.f32 1.0, %v3983
        %v4292 = vsub.f32 1.0, %v3998
        %v4293 = vsub.f32 1.0, %v4013
        %v4294 = vsub.f32 1.0, %v4028
        %v4295 = vsub.f32 1.0, %v4043
        %v4296 = vsub.f32 1.0, %v4058
        %v4297 = vsub.f32 1.0, %v4073
        %4299 = vset.pattern.permute.xlu0 0
        %4300 = vperm.xlu0 %4299, %v4266
        %v4301 = vpop.permute.xlu0 %4300
        %4304 = vset.pattern.permute.xlu0 0
        %4305 = vperm.xlu0 %4304, %v4267
        %v4306 = vpop.permute.xlu0 %4305
        %4309 = vset.pattern.permute.xlu0 0
        %4310 = vperm.xlu0 %4309, %v4268
        %v4311 = vpop.permute.xlu0 %4310
        %4314 = vset.pattern.permute.xlu0 0
        %4315 = vperm.xlu0 %4314, %v4269
        %v4316 = vpop.permute.xlu0 %4315
        %4319 = vset.pattern.permute.xlu0 0
        %4320 = vperm.xlu0 %4319, %v4270
        %v4321 = vpop.permute.xlu0 %4320
        %4324 = vset.pattern.permute.xlu0 0
        %4325 = vperm.xlu0 %4324, %v4271
        %v4326 = vpop.permute.xlu0 %4325
        %4329 = vset.pattern.permute.xlu0 0
        %4330 = vperm.xlu0 %4329, %v4272
        %v4331 = vpop.permute.xlu0 %4330
        %4334 = vset.pattern.permute.xlu0 0
        %4335 = vperm.xlu0 %4334, %v4273
        %v4336 = vpop.permute.xlu0 %4335
        %4339 = vset.pattern.permute.xlu0 0
        %4340 = vperm.xlu0 %4339, %v4274
        %v4341 = vpop.permute.xlu0 %4340
        %4344 = vset.pattern.permute.xlu0 0
        %4345 = vperm.xlu0 %4344, %v4275
        %v4346 = vpop.permute.xlu0 %4345
        %4349 = vset.pattern.permute.xlu0 0
        %4350 = vperm.xlu0 %4349, %v4276
        %v4351 = vpop.permute.xlu0 %4350
        %4354 = vset.pattern.permute.xlu0 0
        %4355 = vperm.xlu0 %4354, %v4277
        %v4356 = vpop.permute.xlu0 %4355
        %4359 = vset.pattern.permute.xlu0 0
        %4360 = vperm.xlu0 %4359, %v4278
        %v4361 = vpop.permute.xlu0 %4360
        %4364 = vset.pattern.permute.xlu0 0
        %4365 = vperm.xlu0 %4364, %v4279
        %v4366 = vpop.permute.xlu0 %4365
        %4369 = vset.pattern.permute.xlu0 0
        %4370 = vperm.xlu0 %4369, %v4280
        %v4371 = vpop.permute.xlu0 %4370
        %4374 = vset.pattern.permute.xlu0 0
        %4375 = vperm.xlu0 %4374, %v4281
        %v4376 = vpop.permute.xlu0 %4375
        %4379 = vset.pattern.permute.xlu0 0
        %4380 = vperm.xlu0 %4379, %v4282
        %v4381 = vpop.permute.xlu0 %4380
        %4384 = vset.pattern.permute.xlu0 0
        %4385 = vperm.xlu0 %4384, %v4283
        %v4386 = vpop.permute.xlu0 %4385
        %4389 = vset.pattern.permute.xlu0 0
        %4390 = vperm.xlu0 %4389, %v4284
        %v4391 = vpop.permute.xlu0 %4390
        %4394 = vset.pattern.permute.xlu0 0
        %4395 = vperm.xlu0 %4394, %v4285
        %v4396 = vpop.permute.xlu0 %4395
        %4399 = vset.pattern.permute.xlu0 0
        %4400 = vperm.xlu0 %4399, %v4286
        %v4401 = vpop.permute.xlu0 %4400
        %4404 = vset.pattern.permute.xlu0 0
        %4405 = vperm.xlu0 %4404, %v4287
        %v4406 = vpop.permute.xlu0 %4405
        %4409 = vset.pattern.permute.xlu0 0
        %4410 = vperm.xlu0 %4409, %v4288
        %v4411 = vpop.permute.xlu0 %4410
        %4414 = vset.pattern.permute.xlu0 0
        %4415 = vperm.xlu0 %4414, %v4289
        %v4416 = vpop.permute.xlu0 %4415
        %4419 = vset.pattern.permute.xlu0 0
        %4420 = vperm.xlu0 %4419, %v4290
        %v4421 = vpop.permute.xlu0 %4420
        %4424 = vset.pattern.permute.xlu0 0
        %4425 = vperm.xlu0 %4424, %v4291
        %v4426 = vpop.permute.xlu0 %4425
        %4429 = vset.pattern.permute.xlu0 0
        %4430 = vperm.xlu0 %4429, %v4292
        %v4431 = vpop.permute.xlu0 %4430
        %4434 = vset.pattern.permute.xlu0 0
        %4435 = vperm.xlu0 %4434, %v4293
        %v4436 = vpop.permute.xlu0 %4435
        %4439 = vset.pattern.permute.xlu0 0
        %4440 = vperm.xlu0 %4439, %v4294
        %v4441 = vpop.permute.xlu0 %4440
        %4444 = vset.pattern.permute.xlu0 0
        %4445 = vperm.xlu0 %4444, %v4295
        %v4446 = vpop.permute.xlu0 %4445
        %4449 = vset.pattern.permute.xlu0 0
        %4450 = vperm.xlu0 %4449, %v4296
        %v4451 = vpop.permute.xlu0 %4450
        %4454 = vset.pattern.permute.xlu0 0
        %4455 = vperm.xlu0 %4454, %v4297
        %v4456 = vpop.permute.xlu0 %4455
        %v4458 = vmul.f32 %v460, %v4301
        %v4459 = vmul.f32 %v461, %v4306
        %v4460 = vmul.f32 %v462, %v4311
        %v4461 = vmul.f32 %v463, %v4316
        %v4462 = vmul.f32 %v464, %v4321
        %v4463 = vmul.f32 %v465, %v4326
        %v4464 = vmul.f32 %v466, %v4331
        %v4465 = vmul.f32 %v467, %v4336
        %v4466 = vmul.f32 %v468, %v4341
        %v4467 = vmul.f32 %v469, %v4346
        %v4468 = vmul.f32 %v470, %v4351
        %v4469 = vmul.f32 %v471, %v4356
        %v4470 = vmul.f32 %v472, %v4361
        %v4471 = vmul.f32 %v473, %v4366
        %v4472 = vmul.f32 %v474, %v4371
        %v4473 = vmul.f32 %v475, %v4376
        %v4474 = vmul.f32 %v476, %v4381
        %v4475 = vmul.f32 %v477, %v4386
        %v4476 = vmul.f32 %v478, %v4391
        %v4477 = vmul.f32 %v479, %v4396
        %v4478 = vmul.f32 %v480, %v4401
        %v4479 = vmul.f32 %v481, %v4406
        %v4480 = vmul.f32 %v482, %v4411
        %v4481 = vmul.f32 %v483, %v4416
        %v4482 = vmul.f32 %v484, %v4421
        %v4483 = vmul.f32 %v485, %v4426
        %v4484 = vmul.f32 %v486, %v4431
        %v4485 = vmul.f32 %v487, %v4436
        %v4486 = vmul.f32 %v488, %v4441
        %v4487 = vmul.f32 %v489, %v4446
        %v4488 = vmul.f32 %v490, %v4451
        %v4489 = vmul.f32 %v491, %v4456
        %v4490 = vadd.f32 %v4234, %v4458
        %v4491 = vadd.f32 %v4235, %v4459
        %v4492 = vadd.f32 %v4236, %v4460
        %v4493 = vadd.f32 %v4237, %v4461
        %v4494 = vadd.f32 %v4238, %v4462
        %v4495 = vadd.f32 %v4239, %v4463
        %v4496 = vadd.f32 %v4240, %v4464
        %v4497 = vadd.f32 %v4241, %v4465
        %v4498 = vadd.f32 %v4242, %v4466
        %v4499 = vadd.f32 %v4243, %v4467
        %v4500 = vadd.f32 %v4244, %v4468
        %v4501 = vadd.f32 %v4245, %v4469
        %v4502 = vadd.f32 %v4246, %v4470
        %v4503 = vadd.f32 %v4247, %v4471
        %v4504 = vadd.f32 %v4248, %v4472
        %v4505 = vadd.f32 %v4249, %v4473
        %v4506 = vadd.f32 %v4250, %v4474
        %v4507 = vadd.f32 %v4251, %v4475
        %v4508 = vadd.f32 %v4252, %v4476
        %v4509 = vadd.f32 %v4253, %v4477
        %v4510 = vadd.f32 %v4254, %v4478
        %v4511 = vadd.f32 %v4255, %v4479
        %v4512 = vadd.f32 %v4256, %v4480
        %v4513 = vadd.f32 %v4257, %v4481
        %v4514 = vadd.f32 %v4258, %v4482
        %v4515 = vadd.f32 %v4259, %v4483
        %v4516 = vadd.f32 %v4260, %v4484
        %v4517 = vadd.f32 %v4261, %v4485
        %v4518 = vadd.f32 %v4262, %v4486
        %v4519 = vadd.f32 %v4263, %v4487
        %v4520 = vadd.f32 %v4264, %v4488
        %v4521 = vadd.f32 %v4265, %v4489
        %vm4522 = vcmask 257024
        %4523 = vst.msk [vmem:[#allocation2] sm:$0xf] %vm4522, 0
        %4524 = vst.msk [vmem:[#allocation2 + $0x4] sm:$0xf] %vm4522, 0
        %4525 = vst.msk [vmem:[#allocation2 + $0x8] sm:$0xf] %vm4522, 0
        %4526 = vst.msk [vmem:[#allocation2 + $0xc] sm:$0xf] %vm4522, 0
        %4527 = vst.msk [vmem:[#allocation2 + $0x10] sm:$0xf] %vm4522, 0
        %4528 = vst.msk [vmem:[#allocation2 + $0x14] sm:$0xf] %vm4522, 0
        %4529 = vst.msk [vmem:[#allocation2 + $0x18] sm:$0xf] %vm4522, 0
        %4530 = vst.msk [vmem:[#allocation2 + $0x1c] sm:$0xf] %vm4522, 0
        %4531 = vst.msk [vmem:[#allocation2 + $0x20] sm:$0xf] %vm4522, 0
        %4532 = vst.msk [vmem:[#allocation2 + $0x24] sm:$0xf] %vm4522, 0
        %4533 = vst.msk [vmem:[#allocation2 + $0x28] sm:$0xf] %vm4522, 0
        %4534 = vst.msk [vmem:[#allocation2 + $0x2c] sm:$0xf] %vm4522, 0
        %4535 = vst.msk [vmem:[#allocation2 + $0x30] sm:$0xf] %vm4522, 0
        %4536 = vst.msk [vmem:[#allocation2 + $0x34] sm:$0xf] %vm4522, 0
        %4537 = vst.msk [vmem:[#allocation2 + $0x38] sm:$0xf] %vm4522, 0
        %4538 = vst.msk [vmem:[#allocation2 + $0x3c] sm:$0xf] %vm4522, 0
        %4539 = vst.msk [vmem:[#allocation2 + $0x40] sm:$0xf] %vm4522, 0
        %4540 = vst.msk [vmem:[#allocation2 + $0x44] sm:$0xf] %vm4522, 0
        %4541 = vst.msk [vmem:[#allocation2 + $0x48] sm:$0xf] %vm4522, 0
        %4542 = vst.msk [vmem:[#allocation2 + $0x4c] sm:$0xf] %vm4522, 0
        %4543 = vst.msk [vmem:[#allocation2 + $0x50] sm:$0xf] %vm4522, 0
        %4544 = vst.msk [vmem:[#allocation2 + $0x54] sm:$0xf] %vm4522, 0
        %4545 = vst.msk [vmem:[#allocation2 + $0x58] sm:$0xf] %vm4522, 0
        %4546 = vst.msk [vmem:[#allocation2 + $0x5c] sm:$0xf] %vm4522, 0
        %4547 = vst.msk [vmem:[#allocation2 + $0x60] sm:$0xf] %vm4522, 0
        %4548 = vst.msk [vmem:[#allocation2 + $0x64] sm:$0xf] %vm4522, 0
        %4549 = vst.msk [vmem:[#allocation2 + $0x68] sm:$0xf] %vm4522, 0
        %4550 = vst.msk [vmem:[#allocation2 + $0x6c] sm:$0xf] %vm4522, 0
        %4551 = vst.msk [vmem:[#allocation2 + $0x70] sm:$0xf] %vm4522, 0
        %4552 = vst.msk [vmem:[#allocation2 + $0x74] sm:$0xf] %vm4522, 0
        %4553 = vst.msk [vmem:[#allocation2 + $0x78] sm:$0xf] %vm4522, 0
        %4554 = vst.msk [vmem:[#allocation2 + $0x7c] sm:$0xf] %vm4522, 0
        %4555 = vst.msk [vmem:[#allocation2 + $0x80] sm:$0xf] %vm4522, 0
        %4556 = vst.msk [vmem:[#allocation2 + $0x84] sm:$0xf] %vm4522, 0
        %4557 = vst.msk [vmem:[#allocation2 + $0x88] sm:$0xf] %vm4522, 0
        %4558 = vst.msk [vmem:[#allocation2 + $0x8c] sm:$0xf] %vm4522, 0
        %4559 = vst.msk [vmem:[#allocation2 + $0x90] sm:$0xf] %vm4522, 0
        %4560 = vst.msk [vmem:[#allocation2 + $0x94] sm:$0xf] %vm4522, 0
        %4561 = vst.msk [vmem:[#allocation2 + $0x98] sm:$0xf] %vm4522, 0
        %4562 = vst.msk [vmem:[#allocation2 + $0x9c] sm:$0xf] %vm4522, 0
        %4563 = vst.msk [vmem:[#allocation2 + $0xa0] sm:$0xf] %vm4522, 0
        %4564 = vst.msk [vmem:[#allocation2 + $0xa4] sm:$0xf] %vm4522, 0
        %4565 = vst.msk [vmem:[#allocation2 + $0xa8] sm:$0xf] %vm4522, 0
        %4566 = vst.msk [vmem:[#allocation2 + $0xac] sm:$0xf] %vm4522, 0
        %4567 = vst.msk [vmem:[#allocation2 + $0xb0] sm:$0xf] %vm4522, 0
        %4568 = vst.msk [vmem:[#allocation2 + $0xb4] sm:$0xf] %vm4522, 0
        %4569 = vst.msk [vmem:[#allocation2 + $0xb8] sm:$0xf] %vm4522, 0
        %4570 = vst.msk [vmem:[#allocation2 + $0xbc] sm:$0xf] %vm4522, 0
        %4571 = vst.msk [vmem:[#allocation2 + $0xc0] sm:$0xf] %vm4522, 0
        %4572 = vst.msk [vmem:[#allocation2 + $0xc4] sm:$0xf] %vm4522, 0
        %4573 = vst.msk [vmem:[#allocation2 + $0xc8] sm:$0xf] %vm4522, 0
        %4574 = vst.msk [vmem:[#allocation2 + $0xcc] sm:$0xf] %vm4522, 0
        %4575 = vst.msk [vmem:[#allocation2 + $0xd0] sm:$0xf] %vm4522, 0
        %4576 = vst.msk [vmem:[#allocation2 + $0xd4] sm:$0xf] %vm4522, 0
        %v4577 = vpack.c.bf16 %v4490, %v4490
        %v4578 = vpack.c.bf16 %v4491, %v4491
        %v4579 = vpack.c.bf16 %v4492, %v4492
        %v4580 = vpack.c.bf16 %v4493, %v4493
        %v4581 = vpack.c.bf16 %v4494, %v4494
        %v4582 = vpack.c.bf16 %v4495, %v4495
        %v4583 = vpack.c.bf16 %v4496, %v4496
        %v4584 = vpack.c.bf16 %v4497, %v4497
        %v4585 = vpack.c.bf16 %v4498, %v4498
        %v4586 = vpack.c.bf16 %v4499, %v4499
        %v4587 = vpack.c.bf16 %v4500, %v4500
        %v4588 = vpack.c.bf16 %v4501, %v4501
        %v4589 = vpack.c.bf16 %v4502, %v4502
        %v4590 = vpack.c.bf16 %v4503, %v4503
        %v4591 = vpack.c.bf16 %v4504, %v4504
        %v4592 = vpack.c.bf16 %v4505, %v4505
        %v4593 = vpack.c.bf16 %v4506, %v4506
        %v4594 = vpack.c.bf16 %v4507, %v4507
        %v4595 = vpack.c.bf16 %v4508, %v4508
        %v4596 = vpack.c.bf16 %v4509, %v4509
        %v4597 = vpack.c.bf16 %v4510, %v4510
        %v4598 = vpack.c.bf16 %v4511, %v4511
        %v4599 = vpack.c.bf16 %v4512, %v4512
        %v4600 = vpack.c.bf16 %v4513, %v4513
        %v4601 = vpack.c.bf16 %v4514, %v4514
        %v4602 = vpack.c.bf16 %v4515, %v4515
        %v4603 = vpack.c.bf16 %v4516, %v4516
        %v4604 = vpack.c.bf16 %v4517, %v4517
        %v4605 = vpack.c.bf16 %v4518, %v4518
        %v4606 = vpack.c.bf16 %v4519, %v4519
        %v4607 = vpack.c.bf16 %v4520, %v4520
        %v4608 = vpack.c.bf16 %v4521, %v4521
        %vm4609 = vsmask.f32 256
        %vm4610 = vsmask.f32 4368
        %vm4611 = vmor %vm4609, %vm4610
        %v4613 = vshrl.u32 %v4577, 16
        %v4615 = vrot.slane %v4613, 7
        %v4616 = vshll.u32 %v4577, 16
        %v4618 = vor.u32 %v4615, %v4616
        %v4619 = vrot.slane %v4615, 4
        %v4621 = vshrl.u32 %v4578, 16
        %v4623 = vrot.slane %v4621, 7
        %v4624 = vshll.u32 %v4578, 16
        %v4626 = vor.u32 %v4623, %v4624
        %v4627 = vsel %vm4611, %v4619, %v4626
        %v4628 = vrot.slane %v4623, 4
        %v4630 = vshrl.u32 %v4579, 16
        %v4632 = vrot.slane %v4630, 7
        %v4633 = vshll.u32 %v4579, 16
        %v4635 = vor.u32 %v4632, %v4633
        %v4636 = vrot.slane %v4632, 4
        %v4638 = vshrl.u32 %v4580, 16
        %v4640 = vrot.slane %v4638, 7
        %v4641 = vshll.u32 %v4580, 16
        %v4643 = vor.u32 %v4640, %v4641
        %v4644 = vsel %vm4611, %v4636, %v4643
        %v4645 = vrot.slane %v4640, 4
        %v4647 = vshrl.u32 %v4581, 16
        %v4649 = vrot.slane %v4647, 7
        %v4650 = vshll.u32 %v4581, 16
        %v4652 = vor.u32 %v4649, %v4650
        %v4653 = vrot.slane %v4649, 4
        %v4655 = vshrl.u32 %v4582, 16
        %v4657 = vrot.slane %v4655, 7
        %v4658 = vshll.u32 %v4582, 16
        %v4660 = vor.u32 %v4657, %v4658
        %v4661 = vsel %vm4611, %v4653, %v4660
        %v4662 = vrot.slane %v4657, 4
        %v4664 = vshrl.u32 %v4583, 16
        %v4666 = vrot.slane %v4664, 7
        %v4667 = vshll.u32 %v4583, 16
        %v4669 = vor.u32 %v4666, %v4667
        %v4670 = vrot.slane %v4666, 4
        %v4672 = vshrl.u32 %v4584, 16
        %v4674 = vrot.slane %v4672, 7
        %v4675 = vshll.u32 %v4584, 16
        %v4677 = vor.u32 %v4674, %v4675
        %v4678 = vsel %vm4611, %v4670, %v4677
        %v4679 = vrot.slane %v4674, 4
        %v4681 = vshrl.u32 %v4585, 16
        %v4683 = vrot.slane %v4681, 7
        %v4684 = vshll.u32 %v4585, 16
        %v4686 = vor.u32 %v4683, %v4684
        %v4687 = vrot.slane %v4683, 4
        %v4689 = vshrl.u32 %v4586, 16
        %v4691 = vrot.slane %v4689, 7
        %v4692 = vshll.u32 %v4586, 16
        %v4694 = vor.u32 %v4691, %v4692
        %v4695 = vsel %vm4611, %v4687, %v4694
        %v4696 = vrot.slane %v4691, 4
        %v4698 = vshrl.u32 %v4587, 16
        %v4700 = vrot.slane %v4698, 7
        %v4701 = vshll.u32 %v4587, 16
        %v4703 = vor.u32 %v4700, %v4701
        %v4704 = vrot.slane %v4700, 4
        %v4706 = vshrl.u32 %v4588, 16
        %v4708 = vrot.slane %v4706, 7
        %v4709 = vshll.u32 %v4588, 16
        %v4711 = vor.u32 %v4708, %v4709
        %v4712 = vsel %vm4611, %v4704, %v4711
        %v4713 = vrot.slane %v4708, 4
        %v4715 = vshrl.u32 %v4589, 16
        %v4717 = vrot.slane %v4715, 7
        %v4718 = vshll.u32 %v4589, 16
        %v4720 = vor.u32 %v4717, %v4718
        %v4721 = vrot.slane %v4717, 4
        %v4723 = vshrl.u32 %v4590, 16
        %v4725 = vrot.slane %v4723, 7
        %v4726 = vshll.u32 %v4590, 16
        %v4728 = vor.u32 %v4725, %v4726
        %v4729 = vsel %vm4611, %v4721, %v4728
        %v4730 = vrot.slane %v4725, 4
        %v4732 = vshrl.u32 %v4591, 16
        %v4734 = vrot.slane %v4732, 7
        %v4735 = vshll.u32 %v4591, 16
        %v4737 = vor.u32 %v4734, %v4735
        %v4738 = vrot.slane %v4734, 4
        %v4740 = vshrl.u32 %v4592, 16
        %v4742 = vrot.slane %v4740, 7
        %v4743 = vshll.u32 %v4592, 16
        %v4745 = vor.u32 %v4742, %v4743
        %v4746 = vsel %vm4611, %v4738, %v4745
        %v4747 = vrot.slane %v4742, 4
        %v4749 = vshrl.u32 %v4593, 16
        %v4751 = vrot.slane %v4749, 7
        %v4752 = vshll.u32 %v4593, 16
        %v4754 = vor.u32 %v4751, %v4752
        %v4755 = vrot.slane %v4751, 4
        %v4757 = vshrl.u32 %v4594, 16
        %v4759 = vrot.slane %v4757, 7
        %v4760 = vshll.u32 %v4594, 16
        %v4762 = vor.u32 %v4759, %v4760
        %v4763 = vsel %vm4611, %v4755, %v4762
        %v4764 = vrot.slane %v4759, 4
        %v4766 = vshrl.u32 %v4595, 16
        %v4768 = vrot.slane %v4766, 7
        %v4769 = vshll.u32 %v4595, 16
        %v4771 = vor.u32 %v4768, %v4769
        %v4772 = vrot.slane %v4768, 4
        %v4774 = vshrl.u32 %v4596, 16
        %v4776 = vrot.slane %v4774, 7
        %v4777 = vshll.u32 %v4596, 16
        %v4779 = vor.u32 %v4776, %v4777
        %v4780 = vsel %vm4611, %v4772, %v4779
        %v4781 = vrot.slane %v4776, 4
        %v4783 = vshrl.u32 %v4597, 16
        %v4785 = vrot.slane %v4783, 7
        %v4786 = vshll.u32 %v4597, 16
        %v4788 = vor.u32 %v4785, %v4786
        %v4789 = vrot.slane %v4785, 4
        %v4791 = vshrl.u32 %v4598, 16
        %v4793 = vrot.slane %v4791, 7
        %v4794 = vshll.u32 %v4598, 16
        %v4796 = vor.u32 %v4793, %v4794
        %v4797 = vsel %vm4611, %v4789, %v4796
        %v4798 = vrot.slane %v4793, 4
        %v4800 = vshrl.u32 %v4599, 16
        %v4802 = vrot.slane %v4800, 7
        %v4803 = vshll.u32 %v4599, 16
        %v4805 = vor.u32 %v4802, %v4803
        %v4806 = vrot.slane %v4802, 4
        %v4808 = vshrl.u32 %v4600, 16
        %v4810 = vrot.slane %v4808, 7
        %v4811 = vshll.u32 %v4600, 16
        %v4813 = vor.u32 %v4810, %v4811
        %v4814 = vsel %vm4611, %v4806, %v4813
        %v4815 = vrot.slane %v4810, 4
        %v4817 = vshrl.u32 %v4601, 16
        %v4819 = vrot.slane %v4817, 7
        %v4820 = vshll.u32 %v4601, 16
        %v4822 = vor.u32 %v4819, %v4820
        %v4823 = vrot.slane %v4819, 4
        %v4825 = vshrl.u32 %v4602, 16
        %v4827 = vrot.slane %v4825, 7
        %v4828 = vshll.u32 %v4602, 16
        %v4830 = vor.u32 %v4827, %v4828
        %v4831 = vsel %vm4611, %v4823, %v4830
        %v4832 = vrot.slane %v4827, 4
        %v4834 = vshrl.u32 %v4603, 16
        %v4836 = vrot.slane %v4834, 7
        %v4837 = vshll.u32 %v4603, 16
        %v4839 = vor.u32 %v4836, %v4837
        %v4840 = vrot.slane %v4836, 4
        %v4842 = vshrl.u32 %v4604, 16
        %v4844 = vrot.slane %v4842, 7
        %v4845 = vshll.u32 %v4604, 16
        %v4847 = vor.u32 %v4844, %v4845
        %v4848 = vsel %vm4611, %v4840, %v4847
        %v4849 = vrot.slane %v4844, 4
        %v4851 = vshrl.u32 %v4605, 16
        %v4853 = vrot.slane %v4851, 7
        %v4854 = vshll.u32 %v4605, 16
        %v4856 = vor.u32 %v4853, %v4854
        %v4857 = vrot.slane %v4853, 4
        %v4859 = vshrl.u32 %v4606, 16
        %v4861 = vrot.slane %v4859, 7
        %v4862 = vshll.u32 %v4606, 16
        %v4864 = vor.u32 %v4861, %v4862
        %v4865 = vsel %vm4611, %v4857, %v4864
        %v4866 = vrot.slane %v4861, 4
        %v4868 = vshrl.u32 %v4607, 16
        %v4870 = vrot.slane %v4868, 7
        %v4871 = vshll.u32 %v4607, 16
        %v4873 = vor.u32 %v4870, %v4871
        %v4874 = vrot.slane %v4870, 4
        %v4876 = vshrl.u32 %v4608, 16
        %v4878 = vrot.slane %v4876, 7
        %v4879 = vshll.u32 %v4608, 16
        %v4881 = vor.u32 %v4878, %v4879
        %v4882 = vsel %vm4611, %v4874, %v4881
        %v4883 = vrot.slane %v4878, 4
        %s4932 = scalar_lea.vmem [#allocation2], 12
        %vm4933 = vcmask 257024
        %vm4934 = vsmask.f32 7938
        %vm4935 = vmand %vm4933, %vm4934
        %v4936 = vld [vmem:[%s4932] sm:$0xf]
        %v4937 = vsel %vm4935, %v4618, %v4936
        %4938 = vst [vmem:[%s4932] sm:$0xf] %v4937
        %4939 = vst.msk [vmem:[%s4932 + $0x4] sm:$0xf] %vm4522, %v4627
        %vm4940 = vcmask 253952
        %vm4941 = vmand %vm4940, %vm4609
        %v4942 = vld [vmem:[%s4932 + $0x8] sm:$0x1]
        %v4943 = vsel %vm4941, %v4628, %v4942
        %4944 = vst [vmem:[%s4932 + $0x8] sm:$0x1] %v4943
        %v4945 = vld [vmem:[%s4932 + $0xc] sm:$0xf]
        %v4946 = vsel %vm4935, %v4635, %v4945
        %4947 = vst [vmem:[%s4932 + $0xc] sm:$0xf] %v4946
        %4948 = vst.msk [vmem:[%s4932 + $0x10] sm:$0xf] %vm4522, %v4644
        %v4949 = vld [vmem:[%s4932 + $0x14] sm:$0x1]
        %v4950 = vsel %vm4941, %v4645, %v4949
        %4951 = vst [vmem:[%s4932 + $0x14] sm:$0x1] %v4950
        %v4952 = vld [vmem:[%s4932 + $0x18] sm:$0xf]
        %v4953 = vsel %vm4935, %v4652, %v4952
        %4954 = vst [vmem:[%s4932 + $0x18] sm:$0xf] %v4953
        %4955 = vst.msk [vmem:[%s4932 + $0x1c] sm:$0xf] %vm4522, %v4661
        %v4956 = vld [vmem:[%s4932 + $0x20] sm:$0x1]
        %v4957 = vsel %vm4941, %v4662, %v4956
        %4958 = vst [vmem:[%s4932 + $0x20] sm:$0x1] %v4957
        %v4959 = vld [vmem:[%s4932 + $0x24] sm:$0xf]
        %v4960 = vsel %vm4935, %v4669, %v4959
        %4961 = vst [vmem:[%s4932 + $0x24] sm:$0xf] %v4960
        %4962 = vst.msk [vmem:[%s4932 + $0x28] sm:$0xf] %vm4522, %v4678
        %v4963 = vld [vmem:[%s4932 + $0x2c] sm:$0x1]
        %v4964 = vsel %vm4941, %v4679, %v4963
        %4965 = vst [vmem:[%s4932 + $0x2c] sm:$0x1] %v4964
        %v4966 = vld [vmem:[%s4932 + $0x30] sm:$0xf]
        %v4967 = vsel %vm4935, %v4686, %v4966
        %4968 = vst [vmem:[%s4932 + $0x30] sm:$0xf] %v4967
        %4969 = vst.msk [vmem:[%s4932 + $0x34] sm:$0xf] %vm4522, %v4695
        %v4970 = vld [vmem:[%s4932 + $0x38] sm:$0x1]
        %v4971 = vsel %vm4941, %v4696, %v4970
        %4972 = vst [vmem:[%s4932 + $0x38] sm:$0x1] %v4971
        %v4973 = vld [vmem:[%s4932 + $0x3c] sm:$0xf]
        %v4974 = vsel %vm4935, %v4703, %v4973
        %4975 = vst [vmem:[%s4932 + $0x3c] sm:$0xf] %v4974
        %4976 = vst.msk [vmem:[%s4932 + $0x40] sm:$0xf] %vm4522, %v4712
        %v4977 = vld [vmem:[%s4932 + $0x44] sm:$0x1]
        %v4978 = vsel %vm4941, %v4713, %v4977
        %4979 = vst [vmem:[%s4932 + $0x44] sm:$0x1] %v4978
        %v4980 = vld [vmem:[%s4932 + $0x48] sm:$0xf]
        %v4981 = vsel %vm4935, %v4720, %v4980
        %4982 = vst [vmem:[%s4932 + $0x48] sm:$0xf] %v4981
        %4983 = vst.msk [vmem:[%s4932 + $0x4c] sm:$0xf] %vm4522, %v4729
        %v4984 = vld [vmem:[%s4932 + $0x50] sm:$0x1]
        %v4985 = vsel %vm4941, %v4730, %v4984
        %4986 = vst [vmem:[%s4932 + $0x50] sm:$0x1] %v4985
        %v4987 = vld [vmem:[%s4932 + $0x54] sm:$0xf]
        %v4988 = vsel %vm4935, %v4737, %v4987
        %4989 = vst [vmem:[%s4932 + $0x54] sm:$0xf] %v4988
        %4990 = vst.msk [vmem:[%s4932 + $0x58] sm:$0xf] %vm4522, %v4746
        %v4991 = vld [vmem:[%s4932 + $0x5c] sm:$0x1]
        %v4992 = vsel %vm4941, %v4747, %v4991
        %4993 = vst [vmem:[%s4932 + $0x5c] sm:$0x1] %v4992
        %v4994 = vld [vmem:[%s4932 + $0x60] sm:$0xf]
        %v4995 = vsel %vm4935, %v4754, %v4994
        %4996 = vst [vmem:[%s4932 + $0x60] sm:$0xf] %v4995
        %4997 = vst.msk [vmem:[%s4932 + $0x64] sm:$0xf] %vm4522, %v4763
        %v4998 = vld [vmem:[%s4932 + $0x68] sm:$0x1]
        %v4999 = vsel %vm4941, %v4764, %v4998
        %5000 = vst [vmem:[%s4932 + $0x68] sm:$0x1] %v4999
        %v5001 = vld [vmem:[%s4932 + $0x6c] sm:$0xf]
        %v5002 = vsel %vm4935, %v4771, %v5001
        %5003 = vst [vmem:[%s4932 + $0x6c] sm:$0xf] %v5002
        %5004 = vst.msk [vmem:[%s4932 + $0x70] sm:$0xf] %vm4522, %v4780
        %v5005 = vld [vmem:[%s4932 + $0x74] sm:$0x1]
        %v5006 = vsel %vm4941, %v4781, %v5005
        %5007 = vst [vmem:[%s4932 + $0x74] sm:$0x1] %v5006
        %v5008 = vld [vmem:[%s4932 + $0x78] sm:$0xf]
        %v5009 = vsel %vm4935, %v4788, %v5008
        %5010 = vst [vmem:[%s4932 + $0x78] sm:$0xf] %v5009
        %5011 = vst.msk [vmem:[%s4932 + $0x7c] sm:$0xf] %vm4522, %v4797
        %v5012 = vld [vmem:[%s4932 + $0x80] sm:$0x1]
        %v5013 = vsel %vm4941, %v4798, %v5012
        %5014 = vst [vmem:[%s4932 + $0x80] sm:$0x1] %v5013
        %v5015 = vld [vmem:[%s4932 + $0x84] sm:$0xf]
        %v5016 = vsel %vm4935, %v4805, %v5015
        %5017 = vst [vmem:[%s4932 + $0x84] sm:$0xf] %v5016
        %5018 = vst.msk [vmem:[%s4932 + $0x88] sm:$0xf] %vm4522, %v4814
        %v5019 = vld [vmem:[%s4932 + $0x8c] sm:$0x1]
        %v5020 = vsel %vm4941, %v4815, %v5019
        %5021 = vst [vmem:[%s4932 + $0x8c] sm:$0x1] %v5020
        %v5022 = vld [vmem:[%s4932 + $0x90] sm:$0xf]
        %v5023 = vsel %vm4935, %v4822, %v5022
        %5024 = vst [vmem:[%s4932 + $0x90] sm:$0xf] %v5023
        %5025 = vst.msk [vmem:[%s4932 + $0x94] sm:$0xf] %vm4522, %v4831
        %v5026 = vld [vmem:[%s4932 + $0x98] sm:$0x1]
        %v5027 = vsel %vm4941, %v4832, %v5026
        %5028 = vst [vmem:[%s4932 + $0x98] sm:$0x1] %v5027
        %v5029 = vld [vmem:[%s4932 + $0x9c] sm:$0xf]
        %v5030 = vsel %vm4935, %v4839, %v5029
        %5031 = vst [vmem:[%s4932 + $0x9c] sm:$0xf] %v5030
        %5032 = vst.msk [vmem:[%s4932 + $0xa0] sm:$0xf] %vm4522, %v4848
        %v5033 = vld [vmem:[%s4932 + $0xa4] sm:$0x1]
        %v5034 = vsel %vm4941, %v4849, %v5033
        %5035 = vst [vmem:[%s4932 + $0xa4] sm:$0x1] %v5034
        %v5036 = vld [vmem:[%s4932 + $0xa8] sm:$0xf]
        %v5037 = vsel %vm4935, %v4856, %v5036
        %5038 = vst [vmem:[%s4932 + $0xa8] sm:$0xf] %v5037
        %5039 = vst.msk [vmem:[%s4932 + $0xac] sm:$0xf] %vm4522, %v4865
        %v5040 = vld [vmem:[%s4932 + $0xb0] sm:$0x1]
        %v5041 = vsel %vm4941, %v4866, %v5040
        %5042 = vst [vmem:[%s4932 + $0xb0] sm:$0x1] %v5041
        %v5043 = vld [vmem:[%s4932 + $0xb4] sm:$0xf]
        %v5044 = vsel %vm4935, %v4873, %v5043
        %5045 = vst [vmem:[%s4932 + $0xb4] sm:$0xf] %v5044
        %5046 = vst.msk [vmem:[%s4932 + $0xb8] sm:$0xf] %vm4522, %v4882
        %v5047 = vld [vmem:[%s4932 + $0xbc] sm:$0x1]
        %v5048 = vsel %vm4941, %v4883, %v5047
        %5049 = vst [vmem:[%s4932 + $0xbc] sm:$0x1] %v5048
        %v5050 = vld [vmem:[#allocation2] sm:$0xf]
        %v5051 = vld [vmem:[#allocation2 + $0x4] sm:$0xf]
        %v5052 = vld [vmem:[#allocation2 + $0x8] sm:$0xf]
        %v5053 = vld [vmem:[#allocation2 + $0xc] sm:$0xf]
        %v5054 = vld [vmem:[#allocation2 + $0x10] sm:$0xf]
        %v5055 = vld [vmem:[#allocation2 + $0x14] sm:$0xf]
        %v5056 = vld [vmem:[#allocation2 + $0x18] sm:$0xf]
        %v5057 = vld [vmem:[#allocation2 + $0x1c] sm:$0xf]
        %v5058 = vld [vmem:[#allocation2 + $0x20] sm:$0xf]
        %v5059 = vld [vmem:[#allocation2 + $0x24] sm:$0xf]
        %v5060 = vld [vmem:[#allocation2 + $0x28] sm:$0xf]
        %v5061 = vld [vmem:[#allocation2 + $0x2c] sm:$0xf]
        %v5062 = vld [vmem:[#allocation2 + $0x30] sm:$0xf]
        %v5063 = vld [vmem:[#allocation2 + $0x34] sm:$0xf]
        %v5064 = vld [vmem:[#allocation2 + $0x38] sm:$0xf]
        %v5065 = vld [vmem:[#allocation2 + $0x3c] sm:$0xf]
        %v5066 = vld [vmem:[#allocation2 + $0x40] sm:$0xf]
        %v5067 = vld [vmem:[#allocation2 + $0x44] sm:$0xf]
        %v5068 = vld [vmem:[#allocation2 + $0x48] sm:$0xf]
        %v5069 = vld [vmem:[#allocation2 + $0x4c] sm:$0xf]
        %v5070 = vld [vmem:[#allocation2 + $0x50] sm:$0xf]
        %v5071 = vld [vmem:[#allocation2 + $0x54] sm:$0xf]
        %v5072 = vld [vmem:[#allocation2 + $0x58] sm:$0xf]
        %v5073 = vld [vmem:[#allocation2 + $0x5c] sm:$0xf]
        %v5074 = vld [vmem:[#allocation2 + $0x60] sm:$0xf]
        %v5075 = vld [vmem:[#allocation2 + $0x64] sm:$0xf]
        %v5076 = vld [vmem:[#allocation2 + $0x68] sm:$0xf]
        %v5077 = vld [vmem:[#allocation2 + $0x6c] sm:$0xf]
        %v5078 = vld [vmem:[#allocation2 + $0x70] sm:$0xf]
        %v5079 = vld [vmem:[#allocation2 + $0x74] sm:$0xf]
        %v5080 = vld [vmem:[#allocation2 + $0x78] sm:$0xf]
        %v5081 = vld [vmem:[#allocation2 + $0x7c] sm:$0xf]
        %v5082 = vld [vmem:[#allocation2 + $0x80] sm:$0xf]
        %v5083 = vld [vmem:[#allocation2 + $0x84] sm:$0xf]
        %v5084 = vld [vmem:[#allocation2 + $0x88] sm:$0xf]
        %v5085 = vld [vmem:[#allocation2 + $0x8c] sm:$0xf]
        %v5086 = vld [vmem:[#allocation2 + $0x90] sm:$0xf]
        %v5087 = vld [vmem:[#allocation2 + $0x94] sm:$0xf]
        %v5088 = vld [vmem:[#allocation2 + $0x98] sm:$0xf]
        %v5089 = vld [vmem:[#allocation2 + $0x9c] sm:$0xf]
        %v5090 = vld [vmem:[#allocation2 + $0xa0] sm:$0xf]
        %v5091 = vld [vmem:[#allocation2 + $0xa4] sm:$0xf]
        %v5092 = vld [vmem:[#allocation2 + $0xa8] sm:$0xf]
        %v5093 = vld [vmem:[#allocation2 + $0xac] sm:$0xf]
        %v5094 = vld [vmem:[#allocation2 + $0xb0] sm:$0xf]
        %v5095 = vld [vmem:[#allocation2 + $0xb4] sm:$0xf]
        %v5096 = vld [vmem:[#allocation2 + $0xb8] sm:$0xf]
        %v5097 = vld [vmem:[#allocation2 + $0xbc] sm:$0xf]
        %v5098 = vld [vmem:[%s9] sm:$0xf]
        %v5099 = vld [vmem:[%s9 + $0x4] sm:$0xf]
        %v5100 = vld [vmem:[%s9 + $0x8] sm:$0xf]
        %v5101 = vld [vmem:[%s9 + $0xc] sm:$0xf]
        %v5102 = vld [vmem:[%s4932] sm:$0xf]
        %v5103 = vld [vmem:[%s4932 + $0x4] sm:$0xf]
        %v5104 = vld [vmem:[%s4932 + $0x8] sm:$0xf]
        %v5105 = vld [vmem:[%s4932 + $0xc] sm:$0xf]
        %v5106 = vld [vmem:[%s4932 + $0x10] sm:$0xf]
        %v5107 = vld [vmem:[%s4932 + $0x14] sm:$0xf]
        %v5108 = vld [vmem:[%s4932 + $0x18] sm:$0xf]
        %v5109 = vld [vmem:[%s4932 + $0x1c] sm:$0xf]
        %v5110 = vld [vmem:[%s4932 + $0x20] sm:$0xf]
        %v5111 = vld [vmem:[%s4932 + $0x24] sm:$0xf]
        %v5112 = vld [vmem:[%s4932 + $0x28] sm:$0xf]
        %v5113 = vld [vmem:[%s4932 + $0x2c] sm:$0xf]
        %v5114 = vld [vmem:[%s4932 + $0x30] sm:$0xf]
        %v5115 = vld [vmem:[%s4932 + $0x34] sm:$0xf]
        %v5116 = vld [vmem:[%s4932 + $0x38] sm:$0xf]
        %v5117 = vld [vmem:[%s4932 + $0x3c] sm:$0xf]
        %v5118 = vld [vmem:[%s4932 + $0x40] sm:$0xf]
        %v5119 = vld [vmem:[%s4932 + $0x44] sm:$0xf]
        %v5120 = vld [vmem:[%s4932 + $0x48] sm:$0xf]
        %v5121 = vld [vmem:[%s4932 + $0x4c] sm:$0xf]
        %v5122 = vld [vmem:[%s4932 + $0x50] sm:$0xf]
        %v5123 = vld [vmem:[%s4932 + $0x54] sm:$0xf]
        %v5124 = vld [vmem:[%s4932 + $0x58] sm:$0xf]
        %v5125 = vld [vmem:[%s4932 + $0x5c] sm:$0xf]
        %v5126 = vld [vmem:[%s4932 + $0x60] sm:$0xf]
        %v5127 = vld [vmem:[%s4932 + $0x64] sm:$0xf]
        %v5128 = vld [vmem:[%s4932 + $0x68] sm:$0xf]
        %v5129 = vld [vmem:[%s4932 + $0x6c] sm:$0xf]
        %v5130 = vld [vmem:[%s4932 + $0x70] sm:$0xf]
        %v5131 = vld [vmem:[%s4932 + $0x74] sm:$0xf]
        %v5132 = vld [vmem:[%s4932 + $0x78] sm:$0xf]
        %v5133 = vld [vmem:[%s4932 + $0x7c] sm:$0xf]
        %v5134 = vld [vmem:[%s4932 + $0x80] sm:$0xf]
        %v5135 = vld [vmem:[%s4932 + $0x84] sm:$0xf]
        %v5136 = vld [vmem:[%s4932 + $0x88] sm:$0xf]
        %v5137 = vld [vmem:[%s4932 + $0x8c] sm:$0xf]
        %v5138 = vld [vmem:[%s4932 + $0x90] sm:$0xf]
        %v5139 = vld [vmem:[%s4932 + $0x94] sm:$0xf]
        %v5140 = vld [vmem:[%s4932 + $0x98] sm:$0xf]
        %v5141 = vld [vmem:[%s4932 + $0x9c] sm:$0xf]
        %v5142 = vld [vmem:[%s4932 + $0xa0] sm:$0xf]
        %v5143 = vld [vmem:[%s4932 + $0xa4] sm:$0xf]
        %v5144 = vld [vmem:[%s4932 + $0xa8] sm:$0xf]
        %v5145 = vld [vmem:[%s4932 + $0xac] sm:$0xf]
        %v5146 = vld [vmem:[%s4932 + $0xb0] sm:$0xf]
        %v5147 = vld [vmem:[%s4932 + $0xb4] sm:$0xf]
        %v5148 = vld [vmem:[%s4932 + $0xb8] sm:$0xf]
        %v5149 = vld [vmem:[%s4932 + $0xbc] sm:$0xf]
        %s5150 = scalar_lea.vmem %s9, 48
        %v5151 = vld [vmem:[%s5150] sm:$0xf]
        %v5152 = vld [vmem:[%s5150 + $0x4] sm:$0xf]
        %v5153 = vld [vmem:[%s5150 + $0x8] sm:$0xf]
        %v5154 = vld [vmem:[%s5150 + $0xc] sm:$0xf]
        %v5203 = vunpack.c.l.b16 %v5102
        %v5204 = vunpack.c.l.b16 %v5103
        %v5205 = vunpack.c.l.b16 %v5104
        %v5206 = vunpack.c.l.b16 %v5105
        %v5207 = vunpack.c.l.b16 %v5106
        %v5208 = vunpack.c.l.b16 %v5107
        %v5209 = vunpack.c.l.b16 %v5108
        %v5210 = vunpack.c.l.b16 %v5109
        %v5211 = vunpack.c.l.b16 %v5110
        %v5212 = vunpack.c.l.b16 %v5111
        %v5213 = vunpack.c.l.b16 %v5112
        %v5214 = vunpack.c.l.b16 %v5113
        %v5215 = vunpack.c.l.b16 %v5114
        %v5216 = vunpack.c.l.b16 %v5115
        %v5217 = vunpack.c.l.b16 %v5116
        %v5218 = vunpack.c.l.b16 %v5117
        %v5219 = vunpack.c.l.b16 %v5118
        %v5220 = vunpack.c.l.b16 %v5119
        %v5221 = vunpack.c.l.b16 %v5120
        %v5222 = vunpack.c.l.b16 %v5121
        %v5223 = vunpack.c.l.b16 %v5122
        %v5224 = vunpack.c.l.b16 %v5123
        %v5225 = vunpack.c.l.b16 %v5124
        %v5226 = vunpack.c.l.b16 %v5125
        %v5227 = vunpack.c.l.b16 %v5126
        %v5228 = vunpack.c.l.b16 %v5127
        %v5229 = vunpack.c.l.b16 %v5128
        %v5230 = vunpack.c.l.b16 %v5129
        %v5231 = vunpack.c.l.b16 %v5130
        %v5232 = vunpack.c.l.b16 %v5131
        %v5233 = vunpack.c.l.b16 %v5132
        %v5234 = vunpack.c.l.b16 %v5133
        %v5235 = vunpack.c.l.b16 %v5134
        %v5236 = vunpack.c.l.b16 %v5135
        %v5237 = vunpack.c.l.b16 %v5136
        %v5238 = vunpack.c.l.b16 %v5137
        %v5239 = vunpack.c.l.b16 %v5138
        %v5240 = vunpack.c.l.b16 %v5139
        %v5241 = vunpack.c.l.b16 %v5140
        %v5242 = vunpack.c.l.b16 %v5141
        %v5243 = vunpack.c.l.b16 %v5142
        %v5244 = vunpack.c.l.b16 %v5143
        %v5245 = vunpack.c.l.b16 %v5144
        %v5246 = vunpack.c.l.b16 %v5145
        %v5247 = vunpack.c.l.b16 %v5146
        %v5248 = vunpack.c.l.b16 %v5147
        %v5249 = vunpack.c.l.b16 %v5148
        %v5250 = vunpack.c.l.b16 %v5149
        %v5251 = vpack.c.b16 %v5204, %v5203
        %v5252 = vpack.c.b16 %v5206, %v5205
        %v5253 = vpack.c.b16 %v5208, %v5207
        %v5254 = vpack.c.b16 %v5210, %v5209
        %v5255 = vpack.c.b16 %v5212, %v5211
        %v5256 = vpack.c.b16 %v5214, %v5213
        %v5257 = vpack.c.b16 %v5216, %v5215
        %v5258 = vpack.c.b16 %v5218, %v5217
        %v5259 = vpack.c.b16 %v5220, %v5219
        %v5260 = vpack.c.b16 %v5222, %v5221
        %v5261 = vpack.c.b16 %v5224, %v5223
        %v5262 = vpack.c.b16 %v5226, %v5225
        %v5263 = vpack.c.b16 %v5228, %v5227
        %v5264 = vpack.c.b16 %v5230, %v5229
        %v5265 = vpack.c.b16 %v5232, %v5231
        %v5266 = vpack.c.b16 %v5234, %v5233
        %v5267 = vpack.c.b16 %v5236, %v5235
        %v5268 = vpack.c.b16 %v5238, %v5237
        %v5269 = vpack.c.b16 %v5240, %v5239
        %v5270 = vpack.c.b16 %v5242, %v5241
        %v5271 = vpack.c.b16 %v5244, %v5243
        %v5272 = vpack.c.b16 %v5246, %v5245
        %v5273 = vpack.c.b16 %v5248, %v5247
        %v5274 = vpack.c.b16 %v5250, %v5249
        %v5279 = vunpack.c.l.b16 %v5151
        %v5280 = vunpack.c.l.b16 %v5152
        %v5281 = vunpack.c.l.b16 %v5153
        %v5282 = vunpack.c.l.b16 %v5154
        %v5283 = vpack.c.b16 %v5280, %v5279
        %v5284 = vpack.c.b16 %v5282, %v5281
        %v5288 = vsel %vm500, %v5251, 0
        %v5291 = vsel %vm500, %v5252, 0
        %v5294 = vsel %vm500, %v5253, 0
        %v5297 = vsel %vm500, %v5254, 0
        %v5300 = vsel %vm500, %v5255, 0
        %v5303 = vsel %vm500, %v5256, 0
        %v5306 = vsel %vm500, %v5257, 0
        %v5309 = vsel %vm500, %v5258, 0
        %v5312 = vsel %vm500, %v5259, 0
        %v5315 = vsel %vm500, %v5260, 0
        %v5318 = vsel %vm500, %v5261, 0
        %v5321 = vsel %vm500, %v5262, 0
        %v5324 = vsel %vm500, %v5263, 0
        %v5327 = vsel %vm500, %v5264, 0
        %v5330 = vsel %vm500, %v5265, 0
        %v5333 = vsel %vm500, %v5266, 0
        %v5336 = vsel %vm500, %v5267, 0
        %v5339 = vsel %vm500, %v5268, 0
        %v5342 = vsel %vm500, %v5269, 0
        %v5345 = vsel %vm500, %v5270, 0
        %v5348 = vsel %vm500, %v5271, 0
        %v5351 = vsel %vm500, %v5272, 0
        %v5354 = vsel %vm500, %v5273, 0
        %v5357 = vsel %vm500, %v5274, 0
        %5359 = vmatpush.bf16.msra.mxu0 0
        %5360 = vmatpush.bf16.msra.mxu0 0
        %5361 = vmatpush.bf16.msra.mxu0 0
        %5362 = vmatpush.bf16.msra.mxu0 0
        %5363 = vmatpush.bf16.msra.mxu0 0
        %5364 = vmatpush.bf16.msra.mxu0 0
        %5365 = vmatpush.bf16.msra.mxu0 %v5284
        %5366 = vmatpush.bf16.msra.mxu0 %v5283
        %5367 = vmatmul.bf16.gmra.mxu0 %v5288
        %v5368 = vpop.f32.mrf.mxu0
        %v5369 = vadd.f32 0.0, %v5368
        %v5370 = vpop.f32.mrf.mxu0
        %v5371 = vadd.f32 0.0, %v5370
        %5372 = vmatmul.bf16.gmra.mxu0 %v5291
        %v5373 = vpop.f32.mrf.mxu0
        %v5374 = vpop.f32.mrf.mxu0
        %v5375 = vadd.f32 0.0, %v5374
        %5376 = vmatmul.bf16.gmra.mxu0 %v5294
        %v5377 = vpop.f32.mrf.mxu0
        %v5378 = vadd.f32 0.0, %v5377
        %v5379 = vpop.f32.mrf.mxu0
        %5380 = vmatmul.bf16.gmra.mxu0 %v5297
        %v5381 = vpop.f32.mrf.mxu0
        %v5382 = vadd.f32 0.0, %v5381
        %v5383 = vpop.f32.mrf.mxu0
        %v5384 = vadd.f32 0.0, %v5383
        %5385 = vmatmul.bf16.gmra.mxu0 %v5300
        %v5386 = vpop.f32.mrf.mxu0
        %v5387 = vpop.f32.mrf.mxu0
        %v5388 = vadd.f32 0.0, %v5387
        %5389 = vmatmul.bf16.gmra.mxu0 %v5303
        %v5390 = vpop.f32.mrf.mxu0
        %v5391 = vadd.f32 0.0, %v5390
        %v5392 = vpop.f32.mrf.mxu0
        %5393 = vmatmul.bf16.gmra.mxu0 %v5306
        %v5394 = vpop.f32.mrf.mxu0
        %v5395 = vadd.f32 0.0, %v5394
        %v5396 = vpop.f32.mrf.mxu0
        %v5397 = vadd.f32 0.0, %v5396
        %5398 = vmatmul.bf16.gmra.mxu0 %v5309
        %v5399 = vpop.f32.mrf.mxu0
        %v5400 = vpop.f32.mrf.mxu0
        %v5401 = vadd.f32 0.0, %v5400
        %5402 = vmatmul.bf16.gmra.mxu0 %v5312
        %v5403 = vpop.f32.mrf.mxu0
        %v5404 = vadd.f32 0.0, %v5403
        %v5405 = vpop.f32.mrf.mxu0
        %5406 = vmatmul.bf16.gmra.mxu0 %v5315
        %v5407 = vpop.f32.mrf.mxu0
        %v5408 = vadd.f32 0.0, %v5407
        %v5409 = vpop.f32.mrf.mxu0
        %v5410 = vadd.f32 0.0, %v5409
        %5411 = vmatmul.bf16.gmra.mxu0 %v5318
        %v5412 = vpop.f32.mrf.mxu0
        %v5413 = vpop.f32.mrf.mxu0
        %v5414 = vadd.f32 0.0, %v5413
        %5415 = vmatmul.bf16.gmra.mxu0 %v5321
        %v5416 = vpop.f32.mrf.mxu0
        %v5417 = vadd.f32 0.0, %v5416
        %v5418 = vpop.f32.mrf.mxu0
        %5419 = vmatmul.bf16.gmra.mxu0 %v5324
        %v5420 = vpop.f32.mrf.mxu0
        %v5421 = vadd.f32 0.0, %v5420
        %v5422 = vpop.f32.mrf.mxu0
        %v5423 = vadd.f32 0.0, %v5422
        %5424 = vmatmul.bf16.gmra.mxu0 %v5327
        %v5425 = vpop.f32.mrf.mxu0
        %v5426 = vpop.f32.mrf.mxu0
        %v5427 = vadd.f32 0.0, %v5426
        %5428 = vmatmul.bf16.gmra.mxu0 %v5330
        %v5429 = vpop.f32.mrf.mxu0
        %v5430 = vadd.f32 0.0, %v5429
        %v5431 = vpop.f32.mrf.mxu0
        %5432 = vmatmul.bf16.gmra.mxu0 %v5333
        %v5433 = vpop.f32.mrf.mxu0
        %v5434 = vadd.f32 0.0, %v5433
        %v5435 = vpop.f32.mrf.mxu0
        %v5436 = vadd.f32 0.0, %v5435
        %5437 = vmatmul.bf16.gmra.mxu0 %v5336
        %v5438 = vpop.f32.mrf.mxu0
        %v5439 = vpop.f32.mrf.mxu0
        %v5440 = vadd.f32 0.0, %v5439
        %5441 = vmatmul.bf16.gmra.mxu0 %v5339
        %v5442 = vpop.f32.mrf.mxu0
        %v5443 = vadd.f32 0.0, %v5442
        %v5444 = vpop.f32.mrf.mxu0
        %5445 = vmatmul.bf16.gmra.mxu0 %v5342
        %v5446 = vpop.f32.mrf.mxu0
        %v5447 = vadd.f32 0.0, %v5446
        %v5448 = vpop.f32.mrf.mxu0
        %v5449 = vadd.f32 0.0, %v5448
        %5450 = vmatmul.bf16.gmra.mxu0 %v5345
        %v5451 = vpop.f32.mrf.mxu0
        %v5452 = vpop.f32.mrf.mxu0
        %v5453 = vadd.f32 0.0, %v5452
        %5454 = vmatmul.bf16.gmra.mxu0 %v5348
        %v5455 = vpop.f32.mrf.mxu0
        %v5456 = vadd.f32 0.0, %v5455
        %v5457 = vpop.f32.mrf.mxu0
        %5458 = vmatmul.bf16.gmra.mxu0 %v5351
        %v5459 = vpop.f32.mrf.mxu0
        %v5460 = vadd.f32 0.0, %v5459
        %v5461 = vpop.f32.mrf.mxu0
        %v5462 = vadd.f32 0.0, %v5461
        %5463 = vmatmul.bf16.gmra.mxu0 %v5354
        %v5464 = vpop.f32.mrf.mxu0
        %v5465 = vpop.f32.mrf.mxu0
        %v5466 = vadd.f32 0.0, %v5465
        %5467 = vmatmul.bf16.gmra.mxu0 %v5357
        %v5468 = vpop.f32.mrf.mxu0
        %v5469 = vadd.f32 0.0, %v5468
        %v5470 = vpop.f32.mrf.mxu0
        %5471 = vdwg.mxu0
        %v5520 = vunpack.c.l.b16 %v5050
        %v5521 = vunpack.c.l.b16 %v5051
        %v5522 = vunpack.c.l.b16 %v5052
        %v5523 = vunpack.c.l.b16 %v5053
        %v5524 = vunpack.c.l.b16 %v5054
        %v5525 = vunpack.c.l.b16 %v5055
        %v5526 = vunpack.c.l.b16 %v5056
        %v5527 = vunpack.c.l.b16 %v5057
        %v5528 = vunpack.c.l.b16 %v5058
        %v5529 = vunpack.c.l.b16 %v5059
        %v5530 = vunpack.c.l.b16 %v5060
        %v5531 = vunpack.c.l.b16 %v5061
        %v5532 = vunpack.c.l.b16 %v5062
        %v5533 = vunpack.c.l.b16 %v5063
        %v5534 = vunpack.c.l.b16 %v5064
        %v5535 = vunpack.c.l.b16 %v5065
        %v5536 = vunpack.c.l.b16 %v5066
        %v5537 = vunpack.c.l.b16 %v5067
        %v5538 = vunpack.c.l.b16 %v5068
        %v5539 = vunpack.c.l.b16 %v5069
        %v5540 = vunpack.c.l.b16 %v5070
        %v5541 = vunpack.c.l.b16 %v5071
        %v5542 = vunpack.c.l.b16 %v5072
        %v5543 = vunpack.c.l.b16 %v5073
        %v5544 = vunpack.c.l.b16 %v5074
        %v5545 = vunpack.c.l.b16 %v5075
        %v5546 = vunpack.c.l.b16 %v5076
        %v5547 = vunpack.c.l.b16 %v5077
        %v5548 = vunpack.c.l.b16 %v5078
        %v5549 = vunpack.c.l.b16 %v5079
        %v5550 = vunpack.c.l.b16 %v5080
        %v5551 = vunpack.c.l.b16 %v5081
        %v5552 = vunpack.c.l.b16 %v5082
        %v5553 = vunpack.c.l.b16 %v5083
        %v5554 = vunpack.c.l.b16 %v5084
        %v5555 = vunpack.c.l.b16 %v5085
        %v5556 = vunpack.c.l.b16 %v5086
        %v5557 = vunpack.c.l.b16 %v5087
        %v5558 = vunpack.c.l.b16 %v5088
        %v5559 = vunpack.c.l.b16 %v5089
        %v5560 = vunpack.c.l.b16 %v5090
        %v5561 = vunpack.c.l.b16 %v5091
        %v5562 = vunpack.c.l.b16 %v5092
        %v5563 = vunpack.c.l.b16 %v5093
        %v5564 = vunpack.c.l.b16 %v5094
        %v5565 = vunpack.c.l.b16 %v5095
        %v5566 = vunpack.c.l.b16 %v5096
        %v5567 = vunpack.c.l.b16 %v5097
        %v5568 = vpack.c.b16 %v5521, %v5520
        %v5569 = vpack.c.b16 %v5523, %v5522
        %v5570 = vpack.c.b16 %v5525, %v5524
        %v5571 = vpack.c.b16 %v5527, %v5526
        %v5572 = vpack.c.b16 %v5529, %v5528
        %v5573 = vpack.c.b16 %v5531, %v5530
        %v5574 = vpack.c.b16 %v5533, %v5532
        %v5575 = vpack.c.b16 %v5535, %v5534
        %v5576 = vpack.c.b16 %v5537, %v5536
        %v5577 = vpack.c.b16 %v5539, %v5538
        %v5578 = vpack.c.b16 %v5541, %v5540
        %v5579 = vpack.c.b16 %v5543, %v5542
        %v5580 = vpack.c.b16 %v5545, %v5544
        %v5581 = vpack.c.b16 %v5547, %v5546
        %v5582 = vpack.c.b16 %v5549, %v5548
        %v5583 = vpack.c.b16 %v5551, %v5550
        %v5584 = vpack.c.b16 %v5553, %v5552
        %v5585 = vpack.c.b16 %v5555, %v5554
        %v5586 = vpack.c.b16 %v5557, %v5556
        %v5587 = vpack.c.b16 %v5559, %v5558
        %v5588 = vpack.c.b16 %v5561, %v5560
        %v5589 = vpack.c.b16 %v5563, %v5562
        %v5590 = vpack.c.b16 %v5565, %v5564
        %v5591 = vpack.c.b16 %v5567, %v5566
        %v5596 = vunpack.c.l.b16 %v5098
        %v5597 = vunpack.c.l.b16 %v5099
        %v5598 = vunpack.c.l.b16 %v5100
        %v5599 = vunpack.c.l.b16 %v5101
        %v5600 = vpack.c.b16 %v5597, %v5596
        %v5601 = vpack.c.b16 %v5599, %v5598
        %v5605 = vsel %vm500, %v5568, 0
        %v5608 = vsel %vm500, %v5569, 0
        %v5611 = vsel %vm500, %v5570, 0
        %v5614 = vsel %vm500, %v5571, 0
        %v5617 = vsel %vm500, %v5572, 0
        %v5620 = vsel %vm500, %v5573, 0
        %v5623 = vsel %vm500, %v5574, 0
        %v5626 = vsel %vm500, %v5575, 0
        %v5629 = vsel %vm500, %v5576, 0
        %v5632 = vsel %vm500, %v5577, 0
        %v5635 = vsel %vm500, %v5578, 0
        %v5638 = vsel %vm500, %v5579, 0
        %v5641 = vsel %vm500, %v5580, 0
        %v5644 = vsel %vm500, %v5581, 0
        %v5647 = vsel %vm500, %v5582, 0
        %v5650 = vsel %vm500, %v5583, 0
        %v5653 = vsel %vm500, %v5584, 0
        %v5656 = vsel %vm500, %v5585, 0
        %v5659 = vsel %vm500, %v5586, 0
        %v5662 = vsel %vm500, %v5587, 0
        %v5665 = vsel %vm500, %v5588, 0
        %v5668 = vsel %vm500, %v5589, 0
        %v5671 = vsel %vm500, %v5590, 0
        %v5674 = vsel %vm500, %v5591, 0
        %5676 = vmatpush.bf16.msra.mxu0 0
        %5677 = vmatpush.bf16.msra.mxu0 0
        %5678 = vmatpush.bf16.msra.mxu0 0
        %5679 = vmatpush.bf16.msra.mxu0 0
        %5680 = vmatpush.bf16.msra.mxu0 0
        %5681 = vmatpush.bf16.msra.mxu0 0
        %5682 = vmatpush.bf16.msra.mxu0 %v5601
        %5683 = vmatpush.bf16.msra.mxu0 %v5600
        %5684 = vmatmul.bf16.gmra.mxu0 %v5605
        %v5685 = vpop.f32.mrf.mxu0
        %v5686 = vadd.f32 %v5369, %v5685
        %v5687 = vpop.f32.mrf.mxu0
        %v5688 = vadd.f32 %v5371, %v5687
        %5689 = vmatmul.bf16.gmra.mxu0 %v5608
        %v5690 = vpop.f32.mrf.mxu0
        %v5691 = vpop.f32.mrf.mxu0
        %v5692 = vadd.f32 %v5375, %v5691
        %5693 = vmatmul.bf16.gmra.mxu0 %v5611
        %v5694 = vpop.f32.mrf.mxu0
        %v5695 = vadd.f32 %v5378, %v5694
        %v5696 = vpop.f32.mrf.mxu0
        %5697 = vmatmul.bf16.gmra.mxu0 %v5614
        %v5698 = vpop.f32.mrf.mxu0
        %v5699 = vadd.f32 %v5382, %v5698
        %v5700 = vpop.f32.mrf.mxu0
        %v5701 = vadd.f32 %v5384, %v5700
        %5702 = vmatmul.bf16.gmra.mxu0 %v5617
        %v5703 = vpop.f32.mrf.mxu0
        %v5704 = vpop.f32.mrf.mxu0
        %v5705 = vadd.f32 %v5388, %v5704
        %5706 = vmatmul.bf16.gmra.mxu0 %v5620
        %v5707 = vpop.f32.mrf.mxu0
        %v5708 = vadd.f32 %v5391, %v5707
        %v5709 = vpop.f32.mrf.mxu0
        %5710 = vmatmul.bf16.gmra.mxu0 %v5623
        %v5711 = vpop.f32.mrf.mxu0
        %v5712 = vadd.f32 %v5395, %v5711
        %v5713 = vpop.f32.mrf.mxu0
        %v5714 = vadd.f32 %v5397, %v5713
        %5715 = vmatmul.bf16.gmra.mxu0 %v5626
        %v5716 = vpop.f32.mrf.mxu0
        %v5717 = vpop.f32.mrf.mxu0
        %v5718 = vadd.f32 %v5401, %v5717
        %5719 = vmatmul.bf16.gmra.mxu0 %v5629
        %v5720 = vpop.f32.mrf.mxu0
        %v5721 = vadd.f32 %v5404, %v5720
        %v5722 = vpop.f32.mrf.mxu0
        %5723 = vmatmul.bf16.gmra.mxu0 %v5632
        %v5724 = vpop.f32.mrf.mxu0
        %v5725 = vadd.f32 %v5408, %v5724
        %v5726 = vpop.f32.mrf.mxu0
        %v5727 = vadd.f32 %v5410, %v5726
        %5728 = vmatmul.bf16.gmra.mxu0 %v5635
        %v5729 = vpop.f32.mrf.mxu0
        %v5730 = vpop.f32.mrf.mxu0
        %v5731 = vadd.f32 %v5414, %v5730
        %5732 = vmatmul.bf16.gmra.mxu0 %v5638
        %v5733 = vpop.f32.mrf.mxu0
        %v5734 = vadd.f32 %v5417, %v5733
        %v5735 = vpop.f32.mrf.mxu0
        %5736 = vmatmul.bf16.gmra.mxu0 %v5641
        %v5737 = vpop.f32.mrf.mxu0
        %v5738 = vadd.f32 %v5421, %v5737
        %v5739 = vpop.f32.mrf.mxu0
        %v5740 = vadd.f32 %v5423, %v5739
        %5741 = vmatmul.bf16.gmra.mxu0 %v5644
        %v5742 = vpop.f32.mrf.mxu0
        %v5743 = vpop.f32.mrf.mxu0
        %v5744 = vadd.f32 %v5427, %v5743
        %5745 = vmatmul.bf16.gmra.mxu0 %v5647
        %v5746 = vpop.f32.mrf.mxu0
        %v5747 = vadd.f32 %v5430, %v5746
        %v5748 = vpop.f32.mrf.mxu0
        %5749 = vmatmul.bf16.gmra.mxu0 %v5650
        %v5750 = vpop.f32.mrf.mxu0
        %v5751 = vadd.f32 %v5434, %v5750
        %v5752 = vpop.f32.mrf.mxu0
        %v5753 = vadd.f32 %v5436, %v5752
        %5754 = vmatmul.bf16.gmra.mxu0 %v5653
        %v5755 = vpop.f32.mrf.mxu0
        %v5756 = vpop.f32.mrf.mxu0
        %v5757 = vadd.f32 %v5440, %v5756
        %5758 = vmatmul.bf16.gmra.mxu0 %v5656
        %v5759 = vpop.f32.mrf.mxu0
        %v5760 = vadd.f32 %v5443, %v5759
        %v5761 = vpop.f32.mrf.mxu0
        %5762 = vmatmul.bf16.gmra.mxu0 %v5659
        %v5763 = vpop.f32.mrf.mxu0
        %v5764 = vadd.f32 %v5447, %v5763
        %v5765 = vpop.f32.mrf.mxu0
        %v5766 = vadd.f32 %v5449, %v5765
        %5767 = vmatmul.bf16.gmra.mxu0 %v5662
        %v5768 = vpop.f32.mrf.mxu0
        %v5769 = vpop.f32.mrf.mxu0
        %v5770 = vadd.f32 %v5453, %v5769
        %5771 = vmatmul.bf16.gmra.mxu0 %v5665
        %v5772 = vpop.f32.mrf.mxu0
        %v5773 = vadd.f32 %v5456, %v5772
        %v5774 = vpop.f32.mrf.mxu0
        %5775 = vmatmul.bf16.gmra.mxu0 %v5668
        %v5776 = vpop.f32.mrf.mxu0
        %v5777 = vadd.f32 %v5460, %v5776
        %v5778 = vpop.f32.mrf.mxu0
        %v5779 = vadd.f32 %v5462, %v5778
        %5780 = vmatmul.bf16.gmra.mxu0 %v5671
        %v5781 = vpop.f32.mrf.mxu0
        %v5782 = vpop.f32.mrf.mxu0
        %v5783 = vadd.f32 %v5466, %v5782
        %5784 = vmatmul.bf16.gmra.mxu0 %v5674
        %v5785 = vpop.f32.mrf.mxu0
        %v5786 = vadd.f32 %v5469, %v5785
        %v5787 = vpop.f32.mrf.mxu0
        %5788 = vdwg.mxu0
        %s5789 = scalar_lea.vmem [#allocation2], 24
        %v5790 = vld [vmem:[%s5789] sm:$0xf]
        %v5791 = vld [vmem:[%s5789 + $0x4] sm:$0xf]
        %v5792 = vld [vmem:[%s5789 + $0x8] sm:$0xf]
        %v5793 = vld [vmem:[%s5789 + $0xc] sm:$0xf]
        %v5794 = vld [vmem:[%s5789 + $0x10] sm:$0xf]
        %v5795 = vld [vmem:[%s5789 + $0x14] sm:$0xf]
        %v5796 = vld [vmem:[%s5789 + $0x18] sm:$0xf]
        %v5797 = vld [vmem:[%s5789 + $0x1c] sm:$0xf]
        %v5798 = vld [vmem:[%s5789 + $0x20] sm:$0xf]
        %v5799 = vld [vmem:[%s5789 + $0x24] sm:$0xf]
        %v5800 = vld [vmem:[%s5789 + $0x28] sm:$0xf]
        %v5801 = vld [vmem:[%s5789 + $0x2c] sm:$0xf]
        %v5802 = vld [vmem:[%s5789 + $0x30] sm:$0xf]
        %v5803 = vld [vmem:[%s5789 + $0x34] sm:$0xf]
        %v5804 = vld [vmem:[%s5789 + $0x38] sm:$0xf]
        %v5805 = vld [vmem:[%s5789 + $0x3c] sm:$0xf]
        %v5806 = vld [vmem:[%s5789 + $0x40] sm:$0xf]
        %v5807 = vld [vmem:[%s5789 + $0x44] sm:$0xf]
        %v5808 = vld [vmem:[%s5789 + $0x48] sm:$0xf]
        %v5809 = vld [vmem:[%s5789 + $0x4c] sm:$0xf]
        %v5810 = vld [vmem:[%s5789 + $0x50] sm:$0xf]
        %v5811 = vld [vmem:[%s5789 + $0x54] sm:$0xf]
        %v5812 = vld [vmem:[%s5789 + $0x58] sm:$0xf]
        %v5813 = vld [vmem:[%s5789 + $0x5c] sm:$0xf]
        %v5814 = vld [vmem:[%s5789 + $0x60] sm:$0xf]
        %v5815 = vld [vmem:[%s5789 + $0x64] sm:$0xf]
        %v5816 = vld [vmem:[%s5789 + $0x68] sm:$0xf]
        %v5817 = vld [vmem:[%s5789 + $0x6c] sm:$0xf]
        %v5818 = vld [vmem:[%s5789 + $0x70] sm:$0xf]
        %v5819 = vld [vmem:[%s5789 + $0x74] sm:$0xf]
        %v5820 = vld [vmem:[%s5789 + $0x78] sm:$0xf]
        %v5821 = vld [vmem:[%s5789 + $0x7c] sm:$0xf]
        %v5822 = vld [vmem:[%s5789 + $0x80] sm:$0xf]
        %v5823 = vld [vmem:[%s5789 + $0x84] sm:$0xf]
        %v5824 = vld [vmem:[%s5789 + $0x88] sm:$0xf]
        %v5825 = vld [vmem:[%s5789 + $0x8c] sm:$0xf]
        %v5826 = vld [vmem:[%s5789 + $0x90] sm:$0xf]
        %v5827 = vld [vmem:[%s5789 + $0x94] sm:$0xf]
        %v5828 = vld [vmem:[%s5789 + $0x98] sm:$0xf]
        %v5829 = vld [vmem:[%s5789 + $0x9c] sm:$0xf]
        %v5830 = vld [vmem:[%s5789 + $0xa0] sm:$0xf]
        %v5831 = vld [vmem:[%s5789 + $0xa4] sm:$0xf]
        %v5832 = vld [vmem:[%s5789 + $0xa8] sm:$0xf]
        %v5833 = vld [vmem:[%s5789 + $0xac] sm:$0xf]
        %v5834 = vld [vmem:[%s5789 + $0xb0] sm:$0xf]
        %v5835 = vld [vmem:[%s5789 + $0xb4] sm:$0xf]
        %v5836 = vld [vmem:[%s5789 + $0xb8] sm:$0xf]
        %v5837 = vld [vmem:[%s5789 + $0xbc] sm:$0xf]
        %s5838 = scalar_lea.vmem %s9, 96
        %v5839 = vld [vmem:[%s5838] sm:$0xf]
        %v5840 = vld [vmem:[%s5838 + $0x4] sm:$0xf]
        %v5841 = vld [vmem:[%s5838 + $0x8] sm:$0xf]
        %v5842 = vld [vmem:[%s5838 + $0xc] sm:$0xf]
        %v5891 = vunpack.c.l.b16 %v5790
        %v5892 = vunpack.c.l.b16 %v5791
        %v5893 = vunpack.c.l.b16 %v5792
        %v5894 = vunpack.c.l.b16 %v5793
        %v5895 = vunpack.c.l.b16 %v5794
        %v5896 = vunpack.c.l.b16 %v5795
        %v5897 = vunpack.c.l.b16 %v5796
        %v5898 = vunpack.c.l.b16 %v5797
        %v5899 = vunpack.c.l.b16 %v5798
        %v5900 = vunpack.c.l.b16 %v5799
        %v5901 = vunpack.c.l.b16 %v5800
        %v5902 = vunpack.c.l.b16 %v5801
        %v5903 = vunpack.c.l.b16 %v5802
        %v5904 = vunpack.c.l.b16 %v5803
        %v5905 = vunpack.c.l.b16 %v5804
        %v5906 = vunpack.c.l.b16 %v5805
        %v5907 = vunpack.c.l.b16 %v5806
        %v5908 = vunpack.c.l.b16 %v5807
        %v5909 = vunpack.c.l.b16 %v5808
        %v5910 = vunpack.c.l.b16 %v5809
        %v5911 = vunpack.c.l.b16 %v5810
        %v5912 = vunpack.c.l.b16 %v5811
        %v5913 = vunpack.c.l.b16 %v5812
        %v5914 = vunpack.c.l.b16 %v5813
        %v5915 = vunpack.c.l.b16 %v5814
        %v5916 = vunpack.c.l.b16 %v5815
        %v5917 = vunpack.c.l.b16 %v5816
        %v5918 = vunpack.c.l.b16 %v5817
        %v5919 = vunpack.c.l.b16 %v5818
        %v5920 = vunpack.c.l.b16 %v5819
        %v5921 = vunpack.c.l.b16 %v5820
        %v5922 = vunpack.c.l.b16 %v5821
        %v5923 = vunpack.c.l.b16 %v5822
        %v5924 = vunpack.c.l.b16 %v5823
        %v5925 = vunpack.c.l.b16 %v5824
        %v5926 = vunpack.c.l.b16 %v5825
        %v5927 = vunpack.c.l.b16 %v5826
        %v5928 = vunpack.c.l.b16 %v5827
        %v5929 = vunpack.c.l.b16 %v5828
        %v5930 = vunpack.c.l.b16 %v5829
        %v5931 = vunpack.c.l.b16 %v5830
        %v5932 = vunpack.c.l.b16 %v5831
        %v5933 = vunpack.c.l.b16 %v5832
        %v5934 = vunpack.c.l.b16 %v5833
        %v5935 = vunpack.c.l.b16 %v5834
        %v5936 = vunpack.c.l.b16 %v5835
        %v5937 = vunpack.c.l.b16 %v5836
        %v5938 = vunpack.c.l.b16 %v5837
        %v5939 = vpack.c.b16 %v5892, %v5891
        %v5940 = vpack.c.b16 %v5894, %v5893
        %v5941 = vpack.c.b16 %v5896, %v5895
        %v5942 = vpack.c.b16 %v5898, %v5897
        %v5943 = vpack.c.b16 %v5900, %v5899
        %v5944 = vpack.c.b16 %v5902, %v5901
        %v5945 = vpack.c.b16 %v5904, %v5903
        %v5946 = vpack.c.b16 %v5906, %v5905
        %v5947 = vpack.c.b16 %v5908, %v5907
        %v5948 = vpack.c.b16 %v5910, %v5909
        %v5949 = vpack.c.b16 %v5912, %v5911
        %v5950 = vpack.c.b16 %v5914, %v5913
        %v5951 = vpack.c.b16 %v5916, %v5915
        %v5952 = vpack.c.b16 %v5918, %v5917
        %v5953 = vpack.c.b16 %v5920, %v5919
        %v5954 = vpack.c.b16 %v5922, %v5921
        %v5955 = vpack.c.b16 %v5924, %v5923
        %v5956 = vpack.c.b16 %v5926, %v5925
        %v5957 = vpack.c.b16 %v5928, %v5927
        %v5958 = vpack.c.b16 %v5930, %v5929
        %v5959 = vpack.c.b16 %v5932, %v5931
        %v5960 = vpack.c.b16 %v5934, %v5933
        %v5961 = vpack.c.b16 %v5936, %v5935
        %v5962 = vpack.c.b16 %v5938, %v5937
        %v5967 = vunpack.c.l.b16 %v5839
        %v5968 = vunpack.c.l.b16 %v5840
        %v5969 = vunpack.c.l.b16 %v5841
        %v5970 = vunpack.c.l.b16 %v5842
        %v5971 = vpack.c.b16 %v5968, %v5967
        %v5972 = vpack.c.b16 %v5970, %v5969
        %v5976 = vsel %vm500, %v5939, 0
        %v5979 = vsel %vm500, %v5940, 0
        %v5982 = vsel %vm500, %v5941, 0
        %v5985 = vsel %vm500, %v5942, 0
        %v5988 = vsel %vm500, %v5943, 0
        %v5991 = vsel %vm500, %v5944, 0
        %v5994 = vsel %vm500, %v5945, 0
        %v5997 = vsel %vm500, %v5946, 0
        %v6000 = vsel %vm500, %v5947, 0
        %v6003 = vsel %vm500, %v5948, 0
        %v6006 = vsel %vm500, %v5949, 0
        %v6009 = vsel %vm500, %v5950, 0
        %v6012 = vsel %vm500, %v5951, 0
        %v6015 = vsel %vm500, %v5952, 0
        %v6018 = vsel %vm500, %v5953, 0
        %v6021 = vsel %vm500, %v5954, 0
        %v6024 = vsel %vm500, %v5955, 0
        %v6027 = vsel %vm500, %v5956, 0
        %v6030 = vsel %vm500, %v5957, 0
        %v6033 = vsel %vm500, %v5958, 0
        %v6036 = vsel %vm500, %v5959, 0
        %v6039 = vsel %vm500, %v5960, 0
        %v6042 = vsel %vm500, %v5961, 0
        %v6045 = vsel %vm500, %v5962, 0
        %6047 = vmatpush.bf16.msra.mxu0 0
        %6048 = vmatpush.bf16.msra.mxu0 0
        %6049 = vmatpush.bf16.msra.mxu0 0
        %6050 = vmatpush.bf16.msra.mxu0 0
        %6051 = vmatpush.bf16.msra.mxu0 0
        %6052 = vmatpush.bf16.msra.mxu0 0
        %6053 = vmatpush.bf16.msra.mxu0 %v5972
        %6054 = vmatpush.bf16.msra.mxu0 %v5971
        %6055 = vmatmul.bf16.gmra.mxu0 %v5976
        %v6056 = vpop.f32.mrf.mxu0
        %v6057 = vadd.f32 0.0, %v6056
        %v6058 = vpop.f32.mrf.mxu0
        %v6059 = vadd.f32 0.0, %v6058
        %6060 = vmatmul.bf16.gmra.mxu0 %v5979
        %v6061 = vpop.f32.mrf.mxu0
        %v6062 = vpop.f32.mrf.mxu0
        %v6063 = vadd.f32 0.0, %v6062
        %6064 = vmatmul.bf16.gmra.mxu0 %v5982
        %v6065 = vpop.f32.mrf.mxu0
        %v6066 = vadd.f32 0.0, %v6065
        %v6067 = vpop.f32.mrf.mxu0
        %6068 = vmatmul.bf16.gmra.mxu0 %v5985
        %v6069 = vpop.f32.mrf.mxu0
        %v6070 = vadd.f32 0.0, %v6069
        %v6071 = vpop.f32.mrf.mxu0
        %v6072 = vadd.f32 0.0, %v6071
        %6073 = vmatmul.bf16.gmra.mxu0 %v5988
        %v6074 = vpop.f32.mrf.mxu0
        %v6075 = vpop.f32.mrf.mxu0
        %v6076 = vadd.f32 0.0, %v6075
        %6077 = vmatmul.bf16.gmra.mxu0 %v5991
        %v6078 = vpop.f32.mrf.mxu0
        %v6079 = vadd.f32 0.0, %v6078
        %v6080 = vpop.f32.mrf.mxu0
        %6081 = vmatmul.bf16.gmra.mxu0 %v5994
        %v6082 = vpop.f32.mrf.mxu0
        %v6083 = vadd.f32 0.0, %v6082
        %v6084 = vpop.f32.mrf.mxu0
        %v6085 = vadd.f32 0.0, %v6084
        %6086 = vmatmul.bf16.gmra.mxu0 %v5997
        %v6087 = vpop.f32.mrf.mxu0
        %v6088 = vpop.f32.mrf.mxu0
        %v6089 = vadd.f32 0.0, %v6088
        %6090 = vmatmul.bf16.gmra.mxu0 %v6000
        %v6091 = vpop.f32.mrf.mxu0
        %v6092 = vadd.f32 0.0, %v6091
        %v6093 = vpop.f32.mrf.mxu0
        %6094 = vmatmul.bf16.gmra.mxu0 %v6003
        %v6095 = vpop.f32.mrf.mxu0
        %v6096 = vadd.f32 0.0, %v6095
        %v6097 = vpop.f32.mrf.mxu0
        %v6098 = vadd.f32 0.0, %v6097
        %6099 = vmatmul.bf16.gmra.mxu0 %v6006
        %v6100 = vpop.f32.mrf.mxu0
        %v6101 = vpop.f32.mrf.mxu0
        %v6102 = vadd.f32 0.0, %v6101
        %6103 = vmatmul.bf16.gmra.mxu0 %v6009
        %v6104 = vpop.f32.mrf.mxu0
        %v6105 = vadd.f32 0.0, %v6104
        %v6106 = vpop.f32.mrf.mxu0
        %6107 = vmatmul.bf16.gmra.mxu0 %v6012
        %v6108 = vpop.f32.mrf.mxu0
        %v6109 = vadd.f32 0.0, %v6108
        %v6110 = vpop.f32.mrf.mxu0
        %v6111 = vadd.f32 0.0, %v6110
        %6112 = vmatmul.bf16.gmra.mxu0 %v6015
        %v6113 = vpop.f32.mrf.mxu0
        %v6114 = vpop.f32.mrf.mxu0
        %v6115 = vadd.f32 0.0, %v6114
        %6116 = vmatmul.bf16.gmra.mxu0 %v6018
        %v6117 = vpop.f32.mrf.mxu0
        %v6118 = vadd.f32 0.0, %v6117
        %v6119 = vpop.f32.mrf.mxu0
        %6120 = vmatmul.bf16.gmra.mxu0 %v6021
        %v6121 = vpop.f32.mrf.mxu0
        %v6122 = vadd.f32 0.0, %v6121
        %v6123 = vpop.f32.mrf.mxu0
        %v6124 = vadd.f32 0.0, %v6123
        %6125 = vmatmul.bf16.gmra.mxu0 %v6024
        %v6126 = vpop.f32.mrf.mxu0
        %v6127 = vpop.f32.mrf.mxu0
        %v6128 = vadd.f32 0.0, %v6127
        %6129 = vmatmul.bf16.gmra.mxu0 %v6027
        %v6130 = vpop.f32.mrf.mxu0
        %v6131 = vadd.f32 0.0, %v6130
        %v6132 = vpop.f32.mrf.mxu0
        %6133 = vmatmul.bf16.gmra.mxu0 %v6030
        %v6134 = vpop.f32.mrf.mxu0
        %v6135 = vadd.f32 0.0, %v6134
        %v6136 = vpop.f32.mrf.mxu0
        %v6137 = vadd.f32 0.0, %v6136
        %6138 = vmatmul.bf16.gmra.mxu0 %v6033
        %v6139 = vpop.f32.mrf.mxu0
        %v6140 = vpop.f32.mrf.mxu0
        %v6141 = vadd.f32 0.0, %v6140
        %6142 = vmatmul.bf16.gmra.mxu0 %v6036
        %v6143 = vpop.f32.mrf.mxu0
        %v6144 = vadd.f32 0.0, %v6143
        %v6145 = vpop.f32.mrf.mxu0
        %6146 = vmatmul.bf16.gmra.mxu0 %v6039
        %v6147 = vpop.f32.mrf.mxu0
        %v6148 = vadd.f32 0.0, %v6147
        %v6149 = vpop.f32.mrf.mxu0
        %v6150 = vadd.f32 0.0, %v6149
        %6151 = vmatmul.bf16.gmra.mxu0 %v6042
        %v6152 = vpop.f32.mrf.mxu0
        %v6153 = vpop.f32.mrf.mxu0
        %v6154 = vadd.f32 0.0, %v6153
        %6155 = vmatmul.bf16.gmra.mxu0 %v6045
        %v6156 = vpop.f32.mrf.mxu0
        %v6157 = vadd.f32 0.0, %v6156
        %v6158 = vpop.f32.mrf.mxu0
        %6159 = vdwg.mxu0
        %v6160 = vadd.f32 %v5686, %v6057
        %v6161 = vadd.f32 %v5688, %v6059
        %v6162 = vadd.f32 %v5692, %v6063
        %v6163 = vadd.f32 %v5695, %v6066
        %v6164 = vadd.f32 %v5699, %v6070
        %v6165 = vadd.f32 %v5701, %v6072
        %v6166 = vadd.f32 %v5705, %v6076
        %v6167 = vadd.f32 %v5708, %v6079
        %v6168 = vadd.f32 %v5712, %v6083
        %v6169 = vadd.f32 %v5714, %v6085
        %v6170 = vadd.f32 %v5718, %v6089
        %v6171 = vadd.f32 %v5721, %v6092
        %v6172 = vadd.f32 %v5725, %v6096
        %v6173 = vadd.f32 %v5727, %v6098
        %v6174 = vadd.f32 %v5731, %v6102
        %v6175 = vadd.f32 %v5734, %v6105
        %v6176 = vadd.f32 %v5738, %v6109
        %v6177 = vadd.f32 %v5740, %v6111
        %v6178 = vadd.f32 %v5744, %v6115
        %v6179 = vadd.f32 %v5747, %v6118
        %v6180 = vadd.f32 %v5751, %v6122
        %v6181 = vadd.f32 %v5753, %v6124
        %v6182 = vadd.f32 %v5757, %v6128
        %v6183 = vadd.f32 %v5760, %v6131
        %v6184 = vadd.f32 %v5764, %v6135
        %v6185 = vadd.f32 %v5766, %v6137
        %v6186 = vadd.f32 %v5770, %v6141
        %v6187 = vadd.f32 %v5773, %v6144
        %v6188 = vadd.f32 %v5777, %v6148
        %v6189 = vadd.f32 %v5779, %v6150
        %v6190 = vadd.f32 %v5783, %v6154
        %v6191 = vadd.f32 %v5786, %v6157
        %s6192 = scalar_lea.vmem %s9, 16
        %v6193 = vld [vmem:[%s6192] sm:$0xf]
        %v6194 = vld [vmem:[%s6192 + $0x4] sm:$0xf]
        %v6195 = vld [vmem:[%s6192 + $0x8] sm:$0xf]
        %v6196 = vld [vmem:[%s6192 + $0xc] sm:$0xf]
        %s6197 = scalar_lea.vmem %s9, 64
        %v6198 = vld [vmem:[%s6197] sm:$0xf]
        %v6199 = vld [vmem:[%s6197 + $0x4] sm:$0xf]
        %v6200 = vld [vmem:[%s6197 + $0x8] sm:$0xf]
        %v6201 = vld [vmem:[%s6197 + $0xc] sm:$0xf]
        %v6206 = vunpack.c.l.b16 %v6198
        %v6207 = vunpack.c.l.b16 %v6199
        %v6208 = vunpack.c.l.b16 %v6200
        %v6209 = vunpack.c.l.b16 %v6201
        %v6210 = vpack.c.b16 %v6207, %v6206
        %v6211 = vpack.c.b16 %v6209, %v6208
        %6214 = vmatpush.bf16.msra.mxu0 0
        %6215 = vmatpush.bf16.msra.mxu0 0
        %6216 = vmatpush.bf16.msra.mxu0 0
        %6217 = vmatpush.bf16.msra.mxu0 0
        %6218 = vmatpush.bf16.msra.mxu0 0
        %6219 = vmatpush.bf16.msra.mxu0 0
        %6220 = vmatpush.bf16.msra.mxu0 %v6211
        %6221 = vmatpush.bf16.msra.mxu0 %v6210
        %6222 = vmatmul.bf16.gmra.mxu0 %v5288
        %v6223 = vpop.f32.mrf.mxu0
        %v6224 = vadd.f32 0.0, %v6223
        %v6225 = vpop.f32.mrf.mxu0
        %v6226 = vadd.f32 0.0, %v6225
        %6227 = vmatmul.bf16.gmra.mxu0 %v5291
        %v6228 = vpop.f32.mrf.mxu0
        %v6229 = vadd.f32 0.0, %v6228
        %v6230 = vpop.f32.mrf.mxu0
        %v6231 = vadd.f32 0.0, %v6230
        %6232 = vmatmul.bf16.gmra.mxu0 %v5294
        %v6233 = vpop.f32.mrf.mxu0
        %v6234 = vadd.f32 0.0, %v6233
        %v6235 = vpop.f32.mrf.mxu0
        %v6236 = vadd.f32 0.0, %v6235
        %6237 = vmatmul.bf16.gmra.mxu0 %v5297
        %v6238 = vpop.f32.mrf.mxu0
        %v6239 = vadd.f32 0.0, %v6238
        %v6240 = vpop.f32.mrf.mxu0
        %v6241 = vadd.f32 0.0, %v6240
        %6242 = vmatmul.bf16.gmra.mxu0 %v5300
        %v6243 = vpop.f32.mrf.mxu0
        %v6244 = vadd.f32 0.0, %v6243
        %v6245 = vpop.f32.mrf.mxu0
        %v6246 = vadd.f32 0.0, %v6245
        %6247 = vmatmul.bf16.gmra.mxu0 %v5303
        %v6248 = vpop.f32.mrf.mxu0
        %v6249 = vadd.f32 0.0, %v6248
        %v6250 = vpop.f32.mrf.mxu0
        %v6251 = vadd.f32 0.0, %v6250
        %6252 = vmatmul.bf16.gmra.mxu0 %v5306
        %v6253 = vpop.f32.mrf.mxu0
        %v6254 = vadd.f32 0.0, %v6253
        %v6255 = vpop.f32.mrf.mxu0
        %v6256 = vadd.f32 0.0, %v6255
        %6257 = vmatmul.bf16.gmra.mxu0 %v5309
        %v6258 = vpop.f32.mrf.mxu0
        %v6259 = vadd.f32 0.0, %v6258
        %v6260 = vpop.f32.mrf.mxu0
        %v6261 = vadd.f32 0.0, %v6260
        %6262 = vmatmul.bf16.gmra.mxu0 %v5312
        %v6263 = vpop.f32.mrf.mxu0
        %v6264 = vadd.f32 0.0, %v6263
        %v6265 = vpop.f32.mrf.mxu0
        %v6266 = vadd.f32 0.0, %v6265
        %6267 = vmatmul.bf16.gmra.mxu0 %v5315
        %v6268 = vpop.f32.mrf.mxu0
        %v6269 = vadd.f32 0.0, %v6268
        %v6270 = vpop.f32.mrf.mxu0
        %v6271 = vadd.f32 0.0, %v6270
        %6272 = vmatmul.bf16.gmra.mxu0 %v5318
        %v6273 = vpop.f32.mrf.mxu0
        %v6274 = vadd.f32 0.0, %v6273
        %v6275 = vpop.f32.mrf.mxu0
        %v6276 = vadd.f32 0.0, %v6275
        %6277 = vmatmul.bf16.gmra.mxu0 %v5321
        %v6278 = vpop.f32.mrf.mxu0
        %v6279 = vadd.f32 0.0, %v6278
        %v6280 = vpop.f32.mrf.mxu0
        %v6281 = vadd.f32 0.0, %v6280
        %6282 = vmatmul.bf16.gmra.mxu0 %v5324
        %v6283 = vpop.f32.mrf.mxu0
        %v6284 = vadd.f32 0.0, %v6283
        %v6285 = vpop.f32.mrf.mxu0
        %v6286 = vadd.f32 0.0, %v6285
        %6287 = vmatmul.bf16.gmra.mxu0 %v5327
        %v6288 = vpop.f32.mrf.mxu0
        %v6289 = vadd.f32 0.0, %v6288
        %v6290 = vpop.f32.mrf.mxu0
        %v6291 = vadd.f32 0.0, %v6290
        %6292 = vmatmul.bf16.gmra.mxu0 %v5330
        %v6293 = vpop.f32.mrf.mxu0
        %v6294 = vadd.f32 0.0, %v6293
        %v6295 = vpop.f32.mrf.mxu0
        %v6296 = vadd.f32 0.0, %v6295
        %6297 = vmatmul.bf16.gmra.mxu0 %v5333
        %v6298 = vpop.f32.mrf.mxu0
        %v6299 = vadd.f32 0.0, %v6298
        %v6300 = vpop.f32.mrf.mxu0
        %v6301 = vadd.f32 0.0, %v6300
        %6302 = vmatmul.bf16.gmra.mxu0 %v5336
        %v6303 = vpop.f32.mrf.mxu0
        %v6304 = vadd.f32 0.0, %v6303
        %v6305 = vpop.f32.mrf.mxu0
        %v6306 = vadd.f32 0.0, %v6305
        %6307 = vmatmul.bf16.gmra.mxu0 %v5339
        %v6308 = vpop.f32.mrf.mxu0
        %v6309 = vadd.f32 0.0, %v6308
        %v6310 = vpop.f32.mrf.mxu0
        %v6311 = vadd.f32 0.0, %v6310
        %6312 = vmatmul.bf16.gmra.mxu0 %v5342
        %v6313 = vpop.f32.mrf.mxu0
        %v6314 = vadd.f32 0.0, %v6313
        %v6315 = vpop.f32.mrf.mxu0
        %v6316 = vadd.f32 0.0, %v6315
        %6317 = vmatmul.bf16.gmra.mxu0 %v5345
        %v6318 = vpop.f32.mrf.mxu0
        %v6319 = vadd.f32 0.0, %v6318
        %v6320 = vpop.f32.mrf.mxu0
        %v6321 = vadd.f32 0.0, %v6320
        %6322 = vmatmul.bf16.gmra.mxu0 %v5348
        %v6323 = vpop.f32.mrf.mxu0
        %v6324 = vadd.f32 0.0, %v6323
        %v6325 = vpop.f32.mrf.mxu0
        %v6326 = vadd.f32 0.0, %v6325
        %6327 = vmatmul.bf16.gmra.mxu0 %v5351
        %v6328 = vpop.f32.mrf.mxu0
        %v6329 = vadd.f32 0.0, %v6328
        %v6330 = vpop.f32.mrf.mxu0
        %v6331 = vadd.f32 0.0, %v6330
        %6332 = vmatmul.bf16.gmra.mxu0 %v5354
        %v6333 = vpop.f32.mrf.mxu0
        %v6334 = vadd.f32 0.0, %v6333
        %v6335 = vpop.f32.mrf.mxu0
        %v6336 = vadd.f32 0.0, %v6335
        %6337 = vmatmul.bf16.gmra.mxu0 %v5357
        %v6338 = vpop.f32.mrf.mxu0
        %v6339 = vadd.f32 0.0, %v6338
        %v6340 = vpop.f32.mrf.mxu0
        %v6341 = vadd.f32 0.0, %v6340
        %6342 = vdwg.mxu0
        %v6347 = vunpack.c.l.b16 %v6193
        %v6348 = vunpack.c.l.b16 %v6194
        %v6349 = vunpack.c.l.b16 %v6195
        %v6350 = vunpack.c.l.b16 %v6196
        %v6351 = vpack.c.b16 %v6348, %v6347
        %v6352 = vpack.c.b16 %v6350, %v6349
        %6355 = vmatpush.bf16.msra.mxu0 0
        %6356 = vmatpush.bf16.msra.mxu0 0
        %6357 = vmatpush.bf16.msra.mxu0 0
        %6358 = vmatpush.bf16.msra.mxu0 0
        %6359 = vmatpush.bf16.msra.mxu0 0
        %6360 = vmatpush.bf16.msra.mxu0 0
        %6361 = vmatpush.bf16.msra.mxu0 %v6352
        %6362 = vmatpush.bf16.msra.mxu0 %v6351
        %6363 = vmatmul.bf16.gmra.mxu0 %v5605
        %v6364 = vpop.f32.mrf.mxu0
        %v6365 = vadd.f32 %v6224, %v6364
        %v6366 = vpop.f32.mrf.mxu0
        %v6367 = vadd.f32 %v6226, %v6366
        %6368 = vmatmul.bf16.gmra.mxu0 %v5608
        %v6369 = vpop.f32.mrf.mxu0
        %v6370 = vadd.f32 %v6229, %v6369
        %v6371 = vpop.f32.mrf.mxu0
        %v6372 = vadd.f32 %v6231, %v6371
        %6373 = vmatmul.bf16.gmra.mxu0 %v5611
        %v6374 = vpop.f32.mrf.mxu0
        %v6375 = vadd.f32 %v6234, %v6374
        %v6376 = vpop.f32.mrf.mxu0
        %v6377 = vadd.f32 %v6236, %v6376
        %6378 = vmatmul.bf16.gmra.mxu0 %v5614
        %v6379 = vpop.f32.mrf.mxu0
        %v6380 = vadd.f32 %v6239, %v6379
        %v6381 = vpop.f32.mrf.mxu0
        %v6382 = vadd.f32 %v6241, %v6381
        %6383 = vmatmul.bf16.gmra.mxu0 %v5617
        %v6384 = vpop.f32.mrf.mxu0
        %v6385 = vadd.f32 %v6244, %v6384
        %v6386 = vpop.f32.mrf.mxu0
        %v6387 = vadd.f32 %v6246, %v6386
        %6388 = vmatmul.bf16.gmra.mxu0 %v5620
        %v6389 = vpop.f32.mrf.mxu0
        %v6390 = vadd.f32 %v6249, %v6389
        %v6391 = vpop.f32.mrf.mxu0
        %v6392 = vadd.f32 %v6251, %v6391
        %6393 = vmatmul.bf16.gmra.mxu0 %v5623
        %v6394 = vpop.f32.mrf.mxu0
        %v6395 = vadd.f32 %v6254, %v6394
        %v6396 = vpop.f32.mrf.mxu0
        %v6397 = vadd.f32 %v6256, %v6396
        %6398 = vmatmul.bf16.gmra.mxu0 %v5626
        %v6399 = vpop.f32.mrf.mxu0
        %v6400 = vadd.f32 %v6259, %v6399
        %v6401 = vpop.f32.mrf.mxu0
        %v6402 = vadd.f32 %v6261, %v6401
        %6403 = vmatmul.bf16.gmra.mxu0 %v5629
        %v6404 = vpop.f32.mrf.mxu0
        %v6405 = vadd.f32 %v6264, %v6404
        %v6406 = vpop.f32.mrf.mxu0
        %v6407 = vadd.f32 %v6266, %v6406
        %6408 = vmatmul.bf16.gmra.mxu0 %v5632
        %v6409 = vpop.f32.mrf.mxu0
        %v6410 = vadd.f32 %v6269, %v6409
        %v6411 = vpop.f32.mrf.mxu0
        %v6412 = vadd.f32 %v6271, %v6411
        %6413 = vmatmul.bf16.gmra.mxu0 %v5635
        %v6414 = vpop.f32.mrf.mxu0
        %v6415 = vadd.f32 %v6274, %v6414
        %v6416 = vpop.f32.mrf.mxu0
        %v6417 = vadd.f32 %v6276, %v6416
        %6418 = vmatmul.bf16.gmra.mxu0 %v5638
        %v6419 = vpop.f32.mrf.mxu0
        %v6420 = vadd.f32 %v6279, %v6419
        %v6421 = vpop.f32.mrf.mxu0
        %v6422 = vadd.f32 %v6281, %v6421
        %6423 = vmatmul.bf16.gmra.mxu0 %v5641
        %v6424 = vpop.f32.mrf.mxu0
        %v6425 = vadd.f32 %v6284, %v6424
        %v6426 = vpop.f32.mrf.mxu0
        %v6427 = vadd.f32 %v6286, %v6426
        %6428 = vmatmul.bf16.gmra.mxu0 %v5644
        %v6429 = vpop.f32.mrf.mxu0
        %v6430 = vadd.f32 %v6289, %v6429
        %v6431 = vpop.f32.mrf.mxu0
        %v6432 = vadd.f32 %v6291, %v6431
        %6433 = vmatmul.bf16.gmra.mxu0 %v5647
        %v6434 = vpop.f32.mrf.mxu0
        %v6435 = vadd.f32 %v6294, %v6434
        %v6436 = vpop.f32.mrf.mxu0
        %v6437 = vadd.f32 %v6296, %v6436
        %6438 = vmatmul.bf16.gmra.mxu0 %v5650
        %v6439 = vpop.f32.mrf.mxu0
        %v6440 = vadd.f32 %v6299, %v6439
        %v6441 = vpop.f32.mrf.mxu0
        %v6442 = vadd.f32 %v6301, %v6441
        %6443 = vmatmul.bf16.gmra.mxu0 %v5653
        %v6444 = vpop.f32.mrf.mxu0
        %v6445 = vadd.f32 %v6304, %v6444
        %v6446 = vpop.f32.mrf.mxu0
        %v6447 = vadd.f32 %v6306, %v6446
        %6448 = vmatmul.bf16.gmra.mxu0 %v5656
        %v6449 = vpop.f32.mrf.mxu0
        %v6450 = vadd.f32 %v6309, %v6449
        %v6451 = vpop.f32.mrf.mxu0
        %v6452 = vadd.f32 %v6311, %v6451
        %6453 = vmatmul.bf16.gmra.mxu0 %v5659
        %v6454 = vpop.f32.mrf.mxu0
        %v6455 = vadd.f32 %v6314, %v6454
        %v6456 = vpop.f32.mrf.mxu0
        %v6457 = vadd.f32 %v6316, %v6456
        %6458 = vmatmul.bf16.gmra.mxu0 %v5662
        %v6459 = vpop.f32.mrf.mxu0
        %v6460 = vadd.f32 %v6319, %v6459
        %v6461 = vpop.f32.mrf.mxu0
        %v6462 = vadd.f32 %v6321, %v6461
        %6463 = vmatmul.bf16.gmra.mxu0 %v5665
        %v6464 = vpop.f32.mrf.mxu0
        %v6465 = vadd.f32 %v6324, %v6464
        %v6466 = vpop.f32.mrf.mxu0
        %v6467 = vadd.f32 %v6326, %v6466
        %6468 = vmatmul.bf16.gmra.mxu0 %v5668
        %v6469 = vpop.f32.mrf.mxu0
        %v6470 = vadd.f32 %v6329, %v6469
        %v6471 = vpop.f32.mrf.mxu0
        %v6472 = vadd.f32 %v6331, %v6471
        %6473 = vmatmul.bf16.gmra.mxu0 %v5671
        %v6474 = vpop.f32.mrf.mxu0
        %v6475 = vadd.f32 %v6334, %v6474
        %v6476 = vpop.f32.mrf.mxu0
        %v6477 = vadd.f32 %v6336, %v6476
        %6478 = vmatmul.bf16.gmra.mxu0 %v5674
        %v6479 = vpop.f32.mrf.mxu0
        %v6480 = vadd.f32 %v6339, %v6479
        %v6481 = vpop.f32.mrf.mxu0
        %v6482 = vadd.f32 %v6341, %v6481
        %6483 = vdwg.mxu0
        %s6484 = scalar_lea.vmem %s9, 112
        %v6485 = vld [vmem:[%s6484] sm:$0xf]
        %v6486 = vld [vmem:[%s6484 + $0x4] sm:$0xf]
        %v6487 = vld [vmem:[%s6484 + $0x8] sm:$0xf]
        %v6488 = vld [vmem:[%s6484 + $0xc] sm:$0xf]
        %v6493 = vunpack.c.l.b16 %v6485
        %v6494 = vunpack.c.l.b16 %v6486
        %v6495 = vunpack.c.l.b16 %v6487
        %v6496 = vunpack.c.l.b16 %v6488
        %v6497 = vpack.c.b16 %v6494, %v6493
        %v6498 = vpack.c.b16 %v6496, %v6495
        %6501 = vmatpush.bf16.msra.mxu0 0
        %6502 = vmatpush.bf16.msra.mxu0 0
        %6503 = vmatpush.bf16.msra.mxu0 0
        %6504 = vmatpush.bf16.msra.mxu0 0
        %6505 = vmatpush.bf16.msra.mxu0 0
        %6506 = vmatpush.bf16.msra.mxu0 0
        %6507 = vmatpush.bf16.msra.mxu0 %v6498
        %6508 = vmatpush.bf16.msra.mxu0 %v6497
        %6509 = vmatmul.bf16.gmra.mxu0 %v5976
        %v6510 = vpop.f32.mrf.mxu0
        %v6511 = vadd.f32 0.0, %v6510
        %v6512 = vpop.f32.mrf.mxu0
        %v6513 = vadd.f32 0.0, %v6512
        %6514 = vmatmul.bf16.gmra.mxu0 %v5979
        %v6515 = vpop.f32.mrf.mxu0
        %v6516 = vadd.f32 0.0, %v6515
        %v6517 = vpop.f32.mrf.mxu0
        %v6518 = vadd.f32 0.0, %v6517
        %6519 = vmatmul.bf16.gmra.mxu0 %v5982
        %v6520 = vpop.f32.mrf.mxu0
        %v6521 = vadd.f32 0.0, %v6520
        %v6522 = vpop.f32.mrf.mxu0
        %v6523 = vadd.f32 0.0, %v6522
        %6524 = vmatmul.bf16.gmra.mxu0 %v5985
        %v6525 = vpop.f32.mrf.mxu0
        %v6526 = vadd.f32 0.0, %v6525
        %v6527 = vpop.f32.mrf.mxu0
        %v6528 = vadd.f32 0.0, %v6527
        %6529 = vmatmul.bf16.gmra.mxu0 %v5988
        %v6530 = vpop.f32.mrf.mxu0
        %v6531 = vadd.f32 0.0, %v6530
        %v6532 = vpop.f32.mrf.mxu0
        %v6533 = vadd.f32 0.0, %v6532
        %6534 = vmatmul.bf16.gmra.mxu0 %v5991
        %v6535 = vpop.f32.mrf.mxu0
        %v6536 = vadd.f32 0.0, %v6535
        %v6537 = vpop.f32.mrf.mxu0
        %v6538 = vadd.f32 0.0, %v6537
        %6539 = vmatmul.bf16.gmra.mxu0 %v5994
        %v6540 = vpop.f32.mrf.mxu0
        %v6541 = vadd.f32 0.0, %v6540
        %v6542 = vpop.f32.mrf.mxu0
        %v6543 = vadd.f32 0.0, %v6542
        %6544 = vmatmul.bf16.gmra.mxu0 %v5997
        %v6545 = vpop.f32.mrf.mxu0
        %v6546 = vadd.f32 0.0, %v6545
        %v6547 = vpop.f32.mrf.mxu0
        %v6548 = vadd.f32 0.0, %v6547
        %6549 = vmatmul.bf16.gmra.mxu0 %v6000
        %v6550 = vpop.f32.mrf.mxu0
        %v6551 = vadd.f32 0.0, %v6550
        %v6552 = vpop.f32.mrf.mxu0
        %v6553 = vadd.f32 0.0, %v6552
        %6554 = vmatmul.bf16.gmra.mxu0 %v6003
        %v6555 = vpop.f32.mrf.mxu0
        %v6556 = vadd.f32 0.0, %v6555
        %v6557 = vpop.f32.mrf.mxu0
        %v6558 = vadd.f32 0.0, %v6557
        %6559 = vmatmul.bf16.gmra.mxu0 %v6006
        %v6560 = vpop.f32.mrf.mxu0
        %v6561 = vadd.f32 0.0, %v6560
        %v6562 = vpop.f32.mrf.mxu0
        %v6563 = vadd.f32 0.0, %v6562
        %6564 = vmatmul.bf16.gmra.mxu0 %v6009
        %v6565 = vpop.f32.mrf.mxu0
        %v6566 = vadd.f32 0.0, %v6565
        %v6567 = vpop.f32.mrf.mxu0
        %v6568 = vadd.f32 0.0, %v6567
        %6569 = vmatmul.bf16.gmra.mxu0 %v6012
        %v6570 = vpop.f32.mrf.mxu0
        %v6571 = vadd.f32 0.0, %v6570
        %v6572 = vpop.f32.mrf.mxu0
        %v6573 = vadd.f32 0.0, %v6572
        %6574 = vmatmul.bf16.gmra.mxu0 %v6015
        %v6575 = vpop.f32.mrf.mxu0
        %v6576 = vadd.f32 0.0, %v6575
        %v6577 = vpop.f32.mrf.mxu0
        %v6578 = vadd.f32 0.0, %v6577
        %6579 = vmatmul.bf16.gmra.mxu0 %v6018
        %v6580 = vpop.f32.mrf.mxu0
        %v6581 = vadd.f32 0.0, %v6580
        %v6582 = vpop.f32.mrf.mxu0
        %v6583 = vadd.f32 0.0, %v6582
        %6584 = vmatmul.bf16.gmra.mxu0 %v6021
        %v6585 = vpop.f32.mrf.mxu0
        %v6586 = vadd.f32 0.0, %v6585
        %v6587 = vpop.f32.mrf.mxu0
        %v6588 = vadd.f32 0.0, %v6587
        %6589 = vmatmul.bf16.gmra.mxu0 %v6024
        %v6590 = vpop.f32.mrf.mxu0
        %v6591 = vadd.f32 0.0, %v6590
        %v6592 = vpop.f32.mrf.mxu0
        %v6593 = vadd.f32 0.0, %v6592
        %6594 = vmatmul.bf16.gmra.mxu0 %v6027
        %v6595 = vpop.f32.mrf.mxu0
        %v6596 = vadd.f32 0.0, %v6595
        %v6597 = vpop.f32.mrf.mxu0
        %v6598 = vadd.f32 0.0, %v6597
        %6599 = vmatmul.bf16.gmra.mxu0 %v6030
        %v6600 = vpop.f32.mrf.mxu0
        %v6601 = vadd.f32 0.0, %v6600
        %v6602 = vpop.f32.mrf.mxu0
        %v6603 = vadd.f32 0.0, %v6602
        %6604 = vmatmul.bf16.gmra.mxu0 %v6033
        %v6605 = vpop.f32.mrf.mxu0
        %v6606 = vadd.f32 0.0, %v6605
        %v6607 = vpop.f32.mrf.mxu0
        %v6608 = vadd.f32 0.0, %v6607
        %6609 = vmatmul.bf16.gmra.mxu0 %v6036
        %v6610 = vpop.f32.mrf.mxu0
        %v6611 = vadd.f32 0.0, %v6610
        %v6612 = vpop.f32.mrf.mxu0
        %v6613 = vadd.f32 0.0, %v6612
        %6614 = vmatmul.bf16.gmra.mxu0 %v6039
        %v6615 = vpop.f32.mrf.mxu0
        %v6616 = vadd.f32 0.0, %v6615
        %v6617 = vpop.f32.mrf.mxu0
        %v6618 = vadd.f32 0.0, %v6617
        %6619 = vmatmul.bf16.gmra.mxu0 %v6042
        %v6620 = vpop.f32.mrf.mxu0
        %v6621 = vadd.f32 0.0, %v6620
        %v6622 = vpop.f32.mrf.mxu0
        %v6623 = vadd.f32 0.0, %v6622
        %6624 = vmatmul.bf16.gmra.mxu0 %v6045
        %v6625 = vpop.f32.mrf.mxu0
        %v6626 = vadd.f32 0.0, %v6625
        %v6627 = vpop.f32.mrf.mxu0
        %v6628 = vadd.f32 0.0, %v6627
        %6629 = vdwg.mxu0
        %v6630 = vadd.f32 %v6365, %v6511
        %v6631 = vadd.f32 %v6367, %v6513
        %v6632 = vadd.f32 %v6370, %v6516
        %v6633 = vadd.f32 %v6372, %v6518
        %v6634 = vadd.f32 %v6375, %v6521
        %v6635 = vadd.f32 %v6377, %v6523
        %v6636 = vadd.f32 %v6380, %v6526
        %v6637 = vadd.f32 %v6382, %v6528
        %v6638 = vadd.f32 %v6385, %v6531
        %v6639 = vadd.f32 %v6387, %v6533
        %v6640 = vadd.f32 %v6390, %v6536
        %v6641 = vadd.f32 %v6392, %v6538
        %v6642 = vadd.f32 %v6395, %v6541
        %v6643 = vadd.f32 %v6397, %v6543
        %v6644 = vadd.f32 %v6400, %v6546
        %v6645 = vadd.f32 %v6402, %v6548
        %v6646 = vadd.f32 %v6405, %v6551
        %v6647 = vadd.f32 %v6407, %v6553
        %v6648 = vadd.f32 %v6410, %v6556
        %v6649 = vadd.f32 %v6412, %v6558
        %v6650 = vadd.f32 %v6415, %v6561
        %v6651 = vadd.f32 %v6417, %v6563
        %v6652 = vadd.f32 %v6420, %v6566
        %v6653 = vadd.f32 %v6422, %v6568
        %v6654 = vadd.f32 %v6425, %v6571
        %v6655 = vadd.f32 %v6427, %v6573
        %v6656 = vadd.f32 %v6430, %v6576
        %v6657 = vadd.f32 %v6432, %v6578
        %v6658 = vadd.f32 %v6435, %v6581
        %v6659 = vadd.f32 %v6437, %v6583
        %v6660 = vadd.f32 %v6440, %v6586
        %v6661 = vadd.f32 %v6442, %v6588
        %v6662 = vadd.f32 %v6445, %v6591
        %v6663 = vadd.f32 %v6447, %v6593
        %v6664 = vadd.f32 %v6450, %v6596
        %v6665 = vadd.f32 %v6452, %v6598
        %v6666 = vadd.f32 %v6455, %v6601
        %v6667 = vadd.f32 %v6457, %v6603
        %v6668 = vadd.f32 %v6460, %v6606
        %v6669 = vadd.f32 %v6462, %v6608
        %v6670 = vadd.f32 %v6465, %v6611
        %v6671 = vadd.f32 %v6467, %v6613
        %v6672 = vadd.f32 %v6470, %v6616
        %v6673 = vadd.f32 %v6472, %v6618
        %v6674 = vadd.f32 %v6475, %v6621
        %v6675 = vadd.f32 %v6477, %v6623
        %v6676 = vadd.f32 %v6480, %v6626
        %v6677 = vadd.f32 %v6482, %v6628
        %vm6726 = vcmask 1046528
        %v6727 = vrot.slane %v6630, 1
        %v6728 = vrot.slane %v6631, 1
        %v6729 = vsel %vm6726, %v6727, %v6728
        %v6730 = vrot.slane %v6632, 1
        %v6731 = vsel %vm6726, %v6728, %v6730
        %v6732 = vrot.slane %v6633, 1
        %v6733 = vrot.slane %v6634, 1
        %v6734 = vsel %vm6726, %v6732, %v6733
        %v6735 = vrot.slane %v6635, 1
        %v6736 = vsel %vm6726, %v6733, %v6735
        %v6737 = vrot.slane %v6636, 1
        %v6738 = vrot.slane %v6637, 1
        %v6739 = vsel %vm6726, %v6737, %v6738
        %v6740 = vrot.slane %v6638, 1
        %v6741 = vsel %vm6726, %v6738, %v6740
        %v6742 = vrot.slane %v6639, 1
        %v6743 = vrot.slane %v6640, 1
        %v6744 = vsel %vm6726, %v6742, %v6743
        %v6745 = vrot.slane %v6641, 1
        %v6746 = vsel %vm6726, %v6743, %v6745
        %v6747 = vrot.slane %v6642, 1
        %v6748 = vrot.slane %v6643, 1
        %v6749 = vsel %vm6726, %v6747, %v6748
        %v6750 = vrot.slane %v6644, 1
        %v6751 = vsel %vm6726, %v6748, %v6750
        %v6752 = vrot.slane %v6645, 1
        %v6753 = vrot.slane %v6646, 1
        %v6754 = vsel %vm6726, %v6752, %v6753
        %v6755 = vrot.slane %v6647, 1
        %v6756 = vsel %vm6726, %v6753, %v6755
        %v6757 = vrot.slane %v6648, 1
        %v6758 = vrot.slane %v6649, 1
        %v6759 = vsel %vm6726, %v6757, %v6758
        %v6760 = vrot.slane %v6650, 1
        %v6761 = vsel %vm6726, %v6758, %v6760
        %v6762 = vrot.slane %v6651, 1
        %v6763 = vrot.slane %v6652, 1
        %v6764 = vsel %vm6726, %v6762, %v6763
        %v6765 = vrot.slane %v6653, 1
        %v6766 = vsel %vm6726, %v6763, %v6765
        %v6767 = vrot.slane %v6654, 1
        %v6768 = vrot.slane %v6655, 1
        %v6769 = vsel %vm6726, %v6767, %v6768
        %v6770 = vrot.slane %v6656, 1
        %v6771 = vsel %vm6726, %v6768, %v6770
        %v6772 = vrot.slane %v6657, 1
        %v6773 = vrot.slane %v6658, 1
        %v6774 = vsel %vm6726, %v6772, %v6773
        %v6775 = vrot.slane %v6659, 1
        %v6776 = vsel %vm6726, %v6773, %v6775
        %v6777 = vrot.slane %v6660, 1
        %v6778 = vrot.slane %v6661, 1
        %v6779 = vsel %vm6726, %v6777, %v6778
        %v6780 = vrot.slane %v6662, 1
        %v6781 = vsel %vm6726, %v6778, %v6780
        %v6782 = vrot.slane %v6663, 1
        %v6783 = vrot.slane %v6664, 1
        %v6784 = vsel %vm6726, %v6782, %v6783
        %v6785 = vrot.slane %v6665, 1
        %v6786 = vsel %vm6726, %v6783, %v6785
        %v6787 = vrot.slane %v6666, 1
        %v6788 = vrot.slane %v6667, 1
        %v6789 = vsel %vm6726, %v6787, %v6788
        %v6790 = vrot.slane %v6668, 1
        %v6791 = vsel %vm6726, %v6788, %v6790
        %v6792 = vrot.slane %v6669, 1
        %v6793 = vrot.slane %v6670, 1
        %v6794 = vsel %vm6726, %v6792, %v6793
        %v6795 = vrot.slane %v6671, 1
        %v6796 = vsel %vm6726, %v6793, %v6795
        %v6797 = vrot.slane %v6672, 1
        %v6798 = vrot.slane %v6673, 1
        %v6799 = vsel %vm6726, %v6797, %v6798
        %v6800 = vrot.slane %v6674, 1
        %v6801 = vsel %vm6726, %v6798, %v6800
        %v6802 = vrot.slane %v6675, 1
        %v6803 = vrot.slane %v6676, 1
        %v6804 = vsel %vm6726, %v6802, %v6803
        %v6805 = vrot.slane %v6677, 1
        %v6806 = vsel %vm6726, %v6803, %v6805
        %v6839 = vadd.f32 %v6160, %v6729
        %v6840 = vadd.f32 %v6161, %v6731
        %v6841 = vadd.f32 %v6162, %v6734
        %v6842 = vadd.f32 %v6163, %v6736
        %v6843 = vadd.f32 %v6164, %v6739
        %v6844 = vadd.f32 %v6165, %v6741
        %v6845 = vadd.f32 %v6166, %v6744
        %v6846 = vadd.f32 %v6167, %v6746
        %v6847 = vadd.f32 %v6168, %v6749
        %v6848 = vadd.f32 %v6169, %v6751
        %v6849 = vadd.f32 %v6170, %v6754
        %v6850 = vadd.f32 %v6171, %v6756
        %v6851 = vadd.f32 %v6172, %v6759
        %v6852 = vadd.f32 %v6173, %v6761
        %v6853 = vadd.f32 %v6174, %v6764
        %v6854 = vadd.f32 %v6175, %v6766
        %v6855 = vadd.f32 %v6176, %v6769
        %v6856 = vadd.f32 %v6177, %v6771
        %v6857 = vadd.f32 %v6178, %v6774
        %v6858 = vadd.f32 %v6179, %v6776
        %v6859 = vadd.f32 %v6180, %v6779
        %v6860 = vadd.f32 %v6181, %v6781
        %v6861 = vadd.f32 %v6182, %v6784
        %v6862 = vadd.f32 %v6183, %v6786
        %v6863 = vadd.f32 %v6184, %v6789
        %v6864 = vadd.f32 %v6185, %v6791
        %v6865 = vadd.f32 %v6186, %v6794
        %v6866 = vadd.f32 %v6187, %v6796
        %v6867 = vadd.f32 %v6188, %v6799
        %v6868 = vadd.f32 %v6189, %v6801
        %v6869 = vadd.f32 %v6190, %v6804
        %v6870 = vadd.f32 %v6191, %v6806
        %s6871 = scalar_lea.vmem %s9, 32
        %v6872 = vld [vmem:[%s6871] sm:$0xf]
        %v6873 = vld [vmem:[%s6871 + $0x4] sm:$0xf]
        %v6874 = vld [vmem:[%s6871 + $0x8] sm:$0xf]
        %v6875 = vld [vmem:[%s6871 + $0xc] sm:$0xf]
        %s6876 = scalar_lea.vmem %s9, 80
        %v6877 = vld [vmem:[%s6876] sm:$0xf]
        %v6878 = vld [vmem:[%s6876 + $0x4] sm:$0xf]
        %v6879 = vld [vmem:[%s6876 + $0x8] sm:$0xf]
        %v6880 = vld [vmem:[%s6876 + $0xc] sm:$0xf]
        %v6885 = vunpack.c.l.b16 %v6877
        %v6886 = vunpack.c.l.b16 %v6878
        %v6887 = vunpack.c.l.b16 %v6879
        %v6888 = vunpack.c.l.b16 %v6880
        %v6889 = vpack.c.b16 %v6886, %v6885
        %v6890 = vpack.c.b16 %v6888, %v6887
        %6893 = vmatpush.bf16.msra.mxu0 0
        %6894 = vmatpush.bf16.msra.mxu0 0
        %6895 = vmatpush.bf16.msra.mxu0 0
        %6896 = vmatpush.bf16.msra.mxu0 0
        %6897 = vmatpush.bf16.msra.mxu0 0
        %6898 = vmatpush.bf16.msra.mxu0 0
        %6899 = vmatpush.bf16.msra.mxu0 %v6890
        %6900 = vmatpush.bf16.msra.mxu0 %v6889
        %6901 = vmatmul.bf16.gmra.mxu0 %v5288
        %v6902 = vpop.f32.mrf.mxu0
        %v6903 = vadd.f32 0.0, %v6902
        %v6904 = vpop.f32.mrf.mxu0
        %v6905 = vadd.f32 0.0, %v6904
        %6906 = vmatmul.bf16.gmra.mxu0 %v5291
        %v6907 = vpop.f32.mrf.mxu0
        %v6908 = vadd.f32 0.0, %v6907
        %v6909 = vpop.f32.mrf.mxu0
        %v6910 = vadd.f32 0.0, %v6909
        %6911 = vmatmul.bf16.gmra.mxu0 %v5294
        %v6912 = vpop.f32.mrf.mxu0
        %v6913 = vadd.f32 0.0, %v6912
        %v6914 = vpop.f32.mrf.mxu0
        %v6915 = vadd.f32 0.0, %v6914
        %6916 = vmatmul.bf16.gmra.mxu0 %v5297
        %v6917 = vpop.f32.mrf.mxu0
        %v6918 = vadd.f32 0.0, %v6917
        %v6919 = vpop.f32.mrf.mxu0
        %v6920 = vadd.f32 0.0, %v6919
        %6921 = vmatmul.bf16.gmra.mxu0 %v5300
        %v6922 = vpop.f32.mrf.mxu0
        %v6923 = vadd.f32 0.0, %v6922
        %v6924 = vpop.f32.mrf.mxu0
        %v6925 = vadd.f32 0.0, %v6924
        %6926 = vmatmul.bf16.gmra.mxu0 %v5303
        %v6927 = vpop.f32.mrf.mxu0
        %v6928 = vadd.f32 0.0, %v6927
        %v6929 = vpop.f32.mrf.mxu0
        %v6930 = vadd.f32 0.0, %v6929
        %6931 = vmatmul.bf16.gmra.mxu0 %v5306
        %v6932 = vpop.f32.mrf.mxu0
        %v6933 = vadd.f32 0.0, %v6932
        %v6934 = vpop.f32.mrf.mxu0
        %v6935 = vadd.f32 0.0, %v6934
        %6936 = vmatmul.bf16.gmra.mxu0 %v5309
        %v6937 = vpop.f32.mrf.mxu0
        %v6938 = vadd.f32 0.0, %v6937
        %v6939 = vpop.f32.mrf.mxu0
        %v6940 = vadd.f32 0.0, %v6939
        %6941 = vmatmul.bf16.gmra.mxu0 %v5312
        %v6942 = vpop.f32.mrf.mxu0
        %v6943 = vadd.f32 0.0, %v6942
        %v6944 = vpop.f32.mrf.mxu0
        %v6945 = vadd.f32 0.0, %v6944
        %6946 = vmatmul.bf16.gmra.mxu0 %v5315
        %v6947 = vpop.f32.mrf.mxu0
        %v6948 = vadd.f32 0.0, %v6947
        %v6949 = vpop.f32.mrf.mxu0
        %v6950 = vadd.f32 0.0, %v6949
        %6951 = vmatmul.bf16.gmra.mxu0 %v5318
        %v6952 = vpop.f32.mrf.mxu0
        %v6953 = vadd.f32 0.0, %v6952
        %v6954 = vpop.f32.mrf.mxu0
        %v6955 = vadd.f32 0.0, %v6954
        %6956 = vmatmul.bf16.gmra.mxu0 %v5321
        %v6957 = vpop.f32.mrf.mxu0
        %v6958 = vadd.f32 0.0, %v6957
        %v6959 = vpop.f32.mrf.mxu0
        %v6960 = vadd.f32 0.0, %v6959
        %6961 = vmatmul.bf16.gmra.mxu0 %v5324
        %v6962 = vpop.f32.mrf.mxu0
        %v6963 = vadd.f32 0.0, %v6962
        %v6964 = vpop.f32.mrf.mxu0
        %v6965 = vadd.f32 0.0, %v6964
        %6966 = vmatmul.bf16.gmra.mxu0 %v5327
        %v6967 = vpop.f32.mrf.mxu0
        %v6968 = vadd.f32 0.0, %v6967
        %v6969 = vpop.f32.mrf.mxu0
        %v6970 = vadd.f32 0.0, %v6969
        %6971 = vmatmul.bf16.gmra.mxu0 %v5330
        %v6972 = vpop.f32.mrf.mxu0
        %v6973 = vadd.f32 0.0, %v6972
        %v6974 = vpop.f32.mrf.mxu0
        %v6975 = vadd.f32 0.0, %v6974
        %6976 = vmatmul.bf16.gmra.mxu0 %v5333
        %v6977 = vpop.f32.mrf.mxu0
        %v6978 = vadd.f32 0.0, %v6977
        %v6979 = vpop.f32.mrf.mxu0
        %v6980 = vadd.f32 0.0, %v6979
        %6981 = vmatmul.bf16.gmra.mxu0 %v5336
        %v6982 = vpop.f32.mrf.mxu0
        %v6983 = vadd.f32 0.0, %v6982
        %v6984 = vpop.f32.mrf.mxu0
        %v6985 = vadd.f32 0.0, %v6984
        %6986 = vmatmul.bf16.gmra.mxu0 %v5339
        %v6987 = vpop.f32.mrf.mxu0
        %v6988 = vadd.f32 0.0, %v6987
        %v6989 = vpop.f32.mrf.mxu0
        %v6990 = vadd.f32 0.0, %v6989
        %6991 = vmatmul.bf16.gmra.mxu0 %v5342
        %v6992 = vpop.f32.mrf.mxu0
        %v6993 = vadd.f32 0.0, %v6992
        %v6994 = vpop.f32.mrf.mxu0
        %v6995 = vadd.f32 0.0, %v6994
        %6996 = vmatmul.bf16.gmra.mxu0 %v5345
        %v6997 = vpop.f32.mrf.mxu0
        %v6998 = vadd.f32 0.0, %v6997
        %v6999 = vpop.f32.mrf.mxu0
        %v7000 = vadd.f32 0.0, %v6999
        %7001 = vmatmul.bf16.gmra.mxu0 %v5348
        %v7002 = vpop.f32.mrf.mxu0
        %v7003 = vadd.f32 0.0, %v7002
        %v7004 = vpop.f32.mrf.mxu0
        %v7005 = vadd.f32 0.0, %v7004
        %7006 = vmatmul.bf16.gmra.mxu0 %v5351
        %v7007 = vpop.f32.mrf.mxu0
        %v7008 = vadd.f32 0.0, %v7007
        %v7009 = vpop.f32.mrf.mxu0
        %v7010 = vadd.f32 0.0, %v7009
        %7011 = vmatmul.bf16.gmra.mxu0 %v5354
        %v7012 = vpop.f32.mrf.mxu0
        %v7013 = vadd.f32 0.0, %v7012
        %v7014 = vpop.f32.mrf.mxu0
        %v7015 = vadd.f32 0.0, %v7014
        %7016 = vmatmul.bf16.gmra.mxu0 %v5357
        %v7017 = vpop.f32.mrf.mxu0
        %v7018 = vadd.f32 0.0, %v7017
        %v7019 = vpop.f32.mrf.mxu0
        %v7020 = vadd.f32 0.0, %v7019
        %7021 = vdwg.mxu0
        %v7026 = vunpack.c.l.b16 %v6872
        %v7027 = vunpack.c.l.b16 %v6873
        %v7028 = vunpack.c.l.b16 %v6874
        %v7029 = vunpack.c.l.b16 %v6875
        %v7030 = vpack.c.b16 %v7027, %v7026
        %v7031 = vpack.c.b16 %v7029, %v7028
        %7034 = vmatpush.bf16.msra.mxu0 0
        %7035 = vmatpush.bf16.msra.mxu0 0
        %7036 = vmatpush.bf16.msra.mxu0 0
        %7037 = vmatpush.bf16.msra.mxu0 0
        %7038 = vmatpush.bf16.msra.mxu0 0
        %7039 = vmatpush.bf16.msra.mxu0 0
        %7040 = vmatpush.bf16.msra.mxu0 %v7031
        %7041 = vmatpush.bf16.msra.mxu0 %v7030
        %7042 = vmatmul.bf16.gmra.mxu0 %v5605
        %v7043 = vpop.f32.mrf.mxu0
        %v7044 = vadd.f32 %v6903, %v7043
        %v7045 = vpop.f32.mrf.mxu0
        %v7046 = vadd.f32 %v6905, %v7045
        %7047 = vmatmul.bf16.gmra.mxu0 %v5608
        %v7048 = vpop.f32.mrf.mxu0
        %v7049 = vadd.f32 %v6908, %v7048
        %v7050 = vpop.f32.mrf.mxu0
        %v7051 = vadd.f32 %v6910, %v7050
        %7052 = vmatmul.bf16.gmra.mxu0 %v5611
        %v7053 = vpop.f32.mrf.mxu0
        %v7054 = vadd.f32 %v6913, %v7053
        %v7055 = vpop.f32.mrf.mxu0
        %v7056 = vadd.f32 %v6915, %v7055
        %7057 = vmatmul.bf16.gmra.mxu0 %v5614
        %v7058 = vpop.f32.mrf.mxu0
        %v7059 = vadd.f32 %v6918, %v7058
        %v7060 = vpop.f32.mrf.mxu0
        %v7061 = vadd.f32 %v6920, %v7060
        %7062 = vmatmul.bf16.gmra.mxu0 %v5617
        %v7063 = vpop.f32.mrf.mxu0
        %v7064 = vadd.f32 %v6923, %v7063
        %v7065 = vpop.f32.mrf.mxu0
        %v7066 = vadd.f32 %v6925, %v7065
        %7067 = vmatmul.bf16.gmra.mxu0 %v5620
        %v7068 = vpop.f32.mrf.mxu0
        %v7069 = vadd.f32 %v6928, %v7068
        %v7070 = vpop.f32.mrf.mxu0
        %v7071 = vadd.f32 %v6930, %v7070
        %7072 = vmatmul.bf16.gmra.mxu0 %v5623
        %v7073 = vpop.f32.mrf.mxu0
        %v7074 = vadd.f32 %v6933, %v7073
        %v7075 = vpop.f32.mrf.mxu0
        %v7076 = vadd.f32 %v6935, %v7075
        %7077 = vmatmul.bf16.gmra.mxu0 %v5626
        %v7078 = vpop.f32.mrf.mxu0
        %v7079 = vadd.f32 %v6938, %v7078
        %v7080 = vpop.f32.mrf.mxu0
        %v7081 = vadd.f32 %v6940, %v7080
        %7082 = vmatmul.bf16.gmra.mxu0 %v5629
        %v7083 = vpop.f32.mrf.mxu0
        %v7084 = vadd.f32 %v6943, %v7083
        %v7085 = vpop.f32.mrf.mxu0
        %v7086 = vadd.f32 %v6945, %v7085
        %7087 = vmatmul.bf16.gmra.mxu0 %v5632
        %v7088 = vpop.f32.mrf.mxu0
        %v7089 = vadd.f32 %v6948, %v7088
        %v7090 = vpop.f32.mrf.mxu0
        %v7091 = vadd.f32 %v6950, %v7090
        %7092 = vmatmul.bf16.gmra.mxu0 %v5635
        %v7093 = vpop.f32.mrf.mxu0
        %v7094 = vadd.f32 %v6953, %v7093
        %v7095 = vpop.f32.mrf.mxu0
        %v7096 = vadd.f32 %v6955, %v7095
        %7097 = vmatmul.bf16.gmra.mxu0 %v5638
        %v7098 = vpop.f32.mrf.mxu0
        %v7099 = vadd.f32 %v6958, %v7098
        %v7100 = vpop.f32.mrf.mxu0
        %v7101 = vadd.f32 %v6960, %v7100
        %7102 = vmatmul.bf16.gmra.mxu0 %v5641
        %v7103 = vpop.f32.mrf.mxu0
        %v7104 = vadd.f32 %v6963, %v7103
        %v7105 = vpop.f32.mrf.mxu0
        %v7106 = vadd.f32 %v6965, %v7105
        %7107 = vmatmul.bf16.gmra.mxu0 %v5644
        %v7108 = vpop.f32.mrf.mxu0
        %v7109 = vadd.f32 %v6968, %v7108
        %v7110 = vpop.f32.mrf.mxu0
        %v7111 = vadd.f32 %v6970, %v7110
        %7112 = vmatmul.bf16.gmra.mxu0 %v5647
        %v7113 = vpop.f32.mrf.mxu0
        %v7114 = vadd.f32 %v6973, %v7113
        %v7115 = vpop.f32.mrf.mxu0
        %v7116 = vadd.f32 %v6975, %v7115
        %7117 = vmatmul.bf16.gmra.mxu0 %v5650
        %v7118 = vpop.f32.mrf.mxu0
        %v7119 = vadd.f32 %v6978, %v7118
        %v7120 = vpop.f32.mrf.mxu0
        %v7121 = vadd.f32 %v6980, %v7120
        %7122 = vmatmul.bf16.gmra.mxu0 %v5653
        %v7123 = vpop.f32.mrf.mxu0
        %v7124 = vadd.f32 %v6983, %v7123
        %v7125 = vpop.f32.mrf.mxu0
        %v7126 = vadd.f32 %v6985, %v7125
        %7127 = vmatmul.bf16.gmra.mxu0 %v5656
        %v7128 = vpop.f32.mrf.mxu0
        %v7129 = vadd.f32 %v6988, %v7128
        %v7130 = vpop.f32.mrf.mxu0
        %v7131 = vadd.f32 %v6990, %v7130
        %7132 = vmatmul.bf16.gmra.mxu0 %v5659
        %v7133 = vpop.f32.mrf.mxu0
        %v7134 = vadd.f32 %v6993, %v7133
        %v7135 = vpop.f32.mrf.mxu0
        %v7136 = vadd.f32 %v6995, %v7135
        %7137 = vmatmul.bf16.gmra.mxu0 %v5662
        %v7138 = vpop.f32.mrf.mxu0
        %v7139 = vadd.f32 %v6998, %v7138
        %v7140 = vpop.f32.mrf.mxu0
        %v7141 = vadd.f32 %v7000, %v7140
        %7142 = vmatmul.bf16.gmra.mxu0 %v5665
        %v7143 = vpop.f32.mrf.mxu0
        %v7144 = vadd.f32 %v7003, %v7143
        %v7145 = vpop.f32.mrf.mxu0
        %v7146 = vadd.f32 %v7005, %v7145
        %7147 = vmatmul.bf16.gmra.mxu0 %v5668
        %v7148 = vpop.f32.mrf.mxu0
        %v7149 = vadd.f32 %v7008, %v7148
        %v7150 = vpop.f32.mrf.mxu0
        %v7151 = vadd.f32 %v7010, %v7150
        %7152 = vmatmul.bf16.gmra.mxu0 %v5671
        %v7153 = vpop.f32.mrf.mxu0
        %v7154 = vadd.f32 %v7013, %v7153
        %v7155 = vpop.f32.mrf.mxu0
        %v7156 = vadd.f32 %v7015, %v7155
        %7157 = vmatmul.bf16.gmra.mxu0 %v5674
        %v7158 = vpop.f32.mrf.mxu0
        %v7159 = vadd.f32 %v7018, %v7158
        %v7160 = vpop.f32.mrf.mxu0
        %v7161 = vadd.f32 %v7020, %v7160
        %7162 = vdwg.mxu0
        %s7163 = scalar_lea.vmem %s9, 128
        %v7164 = vld [vmem:[%s7163] sm:$0xf]
        %v7165 = vld [vmem:[%s7163 + $0x4] sm:$0xf]
        %v7166 = vld [vmem:[%s7163 + $0x8] sm:$0xf]
        %v7167 = vld [vmem:[%s7163 + $0xc] sm:$0xf]
        %v7172 = vunpack.c.l.b16 %v7164
        %v7173 = vunpack.c.l.b16 %v7165
        %v7174 = vunpack.c.l.b16 %v7166
        %v7175 = vunpack.c.l.b16 %v7167
        %v7176 = vpack.c.b16 %v7173, %v7172
        %v7177 = vpack.c.b16 %v7175, %v7174
        %7180 = vmatpush.bf16.msra.mxu0 0
        %7181 = vmatpush.bf16.msra.mxu0 0
        %7182 = vmatpush.bf16.msra.mxu0 0
        %7183 = vmatpush.bf16.msra.mxu0 0
        %7184 = vmatpush.bf16.msra.mxu0 0
        %7185 = vmatpush.bf16.msra.mxu0 0
        %7186 = vmatpush.bf16.msra.mxu0 %v7177
        %7187 = vmatpush.bf16.msra.mxu0 %v7176
        %7188 = vmatmul.bf16.gmra.mxu0 %v5976
        %v7189 = vpop.f32.mrf.mxu0
        %v7190 = vadd.f32 0.0, %v7189
        %v7191 = vpop.f32.mrf.mxu0
        %v7192 = vadd.f32 0.0, %v7191
        %7193 = vmatmul.bf16.gmra.mxu0 %v5979
        %v7194 = vpop.f32.mrf.mxu0
        %v7195 = vadd.f32 0.0, %v7194
        %v7196 = vpop.f32.mrf.mxu0
        %v7197 = vadd.f32 0.0, %v7196
        %7198 = vmatmul.bf16.gmra.mxu0 %v5982
        %v7199 = vpop.f32.mrf.mxu0
        %v7200 = vadd.f32 0.0, %v7199
        %v7201 = vpop.f32.mrf.mxu0
        %v7202 = vadd.f32 0.0, %v7201
        %7203 = vmatmul.bf16.gmra.mxu0 %v5985
        %v7204 = vpop.f32.mrf.mxu0
        %v7205 = vadd.f32 0.0, %v7204
        %v7206 = vpop.f32.mrf.mxu0
        %v7207 = vadd.f32 0.0, %v7206
        %7208 = vmatmul.bf16.gmra.mxu0 %v5988
        %v7209 = vpop.f32.mrf.mxu0
        %v7210 = vadd.f32 0.0, %v7209
        %v7211 = vpop.f32.mrf.mxu0
        %v7212 = vadd.f32 0.0, %v7211
        %7213 = vmatmul.bf16.gmra.mxu0 %v5991
        %v7214 = vpop.f32.mrf.mxu0
        %v7215 = vadd.f32 0.0, %v7214
        %v7216 = vpop.f32.mrf.mxu0
        %v7217 = vadd.f32 0.0, %v7216
        %7218 = vmatmul.bf16.gmra.mxu0 %v5994
        %v7219 = vpop.f32.mrf.mxu0
        %v7220 = vadd.f32 0.0, %v7219
        %v7221 = vpop.f32.mrf.mxu0
        %v7222 = vadd.f32 0.0, %v7221
        %7223 = vmatmul.bf16.gmra.mxu0 %v5997
        %v7224 = vpop.f32.mrf.mxu0
        %v7225 = vadd.f32 0.0, %v7224
        %v7226 = vpop.f32.mrf.mxu0
        %v7227 = vadd.f32 0.0, %v7226
        %7228 = vmatmul.bf16.gmra.mxu0 %v6000
        %v7229 = vpop.f32.mrf.mxu0
        %v7230 = vadd.f32 0.0, %v7229
        %v7231 = vpop.f32.mrf.mxu0
        %v7232 = vadd.f32 0.0, %v7231
        %7233 = vmatmul.bf16.gmra.mxu0 %v6003
        %v7234 = vpop.f32.mrf.mxu0
        %v7235 = vadd.f32 0.0, %v7234
        %v7236 = vpop.f32.mrf.mxu0
        %v7237 = vadd.f32 0.0, %v7236
        %7238 = vmatmul.bf16.gmra.mxu0 %v6006
        %v7239 = vpop.f32.mrf.mxu0
        %v7240 = vadd.f32 0.0, %v7239
        %v7241 = vpop.f32.mrf.mxu0
        %v7242 = vadd.f32 0.0, %v7241
        %7243 = vmatmul.bf16.gmra.mxu0 %v6009
        %v7244 = vpop.f32.mrf.mxu0
        %v7245 = vadd.f32 0.0, %v7244
        %v7246 = vpop.f32.mrf.mxu0
        %v7247 = vadd.f32 0.0, %v7246
        %7248 = vmatmul.bf16.gmra.mxu0 %v6012
        %v7249 = vpop.f32.mrf.mxu0
        %v7250 = vadd.f32 0.0, %v7249
        %v7251 = vpop.f32.mrf.mxu0
        %v7252 = vadd.f32 0.0, %v7251
        %7253 = vmatmul.bf16.gmra.mxu0 %v6015
        %v7254 = vpop.f32.mrf.mxu0
        %v7255 = vadd.f32 0.0, %v7254
        %v7256 = vpop.f32.mrf.mxu0
        %v7257 = vadd.f32 0.0, %v7256
        %7258 = vmatmul.bf16.gmra.mxu0 %v6018
        %v7259 = vpop.f32.mrf.mxu0
        %v7260 = vadd.f32 0.0, %v7259
        %v7261 = vpop.f32.mrf.mxu0
        %v7262 = vadd.f32 0.0, %v7261
        %7263 = vmatmul.bf16.gmra.mxu0 %v6021
        %v7264 = vpop.f32.mrf.mxu0
        %v7265 = vadd.f32 0.0, %v7264
        %v7266 = vpop.f32.mrf.mxu0
        %v7267 = vadd.f32 0.0, %v7266
        %7268 = vmatmul.bf16.gmra.mxu0 %v6024
        %v7269 = vpop.f32.mrf.mxu0
        %v7270 = vadd.f32 0.0, %v7269
        %v7271 = vpop.f32.mrf.mxu0
        %v7272 = vadd.f32 0.0, %v7271
        %7273 = vmatmul.bf16.gmra.mxu0 %v6027
        %v7274 = vpop.f32.mrf.mxu0
        %v7275 = vadd.f32 0.0, %v7274
        %v7276 = vpop.f32.mrf.mxu0
        %v7277 = vadd.f32 0.0, %v7276
        %7278 = vmatmul.bf16.gmra.mxu0 %v6030
        %v7279 = vpop.f32.mrf.mxu0
        %v7280 = vadd.f32 0.0, %v7279
        %v7281 = vpop.f32.mrf.mxu0
        %v7282 = vadd.f32 0.0, %v7281
        %7283 = vmatmul.bf16.gmra.mxu0 %v6033
        %v7284 = vpop.f32.mrf.mxu0
        %v7285 = vadd.f32 0.0, %v7284
        %v7286 = vpop.f32.mrf.mxu0
        %v7287 = vadd.f32 0.0, %v7286
        %7288 = vmatmul.bf16.gmra.mxu0 %v6036
        %v7289 = vpop.f32.mrf.mxu0
        %v7290 = vadd.f32 0.0, %v7289
        %v7291 = vpop.f32.mrf.mxu0
        %v7292 = vadd.f32 0.0, %v7291
        %7293 = vmatmul.bf16.gmra.mxu0 %v6039
        %v7294 = vpop.f32.mrf.mxu0
        %v7295 = vadd.f32 0.0, %v7294
        %v7296 = vpop.f32.mrf.mxu0
        %v7297 = vadd.f32 0.0, %v7296
        %7298 = vmatmul.bf16.gmra.mxu0 %v6042
        %v7299 = vpop.f32.mrf.mxu0
        %v7300 = vadd.f32 0.0, %v7299
        %v7301 = vpop.f32.mrf.mxu0
        %v7302 = vadd.f32 0.0, %v7301
        %7303 = vmatmul.bf16.gmra.mxu0 %v6045
        %v7304 = vpop.f32.mrf.mxu0
        %v7305 = vadd.f32 0.0, %v7304
        %v7306 = vpop.f32.mrf.mxu0
        %v7307 = vadd.f32 0.0, %v7306
        %7308 = vdwg.mxu0
        %v7309 = vadd.f32 %v7044, %v7190
        %v7310 = vadd.f32 %v7046, %v7192
        %v7311 = vadd.f32 %v7049, %v7195
        %v7312 = vadd.f32 %v7051, %v7197
        %v7313 = vadd.f32 %v7054, %v7200
        %v7314 = vadd.f32 %v7056, %v7202
        %v7315 = vadd.f32 %v7059, %v7205
        %v7316 = vadd.f32 %v7061, %v7207
        %v7317 = vadd.f32 %v7064, %v7210
        %v7318 = vadd.f32 %v7066, %v7212
        %v7319 = vadd.f32 %v7069, %v7215
        %v7320 = vadd.f32 %v7071, %v7217
        %v7321 = vadd.f32 %v7074, %v7220
        %v7322 = vadd.f32 %v7076, %v7222
        %v7323 = vadd.f32 %v7079, %v7225
        %v7324 = vadd.f32 %v7081, %v7227
        %v7325 = vadd.f32 %v7084, %v7230
        %v7326 = vadd.f32 %v7086, %v7232
        %v7327 = vadd.f32 %v7089, %v7235
        %v7328 = vadd.f32 %v7091, %v7237
        %v7329 = vadd.f32 %v7094, %v7240
        %v7330 = vadd.f32 %v7096, %v7242
        %v7331 = vadd.f32 %v7099, %v7245
        %v7332 = vadd.f32 %v7101, %v7247
        %v7333 = vadd.f32 %v7104, %v7250
        %v7334 = vadd.f32 %v7106, %v7252
        %v7335 = vadd.f32 %v7109, %v7255
        %v7336 = vadd.f32 %v7111, %v7257
        %v7337 = vadd.f32 %v7114, %v7260
        %v7338 = vadd.f32 %v7116, %v7262
        %v7339 = vadd.f32 %v7119, %v7265
        %v7340 = vadd.f32 %v7121, %v7267
        %v7341 = vadd.f32 %v7124, %v7270
        %v7342 = vadd.f32 %v7126, %v7272
        %v7343 = vadd.f32 %v7129, %v7275
        %v7344 = vadd.f32 %v7131, %v7277
        %v7345 = vadd.f32 %v7134, %v7280
        %v7346 = vadd.f32 %v7136, %v7282
        %v7347 = vadd.f32 %v7139, %v7285
        %v7348 = vadd.f32 %v7141, %v7287
        %v7349 = vadd.f32 %v7144, %v7290
        %v7350 = vadd.f32 %v7146, %v7292
        %v7351 = vadd.f32 %v7149, %v7295
        %v7352 = vadd.f32 %v7151, %v7297
        %v7353 = vadd.f32 %v7154, %v7300
        %v7354 = vadd.f32 %v7156, %v7302
        %v7355 = vadd.f32 %v7159, %v7305
        %v7356 = vadd.f32 %v7161, %v7307
        %vm7405 = vcmask 1045504
        %v7406 = vrot.slane %v7309, 2
        %v7407 = vrot.slane %v7310, 2
        %v7408 = vsel %vm7405, %v7406, %v7407
        %v7409 = vrot.slane %v7311, 2
        %v7410 = vsel %vm7405, %v7407, %v7409
        %v7411 = vrot.slane %v7312, 2
        %v7412 = vrot.slane %v7313, 2
        %v7413 = vsel %vm7405, %v7411, %v7412
        %v7414 = vrot.slane %v7314, 2
        %v7415 = vsel %vm7405, %v7412, %v7414
        %v7416 = vrot.slane %v7315, 2
        %v7417 = vrot.slane %v7316, 2
        %v7418 = vsel %vm7405, %v7416, %v7417
        %v7419 = vrot.slane %v7317, 2
        %v7420 = vsel %vm7405, %v7417, %v7419
        %v7421 = vrot.slane %v7318, 2
        %v7422 = vrot.slane %v7319, 2
        %v7423 = vsel %vm7405, %v7421, %v7422
        %v7424 = vrot.slane %v7320, 2
        %v7425 = vsel %vm7405, %v7422, %v7424
        %v7426 = vrot.slane %v7321, 2
        %v7427 = vrot.slane %v7322, 2
        %v7428 = vsel %vm7405, %v7426, %v7427
        %v7429 = vrot.slane %v7323, 2
        %v7430 = vsel %vm7405, %v7427, %v7429
        %v7431 = vrot.slane %v7324, 2
        %v7432 = vrot.slane %v7325, 2
        %v7433 = vsel %vm7405, %v7431, %v7432
        %v7434 = vrot.slane %v7326, 2
        %v7435 = vsel %vm7405, %v7432, %v7434
        %v7436 = vrot.slane %v7327, 2
        %v7437 = vrot.slane %v7328, 2
        %v7438 = vsel %vm7405, %v7436, %v7437
        %v7439 = vrot.slane %v7329, 2
        %v7440 = vsel %vm7405, %v7437, %v7439
        %v7441 = vrot.slane %v7330, 2
        %v7442 = vrot.slane %v7331, 2
        %v7443 = vsel %vm7405, %v7441, %v7442
        %v7444 = vrot.slane %v7332, 2
        %v7445 = vsel %vm7405, %v7442, %v7444
        %v7446 = vrot.slane %v7333, 2
        %v7447 = vrot.slane %v7334, 2
        %v7448 = vsel %vm7405, %v7446, %v7447
        %v7449 = vrot.slane %v7335, 2
        %v7450 = vsel %vm7405, %v7447, %v7449
        %v7451 = vrot.slane %v7336, 2
        %v7452 = vrot.slane %v7337, 2
        %v7453 = vsel %vm7405, %v7451, %v7452
        %v7454 = vrot.slane %v7338, 2
        %v7455 = vsel %vm7405, %v7452, %v7454
        %v7456 = vrot.slane %v7339, 2
        %v7457 = vrot.slane %v7340, 2
        %v7458 = vsel %vm7405, %v7456, %v7457
        %v7459 = vrot.slane %v7341, 2
        %v7460 = vsel %vm7405, %v7457, %v7459
        %v7461 = vrot.slane %v7342, 2
        %v7462 = vrot.slane %v7343, 2
        %v7463 = vsel %vm7405, %v7461, %v7462
        %v7464 = vrot.slane %v7344, 2
        %v7465 = vsel %vm7405, %v7462, %v7464
        %v7466 = vrot.slane %v7345, 2
        %v7467 = vrot.slane %v7346, 2
        %v7468 = vsel %vm7405, %v7466, %v7467
        %v7469 = vrot.slane %v7347, 2
        %v7470 = vsel %vm7405, %v7467, %v7469
        %v7471 = vrot.slane %v7348, 2
        %v7472 = vrot.slane %v7349, 2
        %v7473 = vsel %vm7405, %v7471, %v7472
        %v7474 = vrot.slane %v7350, 2
        %v7475 = vsel %vm7405, %v7472, %v7474
        %v7476 = vrot.slane %v7351, 2
        %v7477 = vrot.slane %v7352, 2
        %v7478 = vsel %vm7405, %v7476, %v7477
        %v7479 = vrot.slane %v7353, 2
        %v7480 = vsel %vm7405, %v7477, %v7479
        %v7481 = vrot.slane %v7354, 2
        %v7482 = vrot.slane %v7355, 2
        %v7483 = vsel %vm7405, %v7481, %v7482
        %v7484 = vrot.slane %v7356, 2
        %v7485 = vsel %vm7405, %v7482, %v7484
        %v7518 = vadd.f32 %v6839, %v7408
        %v7519 = vadd.f32 %v6840, %v7410
        %v7520 = vadd.f32 %v6841, %v7413
        %v7521 = vadd.f32 %v6842, %v7415
        %v7522 = vadd.f32 %v6843, %v7418
        %v7523 = vadd.f32 %v6844, %v7420
        %v7524 = vadd.f32 %v6845, %v7423
        %v7525 = vadd.f32 %v6846, %v7425
        %v7526 = vadd.f32 %v6847, %v7428
        %v7527 = vadd.f32 %v6848, %v7430
        %v7528 = vadd.f32 %v6849, %v7433
        %v7529 = vadd.f32 %v6850, %v7435
        %v7530 = vadd.f32 %v6851, %v7438
        %v7531 = vadd.f32 %v6852, %v7440
        %v7532 = vadd.f32 %v6853, %v7443
        %v7533 = vadd.f32 %v6854, %v7445
        %v7534 = vadd.f32 %v6855, %v7448
        %v7535 = vadd.f32 %v6856, %v7450
        %v7536 = vadd.f32 %v6857, %v7453
        %v7537 = vadd.f32 %v6858, %v7455
        %v7538 = vadd.f32 %v6859, %v7458
        %v7539 = vadd.f32 %v6860, %v7460
        %v7540 = vadd.f32 %v6861, %v7463
        %v7541 = vadd.f32 %v6862, %v7465
        %v7542 = vadd.f32 %v6863, %v7468
        %v7543 = vadd.f32 %v6864, %v7470
        %v7544 = vadd.f32 %v6865, %v7473
        %v7545 = vadd.f32 %v6866, %v7475
        %v7546 = vadd.f32 %v6867, %v7478
        %v7547 = vadd.f32 %v6868, %v7480
        %v7548 = vadd.f32 %v6869, %v7483
        %v7549 = vadd.f32 %v6870, %v7485
        %v7550 = vld [vmem:[%s10] sm:$0x1]
        %v7552 = vperm.slane %v7550, 0
        %v7554 = vadd.f32 %v7518, %v7552
        %v7555 = vadd.f32 %v7519, %v7552
        %v7556 = vadd.f32 %v7520, %v7552
        %v7557 = vadd.f32 %v7521, %v7552
        %v7558 = vadd.f32 %v7522, %v7552
        %v7559 = vadd.f32 %v7523, %v7552
        %v7560 = vadd.f32 %v7524, %v7552
        %v7561 = vadd.f32 %v7525, %v7552
        %v7562 = vadd.f32 %v7526, %v7552
        %v7563 = vadd.f32 %v7527, %v7552
        %v7564 = vadd.f32 %v7528, %v7552
        %v7565 = vadd.f32 %v7529, %v7552
        %v7566 = vadd.f32 %v7530, %v7552
        %v7567 = vadd.f32 %v7531, %v7552
        %v7568 = vadd.f32 %v7532, %v7552
        %v7569 = vadd.f32 %v7533, %v7552
        %v7570 = vadd.f32 %v7534, %v7552
        %v7571 = vadd.f32 %v7535, %v7552
        %v7572 = vadd.f32 %v7536, %v7552
        %v7573 = vadd.f32 %v7537, %v7552
        %v7574 = vadd.f32 %v7538, %v7552
        %v7575 = vadd.f32 %v7539, %v7552
        %v7576 = vadd.f32 %v7540, %v7552
        %v7577 = vadd.f32 %v7541, %v7552
        %v7578 = vadd.f32 %v7542, %v7552
        %v7579 = vadd.f32 %v7543, %v7552
        %v7580 = vadd.f32 %v7544, %v7552
        %v7581 = vadd.f32 %v7545, %v7552
        %v7582 = vadd.f32 %v7546, %v7552
        %v7583 = vadd.f32 %v7547, %v7552
        %v7584 = vadd.f32 %v7548, %v7552
        %v7585 = vadd.f32 %v7549, %v7552
        %v7586 = vxor.u32 %v7554, 2147483648
        %v7587 = vxor.u32 %v7555, 2147483648
        %v7588 = vxor.u32 %v7556, 2147483648
        %v7589 = vxor.u32 %v7557, 2147483648
        %v7590 = vxor.u32 %v7558, 2147483648
        %v7591 = vxor.u32 %v7559, 2147483648
        %v7592 = vxor.u32 %v7560, 2147483648
        %v7593 = vxor.u32 %v7561, 2147483648
        %v7594 = vxor.u32 %v7562, 2147483648
        %v7595 = vxor.u32 %v7563, 2147483648
        %v7596 = vxor.u32 %v7564, 2147483648
        %v7597 = vxor.u32 %v7565, 2147483648
        %v7598 = vxor.u32 %v7566, 2147483648
        %v7599 = vxor.u32 %v7567, 2147483648
        %v7600 = vxor.u32 %v7568, 2147483648
        %v7601 = vxor.u32 %v7569, 2147483648
        %v7602 = vxor.u32 %v7570, 2147483648
        %v7603 = vxor.u32 %v7571, 2147483648
        %v7604 = vxor.u32 %v7572, 2147483648
        %v7605 = vxor.u32 %v7573, 2147483648
        %v7606 = vxor.u32 %v7574, 2147483648
        %v7607 = vxor.u32 %v7575, 2147483648
        %v7608 = vxor.u32 %v7576, 2147483648
        %v7609 = vxor.u32 %v7577, 2147483648
        %v7610 = vxor.u32 %v7578, 2147483648
        %v7611 = vxor.u32 %v7579, 2147483648
        %v7612 = vxor.u32 %v7580, 2147483648
        %v7613 = vxor.u32 %v7581, 2147483648
        %v7614 = vxor.u32 %v7582, 2147483648
        %v7615 = vxor.u32 %v7583, 2147483648
        %v7616 = vxor.u32 %v7584, 2147483648
        %v7617 = vxor.u32 %v7585, 2147483648
        %v7618 = vmul.f32 %v7586, 1.442695
        %v7619 = vpow.pop %v7618
        %v7620 = vmul.f32 %v7587, 1.442695
        %v7621 = vpow.pop %v7620
        %v7622 = vmul.f32 %v7588, 1.442695
        %v7623 = vpow.pop %v7622
        %v7624 = vmul.f32 %v7589, 1.442695
        %v7625 = vpow.pop %v7624
        %v7626 = vmul.f32 %v7590, 1.442695
        %v7627 = vpow.pop %v7626
        %v7628 = vmul.f32 %v7591, 1.442695
        %v7629 = vpow.pop %v7628
        %v7630 = vmul.f32 %v7592, 1.442695
        %v7631 = vpow.pop %v7630
        %v7632 = vmul.f32 %v7593, 1.442695
        %v7633 = vpow.pop %v7632
        %v7634 = vmul.f32 %v7594, 1.442695
        %v7635 = vpow.pop %v7634
        %v7636 = vmul.f32 %v7595, 1.442695
        %v7637 = vpow.pop %v7636
        %v7638 = vmul.f32 %v7596, 1.442695
        %v7639 = vpow.pop %v7638
        %v7640 = vmul.f32 %v7597, 1.442695
        %v7641 = vpow.pop %v7640
        %v7642 = vmul.f32 %v7598, 1.442695
        %v7643 = vpow.pop %v7642
        %v7644 = vmul.f32 %v7599, 1.442695
        %v7645 = vpow.pop %v7644
        %v7646 = vmul.f32 %v7600, 1.442695
        %v7647 = vpow.pop %v7646
        %v7648 = vmul.f32 %v7601, 1.442695
        %v7649 = vpow.pop %v7648
        %v7650 = vmul.f32 %v7602, 1.442695
        %v7651 = vpow.pop %v7650
        %v7652 = vmul.f32 %v7603, 1.442695
        %v7653 = vpow.pop %v7652
        %v7654 = vmul.f32 %v7604, 1.442695
        %v7655 = vpow.pop %v7654
        %v7656 = vmul.f32 %v7605, 1.442695
        %v7657 = vpow.pop %v7656
        %v7658 = vmul.f32 %v7606, 1.442695
        %v7659 = vpow.pop %v7658
        %v7660 = vmul.f32 %v7607, 1.442695
        %v7661 = vpow.pop %v7660
        %v7662 = vmul.f32 %v7608, 1.442695
        %v7663 = vpow.pop %v7662
        %v7664 = vmul.f32 %v7609, 1.442695
        %v7665 = vpow.pop %v7664
        %v7666 = vmul.f32 %v7610, 1.442695
        %v7667 = vpow.pop %v7666
        %v7668 = vmul.f32 %v7611, 1.442695
        %v7669 = vpow.pop %v7668
        %v7670 = vmul.f32 %v7612, 1.442695
        %v7671 = vpow.pop %v7670
        %v7672 = vmul.f32 %v7613, 1.442695
        %v7673 = vpow.pop %v7672
        %v7674 = vmul.f32 %v7614, 1.442695
        %v7675 = vpow.pop %v7674
        %v7676 = vmul.f32 %v7615, 1.442695
        %v7677 = vpow.pop %v7676
        %v7678 = vmul.f32 %v7616, 1.442695
        %v7679 = vpow.pop %v7678
        %v7680 = vmul.f32 %v7617, 1.442695
        %v7681 = vpow.pop %v7680
        %v7682 = vadd.f32 %v7619, 1.0
        %v7683 = vadd.f32 %v7621, 1.0
        %v7684 = vadd.f32 %v7623, 1.0
        %v7685 = vadd.f32 %v7625, 1.0
        %v7686 = vadd.f32 %v7627, 1.0
        %v7687 = vadd.f32 %v7629, 1.0
        %v7688 = vadd.f32 %v7631, 1.0
        %v7689 = vadd.f32 %v7633, 1.0
        %v7690 = vadd.f32 %v7635, 1.0
        %v7691 = vadd.f32 %v7637, 1.0
        %v7692 = vadd.f32 %v7639, 1.0
        %v7693 = vadd.f32 %v7641, 1.0
        %v7694 = vadd.f32 %v7643, 1.0
        %v7695 = vadd.f32 %v7645, 1.0
        %v7696 = vadd.f32 %v7647, 1.0
        %v7697 = vadd.f32 %v7649, 1.0
        %v7698 = vadd.f32 %v7651, 1.0
        %v7699 = vadd.f32 %v7653, 1.0
        %v7700 = vadd.f32 %v7655, 1.0
        %v7701 = vadd.f32 %v7657, 1.0
        %v7702 = vadd.f32 %v7659, 1.0
        %v7703 = vadd.f32 %v7661, 1.0
        %v7704 = vadd.f32 %v7663, 1.0
        %v7705 = vadd.f32 %v7665, 1.0
        %v7706 = vadd.f32 %v7667, 1.0
        %v7707 = vadd.f32 %v7669, 1.0
        %v7708 = vadd.f32 %v7671, 1.0
        %v7709 = vadd.f32 %v7673, 1.0
        %v7710 = vadd.f32 %v7675, 1.0
        %v7711 = vadd.f32 %v7677, 1.0
        %v7712 = vadd.f32 %v7679, 1.0
        %v7713 = vadd.f32 %v7681, 1.0
        %v7714 = vrcp.pop %v7682
        %v7715 = vmul.f32 %v7682, %v7714
        %v7716 = vsub.f32 1.0, %v7715
        %v7717 = vmul.f32 %v7714, %v7716
        %v7718 = vadd.f32 %v7714, %v7717
        %vm7719 = vweird.f32 %v7682
        %vm7720 = vweird.f32 %v7714
        %vm7721 = vmor %vm7719, %vm7720
        %v7722 = vsel %vm7721, %v7714, %v7718
        %v7723 = vand.u32 2147483647, %v7682
        %vm7724 = vcmp.eq.f32.partialorder %v7723, 8.507059e+37
        %v7725 = vand.u32 %v7682, 2147483648
        %v7726 = vor.u32 1.1754944e-38, %v7725
        %v7727 = vsel %vm7724, %v7726, %v7722
        %v7728 = vmul.f32 1.0, %v7727
        %v7729 = vrcp.pop %v7683
        %v7730 = vmul.f32 %v7683, %v7729
        %v7731 = vsub.f32 1.0, %v7730
        %v7732 = vmul.f32 %v7729, %v7731
        %v7733 = vadd.f32 %v7729, %v7732
        %vm7734 = vweird.f32 %v7683
        %vm7735 = vweird.f32 %v7729
        %vm7736 = vmor %vm7734, %vm7735
        %v7737 = vsel %vm7736, %v7729, %v7733
        %v7738 = vand.u32 2147483647, %v7683
        %vm7739 = vcmp.eq.f32.partialorder %v7738, 8.507059e+37
        %v7740 = vand.u32 %v7683, 2147483648
        %v7741 = vor.u32 1.1754944e-38, %v7740
        %v7742 = vsel %vm7739, %v7741, %v7737
        %v7743 = vmul.f32 1.0, %v7742
        %v7744 = vrcp.pop %v7684
        %v7745 = vmul.f32 %v7684, %v7744
        %v7746 = vsub.f32 1.0, %v7745
        %v7747 = vmul.f32 %v7744, %v7746
        %v7748 = vadd.f32 %v7744, %v7747
        %vm7749 = vweird.f32 %v7684
        %vm7750 = vweird.f32 %v7744
        %vm7751 = vmor %vm7749, %vm7750
        %v7752 = vsel %vm7751, %v7744, %v7748
        %v7753 = vand.u32 2147483647, %v7684
        %vm7754 = vcmp.eq.f32.partialorder %v7753, 8.507059e+37
        %v7755 = vand.u32 %v7684, 2147483648
        %v7756 = vor.u32 1.1754944e-38, %v7755
        %v7757 = vsel %vm7754, %v7756, %v7752
        %v7758 = vmul.f32 1.0, %v7757
        %v7759 = vrcp.pop %v7685
        %v7760 = vmul.f32 %v7685, %v7759
        %v7761 = vsub.f32 1.0, %v7760
        %v7762 = vmul.f32 %v7759, %v7761
        %v7763 = vadd.f32 %v7759, %v7762
        %vm7764 = vweird.f32 %v7685
        %vm7765 = vweird.f32 %v7759
        %vm7766 = vmor %vm7764, %vm7765
        %v7767 = vsel %vm7766, %v7759, %v7763
        %v7768 = vand.u32 2147483647, %v7685
        %vm7769 = vcmp.eq.f32.partialorder %v7768, 8.507059e+37
        %v7770 = vand.u32 %v7685, 2147483648
        %v7771 = vor.u32 1.1754944e-38, %v7770
        %v7772 = vsel %vm7769, %v7771, %v7767
        %v7773 = vmul.f32 1.0, %v7772
        %v7774 = vrcp.pop %v7686
        %v7775 = vmul.f32 %v7686, %v7774
        %v7776 = vsub.f32 1.0, %v7775
        %v7777 = vmul.f32 %v7774, %v7776
        %v7778 = vadd.f32 %v7774, %v7777
        %vm7779 = vweird.f32 %v7686
        %vm7780 = vweird.f32 %v7774
        %vm7781 = vmor %vm7779, %vm7780
        %v7782 = vsel %vm7781, %v7774, %v7778
        %v7783 = vand.u32 2147483647, %v7686
        %vm7784 = vcmp.eq.f32.partialorder %v7783, 8.507059e+37
        %v7785 = vand.u32 %v7686, 2147483648
        %v7786 = vor.u32 1.1754944e-38, %v7785
        %v7787 = vsel %vm7784, %v7786, %v7782
        %v7788 = vmul.f32 1.0, %v7787
        %v7789 = vrcp.pop %v7687
        %v7790 = vmul.f32 %v7687, %v7789
        %v7791 = vsub.f32 1.0, %v7790
        %v7792 = vmul.f32 %v7789, %v7791
        %v7793 = vadd.f32 %v7789, %v7792
        %vm7794 = vweird.f32 %v7687
        %vm7795 = vweird.f32 %v7789
        %vm7796 = vmor %vm7794, %vm7795
        %v7797 = vsel %vm7796, %v7789, %v7793
        %v7798 = vand.u32 2147483647, %v7687
        %vm7799 = vcmp.eq.f32.partialorder %v7798, 8.507059e+37
        %v7800 = vand.u32 %v7687, 2147483648
        %v7801 = vor.u32 1.1754944e-38, %v7800
        %v7802 = vsel %vm7799, %v7801, %v7797
        %v7803 = vmul.f32 1.0, %v7802
        %v7804 = vrcp.pop %v7688
        %v7805 = vmul.f32 %v7688, %v7804
        %v7806 = vsub.f32 1.0, %v7805
        %v7807 = vmul.f32 %v7804, %v7806
        %v7808 = vadd.f32 %v7804, %v7807
        %vm7809 = vweird.f32 %v7688
        %vm7810 = vweird.f32 %v7804
        %vm7811 = vmor %vm7809, %vm7810
        %v7812 = vsel %vm7811, %v7804, %v7808
        %v7813 = vand.u32 2147483647, %v7688
        %vm7814 = vcmp.eq.f32.partialorder %v7813, 8.507059e+37
        %v7815 = vand.u32 %v7688, 2147483648
        %v7816 = vor.u32 1.1754944e-38, %v7815
        %v7817 = vsel %vm7814, %v7816, %v7812
        %v7818 = vmul.f32 1.0, %v7817
        %v7819 = vrcp.pop %v7689
        %v7820 = vmul.f32 %v7689, %v7819
        %v7821 = vsub.f32 1.0, %v7820
        %v7822 = vmul.f32 %v7819, %v7821
        %v7823 = vadd.f32 %v7819, %v7822
        %vm7824 = vweird.f32 %v7689
        %vm7825 = vweird.f32 %v7819
        %vm7826 = vmor %vm7824, %vm7825
        %v7827 = vsel %vm7826, %v7819, %v7823
        %v7828 = vand.u32 2147483647, %v7689
        %vm7829 = vcmp.eq.f32.partialorder %v7828, 8.507059e+37
        %v7830 = vand.u32 %v7689, 2147483648
        %v7831 = vor.u32 1.1754944e-38, %v7830
        %v7832 = vsel %vm7829, %v7831, %v7827
        %v7833 = vmul.f32 1.0, %v7832
        %v7834 = vrcp.pop %v7690
        %v7835 = vmul.f32 %v7690, %v7834
        %v7836 = vsub.f32 1.0, %v7835
        %v7837 = vmul.f32 %v7834, %v7836
        %v7838 = vadd.f32 %v7834, %v7837
        %vm7839 = vweird.f32 %v7690
        %vm7840 = vweird.f32 %v7834
        %vm7841 = vmor %vm7839, %vm7840
        %v7842 = vsel %vm7841, %v7834, %v7838
        %v7843 = vand.u32 2147483647, %v7690
        %vm7844 = vcmp.eq.f32.partialorder %v7843, 8.507059e+37
        %v7845 = vand.u32 %v7690, 2147483648
        %v7846 = vor.u32 1.1754944e-38, %v7845
        %v7847 = vsel %vm7844, %v7846, %v7842
        %v7848 = vmul.f32 1.0, %v7847
        %v7849 = vrcp.pop %v7691
        %v7850 = vmul.f32 %v7691, %v7849
        %v7851 = vsub.f32 1.0, %v7850
        %v7852 = vmul.f32 %v7849, %v7851
        %v7853 = vadd.f32 %v7849, %v7852
        %vm7854 = vweird.f32 %v7691
        %vm7855 = vweird.f32 %v7849
        %vm7856 = vmor %vm7854, %vm7855
        %v7857 = vsel %vm7856, %v7849, %v7853
        %v7858 = vand.u32 2147483647, %v7691
        %vm7859 = vcmp.eq.f32.partialorder %v7858, 8.507059e+37
        %v7860 = vand.u32 %v7691, 2147483648
        %v7861 = vor.u32 1.1754944e-38, %v7860
        %v7862 = vsel %vm7859, %v7861, %v7857
        %v7863 = vmul.f32 1.0, %v7862
        %v7864 = vrcp.pop %v7692
        %v7865 = vmul.f32 %v7692, %v7864
        %v7866 = vsub.f32 1.0, %v7865
        %v7867 = vmul.f32 %v7864, %v7866
        %v7868 = vadd.f32 %v7864, %v7867
        %vm7869 = vweird.f32 %v7692
        %vm7870 = vweird.f32 %v7864
        %vm7871 = vmor %vm7869, %vm7870
        %v7872 = vsel %vm7871, %v7864, %v7868
        %v7873 = vand.u32 2147483647, %v7692
        %vm7874 = vcmp.eq.f32.partialorder %v7873, 8.507059e+37
        %v7875 = vand.u32 %v7692, 2147483648
        %v7876 = vor.u32 1.1754944e-38, %v7875
        %v7877 = vsel %vm7874, %v7876, %v7872
        %v7878 = vmul.f32 1.0, %v7877
        %v7879 = vrcp.pop %v7693
        %v7880 = vmul.f32 %v7693, %v7879
        %v7881 = vsub.f32 1.0, %v7880
        %v7882 = vmul.f32 %v7879, %v7881
        %v7883 = vadd.f32 %v7879, %v7882
        %vm7884 = vweird.f32 %v7693
        %vm7885 = vweird.f32 %v7879
        %vm7886 = vmor %vm7884, %vm7885
        %v7887 = vsel %vm7886, %v7879, %v7883
        %v7888 = vand.u32 2147483647, %v7693
        %vm7889 = vcmp.eq.f32.partialorder %v7888, 8.507059e+37
        %v7890 = vand.u32 %v7693, 2147483648
        %v7891 = vor.u32 1.1754944e-38, %v7890
        %v7892 = vsel %vm7889, %v7891, %v7887
        %v7893 = vmul.f32 1.0, %v7892
        %v7894 = vrcp.pop %v7694
        %v7895 = vmul.f32 %v7694, %v7894
        %v7896 = vsub.f32 1.0, %v7895
        %v7897 = vmul.f32 %v7894, %v7896
        %v7898 = vadd.f32 %v7894, %v7897
        %vm7899 = vweird.f32 %v7694
        %vm7900 = vweird.f32 %v7894
        %vm7901 = vmor %vm7899, %vm7900
        %v7902 = vsel %vm7901, %v7894, %v7898
        %v7903 = vand.u32 2147483647, %v7694
        %vm7904 = vcmp.eq.f32.partialorder %v7903, 8.507059e+37
        %v7905 = vand.u32 %v7694, 2147483648
        %v7906 = vor.u32 1.1754944e-38, %v7905
        %v7907 = vsel %vm7904, %v7906, %v7902
        %v7908 = vmul.f32 1.0, %v7907
        %v7909 = vrcp.pop %v7695
        %v7910 = vmul.f32 %v7695, %v7909
        %v7911 = vsub.f32 1.0, %v7910
        %v7912 = vmul.f32 %v7909, %v7911
        %v7913 = vadd.f32 %v7909, %v7912
        %vm7914 = vweird.f32 %v7695
        %vm7915 = vweird.f32 %v7909
        %vm7916 = vmor %vm7914, %vm7915
        %v7917 = vsel %vm7916, %v7909, %v7913
        %v7918 = vand.u32 2147483647, %v7695
        %vm7919 = vcmp.eq.f32.partialorder %v7918, 8.507059e+37
        %v7920 = vand.u32 %v7695, 2147483648
        %v7921 = vor.u32 1.1754944e-38, %v7920
        %v7922 = vsel %vm7919, %v7921, %v7917
        %v7923 = vmul.f32 1.0, %v7922
        %v7924 = vrcp.pop %v7696
        %v7925 = vmul.f32 %v7696, %v7924
        %v7926 = vsub.f32 1.0, %v7925
        %v7927 = vmul.f32 %v7924, %v7926
        %v7928 = vadd.f32 %v7924, %v7927
        %vm7929 = vweird.f32 %v7696
        %vm7930 = vweird.f32 %v7924
        %vm7931 = vmor %vm7929, %vm7930
        %v7932 = vsel %vm7931, %v7924, %v7928
        %v7933 = vand.u32 2147483647, %v7696
        %vm7934 = vcmp.eq.f32.partialorder %v7933, 8.507059e+37
        %v7935 = vand.u32 %v7696, 2147483648
        %v7936 = vor.u32 1.1754944e-38, %v7935
        %v7937 = vsel %vm7934, %v7936, %v7932
        %v7938 = vmul.f32 1.0, %v7937
        %v7939 = vrcp.pop %v7697
        %v7940 = vmul.f32 %v7697, %v7939
        %v7941 = vsub.f32 1.0, %v7940
        %v7942 = vmul.f32 %v7939, %v7941
        %v7943 = vadd.f32 %v7939, %v7942
        %vm7944 = vweird.f32 %v7697
        %vm7945 = vweird.f32 %v7939
        %vm7946 = vmor %vm7944, %vm7945
        %v7947 = vsel %vm7946, %v7939, %v7943
        %v7948 = vand.u32 2147483647, %v7697
        %vm7949 = vcmp.eq.f32.partialorder %v7948, 8.507059e+37
        %v7950 = vand.u32 %v7697, 2147483648
        %v7951 = vor.u32 1.1754944e-38, %v7950
        %v7952 = vsel %vm7949, %v7951, %v7947
        %v7953 = vmul.f32 1.0, %v7952
        %v7954 = vrcp.pop %v7698
        %v7955 = vmul.f32 %v7698, %v7954
        %v7956 = vsub.f32 1.0, %v7955
        %v7957 = vmul.f32 %v7954, %v7956
        %v7958 = vadd.f32 %v7954, %v7957
        %vm7959 = vweird.f32 %v7698
        %vm7960 = vweird.f32 %v7954
        %vm7961 = vmor %vm7959, %vm7960
        %v7962 = vsel %vm7961, %v7954, %v7958
        %v7963 = vand.u32 2147483647, %v7698
        %vm7964 = vcmp.eq.f32.partialorder %v7963, 8.507059e+37
        %v7965 = vand.u32 %v7698, 2147483648
        %v7966 = vor.u32 1.1754944e-38, %v7965
        %v7967 = vsel %vm7964, %v7966, %v7962
        %v7968 = vmul.f32 1.0, %v7967
        %v7969 = vrcp.pop %v7699
        %v7970 = vmul.f32 %v7699, %v7969
        %v7971 = vsub.f32 1.0, %v7970
        %v7972 = vmul.f32 %v7969, %v7971
        %v7973 = vadd.f32 %v7969, %v7972
        %vm7974 = vweird.f32 %v7699
        %vm7975 = vweird.f32 %v7969
        %vm7976 = vmor %vm7974, %vm7975
        %v7977 = vsel %vm7976, %v7969, %v7973
        %v7978 = vand.u32 2147483647, %v7699
        %vm7979 = vcmp.eq.f32.partialorder %v7978, 8.507059e+37
        %v7980 = vand.u32 %v7699, 2147483648
        %v7981 = vor.u32 1.1754944e-38, %v7980
        %v7982 = vsel %vm7979, %v7981, %v7977
        %v7983 = vmul.f32 1.0, %v7982
        %v7984 = vrcp.pop %v7700
        %v7985 = vmul.f32 %v7700, %v7984
        %v7986 = vsub.f32 1.0, %v7985
        %v7987 = vmul.f32 %v7984, %v7986
        %v7988 = vadd.f32 %v7984, %v7987
        %vm7989 = vweird.f32 %v7700
        %vm7990 = vweird.f32 %v7984
        %vm7991 = vmor %vm7989, %vm7990
        %v7992 = vsel %vm7991, %v7984, %v7988
        %v7993 = vand.u32 2147483647, %v7700
        %vm7994 = vcmp.eq.f32.partialorder %v7993, 8.507059e+37
        %v7995 = vand.u32 %v7700, 2147483648
        %v7996 = vor.u32 1.1754944e-38, %v7995
        %v7997 = vsel %vm7994, %v7996, %v7992
        %v7998 = vmul.f32 1.0, %v7997
        %v7999 = vrcp.pop %v7701
        %v8000 = vmul.f32 %v7701, %v7999
        %v8001 = vsub.f32 1.0, %v8000
        %v8002 = vmul.f32 %v7999, %v8001
        %v8003 = vadd.f32 %v7999, %v8002
        %vm8004 = vweird.f32 %v7701
        %vm8005 = vweird.f32 %v7999
        %vm8006 = vmor %vm8004, %vm8005
        %v8007 = vsel %vm8006, %v7999, %v8003
        %v8008 = vand.u32 2147483647, %v7701
        %vm8009 = vcmp.eq.f32.partialorder %v8008, 8.507059e+37
        %v8010 = vand.u32 %v7701, 2147483648
        %v8011 = vor.u32 1.1754944e-38, %v8010
        %v8012 = vsel %vm8009, %v8011, %v8007
        %v8013 = vmul.f32 1.0, %v8012
        %v8014 = vrcp.pop %v7702
        %v8015 = vmul.f32 %v7702, %v8014
        %v8016 = vsub.f32 1.0, %v8015
        %v8017 = vmul.f32 %v8014, %v8016
        %v8018 = vadd.f32 %v8014, %v8017
        %vm8019 = vweird.f32 %v7702
        %vm8020 = vweird.f32 %v8014
        %vm8021 = vmor %vm8019, %vm8020
        %v8022 = vsel %vm8021, %v8014, %v8018
        %v8023 = vand.u32 2147483647, %v7702
        %vm8024 = vcmp.eq.f32.partialorder %v8023, 8.507059e+37
        %v8025 = vand.u32 %v7702, 2147483648
        %v8026 = vor.u32 1.1754944e-38, %v8025
        %v8027 = vsel %vm8024, %v8026, %v8022
        %v8028 = vmul.f32 1.0, %v8027
        %v8029 = vrcp.pop %v7703
        %v8030 = vmul.f32 %v7703, %v8029
        %v8031 = vsub.f32 1.0, %v8030
        %v8032 = vmul.f32 %v8029, %v8031
        %v8033 = vadd.f32 %v8029, %v8032
        %vm8034 = vweird.f32 %v7703
        %vm8035 = vweird.f32 %v8029
        %vm8036 = vmor %vm8034, %vm8035
        %v8037 = vsel %vm8036, %v8029, %v8033
        %v8038 = vand.u32 2147483647, %v7703
        %vm8039 = vcmp.eq.f32.partialorder %v8038, 8.507059e+37
        %v8040 = vand.u32 %v7703, 2147483648
        %v8041 = vor.u32 1.1754944e-38, %v8040
        %v8042 = vsel %vm8039, %v8041, %v8037
        %v8043 = vmul.f32 1.0, %v8042
        %v8044 = vrcp.pop %v7704
        %v8045 = vmul.f32 %v7704, %v8044
        %v8046 = vsub.f32 1.0, %v8045
        %v8047 = vmul.f32 %v8044, %v8046
        %v8048 = vadd.f32 %v8044, %v8047
        %vm8049 = vweird.f32 %v7704
        %vm8050 = vweird.f32 %v8044
        %vm8051 = vmor %vm8049, %vm8050
        %v8052 = vsel %vm8051, %v8044, %v8048
        %v8053 = vand.u32 2147483647, %v7704
        %vm8054 = vcmp.eq.f32.partialorder %v8053, 8.507059e+37
        %v8055 = vand.u32 %v7704, 2147483648
        %v8056 = vor.u32 1.1754944e-38, %v8055
        %v8057 = vsel %vm8054, %v8056, %v8052
        %v8058 = vmul.f32 1.0, %v8057
        %v8059 = vrcp.pop %v7705
        %v8060 = vmul.f32 %v7705, %v8059
        %v8061 = vsub.f32 1.0, %v8060
        %v8062 = vmul.f32 %v8059, %v8061
        %v8063 = vadd.f32 %v8059, %v8062
        %vm8064 = vweird.f32 %v7705
        %vm8065 = vweird.f32 %v8059
        %vm8066 = vmor %vm8064, %vm8065
        %v8067 = vsel %vm8066, %v8059, %v8063
        %v8068 = vand.u32 2147483647, %v7705
        %vm8069 = vcmp.eq.f32.partialorder %v8068, 8.507059e+37
        %v8070 = vand.u32 %v7705, 2147483648
        %v8071 = vor.u32 1.1754944e-38, %v8070
        %v8072 = vsel %vm8069, %v8071, %v8067
        %v8073 = vmul.f32 1.0, %v8072
        %v8074 = vrcp.pop %v7706
        %v8075 = vmul.f32 %v7706, %v8074
        %v8076 = vsub.f32 1.0, %v8075
        %v8077 = vmul.f32 %v8074, %v8076
        %v8078 = vadd.f32 %v8074, %v8077
        %vm8079 = vweird.f32 %v7706
        %vm8080 = vweird.f32 %v8074
        %vm8081 = vmor %vm8079, %vm8080
        %v8082 = vsel %vm8081, %v8074, %v8078
        %v8083 = vand.u32 2147483647, %v7706
        %vm8084 = vcmp.eq.f32.partialorder %v8083, 8.507059e+37
        %v8085 = vand.u32 %v7706, 2147483648
        %v8086 = vor.u32 1.1754944e-38, %v8085
        %v8087 = vsel %vm8084, %v8086, %v8082
        %v8088 = vmul.f32 1.0, %v8087
        %v8089 = vrcp.pop %v7707
        %v8090 = vmul.f32 %v7707, %v8089
        %v8091 = vsub.f32 1.0, %v8090
        %v8092 = vmul.f32 %v8089, %v8091
        %v8093 = vadd.f32 %v8089, %v8092
        %vm8094 = vweird.f32 %v7707
        %vm8095 = vweird.f32 %v8089
        %vm8096 = vmor %vm8094, %vm8095
        %v8097 = vsel %vm8096, %v8089, %v8093
        %v8098 = vand.u32 2147483647, %v7707
        %vm8099 = vcmp.eq.f32.partialorder %v8098, 8.507059e+37
        %v8100 = vand.u32 %v7707, 2147483648
        %v8101 = vor.u32 1.1754944e-38, %v8100
        %v8102 = vsel %vm8099, %v8101, %v8097
        %v8103 = vmul.f32 1.0, %v8102
        %v8104 = vrcp.pop %v7708
        %v8105 = vmul.f32 %v7708, %v8104
        %v8106 = vsub.f32 1.0, %v8105
        %v8107 = vmul.f32 %v8104, %v8106
        %v8108 = vadd.f32 %v8104, %v8107
        %vm8109 = vweird.f32 %v7708
        %vm8110 = vweird.f32 %v8104
        %vm8111 = vmor %vm8109, %vm8110
        %v8112 = vsel %vm8111, %v8104, %v8108
        %v8113 = vand.u32 2147483647, %v7708
        %vm8114 = vcmp.eq.f32.partialorder %v8113, 8.507059e+37
        %v8115 = vand.u32 %v7708, 2147483648
        %v8116 = vor.u32 1.1754944e-38, %v8115
        %v8117 = vsel %vm8114, %v8116, %v8112
        %v8118 = vmul.f32 1.0, %v8117
        %v8119 = vrcp.pop %v7709
        %v8120 = vmul.f32 %v7709, %v8119
        %v8121 = vsub.f32 1.0, %v8120
        %v8122 = vmul.f32 %v8119, %v8121
        %v8123 = vadd.f32 %v8119, %v8122
        %vm8124 = vweird.f32 %v7709
        %vm8125 = vweird.f32 %v8119
        %vm8126 = vmor %vm8124, %vm8125
        %v8127 = vsel %vm8126, %v8119, %v8123
        %v8128 = vand.u32 2147483647, %v7709
        %vm8129 = vcmp.eq.f32.partialorder %v8128, 8.507059e+37
        %v8130 = vand.u32 %v7709, 2147483648
        %v8131 = vor.u32 1.1754944e-38, %v8130
        %v8132 = vsel %vm8129, %v8131, %v8127
        %v8133 = vmul.f32 1.0, %v8132
        %v8134 = vrcp.pop %v7710
        %v8135 = vmul.f32 %v7710, %v8134
        %v8136 = vsub.f32 1.0, %v8135
        %v8137 = vmul.f32 %v8134, %v8136
        %v8138 = vadd.f32 %v8134, %v8137
        %vm8139 = vweird.f32 %v7710
        %vm8140 = vweird.f32 %v8134
        %vm8141 = vmor %vm8139, %vm8140
        %v8142 = vsel %vm8141, %v8134, %v8138
        %v8143 = vand.u32 2147483647, %v7710
        %vm8144 = vcmp.eq.f32.partialorder %v8143, 8.507059e+37
        %v8145 = vand.u32 %v7710, 2147483648
        %v8146 = vor.u32 1.1754944e-38, %v8145
        %v8147 = vsel %vm8144, %v8146, %v8142
        %v8148 = vmul.f32 1.0, %v8147
        %v8149 = vrcp.pop %v7711
        %v8150 = vmul.f32 %v7711, %v8149
        %v8151 = vsub.f32 1.0, %v8150
        %v8152 = vmul.f32 %v8149, %v8151
        %v8153 = vadd.f32 %v8149, %v8152
        %vm8154 = vweird.f32 %v7711
        %vm8155 = vweird.f32 %v8149
        %vm8156 = vmor %vm8154, %vm8155
        %v8157 = vsel %vm8156, %v8149, %v8153
        %v8158 = vand.u32 2147483647, %v7711
        %vm8159 = vcmp.eq.f32.partialorder %v8158, 8.507059e+37
        %v8160 = vand.u32 %v7711, 2147483648
        %v8161 = vor.u32 1.1754944e-38, %v8160
        %v8162 = vsel %vm8159, %v8161, %v8157
        %v8163 = vmul.f32 1.0, %v8162
        %v8164 = vrcp.pop %v7712
        %v8165 = vmul.f32 %v7712, %v8164
        %v8166 = vsub.f32 1.0, %v8165
        %v8167 = vmul.f32 %v8164, %v8166
        %v8168 = vadd.f32 %v8164, %v8167
        %vm8169 = vweird.f32 %v7712
        %vm8170 = vweird.f32 %v8164
        %vm8171 = vmor %vm8169, %vm8170
        %v8172 = vsel %vm8171, %v8164, %v8168
        %v8173 = vand.u32 2147483647, %v7712
        %vm8174 = vcmp.eq.f32.partialorder %v8173, 8.507059e+37
        %v8175 = vand.u32 %v7712, 2147483648
        %v8176 = vor.u32 1.1754944e-38, %v8175
        %v8177 = vsel %vm8174, %v8176, %v8172
        %v8178 = vmul.f32 1.0, %v8177
        %v8179 = vrcp.pop %v7713
        %v8180 = vmul.f32 %v7713, %v8179
        %v8181 = vsub.f32 1.0, %v8180
        %v8182 = vmul.f32 %v8179, %v8181
        %v8183 = vadd.f32 %v8179, %v8182
        %vm8184 = vweird.f32 %v7713
        %vm8185 = vweird.f32 %v8179
        %vm8186 = vmor %vm8184, %vm8185
        %v8187 = vsel %vm8186, %v8179, %v8183
        %v8188 = vand.u32 2147483647, %v7713
        %vm8189 = vcmp.eq.f32.partialorder %v8188, 8.507059e+37
        %v8190 = vand.u32 %v7713, 2147483648
        %v8191 = vor.u32 1.1754944e-38, %v8190
        %v8192 = vsel %vm8189, %v8191, %v8187
        %v8193 = vmul.f32 1.0, %v8192
        %v8194 = vmul.f32 %v7554, %v7728
        %v8195 = vmul.f32 %v7555, %v7743
        %v8196 = vmul.f32 %v7556, %v7758
        %v8197 = vmul.f32 %v7557, %v7773
        %v8198 = vmul.f32 %v7558, %v7788
        %v8199 = vmul.f32 %v7559, %v7803
        %v8200 = vmul.f32 %v7560, %v7818
        %v8201 = vmul.f32 %v7561, %v7833
        %v8202 = vmul.f32 %v7562, %v7848
        %v8203 = vmul.f32 %v7563, %v7863
        %v8204 = vmul.f32 %v7564, %v7878
        %v8205 = vmul.f32 %v7565, %v7893
        %v8206 = vmul.f32 %v7566, %v7908
        %v8207 = vmul.f32 %v7567, %v7923
        %v8208 = vmul.f32 %v7568, %v7938
        %v8209 = vmul.f32 %v7569, %v7953
        %v8210 = vmul.f32 %v7570, %v7968
        %v8211 = vmul.f32 %v7571, %v7983
        %v8212 = vmul.f32 %v7572, %v7998
        %v8213 = vmul.f32 %v7573, %v8013
        %v8214 = vmul.f32 %v7574, %v8028
        %v8215 = vmul.f32 %v7575, %v8043
        %v8216 = vmul.f32 %v7576, %v8058
        %v8217 = vmul.f32 %v7577, %v8073
        %v8218 = vmul.f32 %v7578, %v8088
        %v8219 = vmul.f32 %v7579, %v8103
        %v8220 = vmul.f32 %v7580, %v8118
        %v8221 = vmul.f32 %v7581, %v8133
        %v8222 = vmul.f32 %v7582, %v8148
        %v8223 = vmul.f32 %v7583, %v8163
        %v8224 = vmul.f32 %v7584, %v8178
        %v8225 = vmul.f32 %v7585, %v8193
        %8226 = vst.msk [vmem:[%s421] sm:$0xff] %vm500, %v8194
        %8227 = vst.msk [vmem:[%s421 + $0x8] sm:$0xff] %vm500, %v8195
        %8228 = vst.msk [vmem:[%s421 + $0x10] sm:$0xff] %vm500, %v8196
        %8229 = vst.msk [vmem:[%s421 + $0x18] sm:$0xff] %vm500, %v8197
        %8230 = vst.msk [vmem:[%s421 + $0x20] sm:$0xff] %vm500, %v8198
        %8231 = vst.msk [vmem:[%s421 + $0x28] sm:$0xff] %vm500, %v8199
        %8232 = vst.msk [vmem:[%s421 + $0x30] sm:$0xff] %vm500, %v8200
        %8233 = vst.msk [vmem:[%s421 + $0x38] sm:$0xff] %vm500, %v8201
        %8234 = vst.msk [vmem:[%s421 + $0x40] sm:$0xff] %vm500, %v8202
        %8235 = vst.msk [vmem:[%s421 + $0x48] sm:$0xff] %vm500, %v8203
        %8236 = vst.msk [vmem:[%s421 + $0x50] sm:$0xff] %vm500, %v8204
        %8237 = vst.msk [vmem:[%s421 + $0x58] sm:$0xff] %vm500, %v8205
        %8238 = vst.msk [vmem:[%s421 + $0x60] sm:$0xff] %vm500, %v8206
        %8239 = vst.msk [vmem:[%s421 + $0x68] sm:$0xff] %vm500, %v8207
        %8240 = vst.msk [vmem:[%s421 + $0x70] sm:$0xff] %vm500, %v8208
        %8241 = vst.msk [vmem:[%s421 + $0x78] sm:$0xff] %vm500, %v8209
        %8242 = vst.msk [vmem:[%s421 + $0x80] sm:$0xff] %vm500, %v8210
        %8243 = vst.msk [vmem:[%s421 + $0x88] sm:$0xff] %vm500, %v8211
        %8244 = vst.msk [vmem:[%s421 + $0x90] sm:$0xff] %vm500, %v8212
        %8245 = vst.msk [vmem:[%s421 + $0x98] sm:$0xff] %vm500, %v8213
        %8246 = vst.msk [vmem:[%s421 + $0xa0] sm:$0xff] %vm500, %v8214
        %8247 = vst.msk [vmem:[%s421 + $0xa8] sm:$0xff] %vm500, %v8215
        %8248 = vst.msk [vmem:[%s421 + $0xb0] sm:$0xff] %vm500, %v8216
        %8249 = vst.msk [vmem:[%s421 + $0xb8] sm:$0xff] %vm500, %v8217
        %8250 = vst.msk [vmem:[%s421 + $0xc0] sm:$0xff] %vm500, %v8218
        %8251 = vst.msk [vmem:[%s421 + $0xc8] sm:$0xff] %vm500, %v8219
        %8252 = vst.msk [vmem:[%s421 + $0xd0] sm:$0xff] %vm500, %v8220
        %8253 = vst.msk [vmem:[%s421 + $0xd8] sm:$0xff] %vm500, %v8221
        %8254 = vst.msk [vmem:[%s421 + $0xe0] sm:$0xff] %vm500, %v8222
        %8255 = vst.msk [vmem:[%s421 + $0xe8] sm:$0xff] %vm500, %v8223
        %8256 = vst.msk [vmem:[%s421 + $0xf0] sm:$0xff] %vm500, %v8224
        %8257 = vst.msk [vmem:[%s421 + $0xf8] sm:$0xff] %vm500, %v8225
        %s8258 = sand.u32 %s277, 1
        %s8259 = scalar_lea.sflag [#allocation5], %s8258
        %s8260 = sand.u32 %s277, 1
        %s8261 = smul.addr %s8260, 256
        %s8262 = scalar_lea.vmem [#allocation6], %s8261
        // Predicated region
        $region69: #{asff_forward.1} parent=63 // pred_check
          %p8263 = pneg %p287
        $region70: #{asff_forward.1} parent=63 // pred_check_branch
          %8265 = sbr.rel (%p8263) target = $region72
        $region71: #{asff_forward.1} parent=63 // pred_region
          %8267 = vsyncadd %s8259, 0
          %s8268 = smul.addr %s28, 32
          %s8269 = smul.addr %s8268, 8
          %s8270 = scalar_lea.hbm %s11, %s8269
          %s8271 = sshll.u32 %s8262, 4
          %s8272 = int_to_ptr.vmem [resolvable:$true] %s8271
          %s8273 = sshll.u32 %s8270, 4
          %s8274 = int_to_ptr.hbm [resolvable:$true] %s8273
          %8279 = dma.vmem_to_hbm [thread:$0]  %s8272, 4096, %s8274, %s8259, 128, 128, 8
        $region72: #{asff_forward.1} parent=63 // pred_fallthru
          _
      $region64: #{asff_forward.1} parent=5 // pred_fallthru
        _
      %p8280 = scmp.le.s32.totalorder 2, %s23
      // Predicated region
      $region73: #{asff_forward.1} parent=5 // pred_check
        %p8281 = pneg %p8280
      $region74: #{asff_forward.1} parent=5 // pred_check_branch
        %8283 = sbr.rel (%p8281) target = $region76
      $region75: #{asff_forward.1} parent=5 // pred_region
        %s8284 = ssub.s32 %s23, 2
        // Predicated region
        $region77: #{asff_forward.1} parent=75 // pred_check
          %p8285 = pneg %p293
        $region78: #{asff_forward.1} parent=75 // pred_check_branch
          %8287 = sbr.rel (%p8285) target = $region80
        $region79: #{asff_forward.1} parent=75 // pred_region
          %s8288 = sand.u32 %s278, 1
          %s8289 = scalar_lea.sflag [#allocation5], %s8288
          %s8290 = sand.u32 %s278, 1
          %s8291 = smul.addr %s8290, 256
          %s8292 = scalar_lea.vmem [#allocation6], %s8291
          %8294 = dma.done %s8289, 4096
        $region80: #{asff_forward.1} parent=75 // pred_fallthru
          _
      $region76: #{asff_forward.1} parent=5 // pred_fallthru
        _
    $region6: #{asff_forward.1} parent=1 // loop_footer
      %s27 = sadd.s32 1, %s23
    $region7: #{asff_forward.1} parent=1 // loop_footer_branch
      %22 = sbr.rel target = $region3
    $region8: #{asff_forward.1} parent=1 // loop_exit
      _
    %8295 = vsyncpa [#allocation4], 1
    %s8296 = scalar_lea.sflag [#allocation4], 1
    %8297 = vsyncpa %s8296, 1
    %8298 = vsyncpa [#allocation5], 1
    %s8299 = scalar_lea.sflag [#allocation5], 1
    %8300 = vsyncpa %s8299, 1

</llo_original>
